<compile_context>
chip_gen: v7x
topology: tpu7x:2x2x1
jax: 0.10.0
libtpu: 0.0.40
codegen_flags: <defaults>
</compile_context>

<pallas_src>
import functools

import jax
import jax.numpy as jnp
from jax.experimental import pallas as pl
from jax.experimental.pallas import tpu as pltpu

HIDDEN_DIM = 64
ODE_HIDDEN = 50
ODE_PAD = 64          # zero-padded ODE hidden width (layout friendly)
NUM_CLASSES = 10
OUT_PAD = 128         # lane-dense padded logits width (sliced back to 10)
RK4_STEPS = 8
CONV_TB = 32          # images per conv grid step (VMEM use stays tiny)
HEAD_TB = 256         # batch rows per head grid step
_VMEM_LIMIT = 32 * 1024 * 1024   # safe on v7x (64 MiB phys); v5e/v6e have headroom


def _round_up(x, m):
    return (x + m - 1) // m * m


def _batch_tile(B, cap, align=1):
    """Largest tile <= cap that keeps >= 2 grid steps (v7x megacore) for B >= 2."""
    if B <= 1:
        return align
    t = max(1, min(cap, B // 2))
    return _round_up(t, align) if align > 1 else t


# ----------------------------------------------------------------------------
# Conv 3x3 (pad=1) + bias + ReLU.  im2col is fused in-kernel; the transposed
# matmul makes the stored output's last dim H*(W+2) >= 128 (lane-dense stores).
# Each grid step handles TB images; weights/bias stay resident across them.
# ----------------------------------------------------------------------------
def _conv3x3_kernel(x_ref, w_ref, b_ref, o_ref, patches_ref, *, H, W, Cin, TB):
    Wp = W + 2
    HWp = H * Wp
    w = w_ref[...]                       # (Cout, 9*Cin) bf16, hoisted
    b = b_ref[...]                       # (Cout, 1) f32, hoisted
    for i in range(TB):                  # unrolled over the image tile
        x = x_ref[i]                     # (Cin, (H+3)*(W+2)) bf16
        # Patch matrix (rows ordered (kh, kw, cin)) from 9 static lane-shifted
        # slices of the zero-padded, spatially-flattened image.
        for k in range(9):
            di, dj = k // 3, k % 3
            off = di * Wp + dj
            patches_ref[pl.ds(k * Cin, Cin), :] = (
                x[:, off:off + HWp].astype(patches_ref.dtype))
        # One MXU matmul (bf16 inputs, f32 accumulate); bias + ReLU in f32.
        acc = jnp.dot(w, patches_ref[...].astype(jnp.bfloat16),
                      preferred_element_type=jnp.float32)    # (Cout, HWp)
        o_ref[i] = jnp.maximum(acc + b, 0.0).astype(o_ref.dtype)


def conv3x3_relu(x_nchw, w_pt, b):
    """x_nchw: (B, Cin, H, W).  w_pt: PyTorch layout (Cout, Cin, 3, 3).
    Returns (B, Cout, H, W) bf16 (conv stride 1, pad 1, + bias, ReLU)."""
    B, Cin, H, W = x_nchw.shape
    Cout = w_pt.shape[0]
    Wp = W + 2
    HWp = H * Wp
    P2 = (H + 3) * Wp

    TB = _batch_tile(B, CONV_TB)
    bp = _round_up(B, TB)

    # Zero-pad (batch -> bp, top 1, bottom 2, left 1, right 1) and flatten the
    # spatial dims.  Same-size layout plumbing only -- no 9x patch blow-up.
    xp = jnp.pad(x_nchw, ((0, bp - B), (0, 0), (1, 2), (1, 1)))
    xp = xp.reshape(bp, Cin, P2).astype(jnp.bfloat16)

    # (Cout, 9*Cin), columns ordered (kh, kw, cin) to match the patch rows.
    wm = jnp.transpose(w_pt, (0, 2, 3, 1)).reshape(Cout, 9 * Cin)
    wm = wm.astype(jnp.bfloat16)
    bm = b.reshape(Cout, 1).astype(jnp.float32)

    # conv2 (Cin=16): bf16 scratch, every patch-row store is 16-row aligned.
    # conv1 (Cin=1): tiny f32 scratch (single-row masked stores; proven path).
    patch_dtype = jnp.bfloat16 if Cin % 8 == 0 else jnp.float32

    kernel = functools.partial(_conv3x3_kernel, H=H, W=W, Cin=Cin, TB=TB)
    flops = 2 * bp * Cout * 9 * Cin * HWp
    bytes_accessed = (xp.size * 2 + wm.size * 2 + bm.size * 4
                      + bp * Cout * HWp * 2)

    out = pl.pallas_call(
        kernel,
        out_shape=jax.ShapeDtypeStruct((bp, Cout, HWp), jnp.bfloat16),
        grid=(bp // TB,),
        in_specs=[
            pl.BlockSpec((TB, Cin, P2), lambda bi: (bi, 0, 0)),
            pl.BlockSpec((Cout, 9 * Cin), lambda bi: (0, 0)),
            pl.BlockSpec((Cout, 1), lambda bi: (0, 0)),
        ],
        out_specs=pl.BlockSpec((TB, Cout, HWp), lambda bi: (bi, 0, 0)),
        scratch_shapes=[pltpu.VMEM((9 * Cin, HWp), patch_dtype)],
        compiler_params=pltpu.CompilerParams(
            dimension_semantics=("parallel",),
            vmem_limit_bytes=_VMEM_LIMIT),
        cost_estimate=pl.CostEstimate(
            flops=flops, transcendentals=0, bytes_accessed=bytes_accessed),
    )(xp, wm, bm)

    # Drop padded batch rows & the 2 wrap-around columns per row; restore NCHW.
    return out.reshape(bp, Cout, H, Wp)[:B, :, :, :W]


def maxpool2_nchw(x):
    B, C, H, W = x.shape
    return jnp.max(x.reshape(B, C, H // 2, 2, W // 2, 2), axis=(3, 5))


# ----------------------------------------------------------------------------
# Head: fc_in -> ODE block (fixed-step RK4, fully unrolled) -> fc_out.
# All matmul inputs bf16, f32 accumulation; RK4 uses a running accumulator.
# ----------------------------------------------------------------------------
def _head_kernel(x_ref, wi_ref, bi_ref, w1_ref, b1_ref, w2_ref, b2_ref,
                 wo_ref, bo_ref, o_ref):
    tb = x_ref.shape[0]
    # Loop-invariant weight loads and bias broadcasts hoisted out of the loop.
    wi = wi_ref[...]
    w1 = w1_ref[...]
    w2 = w2_ref[...]
    wo = wo_ref[...]
    b1 = jnp.broadcast_to(b1_ref[...], (tb, ODE_PAD))
    b2 = jnp.broadcast_to(b2_ref[...], (tb, HIDDEN_DIM))

    # fc_in: bf16 x bf16 matmul, f32 accumulation.
    h = (jnp.dot(x_ref[...], wi, preferred_element_type=jnp.float32)
         + bi_ref[...])

    def odefunc(y):
        z = jnp.maximum(
            jnp.dot(y.astype(jnp.bfloat16), w1,
                    preferred_element_type=jnp.float32) + b1, 0.0)
        return jnp.dot(z.astype(jnp.bfloat16), w2,
                       preferred_element_type=jnp.float32) + b2

    # Fixed-step RK4, fully unrolled.  Running-accumulator combine: each k is
    # folded into `acc` as soon as it is produced, so only h/acc/k stay live.
    dt = 1.0 / RK4_STEPS
    for _ in range(RK4_STEPS):
        k = odefunc(h)                      # k1
        acc = h + (dt / 6.0) * k
        k = odefunc(h + (0.5 * dt) * k)     # k2
        acc = acc + (dt / 3.0) * k
        k = odefunc(h + (0.5 * dt) * k)     # k3
        acc = acc + (dt / 3.0) * k
        k = odefunc(h + dt * k)             # k4
        h = acc + (dt / 6.0) * k

    # fc_out into a lane-dense padded (tb, 128) slab (sliced to 10 outside).
    o_ref[...] = (jnp.dot(h.astype(jnp.bfloat16), wo,
                          preferred_element_type=jnp.float32) + bo_ref[...])


def head_forward(x_flat, params):
    B, feat = x_flat.shape

    # Zero-pad the ODE hidden width 50 -> 64 (exact: ReLU(0)=0 and the matching
    # w2 rows are zero) and the logits width 10 -> 128 (lane-dense stores).
    w1 = jnp.pad(params["ode_w1"], ((0, 0), (0, ODE_PAD - ODE_HIDDEN)))
    b1 = jnp.pad(params["ode_b1"], ((0, ODE_PAD - ODE_HIDDEN),))
    w2 = jnp.pad(params["ode_w2"], ((0, ODE_PAD - ODE_HIDDEN), (0, 0)))
    wo = jnp.pad(params["fc_out_w"], ((0, 0), (0, OUT_PAD - NUM_CLASSES)))
    bo = jnp.pad(params["fc_out_b"], ((0, OUT_PAD - NUM_CLASSES),))

    tb = _batch_tile(B, HEAD_TB, align=8)
    bp = _round_up(B, tb)
    xp = jnp.pad(x_flat.astype(jnp.bfloat16), ((0, bp - B), (0, 0)))

    macs = (feat * HIDDEN_DIM
            + RK4_STEPS * 4 * (HIDDEN_DIM * ODE_PAD + ODE_PAD * HIDDEN_DIM)
            + HIDDEN_DIM * OUT_PAD)
    weight_bytes = 2 * (feat * HIDDEN_DIM + 2 * HIDDEN_DIM * ODE_PAD
                        + HIDDEN_DIM * OUT_PAD)
    bytes_accessed = xp.size * 2 + weight_bytes + bp * OUT_PAD * 4

    logits = pl.pallas_call(
        _head_kernel,
        out_shape=jax.ShapeDtypeStruct((bp, OUT_PAD), jnp.float32),
        grid=(bp // tb,),
        in_specs=[
            pl.BlockSpec((tb, feat), lambda i: (i, 0)),
            pl.BlockSpec((feat, HIDDEN_DIM), lambda i: (0, 0)),
            pl.BlockSpec((1, HIDDEN_DIM), lambda i: (0, 0)),
            pl.BlockSpec((HIDDEN_DIM, ODE_PAD), lambda i: (0, 0)),
            pl.BlockSpec((1, ODE_PAD), lambda i: (0, 0)),
            pl.BlockSpec((ODE_PAD, HIDDEN_DIM), lambda i: (0, 0)),
            pl.BlockSpec((1, HIDDEN_DIM), lambda i: (0, 0)),
            pl.BlockSpec((HIDDEN_DIM, OUT_PAD), lambda i: (0, 0)),
            pl.BlockSpec((1, OUT_PAD), lambda i: (0, 0)),
        ],
        out_specs=pl.BlockSpec((tb, OUT_PAD), lambda i: (i, 0)),
        compiler_params=pltpu.CompilerParams(
            dimension_semantics=("parallel",),
            vmem_limit_bytes=_VMEM_LIMIT),
        cost_estimate=pl.CostEstimate(
            flops=2 * bp * macs, transcendentals=0,
            bytes_accessed=bytes_accessed),
    )(
        xp,
        params["fc_in_w"].astype(jnp.bfloat16),
        params["fc_in_b"].reshape(1, HIDDEN_DIM).astype(jnp.float32),
        w1.astype(jnp.bfloat16),
        b1.reshape(1, ODE_PAD).astype(jnp.float32),
        w2.astype(jnp.bfloat16),
        params["ode_b2"].reshape(1, HIDDEN_DIM).astype(jnp.float32),
        wo.astype(jnp.bfloat16),
        bo.reshape(1, OUT_PAD).astype(jnp.float32),
    )
    return logits[:B, :NUM_CLASSES]


# ----------------------------------------------------------------------------
# Full forward
# ----------------------------------------------------------------------------
def neural_ode_mnist_forward(x_nchw, params):
    """x_nchw: (B, 1, 28, 28) float32 -> logits (B, 10) float32."""
    x = conv3x3_relu(x_nchw, params["conv1_w"], params["conv1_b"])   # (B,16,28,28) bf16
    x = maxpool2_nchw(x)                                             # (B,16,14,14) bf16
    x = conv3x3_relu(x, params["conv2_w"], params["conv2_b"])        # (B,32,14,14) bf16
    x = maxpool2_nchw(x)                                             # (B,32,7,7)   bf16
    B = x.shape[0]
    x_flat = x.reshape(B, 32 * 7 * 7)   # matches PyTorch x.view(B, -1) in NCHW
    return head_forward(x_flat, params)


# ----------------------------------------------------------------------------
# Deterministic parameter init (PyTorch layouts where relevant; distinct keys)
# ----------------------------------------------------------------------------
def init_params(key):
    ks = jax.random.split(key, 12)

    def unif(k, shape, fan_in):
        bound = 1.0 / jnp.sqrt(fan_in)
        return jax.random.uniform(k, shape, jnp.float32, -bound, bound)

    return {
        # conv weights in PyTorch layout (Cout, Cin, kH, kW)
        "conv1_w": unif(ks[0], (16, 1, 3, 3), 1 * 9),
        "conv1_b": unif(ks[1], (16,), 1 * 9),
        "conv2_w": unif(ks[2], (32, 16, 3, 3), 16 * 9),
        "conv2_b": unif(ks[3], (32,), 16 * 9),
        # linear weights stored as (in, out) for direct matmul
        "fc_in_w": unif(ks[4], (32 * 7 * 7, HIDDEN_DIM), 32 * 7 * 7),
        "fc_in_b": unif(ks[5], (HIDDEN_DIM,), 32 * 7 * 7),
        "ode_w1": unif(ks[6], (HIDDEN_DIM, ODE_HIDDEN), HIDDEN_DIM),
        "ode_b1": unif(ks[7], (ODE_HIDDEN,), HIDDEN_DIM),
        "ode_w2": unif(ks[8], (ODE_HIDDEN, HIDDEN_DIM), ODE_HIDDEN),
        "ode_b2": unif(ks[9], (HIDDEN_DIM,), ODE_HIDDEN),
        "fc_out_w": unif(ks[10], (HIDDEN_DIM, NUM_CLASSES), HIDDEN_DIM),
        "fc_out_b": unif(ks[11], (NUM_CLASSES,), HIDDEN_DIM),
    }


if __name__ == "__main__":
    key = jax.random.PRNGKey(0)
    pkey, xkey = jax.random.split(key)
    params = init_params(pkey)

    # MNIST-shaped input (the fc_in layer requires 28x28 single-channel input).
    x = jax.random.normal(xkey, (2, 1, 28, 28), jnp.float32)

    logits = jax.jit(neural_ode_mnist_forward)(x, params)
    logits = jax.block_until_ready(logits)

    assert logits.shape == (2, NUM_CLASSES)
    assert bool(jnp.all(jnp.isfinite(logits)))
    print("KERNEL_OK")
</pallas_src>

<mosaic_0001>
module attributes {stable_mosaic.version = 11 : i64} {
  func.func @_conv3x3_kernel(%arg0: i32, %arg1: memref<1x1x930xbf16, #tpu.memory_space<vmem>>, %arg2: memref<16x9xbf16, #tpu.memory_space<vmem>>, %arg3: memref<16x1xf32, #tpu.memory_space<vmem>>, %arg4: memref<1x16x840xbf16, #tpu.memory_space<vmem>>, %arg5: memref<9x840xf32, #tpu.memory_space<vmem>>) attributes {dimension_semantics = [#tpu.dimension_semantics<parallel>], iteration_bounds = array<i64: 2>, scalar_prefetch = 0 : i64, scratch_operands = 1 : i64, tpu.core_type = #tpu.core_type<tc>, window_params = [{transform_indices = @transform_0, window_bounds = array<i64: 1, 1, 930>}, {pipeline_mode = #tpu.pipeline_mode<synchronous>, transform_indices = @transform_1, window_bounds = array<i64: 16, 9>}, {pipeline_mode = #tpu.pipeline_mode<synchronous>, transform_indices = @transform_2, window_bounds = array<i64: 16, 1>}, {transform_indices = @transform_3, window_bounds = array<i64: 1, 16, 840>}]} {
    %c0 = arith.constant 0 : index
    %c0_0 = arith.constant 0 : index
    %0 = vector.load %arg2[%c0, %c0_0] : memref<16x9xbf16, #tpu.memory_space<vmem>>, vector<16x9xbf16>
    %c0_1 = arith.constant 0 : index
    %c0_2 = arith.constant 0 : index
    %1 = vector.load %arg3[%c0_1, %c0_2] : memref<16x1xf32, #tpu.memory_space<vmem>>, vector<16x1xf32>
    %c0_3 = arith.constant 0 : index
    %c0_4 = arith.constant 0 : index
    %c0_5 = arith.constant 0 : index
    %2 = vector.load %arg1[%c0_3, %c0_4, %c0_5] : memref<1x1x930xbf16, #tpu.memory_space<vmem>>, vector<1x1x930xbf16>
    %3 = vector.shape_cast %2 : vector<1x1x930xbf16> to vector<1x930xbf16>
    %4 = vector.extract_strided_slice %3 {offsets = [0, 0], sizes = [1, 840], strides = [1, 1]} : vector<1x930xbf16> to vector<1x840xbf16>
    %5 = arith.extf %4 : vector<1x840xbf16> to vector<1x840xf32>
    %c0_6 = arith.constant 0 : index
    %c0_7 = arith.constant 0 : index
    %6 = vector.load %arg5[%c0_6, %c0_7] : memref<9x840xf32, #tpu.memory_space<vmem>>, vector<1x840xf32>
    tpu.vector_store %arg5[%c0_6, %c0_7], %5 {strides = array<i32>} : memref<9x840xf32, #tpu.memory_space<vmem>>, vector<1x840xf32>,
    %7 = vector.extract_strided_slice %3 {offsets = [0, 1], sizes = [1, 840], strides = [1, 1]} : vector<1x930xbf16> to vector<1x840xbf16>
    %8 = arith.extf %7 : vector<1x840xbf16> to vector<1x840xf32>
    %c1 = arith.constant 1 : index
    %c0_8 = arith.constant 0 : index
    %9 = vector.load %arg5[%c1, %c0_8] : memref<9x840xf32, #tpu.memory_space<vmem>>, vector<1x840xf32>
    tpu.vector_store %arg5[%c1, %c0_8], %8 {strides = array<i32>} : memref<9x840xf32, #tpu.memory_space<vmem>>, vector<1x840xf32>,
    %10 = vector.extract_strided_slice %3 {offsets = [0, 2], sizes = [1, 840], strides = [1, 1]} : vector<1x930xbf16> to vector<1x840xbf16>
    %11 = arith.extf %10 : vector<1x840xbf16> to vector<1x840xf32>
    %c2 = arith.constant 2 : index
    %c0_9 = arith.constant 0 : index
    %12 = vector.load %arg5[%c2, %c0_9] : memref<9x840xf32, #tpu.memory_space<vmem>>, vector<1x840xf32>
    tpu.vector_store %arg5[%c2, %c0_9], %11 {strides = array<i32>} : memref<9x840xf32, #tpu.memory_space<vmem>>, vector<1x840xf32>,
    %13 = vector.extract_strided_slice %3 {offsets = [0, 30], sizes = [1, 840], strides = [1, 1]} : vector<1x930xbf16> to vector<1x840xbf16>
    %14 = arith.extf %13 : vector<1x840xbf16> to vector<1x840xf32>
    %c3 = arith.constant 3 : index
    %c0_10 = arith.constant 0 : index
    %15 = vector.load %arg5[%c3, %c0_10] : memref<9x840xf32, #tpu.memory_space<vmem>>, vector<1x840xf32>
    tpu.vector_store %arg5[%c3, %c0_10], %14 {strides = array<i32>} : memref<9x840xf32, #tpu.memory_space<vmem>>, vector<1x840xf32>,
    %16 = vector.extract_strided_slice %3 {offsets = [0, 31], sizes = [1, 840], strides = [1, 1]} : vector<1x930xbf16> to vector<1x840xbf16>
    %17 = arith.extf %16 : vector<1x840xbf16> to vector<1x840xf32>
    %c4 = arith.constant 4 : index
    %c0_11 = arith.constant 0 : index
    %18 = vector.load %arg5[%c4, %c0_11] : memref<9x840xf32, #tpu.memory_space<vmem>>, vector<1x840xf32>
    tpu.vector_store %arg5[%c4, %c0_11], %17 {strides = array<i32>} : memref<9x840xf32, #tpu.memory_space<vmem>>, vector<1x840xf32>,
    %19 = vector.extract_strided_slice %3 {offsets = [0, 32], sizes = [1, 840], strides = [1, 1]} : vector<1x930xbf16> to vector<1x840xbf16>
    %20 = arith.extf %19 : vector<1x840xbf16> to vector<1x840xf32>
    %c5 = arith.constant 5 : index
    %c0_12 = arith.constant 0 : index
    %21 = vector.load %arg5[%c5, %c0_12] : memref<9x840xf32, #tpu.memory_space<vmem>>, vector<1x840xf32>
    tpu.vector_store %arg5[%c5, %c0_12], %20 {strides = array<i32>} : memref<9x840xf32, #tpu.memory_space<vmem>>, vector<1x840xf32>,
    %22 = vector.extract_strided_slice %3 {offsets = [0, 60], sizes = [1, 840], strides = [1, 1]} : vector<1x930xbf16> to vector<1x840xbf16>
    %23 = arith.extf %22 : vector<1x840xbf16> to vector<1x840xf32>
    %c6 = arith.constant 6 : index
    %c0_13 = arith.constant 0 : index
    %24 = vector.load %arg5[%c6, %c0_13] : memref<9x840xf32, #tpu.memory_space<vmem>>, vector<1x840xf32>
    tpu.vector_store %arg5[%c6, %c0_13], %23 {strides = array<i32>} : memref<9x840xf32, #tpu.memory_space<vmem>>, vector<1x840xf32>,
    %25 = vector.extract_strided_slice %3 {offsets = [0, 61], sizes = [1, 840], strides = [1, 1]} : vector<1x930xbf16> to vector<1x840xbf16>
    %26 = arith.extf %25 : vector<1x840xbf16> to vector<1x840xf32>
    %c7 = arith.constant 7 : index
    %c0_14 = arith.constant 0 : index
    %27 = vector.load %arg5[%c7, %c0_14] : memref<9x840xf32, #tpu.memory_space<vmem>>, vector<1x840xf32>
    tpu.vector_store %arg5[%c7, %c0_14], %26 {strides = array<i32>} : memref<9x840xf32, #tpu.memory_space<vmem>>, vector<1x840xf32>,
    %28 = vector.extract_strided_slice %3 {offsets = [0, 62], sizes = [1, 840], strides = [1, 1]} : vector<1x930xbf16> to vector<1x840xbf16>
    %29 = arith.extf %28 : vector<1x840xbf16> to vector<1x840xf32>
    %c8 = arith.constant 8 : index
    %c0_15 = arith.constant 0 : index
    %30 = vector.load %arg5[%c8, %c0_15] : memref<9x840xf32, #tpu.memory_space<vmem>>, vector<1x840xf32>
    tpu.vector_store %arg5[%c8, %c0_15], %29 {strides = array<i32>} : memref<9x840xf32, #tpu.memory_space<vmem>>, vector<1x840xf32>,
    %c0_16 = arith.constant 0 : index
    %c0_17 = arith.constant 0 : index
    %31 = vector.load %arg5[%c0_16, %c0_17] : memref<9x840xf32, #tpu.memory_space<vmem>>, vector<9x840xf32>
    %32 = arith.truncf %31 : vector<9x840xf32> to vector<9x840xbf16>
    %cst = arith.constant dense<0.000000e+00> : vector<16x840xf32>
    %33 = tpu.matmul %0, %32, %cst {dimension_numbers = #tpu.dot_dimension_numbers<[1], [0], [0], [1], [0, 0, 1, 1], [], []>} : vector<16x9xbf16>, vector<9x840xbf16>, vector<16x840xf32> -> vector<16x840xf32>
    %34 = vector.broadcast %1 : vector<16x1xf32> to vector<16x840xf32>
    %35 = arith.addf %33, %34 : vector<16x840xf32>
    %cst_18 = arith.constant 0.000000e+00 : f32
    %36 = vector.broadcast %cst_18 : f32 to vector<16x840xf32>
    %37 = arith.maximumf %35, %36 : vector<16x840xf32>
    %38 = arith.truncf %37 : vector<16x840xf32> to vector<16x840xbf16>
    %c0_19 = arith.constant 0 : index
    %c0_20 = arith.constant 0 : index
    %c0_21 = arith.constant 0 : index
    %39 = vector.load %arg4[%c0_19, %c0_20, %c0_21] : memref<1x16x840xbf16, #tpu.memory_space<vmem>>, vector<1x16x840xbf16>
    %40 = vector.shape_cast %39 : vector<1x16x840xbf16> to vector<16x840xbf16>
    %41 = vector.shape_cast %38 : vector<16x840xbf16> to vector<1x16x840xbf16>
    tpu.vector_store %arg4[%c0_19, %c0_20, %c0_21], %41 {strides = array<i32>} : memref<1x16x840xbf16, #tpu.memory_space<vmem>>, vector<1x16x840xbf16>,
    return
  }
  func.func @transform_0(%arg0: i32) -> (i32, i32, i32) {
    %c0_i32 = arith.constant 0 : i32
    %c0_i32_0 = arith.constant 0 : i32
    %c0_i32_1 = arith.constant 0 : i32
    return %arg0, %c0_i32, %c0_i32_0 : i32, i32, i32
  }
  func.func @transform_1(%arg0: i32) -> (i32, i32) {
    %c0_i32 = arith.constant 0 : i32
    %c0_i32_0 = arith.constant 0 : i32
    %c0_i32_1 = arith.constant 0 : i32
    return %c0_i32, %c0_i32_0 : i32, i32
  }
  func.func @transform_2(%arg0: i32) -> (i32, i32) {
    %c0_i32 = arith.constant 0 : i32
    %c0_i32_0 = arith.constant 0 : i32
    %c0_i32_1 = arith.constant 0 : i32
    return %c0_i32, %c0_i32_0 : i32, i32
  }
  func.func @transform_3(%arg0: i32) -> (i32, i32, i32) {
    %c0_i32 = arith.constant 0 : i32
    %c0_i32_0 = arith.constant 0 : i32
    %c0_i32_1 = arith.constant 0 : i32
    return %arg0, %c0_i32, %c0_i32_0 : i32, i32, i32
  }
}

module attributes {stable_mosaic.version = 11 : i64} {
  func.func @_conv3x3_kernel(%arg0: i32, %arg1: memref<1x16x272xbf16, #tpu.memory_space<vmem>>, %arg2: memref<32x144xbf16, #tpu.memory_space<vmem>>, %arg3: memref<32x1xf32, #tpu.memory_space<vmem>>, %arg4: memref<1x32x224xbf16, #tpu.memory_space<vmem>>, %arg5: memref<144x224xbf16, #tpu.memory_space<vmem>>) attributes {dimension_semantics = [#tpu.dimension_semantics<parallel>], iteration_bounds = array<i64: 2>, scalar_prefetch = 0 : i64, scratch_operands = 1 : i64, tpu.core_type = #tpu.core_type<tc>, window_params = [{transform_indices = @transform_0, window_bounds = array<i64: 1, 16, 272>}, {pipeline_mode = #tpu.pipeline_mode<synchronous>, transform_indices = @transform_1, window_bounds = array<i64: 32, 144>}, {pipeline_mode = #tpu.pipeline_mode<synchronous>, transform_indices = @transform_2, window_bounds = array<i64: 32, 1>}, {transform_indices = @transform_3, window_bounds = array<i64: 1, 32, 224>}]} {
    %c0 = arith.constant 0 : index
    %c0_0 = arith.constant 0 : index
    %0 = vector.load %arg2[%c0, %c0_0] : memref<32x144xbf16, #tpu.memory_space<vmem>>, vector<32x144xbf16>
    %c0_1 = arith.constant 0 : index
    %c0_2 = arith.constant 0 : index
    %1 = vector.load %arg3[%c0_1, %c0_2] : memref<32x1xf32, #tpu.memory_space<vmem>>, vector<32x1xf32>
    %c0_3 = arith.constant 0 : index
    %c0_4 = arith.constant 0 : index
    %c0_5 = arith.constant 0 : index
    %2 = vector.load %arg1[%c0_3, %c0_4, %c0_5] : memref<1x16x272xbf16, #tpu.memory_space<vmem>>, vector<1x16x272xbf16>
    %3 = vector.shape_cast %2 : vector<1x16x272xbf16> to vector<16x272xbf16>
    %4 = vector.extract_strided_slice %3 {offsets = [0, 0], sizes = [16, 224], strides = [1, 1]} : vector<16x272xbf16> to vector<16x224xbf16>
    %c0_6 = arith.constant 0 : index
    %c0_7 = arith.constant 0 : index
    %5 = vector.load %arg5[%c0_6, %c0_7] : memref<144x224xbf16, #tpu.memory_space<vmem>>, vector<16x224xbf16>
    tpu.vector_store %arg5[%c0_6, %c0_7], %4 {strides = array<i32>} : memref<144x224xbf16, #tpu.memory_space<vmem>>, vector<16x224xbf16>,
    %6 = vector.extract_strided_slice %3 {offsets = [0, 1], sizes = [16, 224], strides = [1, 1]} : vector<16x272xbf16> to vector<16x224xbf16>
    %c16 = arith.constant 16 : index
    %c0_8 = arith.constant 0 : index
    %7 = vector.load %arg5[%c16, %c0_8] : memref<144x224xbf16, #tpu.memory_space<vmem>>, vector<16x224xbf16>
    tpu.vector_store %arg5[%c16, %c0_8], %6 {strides = array<i32>} : memref<144x224xbf16, #tpu.memory_space<vmem>>, vector<16x224xbf16>,
    %8 = vector.extract_strided_slice %3 {offsets = [0, 2], sizes = [16, 224], strides = [1, 1]} : vector<16x272xbf16> to vector<16x224xbf16>
    %c32 = arith.constant 32 : index
    %c0_9 = arith.constant 0 : index
    %9 = vector.load %arg5[%c32, %c0_9] : memref<144x224xbf16, #tpu.memory_space<vmem>>, vector<16x224xbf16>
    tpu.vector_store %arg5[%c32, %c0_9], %8 {strides = array<i32>} : memref<144x224xbf16, #tpu.memory_space<vmem>>, vector<16x224xbf16>,
    %10 = vector.extract_strided_slice %3 {offsets = [0, 16], sizes = [16, 224], strides = [1, 1]} : vector<16x272xbf16> to vector<16x224xbf16>
    %c48 = arith.constant 48 : index
    %c0_10 = arith.constant 0 : index
    %11 = vector.load %arg5[%c48, %c0_10] : memref<144x224xbf16, #tpu.memory_space<vmem>>, vector<16x224xbf16>
    tpu.vector_store %arg5[%c48, %c0_10], %10 {strides = array<i32>} : memref<144x224xbf16, #tpu.memory_space<vmem>>, vector<16x224xbf16>,
    %12 = vector.extract_strided_slice %3 {offsets = [0, 17], sizes = [16, 224], strides = [1, 1]} : vector<16x272xbf16> to vector<16x224xbf16>
    %c64 = arith.constant 64 : index
    %c0_11 = arith.constant 0 : index
    %13 = vector.load %arg5[%c64, %c0_11] : memref<144x224xbf16, #tpu.memory_space<vmem>>, vector<16x224xbf16>
    tpu.vector_store %arg5[%c64, %c0_11], %12 {strides = array<i32>} : memref<144x224xbf16, #tpu.memory_space<vmem>>, vector<16x224xbf16>,
    %14 = vector.extract_strided_slice %3 {offsets = [0, 18], sizes = [16, 224], strides = [1, 1]} : vector<16x272xbf16> to vector<16x224xbf16>
    %c80 = arith.constant 80 : index
    %c0_12 = arith.constant 0 : index
    %15 = vector.load %arg5[%c80, %c0_12] : memref<144x224xbf16, #tpu.memory_space<vmem>>, vector<16x224xbf16>
    tpu.vector_store %arg5[%c80, %c0_12], %14 {strides = array<i32>} : memref<144x224xbf16, #tpu.memory_space<vmem>>, vector<16x224xbf16>,
    %16 = vector.extract_strided_slice %3 {offsets = [0, 32], sizes = [16, 224], strides = [1, 1]} : vector<16x272xbf16> to vector<16x224xbf16>
    %c96 = arith.constant 96 : index
    %c0_13 = arith.constant 0 : index
    %17 = vector.load %arg5[%c96, %c0_13] : memref<144x224xbf16, #tpu.memory_space<vmem>>, vector<16x224xbf16>
    tpu.vector_store %arg5[%c96, %c0_13], %16 {strides = array<i32>} : memref<144x224xbf16, #tpu.memory_space<vmem>>, vector<16x224xbf16>,
    %18 = vector.extract_strided_slice %3 {offsets = [0, 33], sizes = [16, 224], strides = [1, 1]} : vector<16x272xbf16> to vector<16x224xbf16>
    %c112 = arith.constant 112 : index
    %c0_14 = arith.constant 0 : index
    %19 = vector.load %arg5[%c112, %c0_14] : memref<144x224xbf16, #tpu.memory_space<vmem>>, vector<16x224xbf16>
    tpu.vector_store %arg5[%c112, %c0_14], %18 {strides = array<i32>} : memref<144x224xbf16, #tpu.memory_space<vmem>>, vector<16x224xbf16>,
    %20 = vector.extract_strided_slice %3 {offsets = [0, 34], sizes = [16, 224], strides = [1, 1]} : vector<16x272xbf16> to vector<16x224xbf16>
    %c128 = arith.constant 128 : index
    %c0_15 = arith.constant 0 : index
    %21 = vector.load %arg5[%c128, %c0_15] : memref<144x224xbf16, #tpu.memory_space<vmem>>, vector<16x224xbf16>
    tpu.vector_store %arg5[%c128, %c0_15], %20 {strides = array<i32>} : memref<144x224xbf16, #tpu.memory_space<vmem>>, vector<16x224xbf16>,
    %c0_16 = arith.constant 0 : index
    %c0_17 = arith.constant 0 : index
    %22 = vector.load %arg5[%c0_16, %c0_17] : memref<144x224xbf16, #tpu.memory_space<vmem>>, vector<144x224xbf16>
    %cst = arith.constant dense<0.000000e+00> : vector<32x224xf32>
    %23 = tpu.matmul %0, %22, %cst {dimension_numbers = #tpu.dot_dimension_numbers<[1], [0], [0], [1], [0, 0, 1, 1], [], []>} : vector<32x144xbf16>, vector<144x224xbf16>, vector<32x224xf32> -> vector<32x224xf32>
    %24 = vector.broadcast %1 : vector<32x1xf32> to vector<32x224xf32>
    %25 = arith.addf %23, %24 : vector<32x224xf32>
    %cst_18 = arith.constant 0.000000e+00 : f32
    %26 = vector.broadcast %cst_18 : f32 to vector<32x224xf32>
    %27 = arith.maximumf %25, %26 : vector<32x224xf32>
    %28 = arith.truncf %27 : vector<32x224xf32> to vector<32x224xbf16>
    %c0_19 = arith.constant 0 : index
    %c0_20 = arith.constant 0 : index
    %c0_21 = arith.constant 0 : index
    %29 = vector.load %arg4[%c0_19, %c0_20, %c0_21] : memref<1x32x224xbf16, #tpu.memory_space<vmem>>, vector<1x32x224xbf16>
    %30 = vector.shape_cast %29 : vector<1x32x224xbf16> to vector<32x224xbf16>
    %31 = vector.shape_cast %28 : vector<32x224xbf16> to vector<1x32x224xbf16>
    tpu.vector_store %arg4[%c0_19, %c0_20, %c0_21], %31 {strides = array<i32>} : memref<1x32x224xbf16, #tpu.memory_space<vmem>>, vector<1x32x224xbf16>,
    return
  }
  func.func @transform_0(%arg0: i32) -> (i32, i32, i32) {
    %c0_i32 = arith.constant 0 : i32
    %c0_i32_0 = arith.constant 0 : i32
    %c0_i32_1 = arith.constant 0 : i32
    return %arg0, %c0_i32, %c0_i32_0 : i32, i32, i32
  }
  func.func @transform_1(%arg0: i32) -> (i32, i32) {
    %c0_i32 = arith.constant 0 : i32
    %c0_i32_0 = arith.constant 0 : i32
    %c0_i32_1 = arith.constant 0 : i32
    return %c0_i32, %c0_i32_0 : i32, i32
  }
  func.func @transform_2(%arg0: i32) -> (i32, i32) {
    %c0_i32 = arith.constant 0 : i32
    %c0_i32_0 = arith.constant 0 : i32
    %c0_i32_1 = arith.constant 0 : i32
    return %c0_i32, %c0_i32_0 : i32, i32
  }
  func.func @transform_3(%arg0: i32) -> (i32, i32, i32) {
    %c0_i32 = arith.constant 0 : i32
    %c0_i32_0 = arith.constant 0 : i32
    %c0_i32_1 = arith.constant 0 : i32
    return %arg0, %c0_i32, %c0_i32_0 : i32, i32, i32
  }
}

module attributes {stable_mosaic.version = 11 : i64} {
  func.func @_head_kernel(%arg0: i32, %arg1: memref<8x1568xbf16, #tpu.memory_space<vmem>>, %arg2: memref<1568x64xbf16, #tpu.memory_space<vmem>>, %arg3: memref<1x64xf32, #tpu.memory_space<vmem>>, %arg4: memref<64x64xbf16, #tpu.memory_space<vmem>>, %arg5: memref<1x64xf32, #tpu.memory_space<vmem>>, %arg6: memref<64x64xbf16, #tpu.memory_space<vmem>>, %arg7: memref<1x64xf32, #tpu.memory_space<vmem>>, %arg8: memref<64x128xbf16, #tpu.memory_space<vmem>>, %arg9: memref<1x128xf32, #tpu.memory_space<vmem>>, %arg10: memref<8x128xf32, #tpu.memory_space<vmem>>) attributes {dimension_semantics = [#tpu.dimension_semantics<parallel>], iteration_bounds = array<i64: 1>, scalar_prefetch = 0 : i64, scratch_operands = 0 : i64, tpu.core_type = #tpu.core_type<tc>, window_params = [{transform_indices = @transform_0, window_bounds = array<i64: 8, 1568>}, {pipeline_mode = #tpu.pipeline_mode<synchronous>, transform_indices = @transform_1, window_bounds = array<i64: 1568, 64>}, {pipeline_mode = #tpu.pipeline_mode<synchronous>, transform_indices = @transform_2, window_bounds = array<i64: 1, 64>}, {pipeline_mode = #tpu.pipeline_mode<synchronous>, transform_indices = @transform_3, window_bounds = array<i64: 64, 64>}, {pipeline_mode = #tpu.pipeline_mode<synchronous>, transform_indices = @transform_4, window_bounds = array<i64: 1, 64>}, {pipeline_mode = #tpu.pipeline_mode<synchronous>, transform_indices = @transform_5, window_bounds = array<i64: 64, 64>}, {pipeline_mode = #tpu.pipeline_mode<synchronous>, transform_indices = @transform_6, window_bounds = array<i64: 1, 64>}, {pipeline_mode = #tpu.pipeline_mode<synchronous>, transform_indices = @transform_7, window_bounds = array<i64: 64, 128>}, {pipeline_mode = #tpu.pipeline_mode<synchronous>, transform_indices = @transform_8, window_bounds = array<i64: 1, 128>}, {transform_indices = @transform_9, window_bounds = array<i64: 8, 128>}]} {
    %c0 = arith.constant 0 : index
    %c0_0 = arith.constant 0 : index
    %0 = vector.load %arg2[%c0, %c0_0] : memref<1568x64xbf16, #tpu.memory_space<vmem>>, vector<1568x64xbf16>
    %c0_1 = arith.constant 0 : index
    %c0_2 = arith.constant 0 : index
    %1 = vector.load %arg4[%c0_1, %c0_2] : memref<64x64xbf16, #tpu.memory_space<vmem>>, vector<64x64xbf16>
    %c0_3 = arith.constant 0 : index
    %c0_4 = arith.constant 0 : index
    %2 = vector.load %arg6[%c0_3, %c0_4] : memref<64x64xbf16, #tpu.memory_space<vmem>>, vector<64x64xbf16>
    %c0_5 = arith.constant 0 : index
    %c0_6 = arith.constant 0 : index
    %3 = vector.load %arg8[%c0_5, %c0_6] : memref<64x128xbf16, #tpu.memory_space<vmem>>, vector<64x128xbf16>
    %c0_7 = arith.constant 0 : index
    %c0_8 = arith.constant 0 : index
    %4 = vector.load %arg5[%c0_7, %c0_8] : memref<1x64xf32, #tpu.memory_space<vmem>>, vector<1x64xf32>
    %5 = vector.shape_cast %4 : vector<1x64xf32> to vector<1x64xf32>
    %6 = vector.broadcast %5 : vector<1x64xf32> to vector<8x64xf32>
    %c0_9 = arith.constant 0 : index
    %c0_10 = arith.constant 0 : index
    %7 = vector.load %arg7[%c0_9, %c0_10] : memref<1x64xf32, #tpu.memory_space<vmem>>, vector<1x64xf32>
    %8 = vector.shape_cast %7 : vector<1x64xf32> to vector<1x64xf32>
    %9 = vector.broadcast %8 : vector<1x64xf32> to vector<8x64xf32>
    %c0_11 = arith.constant 0 : index
    %c0_12 = arith.constant 0 : index
    %10 = vector.load %arg1[%c0_11, %c0_12] : memref<8x1568xbf16, #tpu.memory_space<vmem>>, vector<8x1568xbf16>
    %cst = arith.constant dense<0.000000e+00> : vector<8x64xf32>
    %11 = tpu.matmul %10, %0, %cst {dimension_numbers = #tpu.dot_dimension_numbers<[1], [0], [0], [1], [0, 0, 1, 1], [], []>} : vector<8x1568xbf16>, vector<1568x64xbf16>, vector<8x64xf32> -> vector<8x64xf32>
    %c0_13 = arith.constant 0 : index
    %c0_14 = arith.constant 0 : index
    %12 = vector.load %arg3[%c0_13, %c0_14] : memref<1x64xf32, #tpu.memory_space<vmem>>, vector<1x64xf32>
    %13 = vector.broadcast %12 : vector<1x64xf32> to vector<8x64xf32>
    %14 = arith.addf %11, %13 : vector<8x64xf32>
    %15 = arith.truncf %14 : vector<8x64xf32> to vector<8x64xbf16>
    %cst_15 = arith.constant dense<0.000000e+00> : vector<8x64xf32>
    %16 = tpu.matmul %15, %1, %cst_15 {dimension_numbers = #tpu.dot_dimension_numbers<[1], [0], [0], [1], [0, 0, 1, 1], [], []>} : vector<8x64xbf16>, vector<64x64xbf16>, vector<8x64xf32> -> vector<8x64xf32>
    %17 = arith.addf %16, %6 : vector<8x64xf32>
    %cst_16 = arith.constant 0.000000e+00 : f32
    %18 = vector.broadcast %cst_16 : f32 to vector<8x64xf32>
    %19 = arith.maximumf %17, %18 : vector<8x64xf32>
    %20 = arith.truncf %19 : vector<8x64xf32> to vector<8x64xbf16>
    %cst_17 = arith.constant dense<0.000000e+00> : vector<8x64xf32>
    %21 = tpu.matmul %20, %2, %cst_17 {dimension_numbers = #tpu.dot_dimension_numbers<[1], [0], [0], [1], [0, 0, 1, 1], [], []>} : vector<8x64xbf16>, vector<64x64xbf16>, vector<8x64xf32> -> vector<8x64xf32>
    %22 = arith.addf %21, %9 : vector<8x64xf32>
    %cst_18 = arith.constant 0.020833334 : f32
    %23 = vector.broadcast %cst_18 : f32 to vector<8x64xf32>
    %24 = arith.mulf %23, %22 : vector<8x64xf32>
    %25 = arith.addf %14, %24 : vector<8x64xf32>
    %cst_19 = arith.constant 6.250000e-02 : f32
    %26 = vector.broadcast %cst_19 : f32 to vector<8x64xf32>
    %27 = arith.mulf %26, %22 : vector<8x64xf32>
    %28 = arith.addf %14, %27 : vector<8x64xf32>
    %29 = arith.truncf %28 : vector<8x64xf32> to vector<8x64xbf16>
    %cst_20 = arith.constant dense<0.000000e+00> : vector<8x64xf32>
    %30 = tpu.matmul %29, %1, %cst_20 {dimension_numbers = #tpu.dot_dimension_numbers<[1], [0], [0], [1], [0, 0, 1, 1], [], []>} : vector<8x64xbf16>, vector<64x64xbf16>, vector<8x64xf32> -> vector<8x64xf32>
    %31 = arith.addf %30, %6 : vector<8x64xf32>
    %cst_21 = arith.constant 0.000000e+00 : f32
    %32 = vector.broadcast %cst_21 : f32 to vector<8x64xf32>
    %33 = arith.maximumf %31, %32 : vector<8x64xf32>
    %34 = arith.truncf %33 : vector<8x64xf32> to vector<8x64xbf16>
    %cst_22 = arith.constant dense<0.000000e+00> : vector<8x64xf32>
    %35 = tpu.matmul %34, %2, %cst_22 {dimension_numbers = #tpu.dot_dimension_numbers<[1], [0], [0], [1], [0, 0, 1, 1], [], []>} : vector<8x64xbf16>, vector<64x64xbf16>, vector<8x64xf32> -> vector<8x64xf32>
    %36 = arith.addf %35, %9 : vector<8x64xf32>
    %cst_23 = arith.constant 0.0416666679 : f32
    %37 = vector.broadcast %cst_23 : f32 to vector<8x64xf32>
    %38 = arith.mulf %37, %36 : vector<8x64xf32>
    %39 = arith.addf %25, %38 : vector<8x64xf32>
    %cst_24 = arith.constant 6.250000e-02 : f32
    %40 = vector.broadcast %cst_24 : f32 to vector<8x64xf32>
    %41 = arith.mulf %40, %36 : vector<8x64xf32>
    %42 = arith.addf %14, %41 : vector<8x64xf32>
    %43 = arith.truncf %42 : vector<8x64xf32> to vector<8x64xbf16>
    %cst_25 = arith.constant dense<0.000000e+00> : vector<8x64xf32>
    %44 = tpu.matmul %43, %1, %cst_25 {dimension_numbers = #tpu.dot_dimension_numbers<[1], [0], [0], [1], [0, 0, 1, 1], [], []>} : vector<8x64xbf16>, vector<64x64xbf16>, vector<8x64xf32> -> vector<8x64xf32>
    %45 = arith.addf %44, %6 : vector<8x64xf32>
    %cst_26 = arith.constant 0.000000e+00 : f32
    %46 = vector.broadcast %cst_26 : f32 to vector<8x64xf32>
    %47 = arith.maximumf %45, %46 : vector<8x64xf32>
    %48 = arith.truncf %47 : vector<8x64xf32> to vector<8x64xbf16>
    %cst_27 = arith.constant dense<0.000000e+00> : vector<8x64xf32>
    %49 = tpu.matmul %48, %2, %cst_27 {dimension_numbers = #tpu.dot_dimension_numbers<[1], [0], [0], [1], [0, 0, 1, 1], [], []>} : vector<8x64xbf16>, vector<64x64xbf16>, vector<8x64xf32> -> vector<8x64xf32>
    %50 = arith.addf %49, %9 : vector<8x64xf32>
    %cst_28 = arith.constant 0.0416666679 : f32
    %51 = vector.broadcast %cst_28 : f32 to vector<8x64xf32>
    %52 = arith.mulf %51, %50 : vector<8x64xf32>
    %53 = arith.addf %39, %52 : vector<8x64xf32>
    %cst_29 = arith.constant 1.250000e-01 : f32
    %54 = vector.broadcast %cst_29 : f32 to vector<8x64xf32>
    %55 = arith.mulf %54, %50 : vector<8x64xf32>
    %56 = arith.addf %14, %55 : vector<8x64xf32>
    %57 = arith.truncf %56 : vector<8x64xf32> to vector<8x64xbf16>
    %cst_30 = arith.constant dense<0.000000e+00> : vector<8x64xf32>
    %58 = tpu.matmul %57, %1, %cst_30 {dimension_numbers = #tpu.dot_dimension_numbers<[1], [0], [0], [1], [0, 0, 1, 1], [], []>} : vector<8x64xbf16>, vector<64x64xbf16>, vector<8x64xf32> -> vector<8x64xf32>
    %59 = arith.addf %58, %6 : vector<8x64xf32>
    %cst_31 = arith.constant 0.000000e+00 : f32
    %60 = vector.broadcast %cst_31 : f32 to vector<8x64xf32>
    %61 = arith.maximumf %59, %60 : vector<8x64xf32>
    %62 = arith.truncf %61 : vector<8x64xf32> to vector<8x64xbf16>
    %cst_32 = arith.constant dense<0.000000e+00> : vector<8x64xf32>
    %63 = tpu.matmul %62, %2, %cst_32 {dimension_numbers = #tpu.dot_dimension_numbers<[1], [0], [0], [1], [0, 0, 1, 1], [], []>} : vector<8x64xbf16>, vector<64x64xbf16>, vector<8x64xf32> -> vector<8x64xf32>
    %64 = arith.addf %63, %9 : vector<8x64xf32>
    %cst_33 = arith.constant 0.020833334 : f32
    %65 = vector.broadcast %cst_33 : f32 to vector<8x64xf32>
    %66 = arith.mulf %65, %64 : vector<8x64xf32>
    %67 = arith.addf %53, %66 : vector<8x64xf32>
    %68 = arith.truncf %67 : vector<8x64xf32> to vector<8x64xbf16>
    %cst_34 = arith.constant dense<0.000000e+00> : vector<8x64xf32>
    %69 = tpu.matmul %68, %1, %cst_34 {dimension_numbers = #tpu.dot_dimension_numbers<[1], [0], [0], [1], [0, 0, 1, 1], [], []>} : vector<8x64xbf16>, vector<64x64xbf16>, vector<8x64xf32> -> vector<8x64xf32>
    %70 = arith.addf %69, %6 : vector<8x64xf32>
    %cst_35 = arith.constant 0.000000e+00 : f32
    %71 = vector.broadcast %cst_35 : f32 to vector<8x64xf32>
    %72 = arith.maximumf %70, %71 : vector<8x64xf32>
    %73 = arith.truncf %72 : vector<8x64xf32> to vector<8x64xbf16>
    %cst_36 = arith.constant dense<0.000000e+00> : vector<8x64xf32>
    %74 = tpu.matmul %73, %2, %cst_36 {dimension_numbers = #tpu.dot_dimension_numbers<[1], [0], [0], [1], [0, 0, 1, 1], [], []>} : vector<8x64xbf16>, vector<64x64xbf16>, vector<8x64xf32> -> vector<8x64xf32>
    %75 = arith.addf %74, %9 : vector<8x64xf32>
    %cst_37 = arith.constant 0.020833334 : f32
    %76 = vector.broadcast %cst_37 : f32 to vector<8x64xf32>
    %77 = arith.mulf %76, %75 : vector<8x64xf32>
    %78 = arith.addf %67, %77 : vector<8x64xf32>
    %cst_38 = arith.constant 6.250000e-02 : f32
    %79 = vector.broadcast %cst_38 : f32 to vector<8x64xf32>
    %80 = arith.mulf %79, %75 : vector<8x64xf32>
    %81 = arith.addf %67, %80 : vector<8x64xf32>
    %82 = arith.truncf %81 : vector<8x64xf32> to vector<8x64xbf16>
    %cst_39 = arith.constant dense<0.000000e+00> : vector<8x64xf32>
    %83 = tpu.matmul %82, %1, %cst_39 {dimension_numbers = #tpu.dot_dimension_numbers<[1], [0], [0], [1], [0, 0, 1, 1], [], []>} : vector<8x64xbf16>, vector<64x64xbf16>, vector<8x64xf32> -> vector<8x64xf32>
    %84 = arith.addf %83, %6 : vector<8x64xf32>
    %cst_40 = arith.constant 0.000000e+00 : f32
    %85 = vector.broadcast %cst_40 : f32 to vector<8x64xf32>
    %86 = arith.maximumf %84, %85 : vector<8x64xf32>
    %87 = arith.truncf %86 : vector<8x64xf32> to vector<8x64xbf16>
    %cst_41 = arith.constant dense<0.000000e+00> : vector<8x64xf32>
    %88 = tpu.matmul %87, %2, %cst_41 {dimension_numbers = #tpu.dot_dimension_numbers<[1], [0], [0], [1], [0, 0, 1, 1], [], []>} : vector<8x64xbf16>, vector<64x64xbf16>, vector<8x64xf32> -> vector<8x64xf32>
    %89 = arith.addf %88, %9 : vector<8x64xf32>
    %cst_42 = arith.constant 0.0416666679 : f32
    %90 = vector.broadcast %cst_42 : f32 to vector<8x64xf32>
    %91 = arith.mulf %90, %89 : vector<8x64xf32>
    %92 = arith.addf %78, %91 : vector<8x64xf32>
    %cst_43 = arith.constant 6.250000e-02 : f32
    %93 = vector.broadcast %cst_43 : f32 to vector<8x64xf32>
    %94 = arith.mulf %93, %89 : vector<8x64xf32>
    %95 = arith.addf %67, %94 : vector<8x64xf32>
    %96 = arith.truncf %95 : vector<8x64xf32> to vector<8x64xbf16>
    %cst_44 = arith.constant dense<0.000000e+00> : vector<8x64xf32>
    %97 = tpu.matmul %96, %1, %cst_44 {dimension_numbers = #tpu.dot_dimension_numbers<[1], [0], [0], [1], [0, 0, 1, 1], [], []>} : vector<8x64xbf16>, vector<64x64xbf16>, vector<8x64xf32> -> vector<8x64xf32>
    %98 = arith.addf %97, %6 : vector<8x64xf32>
    %cst_45 = arith.constant 0.000000e+00 : f32
    %99 = vector.broadcast %cst_45 : f32 to vector<8x64xf32>
    %100 = arith.maximumf %98, %99 : vector<8x64xf32>
    %101 = arith.truncf %100 : vector<8x64xf32> to vector<8x64xbf16>
    %cst_46 = arith.constant dense<0.000000e+00> : vector<8x64xf32>
    %102 = tpu.matmul %101, %2, %cst_46 {dimension_numbers = #tpu.dot_dimension_numbers<[1], [0], [0], [1], [0, 0, 1, 1], [], []>} : vector<8x64xbf16>, vector<64x64xbf16>, vector<8x64xf32> -> vector<8x64xf32>
    %103 = arith.addf %102, %9 : vector<8x64xf32>
    %cst_47 = arith.constant 0.0416666679 : f32
    %104 = vector.broadcast %cst_47 : f32 to vector<8x64xf32>
    %105 = arith.mulf %104, %103 : vector<8x64xf32>
    %106 = arith.addf %92, %105 : vector<8x64xf32>
    %cst_48 = arith.constant 1.250000e-01 : f32
    %107 = vector.broadcast %cst_48 : f32 to vector<8x64xf32>
    %108 = arith.mulf %107, %103 : vector<8x64xf32>
    %109 = arith.addf %67, %108 : vector<8x64xf32>
    %110 = arith.truncf %109 : vector<8x64xf32> to vector<8x64xbf16>
    %cst_49 = arith.constant dense<0.000000e+00> : vector<8x64xf32>
    %111 = tpu.matmul %110, %1, %cst_49 {dimension_numbers = #tpu.dot_dimension_numbers<[1], [0], [0], [1], [0, 0, 1, 1], [], []>} : vector<8x64xbf16>, vector<64x64xbf16>, vector<8x64xf32> -> vector<8x64xf32>
    %112 = arith.addf %111, %6 : vector<8x64xf32>
    %cst_50 = arith.constant 0.000000e+00 : f32
    %113 = vector.broadcast %cst_50 : f32 to vector<8x64xf32>
    %114 = arith.maximumf %112, %113 : vector<8x64xf32>
    %115 = arith.truncf %114 : vector<8x64xf32> to vector<8x64xbf16>
    %cst_51 = arith.constant dense<0.000000e+00> : vector<8x64xf32>
    %116 = tpu.matmul %115, %2, %cst_51 {dimension_numbers = #tpu.dot_dimension_numbers<[1], [0], [0], [1], [0, 0, 1, 1], [], []>} : vector<8x64xbf16>, vector<64x64xbf16>, vector<8x64xf32> -> vector<8x64xf32>
    %117 = arith.addf %116, %9 : vector<8x64xf32>
    %cst_52 = arith.constant 0.020833334 : f32
    %118 = vector.broadcast %cst_52 : f32 to vector<8x64xf32>
    %119 = arith.mulf %118, %117 : vector<8x64xf32>
    %120 = arith.addf %106, %119 : vector<8x64xf32>
    %121 = arith.truncf %120 : vector<8x64xf32> to vector<8x64xbf16>
    %cst_53 = arith.constant dense<0.000000e+00> : vector<8x64xf32>
    %122 = tpu.matmul %121, %1, %cst_53 {dimension_numbers = #tpu.dot_dimension_numbers<[1], [0], [0], [1], [0, 0, 1, 1], [], []>} : vector<8x64xbf16>, vector<64x64xbf16>, vector<8x64xf32> -> vector<8x64xf32>
    %123 = arith.addf %122, %6 : vector<8x64xf32>
    %cst_54 = arith.constant 0.000000e+00 : f32
    %124 = vector.broadcast %cst_54 : f32 to vector<8x64xf32>
    %125 = arith.maximumf %123, %124 : vector<8x64xf32>
    %126 = arith.truncf %125 : vector<8x64xf32> to vector<8x64xbf16>
    %cst_55 = arith.constant dense<0.000000e+00> : vector<8x64xf32>
    %127 = tpu.matmul %126, %2, %cst_55 {dimension_numbers = #tpu.dot_dimension_numbers<[1], [0], [0], [1], [0, 0, 1, 1], [], []>} : vector<8x64xbf16>, vector<64x64xbf16>, vector<8x64xf32> -> vector<8x64xf32>
    %128 = arith.addf %127, %9 : vector<8x64xf32>
    %cst_56 = arith.constant 0.020833334 : f32
    %129 = vector.broadcast %cst_56 : f32 to vector<8x64xf32>
    %130 = arith.mulf %129, %128 : vector<8x64xf32>
    %131 = arith.addf %120, %130 : vector<8x64xf32>
    %cst_57 = arith.constant 6.250000e-02 : f32
    %132 = vector.broadcast %cst_57 : f32 to vector<8x64xf32>
    %133 = arith.mulf %132, %128 : vector<8x64xf32>
    %134 = arith.addf %120, %133 : vector<8x64xf32>
    %135 = arith.truncf %134 : vector<8x64xf32> to vector<8x64xbf16>
    %cst_58 = arith.constant dense<0.000000e+00> : vector<8x64xf32>
    %136 = tpu.matmul %135, %1, %cst_58 {dimension_numbers = #tpu.dot_dimension_numbers<[1], [0], [0], [1], [0, 0, 1, 1], [], []>} : vector<8x64xbf16>, vector<64x64xbf16>, vector<8x64xf32> -> vector<8x64xf32>
    %137 = arith.addf %136, %6 : vector<8x64xf32>
    %cst_59 = arith.constant 0.000000e+00 : f32
    %138 = vector.broadcast %cst_59 : f32 to vector<8x64xf32>
    %139 = arith.maximumf %137, %138 : vector<8x64xf32>
    %140 = arith.truncf %139 : vector<8x64xf32> to vector<8x64xbf16>
    %cst_60 = arith.constant dense<0.000000e+00> : vector<8x64xf32>
    %141 = tpu.matmul %140, %2, %cst_60 {dimension_numbers = #tpu.dot_dimension_numbers<[1], [0], [0], [1], [0, 0, 1, 1], [], []>} : vector<8x64xbf16>, vector<64x64xbf16>, vector<8x64xf32> -> vector<8x64xf32>
    %142 = arith.addf %141, %9 : vector<8x64xf32>
    %cst_61 = arith.constant 0.0416666679 : f32
    %143 = vector.broadcast %cst_61 : f32 to vector<8x64xf32>
    %144 = arith.mulf %143, %142 : vector<8x64xf32>
    %145 = arith.addf %131, %144 : vector<8x64xf32>
    %cst_62 = arith.constant 6.250000e-02 : f32
    %146 = vector.broadcast %cst_62 : f32 to vector<8x64xf32>
    %147 = arith.mulf %146, %142 : vector<8x64xf32>
    %148 = arith.addf %120, %147 : vector<8x64xf32>
    %149 = arith.truncf %148 : vector<8x64xf32> to vector<8x64xbf16>
    %cst_63 = arith.constant dense<0.000000e+00> : vector<8x64xf32>
    %150 = tpu.matmul %149, %1, %cst_63 {dimension_numbers = #tpu.dot_dimension_numbers<[1], [0], [0], [1], [0, 0, 1, 1], [], []>} : vector<8x64xbf16>, vector<64x64xbf16>, vector<8x64xf32> -> vector<8x64xf32>
    %151 = arith.addf %150, %6 : vector<8x64xf32>
    %cst_64 = arith.constant 0.000000e+00 : f32
    %152 = vector.broadcast %cst_64 : f32 to vector<8x64xf32>
    %153 = arith.maximumf %151, %152 : vector<8x64xf32>
    %154 = arith.truncf %153 : vector<8x64xf32> to vector<8x64xbf16>
    %cst_65 = arith.constant dense<0.000000e+00> : vector<8x64xf32>
    %155 = tpu.matmul %154, %2, %cst_65 {dimension_numbers = #tpu.dot_dimension_numbers<[1], [0], [0], [1], [0, 0, 1, 1], [], []>} : vector<8x64xbf16>, vector<64x64xbf16>, vector<8x64xf32> -> vector<8x64xf32>
    %156 = arith.addf %155, %9 : vector<8x64xf32>
    %cst_66 = arith.constant 0.0416666679 : f32
    %157 = vector.broadcast %cst_66 : f32 to vector<8x64xf32>
    %158 = arith.mulf %157, %156 : vector<8x64xf32>
    %159 = arith.addf %145, %158 : vector<8x64xf32>
    %cst_67 = arith.constant 1.250000e-01 : f32
    %160 = vector.broadcast %cst_67 : f32 to vector<8x64xf32>
    %161 = arith.mulf %160, %156 : vector<8x64xf32>
    %162 = arith.addf %120, %161 : vector<8x64xf32>
    %163 = arith.truncf %162 : vector<8x64xf32> to vector<8x64xbf16>
    %cst_68 = arith.constant dense<0.000000e+00> : vector<8x64xf32>
    %164 = tpu.matmul %163, %1, %cst_68 {dimension_numbers = #tpu.dot_dimension_numbers<[1], [0], [0], [1], [0, 0, 1, 1], [], []>} : vector<8x64xbf16>, vector<64x64xbf16>, vector<8x64xf32> -> vector<8x64xf32>
    %165 = arith.addf %164, %6 : vector<8x64xf32>
    %cst_69 = arith.constant 0.000000e+00 : f32
    %166 = vector.broadcast %cst_69 : f32 to vector<8x64xf32>
    %167 = arith.maximumf %165, %166 : vector<8x64xf32>
    %168 = arith.truncf %167 : vector<8x64xf32> to vector<8x64xbf16>
    %cst_70 = arith.constant dense<0.000000e+00> : vector<8x64xf32>
    %169 = tpu.matmul %168, %2, %cst_70 {dimension_numbers = #tpu.dot_dimension_numbers<[1], [0], [0], [1], [0, 0, 1, 1], [], []>} : vector<8x64xbf16>, vector<64x64xbf16>, vector<8x64xf32> -> vector<8x64xf32>
    %170 = arith.addf %169, %9 : vector<8x64xf32>
    %cst_71 = arith.constant 0.020833334 : f32
    %171 = vector.broadcast %cst_71 : f32 to vector<8x64xf32>
    %172 = arith.mulf %171, %170 : vector<8x64xf32>
    %173 = arith.addf %159, %172 : vector<8x64xf32>
    %174 = arith.truncf %173 : vector<8x64xf32> to vector<8x64xbf16>
    %cst_72 = arith.constant dense<0.000000e+00> : vector<8x64xf32>
    %175 = tpu.matmul %174, %1, %cst_72 {dimension_numbers = #tpu.dot_dimension_numbers<[1], [0], [0], [1], [0, 0, 1, 1], [], []>} : vector<8x64xbf16>, vector<64x64xbf16>, vector<8x64xf32> -> vector<8x64xf32>
    %176 = arith.addf %175, %6 : vector<8x64xf32>
    %cst_73 = arith.constant 0.000000e+00 : f32
    %177 = vector.broadcast %cst_73 : f32 to vector<8x64xf32>
    %178 = arith.maximumf %176, %177 : vector<8x64xf32>
    %179 = arith.truncf %178 : vector<8x64xf32> to vector<8x64xbf16>
    %cst_74 = arith.constant dense<0.000000e+00> : vector<8x64xf32>
    %180 = tpu.matmul %179, %2, %cst_74 {dimension_numbers = #tpu.dot_dimension_numbers<[1], [0], [0], [1], [0, 0, 1, 1], [], []>} : vector<8x64xbf16>, vector<64x64xbf16>, vector<8x64xf32> -> vector<8x64xf32>
    %181 = arith.addf %180, %9 : vector<8x64xf32>
    %cst_75 = arith.constant 0.020833334 : f32
    %182 = vector.broadcast %cst_75 : f32 to vector<8x64xf32>
    %183 = arith.mulf %182, %181 : vector<8x64xf32>
    %184 = arith.addf %173, %183 : vector<8x64xf32>
    %cst_76 = arith.constant 6.250000e-02 : f32
    %185 = vector.broadcast %cst_76 : f32 to vector<8x64xf32>
    %186 = arith.mulf %185, %181 : vector<8x64xf32>
    %187 = arith.addf %173, %186 : vector<8x64xf32>
    %188 = arith.truncf %187 : vector<8x64xf32> to vector<8x64xbf16>
    %cst_77 = arith.constant dense<0.000000e+00> : vector<8x64xf32>
    %189 = tpu.matmul %188, %1, %cst_77 {dimension_numbers = #tpu.dot_dimension_numbers<[1], [0], [0], [1], [0, 0, 1, 1], [], []>} : vector<8x64xbf16>, vector<64x64xbf16>, vector<8x64xf32> -> vector<8x64xf32>
    %190 = arith.addf %189, %6 : vector<8x64xf32>
    %cst_78 = arith.constant 0.000000e+00 : f32
    %191 = vector.broadcast %cst_78 : f32 to vector<8x64xf32>
    %192 = arith.maximumf %190, %191 : vector<8x64xf32>
    %193 = arith.truncf %192 : vector<8x64xf32> to vector<8x64xbf16>
    %cst_79 = arith.constant dense<0.000000e+00> : vector<8x64xf32>
    %194 = tpu.matmul %193, %2, %cst_79 {dimension_numbers = #tpu.dot_dimension_numbers<[1], [0], [0], [1], [0, 0, 1, 1], [], []>} : vector<8x64xbf16>, vector<64x64xbf16>, vector<8x64xf32> -> vector<8x64xf32>
    %195 = arith.addf %194, %9 : vector<8x64xf32>
    %cst_80 = arith.constant 0.0416666679 : f32
    %196 = vector.broadcast %cst_80 : f32 to vector<8x64xf32>
    %197 = arith.mulf %196, %195 : vector<8x64xf32>
    %198 = arith.addf %184, %197 : vector<8x64xf32>
    %cst_81 = arith.constant 6.250000e-02 : f32
    %199 = vector.broadcast %cst_81 : f32 to vector<8x64xf32>
    %200 = arith.mulf %199, %195 : vector<8x64xf32>
    %201 = arith.addf %173, %200 : vector<8x64xf32>
    %202 = arith.truncf %201 : vector<8x64xf32> to vector<8x64xbf16>
    %cst_82 = arith.constant dense<0.000000e+00> : vector<8x64xf32>
    %203 = tpu.matmul %202, %1, %cst_82 {dimension_numbers = #tpu.dot_dimension_numbers<[1], [0], [0], [1], [0, 0, 1, 1], [], []>} : vector<8x64xbf16>, vector<64x64xbf16>, vector<8x64xf32> -> vector<8x64xf32>
    %204 = arith.addf %203, %6 : vector<8x64xf32>
    %cst_83 = arith.constant 0.000000e+00 : f32
    %205 = vector.broadcast %cst_83 : f32 to vector<8x64xf32>
    %206 = arith.maximumf %204, %205 : vector<8x64xf32>
    %207 = arith.truncf %206 : vector<8x64xf32> to vector<8x64xbf16>
    %cst_84 = arith.constant dense<0.000000e+00> : vector<8x64xf32>
    %208 = tpu.matmul %207, %2, %cst_84 {dimension_numbers = #tpu.dot_dimension_numbers<[1], [0], [0], [1], [0, 0, 1, 1], [], []>} : vector<8x64xbf16>, vector<64x64xbf16>, vector<8x64xf32> -> vector<8x64xf32>
    %209 = arith.addf %208, %9 : vector<8x64xf32>
    %cst_85 = arith.constant 0.0416666679 : f32
    %210 = vector.broadcast %cst_85 : f32 to vector<8x64xf32>
    %211 = arith.mulf %210, %209 : vector<8x64xf32>
    %212 = arith.addf %198, %211 : vector<8x64xf32>
    %cst_86 = arith.constant 1.250000e-01 : f32
    %213 = vector.broadcast %cst_86 : f32 to vector<8x64xf32>
    %214 = arith.mulf %213, %209 : vector<8x64xf32>
    %215 = arith.addf %173, %214 : vector<8x64xf32>
    %216 = arith.truncf %215 : vector<8x64xf32> to vector<8x64xbf16>
    %cst_87 = arith.constant dense<0.000000e+00> : vector<8x64xf32>
    %217 = tpu.matmul %216, %1, %cst_87 {dimension_numbers = #tpu.dot_dimension_numbers<[1], [0], [0], [1], [0, 0, 1, 1], [], []>} : vector<8x64xbf16>, vector<64x64xbf16>, vector<8x64xf32> -> vector<8x64xf32>
    %218 = arith.addf %217, %6 : vector<8x64xf32>
    %cst_88 = arith.constant 0.000000e+00 : f32
    %219 = vector.broadcast %cst_88 : f32 to vector<8x64xf32>
    %220 = arith.maximumf %218, %219 : vector<8x64xf32>
    %221 = arith.truncf %220 : vector<8x64xf32> to vector<8x64xbf16>
    %cst_89 = arith.constant dense<0.000000e+00> : vector<8x64xf32>
    %222 = tpu.matmul %221, %2, %cst_89 {dimension_numbers = #tpu.dot_dimension_numbers<[1], [0], [0], [1], [0, 0, 1, 1], [], []>} : vector<8x64xbf16>, vector<64x64xbf16>, vector<8x64xf32> -> vector<8x64xf32>
    %223 = arith.addf %222, %9 : vector<8x64xf32>
    %cst_90 = arith.constant 0.020833334 : f32
    %224 = vector.broadcast %cst_90 : f32 to vector<8x64xf32>
    %225 = arith.mulf %224, %223 : vector<8x64xf32>
    %226 = arith.addf %212, %225 : vector<8x64xf32>
    %227 = arith.truncf %226 : vector<8x64xf32> to vector<8x64xbf16>
    %cst_91 = arith.constant dense<0.000000e+00> : vector<8x64xf32>
    %228 = tpu.matmul %227, %1, %cst_91 {dimension_numbers = #tpu.dot_dimension_numbers<[1], [0], [0], [1], [0, 0, 1, 1], [], []>} : vector<8x64xbf16>, vector<64x64xbf16>, vector<8x64xf32> -> vector<8x64xf32>
    %229 = arith.addf %228, %6 : vector<8x64xf32>
    %cst_92 = arith.constant 0.000000e+00 : f32
    %230 = vector.broadcast %cst_92 : f32 to vector<8x64xf32>
    %231 = arith.maximumf %229, %230 : vector<8x64xf32>
    %232 = arith.truncf %231 : vector<8x64xf32> to vector<8x64xbf16>
    %cst_93 = arith.constant dense<0.000000e+00> : vector<8x64xf32>
    %233 = tpu.matmul %232, %2, %cst_93 {dimension_numbers = #tpu.dot_dimension_numbers<[1], [0], [0], [1], [0, 0, 1, 1], [], []>} : vector<8x64xbf16>, vector<64x64xbf16>, vector<8x64xf32> -> vector<8x64xf32>
    %234 = arith.addf %233, %9 : vector<8x64xf32>
    %cst_94 = arith.constant 0.020833334 : f32
    %235 = vector.broadcast %cst_94 : f32 to vector<8x64xf32>
    %236 = arith.mulf %235, %234 : vector<8x64xf32>
    %237 = arith.addf %226, %236 : vector<8x64xf32>
    %cst_95 = arith.constant 6.250000e-02 : f32
    %238 = vector.broadcast %cst_95 : f32 to vector<8x64xf32>
    %239 = arith.mulf %238, %234 : vector<8x64xf32>
    %240 = arith.addf %226, %239 : vector<8x64xf32>
    %241 = arith.truncf %240 : vector<8x64xf32> to vector<8x64xbf16>
    %cst_96 = arith.constant dense<0.000000e+00> : vector<8x64xf32>
    %242 = tpu.matmul %241, %1, %cst_96 {dimension_numbers = #tpu.dot_dimension_numbers<[1], [0], [0], [1], [0, 0, 1, 1], [], []>} : vector<8x64xbf16>, vector<64x64xbf16>, vector<8x64xf32> -> vector<8x64xf32>
    %243 = arith.addf %242, %6 : vector<8x64xf32>
    %cst_97 = arith.constant 0.000000e+00 : f32
    %244 = vector.broadcast %cst_97 : f32 to vector<8x64xf32>
    %245 = arith.maximumf %243, %244 : vector<8x64xf32>
    %246 = arith.truncf %245 : vector<8x64xf32> to vector<8x64xbf16>
    %cst_98 = arith.constant dense<0.000000e+00> : vector<8x64xf32>
    %247 = tpu.matmul %246, %2, %cst_98 {dimension_numbers = #tpu.dot_dimension_numbers<[1], [0], [0], [1], [0, 0, 1, 1], [], []>} : vector<8x64xbf16>, vector<64x64xbf16>, vector<8x64xf32> -> vector<8x64xf32>
    %248 = arith.addf %247, %9 : vector<8x64xf32>
    %cst_99 = arith.constant 0.0416666679 : f32
    %249 = vector.broadcast %cst_99 : f32 to vector<8x64xf32>
    %250 = arith.mulf %249, %248 : vector<8x64xf32>
    %251 = arith.addf %237, %250 : vector<8x64xf32>
    %cst_100 = arith.constant 6.250000e-02 : f32
    %252 = vector.broadcast %cst_100 : f32 to vector<8x64xf32>
    %253 = arith.mulf %252, %248 : vector<8x64xf32>
    %254 = arith.addf %226, %253 : vector<8x64xf32>
    %255 = arith.truncf %254 : vector<8x64xf32> to vector<8x64xbf16>
    %cst_101 = arith.constant dense<0.000000e+00> : vector<8x64xf32>
    %256 = tpu.matmul %255, %1, %cst_101 {dimension_numbers = #tpu.dot_dimension_numbers<[1], [0], [0], [1], [0, 0, 1, 1], [], []>} : vector<8x64xbf16>, vector<64x64xbf16>, vector<8x64xf32> -> vector<8x64xf32>
    %257 = arith.addf %256, %6 : vector<8x64xf32>
    %cst_102 = arith.constant 0.000000e+00 : f32
    %258 = vector.broadcast %cst_102 : f32 to vector<8x64xf32>
    %259 = arith.maximumf %257, %258 : vector<8x64xf32>
    %260 = arith.truncf %259 : vector<8x64xf32> to vector<8x64xbf16>
    %cst_103 = arith.constant dense<0.000000e+00> : vector<8x64xf32>
    %261 = tpu.matmul %260, %2, %cst_103 {dimension_numbers = #tpu.dot_dimension_numbers<[1], [0], [0], [1], [0, 0, 1, 1], [], []>} : vector<8x64xbf16>, vector<64x64xbf16>, vector<8x64xf32> -> vector<8x64xf32>
    %262 = arith.addf %261, %9 : vector<8x64xf32>
    %cst_104 = arith.constant 0.0416666679 : f32
    %263 = vector.broadcast %cst_104 : f32 to vector<8x64xf32>
    %264 = arith.mulf %263, %262 : vector<8x64xf32>
    %265 = arith.addf %251, %264 : vector<8x64xf32>
    %cst_105 = arith.constant 1.250000e-01 : f32
    %266 = vector.broadcast %cst_105 : f32 to vector<8x64xf32>
    %267 = arith.mulf %266, %262 : vector<8x64xf32>
    %268 = arith.addf %226, %267 : vector<8x64xf32>
    %269 = arith.truncf %268 : vector<8x64xf32> to vector<8x64xbf16>
    %cst_106 = arith.constant dense<0.000000e+00> : vector<8x64xf32>
    %270 = tpu.matmul %269, %1, %cst_106 {dimension_numbers = #tpu.dot_dimension_numbers<[1], [0], [0], [1], [0, 0, 1, 1], [], []>} : vector<8x64xbf16>, vector<64x64xbf16>, vector<8x64xf32> -> vector<8x64xf32>
    %271 = arith.addf %270, %6 : vector<8x64xf32>
    %cst_107 = arith.constant 0.000000e+00 : f32
    %272 = vector.broadcast %cst_107 : f32 to vector<8x64xf32>
    %273 = arith.maximumf %271, %272 : vector<8x64xf32>
    %274 = arith.truncf %273 : vector<8x64xf32> to vector<8x64xbf16>
    %cst_108 = arith.constant dense<0.000000e+00> : vector<8x64xf32>
    %275 = tpu.matmul %274, %2, %cst_108 {dimension_numbers = #tpu.dot_dimension_numbers<[1], [0], [0], [1], [0, 0, 1, 1], [], []>} : vector<8x64xbf16>, vector<64x64xbf16>, vector<8x64xf32> -> vector<8x64xf32>
    %276 = arith.addf %275, %9 : vector<8x64xf32>
    %cst_109 = arith.constant 0.020833334 : f32
    %277 = vector.broadcast %cst_109 : f32 to vector<8x64xf32>
    %278 = arith.mulf %277, %276 : vector<8x64xf32>
    %279 = arith.addf %265, %278 : vector<8x64xf32>
    %280 = arith.truncf %279 : vector<8x64xf32> to vector<8x64xbf16>
    %cst_110 = arith.constant dense<0.000000e+00> : vector<8x64xf32>
    %281 = tpu.matmul %280, %1, %cst_110 {dimension_numbers = #tpu.dot_dimension_numbers<[1], [0], [0], [1], [0, 0, 1, 1], [], []>} : vector<8x64xbf16>, vector<64x64xbf16>, vector<8x64xf32> -> vector<8x64xf32>
    %282 = arith.addf %281, %6 : vector<8x64xf32>
    %cst_111 = arith.constant 0.000000e+00 : f32
    %283 = vector.broadcast %cst_111 : f32 to vector<8x64xf32>
    %284 = arith.maximumf %282, %283 : vector<8x64xf32>
    %285 = arith.truncf %284 : vector<8x64xf32> to vector<8x64xbf16>
    %cst_112 = arith.constant dense<0.000000e+00> : vector<8x64xf32>
    %286 = tpu.matmul %285, %2, %cst_112 {dimension_numbers = #tpu.dot_dimension_numbers<[1], [0], [0], [1], [0, 0, 1, 1], [], []>} : vector<8x64xbf16>, vector<64x64xbf16>, vector<8x64xf32> -> vector<8x64xf32>
    %287 = arith.addf %286, %9 : vector<8x64xf32>
    %cst_113 = arith.constant 0.020833334 : f32
    %288 = vector.broadcast %cst_113 : f32 to vector<8x64xf32>
    %289 = arith.mulf %288, %287 : vector<8x64xf32>
    %290 = arith.addf %279, %289 : vector<8x64xf32>
    %cst_114 = arith.constant 6.250000e-02 : f32
    %291 = vector.broadcast %cst_114 : f32 to vector<8x64xf32>
    %292 = arith.mulf %291, %287 : vector<8x64xf32>
    %293 = arith.addf %279, %292 : vector<8x64xf32>
    %294 = arith.truncf %293 : vector<8x64xf32> to vector<8x64xbf16>
    %cst_115 = arith.constant dense<0.000000e+00> : vector<8x64xf32>
    %295 = tpu.matmul %294, %1, %cst_115 {dimension_numbers = #tpu.dot_dimension_numbers<[1], [0], [0], [1], [0, 0, 1, 1], [], []>} : vector<8x64xbf16>, vector<64x64xbf16>, vector<8x64xf32> -> vector<8x64xf32>
    %296 = arith.addf %295, %6 : vector<8x64xf32>
    %cst_116 = arith.constant 0.000000e+00 : f32
    %297 = vector.broadcast %cst_116 : f32 to vector<8x64xf32>
    %298 = arith.maximumf %296, %297 : vector<8x64xf32>
    %299 = arith.truncf %298 : vector<8x64xf32> to vector<8x64xbf16>
    %cst_117 = arith.constant dense<0.000000e+00> : vector<8x64xf32>
    %300 = tpu.matmul %299, %2, %cst_117 {dimension_numbers = #tpu.dot_dimension_numbers<[1], [0], [0], [1], [0, 0, 1, 1], [], []>} : vector<8x64xbf16>, vector<64x64xbf16>, vector<8x64xf32> -> vector<8x64xf32>
    %301 = arith.addf %300, %9 : vector<8x64xf32>
    %cst_118 = arith.constant 0.0416666679 : f32
    %302 = vector.broadcast %cst_118 : f32 to vector<8x64xf32>
    %303 = arith.mulf %302, %301 : vector<8x64xf32>
    %304 = arith.addf %290, %303 : vector<8x64xf32>
    %cst_119 = arith.constant 6.250000e-02 : f32
    %305 = vector.broadcast %cst_119 : f32 to vector<8x64xf32>
    %306 = arith.mulf %305, %301 : vector<8x64xf32>
    %307 = arith.addf %279, %306 : vector<8x64xf32>
    %308 = arith.truncf %307 : vector<8x64xf32> to vector<8x64xbf16>
    %cst_120 = arith.constant dense<0.000000e+00> : vector<8x64xf32>
    %309 = tpu.matmul %308, %1, %cst_120 {dimension_numbers = #tpu.dot_dimension_numbers<[1], [0], [0], [1], [0, 0, 1, 1], [], []>} : vector<8x64xbf16>, vector<64x64xbf16>, vector<8x64xf32> -> vector<8x64xf32>
    %310 = arith.addf %309, %6 : vector<8x64xf32>
    %cst_121 = arith.constant 0.000000e+00 : f32
    %311 = vector.broadcast %cst_121 : f32 to vector<8x64xf32>
    %312 = arith.maximumf %310, %311 : vector<8x64xf32>
    %313 = arith.truncf %312 : vector<8x64xf32> to vector<8x64xbf16>
    %cst_122 = arith.constant dense<0.000000e+00> : vector<8x64xf32>
    %314 = tpu.matmul %313, %2, %cst_122 {dimension_numbers = #tpu.dot_dimension_numbers<[1], [0], [0], [1], [0, 0, 1, 1], [], []>} : vector<8x64xbf16>, vector<64x64xbf16>, vector<8x64xf32> -> vector<8x64xf32>
    %315 = arith.addf %314, %9 : vector<8x64xf32>
    %cst_123 = arith.constant 0.0416666679 : f32
    %316 = vector.broadcast %cst_123 : f32 to vector<8x64xf32>
    %317 = arith.mulf %316, %315 : vector<8x64xf32>
    %318 = arith.addf %304, %317 : vector<8x64xf32>
    %cst_124 = arith.constant 1.250000e-01 : f32
    %319 = vector.broadcast %cst_124 : f32 to vector<8x64xf32>
    %320 = arith.mulf %319, %315 : vector<8x64xf32>
    %321 = arith.addf %279, %320 : vector<8x64xf32>
    %322 = arith.truncf %321 : vector<8x64xf32> to vector<8x64xbf16>
    %cst_125 = arith.constant dense<0.000000e+00> : vector<8x64xf32>
    %323 = tpu.matmul %322, %1, %cst_125 {dimension_numbers = #tpu.dot_dimension_numbers<[1], [0], [0], [1], [0, 0, 1, 1], [], []>} : vector<8x64xbf16>, vector<64x64xbf16>, vector<8x64xf32> -> vector<8x64xf32>
    %324 = arith.addf %323, %6 : vector<8x64xf32>
    %cst_126 = arith.constant 0.000000e+00 : f32
    %325 = vector.broadcast %cst_126 : f32 to vector<8x64xf32>
    %326 = arith.maximumf %324, %325 : vector<8x64xf32>
    %327 = arith.truncf %326 : vector<8x64xf32> to vector<8x64xbf16>
    %cst_127 = arith.constant dense<0.000000e+00> : vector<8x64xf32>
    %328 = tpu.matmul %327, %2, %cst_127 {dimension_numbers = #tpu.dot_dimension_numbers<[1], [0], [0], [1], [0, 0, 1, 1], [], []>} : vector<8x64xbf16>, vector<64x64xbf16>, vector<8x64xf32> -> vector<8x64xf32>
    %329 = arith.addf %328, %9 : vector<8x64xf32>
    %cst_128 = arith.constant 0.020833334 : f32
    %330 = vector.broadcast %cst_128 : f32 to vector<8x64xf32>
    %331 = arith.mulf %330, %329 : vector<8x64xf32>
    %332 = arith.addf %318, %331 : vector<8x64xf32>
    %333 = arith.truncf %332 : vector<8x64xf32> to vector<8x64xbf16>
    %cst_129 = arith.constant dense<0.000000e+00> : vector<8x64xf32>
    %334 = tpu.matmul %333, %1, %cst_129 {dimension_numbers = #tpu.dot_dimension_numbers<[1], [0], [0], [1], [0, 0, 1, 1], [], []>} : vector<8x64xbf16>, vector<64x64xbf16>, vector<8x64xf32> -> vector<8x64xf32>
    %335 = arith.addf %334, %6 : vector<8x64xf32>
    %cst_130 = arith.constant 0.000000e+00 : f32
    %336 = vector.broadcast %cst_130 : f32 to vector<8x64xf32>
    %337 = arith.maximumf %335, %336 : vector<8x64xf32>
    %338 = arith.truncf %337 : vector<8x64xf32> to vector<8x64xbf16>
    %cst_131 = arith.constant dense<0.000000e+00> : vector<8x64xf32>
    %339 = tpu.matmul %338, %2, %cst_131 {dimension_numbers = #tpu.dot_dimension_numbers<[1], [0], [0], [1], [0, 0, 1, 1], [], []>} : vector<8x64xbf16>, vector<64x64xbf16>, vector<8x64xf32> -> vector<8x64xf32>
    %340 = arith.addf %339, %9 : vector<8x64xf32>
    %cst_132 = arith.constant 0.020833334 : f32
    %341 = vector.broadcast %cst_132 : f32 to vector<8x64xf32>
    %342 = arith.mulf %341, %340 : vector<8x64xf32>
    %343 = arith.addf %332, %342 : vector<8x64xf32>
    %cst_133 = arith.constant 6.250000e-02 : f32
    %344 = vector.broadcast %cst_133 : f32 to vector<8x64xf32>
    %345 = arith.mulf %344, %340 : vector<8x64xf32>
    %346 = arith.addf %332, %345 : vector<8x64xf32>
    %347 = arith.truncf %346 : vector<8x64xf32> to vector<8x64xbf16>
    %cst_134 = arith.constant dense<0.000000e+00> : vector<8x64xf32>
    %348 = tpu.matmul %347, %1, %cst_134 {dimension_numbers = #tpu.dot_dimension_numbers<[1], [0], [0], [1], [0, 0, 1, 1], [], []>} : vector<8x64xbf16>, vector<64x64xbf16>, vector<8x64xf32> -> vector<8x64xf32>
    %349 = arith.addf %348, %6 : vector<8x64xf32>
    %cst_135 = arith.constant 0.000000e+00 : f32
    %350 = vector.broadcast %cst_135 : f32 to vector<8x64xf32>
    %351 = arith.maximumf %349, %350 : vector<8x64xf32>
    %352 = arith.truncf %351 : vector<8x64xf32> to vector<8x64xbf16>
    %cst_136 = arith.constant dense<0.000000e+00> : vector<8x64xf32>
    %353 = tpu.matmul %352, %2, %cst_136 {dimension_numbers = #tpu.dot_dimension_numbers<[1], [0], [0], [1], [0, 0, 1, 1], [], []>} : vector<8x64xbf16>, vector<64x64xbf16>, vector<8x64xf32> -> vector<8x64xf32>
    %354 = arith.addf %353, %9 : vector<8x64xf32>
    %cst_137 = arith.constant 0.0416666679 : f32
    %355 = vector.broadcast %cst_137 : f32 to vector<8x64xf32>
    %356 = arith.mulf %355, %354 : vector<8x64xf32>
    %357 = arith.addf %343, %356 : vector<8x64xf32>
    %cst_138 = arith.constant 6.250000e-02 : f32
    %358 = vector.broadcast %cst_138 : f32 to vector<8x64xf32>
    %359 = arith.mulf %358, %354 : vector<8x64xf32>
    %360 = arith.addf %332, %359 : vector<8x64xf32>
    %361 = arith.truncf %360 : vector<8x64xf32> to vector<8x64xbf16>
    %cst_139 = arith.constant dense<0.000000e+00> : vector<8x64xf32>
    %362 = tpu.matmul %361, %1, %cst_139 {dimension_numbers = #tpu.dot_dimension_numbers<[1], [0], [0], [1], [0, 0, 1, 1], [], []>} : vector<8x64xbf16>, vector<64x64xbf16>, vector<8x64xf32> -> vector<8x64xf32>
    %363 = arith.addf %362, %6 : vector<8x64xf32>
    %cst_140 = arith.constant 0.000000e+00 : f32
    %364 = vector.broadcast %cst_140 : f32 to vector<8x64xf32>
    %365 = arith.maximumf %363, %364 : vector<8x64xf32>
    %366 = arith.truncf %365 : vector<8x64xf32> to vector<8x64xbf16>
    %cst_141 = arith.constant dense<0.000000e+00> : vector<8x64xf32>
    %367 = tpu.matmul %366, %2, %cst_141 {dimension_numbers = #tpu.dot_dimension_numbers<[1], [0], [0], [1], [0, 0, 1, 1], [], []>} : vector<8x64xbf16>, vector<64x64xbf16>, vector<8x64xf32> -> vector<8x64xf32>
    %368 = arith.addf %367, %9 : vector<8x64xf32>
    %cst_142 = arith.constant 0.0416666679 : f32
    %369 = vector.broadcast %cst_142 : f32 to vector<8x64xf32>
    %370 = arith.mulf %369, %368 : vector<8x64xf32>
    %371 = arith.addf %357, %370 : vector<8x64xf32>
    %cst_143 = arith.constant 1.250000e-01 : f32
    %372 = vector.broadcast %cst_143 : f32 to vector<8x64xf32>
    %373 = arith.mulf %372, %368 : vector<8x64xf32>
    %374 = arith.addf %332, %373 : vector<8x64xf32>
    %375 = arith.truncf %374 : vector<8x64xf32> to vector<8x64xbf16>
    %cst_144 = arith.constant dense<0.000000e+00> : vector<8x64xf32>
    %376 = tpu.matmul %375, %1, %cst_144 {dimension_numbers = #tpu.dot_dimension_numbers<[1], [0], [0], [1], [0, 0, 1, 1], [], []>} : vector<8x64xbf16>, vector<64x64xbf16>, vector<8x64xf32> -> vector<8x64xf32>
    %377 = arith.addf %376, %6 : vector<8x64xf32>
    %cst_145 = arith.constant 0.000000e+00 : f32
    %378 = vector.broadcast %cst_145 : f32 to vector<8x64xf32>
    %379 = arith.maximumf %377, %378 : vector<8x64xf32>
    %380 = arith.truncf %379 : vector<8x64xf32> to vector<8x64xbf16>
    %cst_146 = arith.constant dense<0.000000e+00> : vector<8x64xf32>
    %381 = tpu.matmul %380, %2, %cst_146 {dimension_numbers = #tpu.dot_dimension_numbers<[1], [0], [0], [1], [0, 0, 1, 1], [], []>} : vector<8x64xbf16>, vector<64x64xbf16>, vector<8x64xf32> -> vector<8x64xf32>
    %382 = arith.addf %381, %9 : vector<8x64xf32>
    %cst_147 = arith.constant 0.020833334 : f32
    %383 = vector.broadcast %cst_147 : f32 to vector<8x64xf32>
    %384 = arith.mulf %383, %382 : vector<8x64xf32>
    %385 = arith.addf %371, %384 : vector<8x64xf32>
    %386 = arith.truncf %385 : vector<8x64xf32> to vector<8x64xbf16>
    %cst_148 = arith.constant dense<0.000000e+00> : vector<8x64xf32>
    %387 = tpu.matmul %386, %1, %cst_148 {dimension_numbers = #tpu.dot_dimension_numbers<[1], [0], [0], [1], [0, 0, 1, 1], [], []>} : vector<8x64xbf16>, vector<64x64xbf16>, vector<8x64xf32> -> vector<8x64xf32>
    %388 = arith.addf %387, %6 : vector<8x64xf32>
    %cst_149 = arith.constant 0.000000e+00 : f32
    %389 = vector.broadcast %cst_149 : f32 to vector<8x64xf32>
    %390 = arith.maximumf %388, %389 : vector<8x64xf32>
    %391 = arith.truncf %390 : vector<8x64xf32> to vector<8x64xbf16>
    %cst_150 = arith.constant dense<0.000000e+00> : vector<8x64xf32>
    %392 = tpu.matmul %391, %2, %cst_150 {dimension_numbers = #tpu.dot_dimension_numbers<[1], [0], [0], [1], [0, 0, 1, 1], [], []>} : vector<8x64xbf16>, vector<64x64xbf16>, vector<8x64xf32> -> vector<8x64xf32>
    %393 = arith.addf %392, %9 : vector<8x64xf32>
    %cst_151 = arith.constant 0.020833334 : f32
    %394 = vector.broadcast %cst_151 : f32 to vector<8x64xf32>
    %395 = arith.mulf %394, %393 : vector<8x64xf32>
    %396 = arith.addf %385, %395 : vector<8x64xf32>
    %cst_152 = arith.constant 6.250000e-02 : f32
    %397 = vector.broadcast %cst_152 : f32 to vector<8x64xf32>
    %398 = arith.mulf %397, %393 : vector<8x64xf32>
    %399 = arith.addf %385, %398 : vector<8x64xf32>
    %400 = arith.truncf %399 : vector<8x64xf32> to vector<8x64xbf16>
    %cst_153 = arith.constant dense<0.000000e+00> : vector<8x64xf32>
    %401 = tpu.matmul %400, %1, %cst_153 {dimension_numbers = #tpu.dot_dimension_numbers<[1], [0], [0], [1], [0, 0, 1, 1], [], []>} : vector<8x64xbf16>, vector<64x64xbf16>, vector<8x64xf32> -> vector<8x64xf32>
    %402 = arith.addf %401, %6 : vector<8x64xf32>
    %cst_154 = arith.constant 0.000000e+00 : f32
    %403 = vector.broadcast %cst_154 : f32 to vector<8x64xf32>
    %404 = arith.maximumf %402, %403 : vector<8x64xf32>
    %405 = arith.truncf %404 : vector<8x64xf32> to vector<8x64xbf16>
    %cst_155 = arith.constant dense<0.000000e+00> : vector<8x64xf32>
    %406 = tpu.matmul %405, %2, %cst_155 {dimension_numbers = #tpu.dot_dimension_numbers<[1], [0], [0], [1], [0, 0, 1, 1], [], []>} : vector<8x64xbf16>, vector<64x64xbf16>, vector<8x64xf32> -> vector<8x64xf32>
    %407 = arith.addf %406, %9 : vector<8x64xf32>
    %cst_156 = arith.constant 0.0416666679 : f32
    %408 = vector.broadcast %cst_156 : f32 to vector<8x64xf32>
    %409 = arith.mulf %408, %407 : vector<8x64xf32>
    %410 = arith.addf %396, %409 : vector<8x64xf32>
    %cst_157 = arith.constant 6.250000e-02 : f32
    %411 = vector.broadcast %cst_157 : f32 to vector<8x64xf32>
    %412 = arith.mulf %411, %407 : vector<8x64xf32>
    %413 = arith.addf %385, %412 : vector<8x64xf32>
    %414 = arith.truncf %413 : vector<8x64xf32> to vector<8x64xbf16>
    %cst_158 = arith.constant dense<0.000000e+00> : vector<8x64xf32>
    %415 = tpu.matmul %414, %1, %cst_158 {dimension_numbers = #tpu.dot_dimension_numbers<[1], [0], [0], [1], [0, 0, 1, 1], [], []>} : vector<8x64xbf16>, vector<64x64xbf16>, vector<8x64xf32> -> vector<8x64xf32>
    %416 = arith.addf %415, %6 : vector<8x64xf32>
    %cst_159 = arith.constant 0.000000e+00 : f32
    %417 = vector.broadcast %cst_159 : f32 to vector<8x64xf32>
    %418 = arith.maximumf %416, %417 : vector<8x64xf32>
    %419 = arith.truncf %418 : vector<8x64xf32> to vector<8x64xbf16>
    %cst_160 = arith.constant dense<0.000000e+00> : vector<8x64xf32>
    %420 = tpu.matmul %419, %2, %cst_160 {dimension_numbers = #tpu.dot_dimension_numbers<[1], [0], [0], [1], [0, 0, 1, 1], [], []>} : vector<8x64xbf16>, vector<64x64xbf16>, vector<8x64xf32> -> vector<8x64xf32>
    %421 = arith.addf %420, %9 : vector<8x64xf32>
    %cst_161 = arith.constant 0.0416666679 : f32
    %422 = vector.broadcast %cst_161 : f32 to vector<8x64xf32>
    %423 = arith.mulf %422, %421 : vector<8x64xf32>
    %424 = arith.addf %410, %423 : vector<8x64xf32>
    %cst_162 = arith.constant 1.250000e-01 : f32
    %425 = vector.broadcast %cst_162 : f32 to vector<8x64xf32>
    %426 = arith.mulf %425, %421 : vector<8x64xf32>
    %427 = arith.addf %385, %426 : vector<8x64xf32>
    %428 = arith.truncf %427 : vector<8x64xf32> to vector<8x64xbf16>
    %cst_163 = arith.constant dense<0.000000e+00> : vector<8x64xf32>
    %429 = tpu.matmul %428, %1, %cst_163 {dimension_numbers = #tpu.dot_dimension_numbers<[1], [0], [0], [1], [0, 0, 1, 1], [], []>} : vector<8x64xbf16>, vector<64x64xbf16>, vector<8x64xf32> -> vector<8x64xf32>
    %430 = arith.addf %429, %6 : vector<8x64xf32>
    %cst_164 = arith.constant 0.000000e+00 : f32
    %431 = vector.broadcast %cst_164 : f32 to vector<8x64xf32>
    %432 = arith.maximumf %430, %431 : vector<8x64xf32>
    %433 = arith.truncf %432 : vector<8x64xf32> to vector<8x64xbf16>
    %cst_165 = arith.constant dense<0.000000e+00> : vector<8x64xf32>
    %434 = tpu.matmul %433, %2, %cst_165 {dimension_numbers = #tpu.dot_dimension_numbers<[1], [0], [0], [1], [0, 0, 1, 1], [], []>} : vector<8x64xbf16>, vector<64x64xbf16>, vector<8x64xf32> -> vector<8x64xf32>
    %435 = arith.addf %434, %9 : vector<8x64xf32>
    %cst_166 = arith.constant 0.020833334 : f32
    %436 = vector.broadcast %cst_166 : f32 to vector<8x64xf32>
    %437 = arith.mulf %436, %435 : vector<8x64xf32>
    %438 = arith.addf %424, %437 : vector<8x64xf32>
    %439 = arith.truncf %438 : vector<8x64xf32> to vector<8x64xbf16>
    %cst_167 = arith.constant dense<0.000000e+00> : vector<8x128xf32>
    %440 = tpu.matmul %439, %3, %cst_167 {dimension_numbers = #tpu.dot_dimension_numbers<[1], [0], [0], [1], [0, 0, 1, 1], [], []>} : vector<8x64xbf16>, vector<64x128xbf16>, vector<8x128xf32> -> vector<8x128xf32>
    %c0_168 = arith.constant 0 : index
    %c0_169 = arith.constant 0 : index
    %441 = vector.load %arg9[%c0_168, %c0_169] : memref<1x128xf32, #tpu.memory_space<vmem>>, vector<1x128xf32>
    %442 = vector.broadcast %441 : vector<1x128xf32> to vector<8x128xf32>
    %443 = arith.addf %440, %442 : vector<8x128xf32>
    %c0_170 = arith.constant 0 : index
    %c0_171 = arith.constant 0 : index
    %444 = vector.load %arg10[%c0_170, %c0_171] : memref<8x128xf32, #tpu.memory_space<vmem>>, vector<8x128xf32>
    tpu.vector_store %arg10[%c0_170, %c0_171], %443 {strides = array<i32>} : memref<8x128xf32, #tpu.memory_space<vmem>>, vector<8x128xf32>,
    return
  }
  func.func @transform_0(%arg0: i32) -> (i32, i32) {
    %c0_i32 = arith.constant 0 : i32
    %c0_i32_0 = arith.constant 0 : i32
    return %arg0, %c0_i32 : i32, i32
  }
  func.func @transform_1(%arg0: i32) -> (i32, i32) {
    %c0_i32 = arith.constant 0 : i32
    %c0_i32_0 = arith.constant 0 : i32
    %c0_i32_1 = arith.constant 0 : i32
    return %c0_i32, %c0_i32_0 : i32, i32
  }
  func.func @transform_2(%arg0: i32) -> (i32, i32) {
    %c0_i32 = arith.constant 0 : i32
    %c0_i32_0 = arith.constant 0 : i32
    %c0_i32_1 = arith.constant 0 : i32
    return %c0_i32, %c0_i32_0 : i32, i32
  }
  func.func @transform_3(%arg0: i32) -> (i32, i32) {
    %c0_i32 = arith.constant 0 : i32
    %c0_i32_0 = arith.constant 0 : i32
    %c0_i32_1 = arith.constant 0 : i32
    return %c0_i32, %c0_i32_0 : i32, i32
  }
  func.func @transform_4(%arg0: i32) -> (i32, i32) {
    %c0_i32 = arith.constant 0 : i32
    %c0_i32_0 = arith.constant 0 : i32
    %c0_i32_1 = arith.constant 0 : i32
    return %c0_i32, %c0_i32_0 : i32, i32
  }
  func.func @transform_5(%arg0: i32) -> (i32, i32) {
    %c0_i32 = arith.constant 0 : i32
    %c0_i32_0 = arith.constant 0 : i32
    %c0_i32_1 = arith.constant 0 : i32
    return %c0_i32, %c0_i32_0 : i32, i32
  }
  func.func @transform_6(%arg0: i32) -> (i32, i32) {
    %c0_i32 = arith.constant 0 : i32
    %c0_i32_0 = arith.constant 0 : i32
    %c0_i32_1 = arith.constant 0 : i32
    return %c0_i32, %c0_i32_0 : i32, i32
  }
  func.func @transform_7(%arg0: i32) -> (i32, i32) {
    %c0_i32 = arith.constant 0 : i32
    %c0_i32_0 = arith.constant 0 : i32
    %c0_i32_1 = arith.constant 0 : i32
    return %c0_i32, %c0_i32_0 : i32, i32
  }
  func.func @transform_8(%arg0: i32) -> (i32, i32) {
    %c0_i32 = arith.constant 0 : i32
    %c0_i32_0 = arith.constant 0 : i32
    %c0_i32_1 = arith.constant 0 : i32
    return %c0_i32, %c0_i32_0 : i32, i32
  }
  func.func @transform_9(%arg0: i32) -> (i32, i32) {
    %c0_i32 = arith.constant 0 : i32
    %c0_i32_0 = arith.constant 0 : i32
    return %arg0, %c0_i32 : i32, i32
  }
}

</mosaic_0001>

<llo_original>
// kernel: neural_ode_mnist_forward.3
$region0: #{neural_ode_mnist_forward.3}
  #allocation0 [shape = 'u32[]', space=smem, size = 0x4, offset = 0x4, fixed_abs, tag = 'smem constant byte address 0x4 - core index']
  #allocation1 [shape = 'u32[144,128]{1,0:T(1,128)}', space=vmem, size = 0x12000, scoped, tag = 'internal scratch']
  #allocation2 [shape = 'f32[9,840]{1,0:T(8,128)}', space=vmem, size = 0xe000, scoped, tag = 'scratch operand']
  %s0 = inlined_call_operand.vmem [shape: bf16[2,1,930], index: 0, kind: input, shape index: {}]
  %s1 = inlined_call_operand.vmem [shape: bf16[16,9], index: 1, kind: input, shape index: {}]
  %s2 = inlined_call_operand.vmem [shape: f32[16,1], index: 2, kind: input, shape index: {}]
  %s3 = inlined_call_operand.vmem [shape: bf16[2,16,840], index: 3, kind: output, shape index: {}]
  %s4 = sld [smem:[#allocation0]]
  $region45: #{neural_ode_mnist_forward.3} parent=0
    _
  %s6 = ssub.s32 1, %s4
  %s7 = scalar_select 0, %s6, %s4
  loop: start=0, step=1, limit=4
  $region2: #{neural_ode_mnist_forward.3} parent=0 // loop_pre_header
    _
  $region3: #{neural_ode_mnist_forward.3} parent=0 // loop_header
    %s9 = sphi 0, %s13
    %p10 = scmp.ge.s32.totalorder %s9, 4
    %s19 = sphi 0, %s21
    %s22 = sphi 0, %s19
    %s23 = sphi 0, %s22
    %s39 = sphi 0, %s23
    %s43 = sphi 0, %s43
    %s45 = sphi 0, %s43
    %s46 = sphi 0, %s45
    %s60 = sphi 0, %s46
    %s64 = sphi 0, %s64
    %s66 = sphi 0, %s64
    %s67 = sphi 0, %s66
    %s81 = sphi 0, %s67
    %s87 = sphi 0, %s89
    %s90 = sphi 0, %s87
    %s91 = sphi 0, %s90
    %s107 = sphi 0, %s91
  $region4: #{neural_ode_mnist_forward.3} parent=0 // loop_header_branch
    %12 = sbr.rel (%p10) target = $region8
  $region5: #{neural_ode_mnist_forward.3} parent=0 // loop_body
    %s14 = ssub.s32 %s9, 1
    %s15 = ssub.s32 %s9, 2
    %s16 = sadd.s32 %s9, 1
    %s17 = ssub.s32 %s9, %s16
    %p18 = scmp.eq.s32.totalorder %s17, 0
    %s20 = sadd.s32 %s19, 1
    %s21 = scalar_select %p18, %s19, %s20
    %p24 = pneg %p18
    %p25 = scmp.eq.s32.totalorder %s9, 1
    %p26 = por %p24, %p25
    %p27 = scmp.ne.s32.totalorder %s19, %s22
    %p28 = scmp.eq.s32.totalorder %s9, 0
    %p29 = por %p27, %p28
    %p30 = scmp.ne.s32.totalorder %s19, %s22
    %p31 = scmp.eq.s32.totalorder %s14, 1
    %p32 = por %p30, %p31
    %p33 = scmp.ne.s32.totalorder %s22, %s23
    %p34 = scmp.eq.s32.totalorder %s14, 0
    %p35 = por %p33, %p34
    %p36 = scmp.ne.s32.totalorder %s22, %s23
    %p37 = scmp.eq.s32.totalorder %s15, 1
    %p38 = por %p36, %p37
    %p40 = scmp.ne.s32.totalorder %s23, %s39
    %p41 = scmp.eq.s32.totalorder %s15, 0
    %p42 = por %p40, %p41
    %s44 = sadd.s32 %s43, 1
    %p47 = scmp.eq.s32.totalorder %s9, 1
    %p48 = scmp.ne.s32.totalorder %s43, %s45
    %p49 = scmp.eq.s32.totalorder %s9, 0
    %p50 = por %p48, %p49
    %p51 = scmp.ne.s32.totalorder %s43, %s45
    %p52 = scmp.eq.s32.totalorder %s14, 1
    %p53 = por %p51, %p52
    %p54 = scmp.ne.s32.totalorder %s45, %s46
    %p55 = scmp.eq.s32.totalorder %s14, 0
    %p56 = por %p54, %p55
    %p57 = scmp.ne.s32.totalorder %s45, %s46
    %p58 = scmp.eq.s32.totalorder %s15, 1
    %p59 = por %p57, %p58
    %p61 = scmp.ne.s32.totalorder %s46, %s60
    %p62 = scmp.eq.s32.totalorder %s15, 0
    %p63 = por %p61, %p62
    %s65 = sadd.s32 %s64, 1
    %p68 = scmp.eq.s32.totalorder %s9, 1
    %p69 = scmp.ne.s32.totalorder %s64, %s66
    %p70 = scmp.eq.s32.totalorder %s9, 0
    %p71 = por %p69, %p70
    %p72 = scmp.ne.s32.totalorder %s64, %s66
    %p73 = scmp.eq.s32.totalorder %s14, 1
    %p74 = por %p72, %p73
    %p75 = scmp.ne.s32.totalorder %s66, %s67
    %p76 = scmp.eq.s32.totalorder %s14, 0
    %p77 = por %p75, %p76
    %p78 = scmp.ne.s32.totalorder %s66, %s67
    %p79 = scmp.eq.s32.totalorder %s15, 1
    %p80 = por %p78, %p79
    %p82 = scmp.ne.s32.totalorder %s67, %s81
    %p83 = scmp.eq.s32.totalorder %s15, 0
    %p84 = por %p82, %p83
    %s85 = ssub.s32 %s9, %s16
    %p86 = scmp.eq.s32.totalorder %s85, 0
    %s88 = sadd.s32 %s87, 1
    %s89 = scalar_select %p86, %s87, %s88
    %p92 = pneg %p86
    %p93 = scmp.eq.s32.totalorder %s9, 1
    %p94 = por %p92, %p93
    %p95 = scmp.ne.s32.totalorder %s87, %s90
    %p96 = scmp.eq.s32.totalorder %s9, 0
    %p97 = por %p95, %p96
    %p98 = scmp.ne.s32.totalorder %s87, %s90
    %p99 = scmp.eq.s32.totalorder %s14, 1
    %p100 = por %p98, %p99
    %p101 = scmp.ne.s32.totalorder %s90, %s91
    %p102 = scmp.eq.s32.totalorder %s14, 0
    %p103 = por %p101, %p102
    %p104 = scmp.ne.s32.totalorder %s90, %s91
    %p105 = scmp.eq.s32.totalorder %s15, 1
    %p106 = por %p104, %p105
    %p108 = scmp.ne.s32.totalorder %s91, %s107
    %p109 = scmp.eq.s32.totalorder %s15, 0
    %p110 = por %p108, %p109
    %p111 = scmp.le.s32.totalorder 1, %s9
    %p112 = scmp.lt.s32.totalorder %s9, 3
    %p113 = pnand %p111, %p112
    %p114 = pneg %p113
    // Predicated region
    $region9: #{neural_ode_mnist_forward.3} parent=5 // pred_check
      _
    $region10: #{neural_ode_mnist_forward.3} parent=5 // pred_check_branch
      %116 = sbr.rel (%p113) target = $region12
    $region11: #{neural_ode_mnist_forward.3} parent=5 // pred_region
      %s117 = ssub.s32 %s9, 1
      // Predicated region
      $region13: #{neural_ode_mnist_forward.3} parent=11 // pred_check
        %p118 = pneg %p56
      $region14: #{neural_ode_mnist_forward.3} parent=11 // pred_check_branch
        %120 = sbr.rel (%p118) target = $region16
      $region15: #{neural_ode_mnist_forward.3} parent=11 // pred_region
        _
      $region16: #{neural_ode_mnist_forward.3} parent=11 // pred_fallthru
        _
      // Predicated region
      $region17: #{neural_ode_mnist_forward.3} parent=11 // pred_check
        %p121 = pneg %p77
      $region18: #{neural_ode_mnist_forward.3} parent=11 // pred_check_branch
        %123 = sbr.rel (%p121) target = $region20
      $region19: #{neural_ode_mnist_forward.3} parent=11 // pred_region
        _
      $region20: #{neural_ode_mnist_forward.3} parent=11 // pred_fallthru
        _
    $region12: #{neural_ode_mnist_forward.3} parent=5 // pred_fallthru
      _
    %p124 = scmp.lt.s32.totalorder %s9, 2
    // Predicated region
    $region21: #{neural_ode_mnist_forward.3} parent=5 // pred_check
      %p125 = pneg %p124
    $region22: #{neural_ode_mnist_forward.3} parent=5 // pred_check_branch
      %127 = sbr.rel (%p125) target = $region24
    $region23: #{neural_ode_mnist_forward.3} parent=5 // pred_region
      // Predicated region
      $region25: #{neural_ode_mnist_forward.3} parent=23 // pred_check
        %p128 = pneg %p29
      $region26: #{neural_ode_mnist_forward.3} parent=23 // pred_check_branch
        %130 = sbr.rel (%p128) target = $region28
      $region27: #{neural_ode_mnist_forward.3} parent=23 // pred_region
        %p131 = scmp.lt.s32.totalorder %s9, 1
        %s132 = scalar_select %p131, %s9, 1
        %s133 = smul.addr %s132, 8
        %s134 = scalar_lea.vmem %s0, %s133
      $region28: #{neural_ode_mnist_forward.3} parent=23 // pred_fallthru
        _
    $region24: #{neural_ode_mnist_forward.3} parent=5 // pred_fallthru
      _
    %p135 = scmp.le.s32.totalorder 1, %s9
    %p136 = scmp.lt.s32.totalorder %s9, 3
    %p137 = pnand %p135, %p136
    %p138 = pneg %p137
    // Predicated region
    $region29: #{neural_ode_mnist_forward.3} parent=5 // pred_check
      _
    $region30: #{neural_ode_mnist_forward.3} parent=5 // pred_check_branch
      %140 = sbr.rel (%p137) target = $region32
    $region31: #{neural_ode_mnist_forward.3} parent=5 // pred_region
      %s141 = ssub.s32 %s9, 1
      %p142 = scmp.lt.s32.totalorder %s14, 1
      %s143 = scalar_select %p142, %s14, 1
      %s144 = smul.addr %s143, 8
      %s145 = scalar_lea.vmem %s0, %s144
      %p146 = pneg %p35
      %p147 = pneg %p32
      %p148 = pneg %p56
      %p149 = pneg %p53
      %p150 = pneg %p77
      %p151 = pneg %p74
      %p152 = pneg %p103
      %p153 = pneg %p100
      %p154 = scmp.lt.s32.totalorder %s14, 1
      %s155 = scalar_select %p154, %s14, 1
      %s156 = smul.addr %s155, 14
      %s157 = smul.addr %s156, 4
      %s158 = scalar_lea.vmem %s3, %s157
      %p159 = scmp.lt.s32.totalorder %s14, 1
      %s160 = scalar_select %p159, %s14, 1
      %s161 = smul.addr %s160, 8
      %s162 = scalar_lea.vmem %s0, %s161
      %p163 = scmp.lt.s32.totalorder %s14, 1
      %s164 = scalar_select %p163, %s14, 1
      %s165 = smul.addr %s164, 14
      %s166 = smul.addr %s165, 4
      %s167 = scalar_lea.vmem %s3, %s166
      %v169 = vld [vmem:[%s1] sm:$0xf]
      %v170 = vld [vmem:[%s1 + $0x4] sm:$0xf]
      %v171 = vld [vmem:[%s2] sm:$0xff]
      %v172 = vld [vmem:[%s2 + $0x8] sm:$0xff]
      %v173 = vld [vmem:[%s162] sm:$0xff]
      %v174 = vunpack.c.l.bf16 %v173
      %v175 = vunpack.c.h.bf16 %v173
      %v179 = vunpack.c.l.s4 1966171168
      %v180 = vunpack.c.0.s8 %v179
      %v181 = vlaneseq
      %v182 = vshrl.u32 %v181, 7
      %v183 = vsub.s32 %v180, %v182
      %v184 = vrot.slane %v174, %v183
      %v186 = vunpack.c.l.s4 1966171168
      %v187 = vunpack.c.0.s8 %v186
      %v188 = vlaneseq
      %v189 = vshrl.u32 %v188, 7
      %v190 = vsub.s32 %v187, %v189
      %v191 = vrot.slane %v175, %v190
      %v192 = vcombine.low %v184, %v191
      %v194 = vlaneseq
      %vm195 = vcmp.ge.s32.totalorder %v194, 0
      %vm196 = vcmp.lt.s32.totalorder %v194, 840
      %vm197 = vmand %vm195, %vm196
      %198 = vst.msk [vmem:[#allocation2] ss:$8 sm:$0xf] %vm197, %v192
      %199 = vst.msk [vmem:[#allocation2] ss:$8 sm:$0x70] %vm197, %v192
      %200 = vrot.lane.b32.xlu0 %v192, 127
      %v201 = vpop.permute.xlu0 %200
      %v202 = vrot.slane %v201, 1
      %vm203 = vcmask 1039360
      %v204 = vsel %vm203, %v201, %v202
      %s206 = scalar_lea.vmem [#allocation2], 1
      %207 = vst.msk [vmem:[%s206] ss:$8 sm:$0xf] %vm197, %v204
      %208 = vst.msk [vmem:[%s206] ss:$8 sm:$0x70] %vm197, %v204
      %209 = vrot.lane.b32.xlu0 %v192, 126
      %v210 = vpop.permute.xlu0 %209
      %v211 = vrot.slane %v210, 1
      %vm212 = vcmask 1031168
      %v213 = vsel %vm212, %v210, %v211
      %s215 = scalar_lea.vmem [#allocation2], 2
      %216 = vst.msk [vmem:[%s215] ss:$8 sm:$0xf] %vm197, %v213
      %217 = vst.msk [vmem:[%s215] ss:$8 sm:$0x70] %vm197, %v213
      %218 = vrot.lane.b32.xlu0 %v192, 98
      %v219 = vpop.permute.xlu0 %218
      %v220 = vrot.slane %v219, 1
      %vm221 = vcmask 801792
      %v222 = vsel %vm221, %v219, %v220
      %s224 = scalar_lea.vmem [#allocation2], 3
      %225 = vst.msk [vmem:[%s224] ss:$8 sm:$0xf] %vm197, %v222
      %226 = vst.msk [vmem:[%s224] ss:$8 sm:$0x70] %vm197, %v222
      %227 = vrot.lane.b32.xlu0 %v192, 97
      %v228 = vpop.permute.xlu0 %227
      %v229 = vrot.slane %v228, 1
      %vm230 = vcmask 793600
      %v231 = vsel %vm230, %v228, %v229
      %s233 = scalar_lea.vmem [#allocation2], 4
      %234 = vst.msk [vmem:[%s233] ss:$8 sm:$0xf] %vm197, %v231
      %235 = vst.msk [vmem:[%s233] ss:$8 sm:$0x70] %vm197, %v231
      %236 = vrot.lane.b32.xlu0 %v192, 96
      %v237 = vpop.permute.xlu0 %236
      %v238 = vrot.slane %v237, 1
      %vm239 = vcmask 785408
      %v240 = vsel %vm239, %v237, %v238
      %s242 = scalar_lea.vmem [#allocation2], 5
      %243 = vst.msk [vmem:[%s242] ss:$8 sm:$0xf] %vm197, %v240
      %244 = vst.msk [vmem:[%s242] ss:$8 sm:$0x70] %vm197, %v240
      %245 = vrot.lane.b32.xlu0 %v192, 68
      %v246 = vpop.permute.xlu0 %245
      %v247 = vrot.slane %v246, 1
      %vm248 = vcmask 556032
      %v249 = vsel %vm248, %v246, %v247
      %s251 = scalar_lea.vmem [#allocation2], 6
      %252 = vst.msk [vmem:[%s251] ss:$8 sm:$0xf] %vm197, %v249
      %253 = vst.msk [vmem:[%s251] ss:$8 sm:$0x70] %vm197, %v249
      %254 = vrot.lane.b32.xlu0 %v192, 67
      %v255 = vpop.permute.xlu0 %254
      %v256 = vrot.slane %v255, 1
      %vm257 = vcmask 547840
      %v258 = vsel %vm257, %v255, %v256
      %s260 = scalar_lea.vmem [#allocation2], 7
      %261 = vst.msk [vmem:[%s260] ss:$8 sm:$0xf] %vm197, %v258
      %262 = vst.msk [vmem:[%s260] ss:$8 sm:$0x70] %vm197, %v258
      %263 = vrot.lane.b32.xlu0 %v192, 66
      %v264 = vpop.permute.xlu0 %263
      %v265 = vrot.slane %v264, 1
      %vm266 = vcmask 539648
      %v267 = vsel %vm266, %v264, %v265
      %s269 = scalar_lea.vmem [#allocation2], 56
      %270 = vst.msk [vmem:[%s269] ss:$8 sm:$0xf] %vm197, %v267
      %271 = vst.msk [vmem:[%s269] ss:$8 sm:$0x70] %vm197, %v267
      %v272 = vld [vmem:[#allocation2] sm:$0xff]
      %v273 = vld [vmem:[#allocation2 + $0x8] sm:$0xff]
      %v274 = vld [vmem:[#allocation2 + $0x10] sm:$0xff]
      %v275 = vld [vmem:[#allocation2 + $0x18] sm:$0xff]
      %v276 = vld [vmem:[#allocation2 + $0x20] sm:$0xff]
      %v277 = vld [vmem:[#allocation2 + $0x28] sm:$0xff]
      %v278 = vld [vmem:[#allocation2 + $0x30] sm:$0xff]
      %v279 = vld [vmem:[#allocation2 + $0x38] sm:$0x1]
      %v280 = vld [vmem:[#allocation2 + $0x40] sm:$0x1]
      %v281 = vld [vmem:[#allocation2 + $0x48] sm:$0x1]
      %v282 = vld [vmem:[#allocation2 + $0x50] sm:$0x1]
      %v283 = vld [vmem:[#allocation2 + $0x58] sm:$0x1]
      %v284 = vld [vmem:[#allocation2 + $0x60] sm:$0x1]
      %v285 = vld [vmem:[#allocation2 + $0x68] sm:$0x1]
      %v286 = vpack.c.bf16 %v279, %v272
      %v287 = vpack.c.bf16 %v280, %v273
      %v288 = vpack.c.bf16 %v281, %v274
      %v289 = vpack.c.bf16 %v282, %v275
      %v290 = vpack.c.bf16 %v283, %v276
      %v291 = vpack.c.bf16 %v284, %v277
      %v292 = vpack.c.bf16 %v285, %v278
      %294 = vset.pattern.permute.xlu0 0
      %295 = vperm.xlu0 %294, %v171
      %v296 = vpop.permute.xlu0 %295
      %299 = vset.pattern.permute.xlu0 0
      %300 = vperm.xlu0 %299, %v172
      %v301 = vpop.permute.xlu0 %300
      %v305 = vunpack.c.l.b16 %v169
      %v306 = vunpack.c.l.b16 %v170
      %v307 = vpack.c.b16 %v306, %v305
      %vm308 = vcmask 72704
      %v310 = vsel %vm308, %v307, 0
      %vm312 = vcmask 1043456
      %vm313 = vcmask 1044480
      %v314 = vsel %vm312, 4294967295, 65535
      %v315 = vsel %vm313, %v314, 0
      %v317 = vand.u32 %v286, %v315
      %v320 = vand.u32 %v287, %v315
      %v323 = vand.u32 %v288, %v315
      %v326 = vand.u32 %v289, %v315
      %v329 = vand.u32 %v290, %v315
      %v332 = vand.u32 %v291, %v315
      %v335 = vand.u32 %v292, %v315
      %337 = vmatprep.subr.bf16.mxu0 %v320
      %338 = vmatpush1.bf16.msra.mxu0 %v317
      %339 = vmatprep.subr.bf16.mxu0 0
      %340 = vmatpush1.bf16.msra.mxu0 0
      %341 = vmatprep.subr.bf16.mxu0 0
      %342 = vmatpush1.bf16.msra.mxu0 0
      %343 = vmatprep.subr.bf16.mxu0 0
      %344 = vmatpush1.bf16.msra.mxu0 0
      %345 = vmatprep.subr.bf16.mxu0 0
      %346 = vmatpush1.bf16.msra.mxu0 0
      %347 = vmatprep.subr.bf16.mxu0 0
      %348 = vmatpush1.bf16.msra.mxu0 0
      %349 = vmatprep.subr.bf16.mxu0 0
      %350 = vmatpush1.bf16.msra.mxu0 0
      %351 = vmatprep.subr.bf16.mxu0 0
      %352 = vmatpush1.bf16.msra.mxu0 0
      %353 = vmatprep.subr.bf16.mxu0 0
      %354 = vmatpush1.bf16.msra.mxu0 0
      %355 = vmatprep.subr.bf16.mxu0 0
      %356 = vmatpush1.bf16.msra.mxu0 0
      %357 = vmatprep.subr.bf16.mxu0 0
      %358 = vmatpush1.bf16.msra.mxu0 0
      %359 = vmatprep.subr.bf16.mxu0 0
      %360 = vmatpush1.bf16.msra.mxu0 0
      %361 = vmatprep.subr.bf16.mxu0 0
      %362 = vmatpush1.bf16.msra.mxu0 0
      %363 = vmatprep.subr.bf16.mxu0 0
      %364 = vmatpush1.bf16.msra.mxu0 0
      %365 = vmatprep.subr.bf16.mxu0 0
      %366 = vmatpush1.bf16.msra.mxu0 0
      %367 = vmatprep.subr.bf16.mxu0 0
      %368 = vmatpush1.bf16.msra.mxu0 0
      %369 = vmatprep.mubr.bf16.mxu0 0
      %370 = vmatmul.mubr.bf16.gmra.mrb[0].mxu0 %v310
      %v371 = vpop.f32.mrb[0].mxu0
      %v372 = vadd.f32 %v296, %v371
      %v373 = vpop.f32.mrb[0].mxu0
      %v374 = vadd.f32 %v296, %v373
      %v375 = vpop.f32.mrb[0].mxu0
      %v376 = vadd.f32 %v301, %v375
      %v377 = vpop.f32.mrb[0].mxu0
      %v378 = vadd.f32 %v301, %v377
      %379 = vdwg.mxu0
      %380 = vmatprep.subr.bf16.mxu0 %v326
      %381 = vmatpush1.bf16.msra.mxu0 %v323
      %382 = vmatprep.subr.bf16.mxu0 0
      %383 = vmatpush1.bf16.msra.mxu0 0
      %384 = vmatprep.subr.bf16.mxu0 0
      %385 = vmatpush1.bf16.msra.mxu0 0
      %386 = vmatprep.subr.bf16.mxu0 0
      %387 = vmatpush1.bf16.msra.mxu0 0
      %388 = vmatprep.subr.bf16.mxu0 0
      %389 = vmatpush1.bf16.msra.mxu0 0
      %390 = vmatprep.subr.bf16.mxu0 0
      %391 = vmatpush1.bf16.msra.mxu0 0
      %392 = vmatprep.subr.bf16.mxu0 0
      %393 = vmatpush1.bf16.msra.mxu0 0
      %394 = vmatprep.subr.bf16.mxu0 0
      %395 = vmatpush1.bf16.msra.mxu0 0
      %396 = vmatprep.subr.bf16.mxu0 0
      %397 = vmatpush1.bf16.msra.mxu0 0
      %398 = vmatprep.subr.bf16.mxu0 0
      %399 = vmatpush1.bf16.msra.mxu0 0
      %400 = vmatprep.subr.bf16.mxu0 0
      %401 = vmatpush1.bf16.msra.mxu0 0
      %402 = vmatprep.subr.bf16.mxu0 0
      %403 = vmatpush1.bf16.msra.mxu0 0
      %404 = vmatprep.subr.bf16.mxu0 0
      %405 = vmatpush1.bf16.msra.mxu0 0
      %406 = vmatprep.subr.bf16.mxu0 0
      %407 = vmatpush1.bf16.msra.mxu0 0
      %408 = vmatprep.subr.bf16.mxu0 0
      %409 = vmatpush1.bf16.msra.mxu0 0
      %410 = vmatprep.subr.bf16.mxu0 0
      %411 = vmatpush1.bf16.msra.mxu0 0
      %412 = vmatprep.mubr.bf16.mxu0 0
      %413 = vmatmul.mubr.bf16.gmra.mrb[0].mxu0 %v310
      %v414 = vpop.f32.mrb[0].mxu0
      %v415 = vadd.f32 %v296, %v414
      %v416 = vpop.f32.mrb[0].mxu0
      %v417 = vadd.f32 %v296, %v416
      %v418 = vpop.f32.mrb[0].mxu0
      %v419 = vadd.f32 %v301, %v418
      %v420 = vpop.f32.mrb[0].mxu0
      %v421 = vadd.f32 %v301, %v420
      %422 = vdwg.mxu0
      %423 = vmatprep.subr.bf16.mxu0 %v332
      %424 = vmatpush1.bf16.msra.mxu0 %v329
      %425 = vmatprep.subr.bf16.mxu0 0
      %426 = vmatpush1.bf16.msra.mxu0 0
      %427 = vmatprep.subr.bf16.mxu0 0
      %428 = vmatpush1.bf16.msra.mxu0 0
      %429 = vmatprep.subr.bf16.mxu0 0
      %430 = vmatpush1.bf16.msra.mxu0 0
      %431 = vmatprep.subr.bf16.mxu0 0
      %432 = vmatpush1.bf16.msra.mxu0 0
      %433 = vmatprep.subr.bf16.mxu0 0
      %434 = vmatpush1.bf16.msra.mxu0 0
      %435 = vmatprep.subr.bf16.mxu0 0
      %436 = vmatpush1.bf16.msra.mxu0 0
      %437 = vmatprep.subr.bf16.mxu0 0
      %438 = vmatpush1.bf16.msra.mxu0 0
      %439 = vmatprep.subr.bf16.mxu0 0
      %440 = vmatpush1.bf16.msra.mxu0 0
      %441 = vmatprep.subr.bf16.mxu0 0
      %442 = vmatpush1.bf16.msra.mxu0 0
      %443 = vmatprep.subr.bf16.mxu0 0
      %444 = vmatpush1.bf16.msra.mxu0 0
      %445 = vmatprep.subr.bf16.mxu0 0
      %446 = vmatpush1.bf16.msra.mxu0 0
      %447 = vmatprep.subr.bf16.mxu0 0
      %448 = vmatpush1.bf16.msra.mxu0 0
      %449 = vmatprep.subr.bf16.mxu0 0
      %450 = vmatpush1.bf16.msra.mxu0 0
      %451 = vmatprep.subr.bf16.mxu0 0
      %452 = vmatpush1.bf16.msra.mxu0 0
      %453 = vmatprep.subr.bf16.mxu0 0
      %454 = vmatpush1.bf16.msra.mxu0 0
      %455 = vmatprep.mubr.bf16.mxu0 0
      %456 = vmatmul.mubr.bf16.gmra.mrb[0].mxu0 %v310
      %v457 = vpop.f32.mrb[0].mxu0
      %v458 = vadd.f32 %v296, %v457
      %v459 = vpop.f32.mrb[0].mxu0
      %v460 = vadd.f32 %v296, %v459
      %v461 = vpop.f32.mrb[0].mxu0
      %v462 = vadd.f32 %v301, %v461
      %v463 = vpop.f32.mrb[0].mxu0
      %v464 = vadd.f32 %v301, %v463
      %465 = vdwg.mxu0
      %466 = vmatprep.subr.bf16.mxu0 0
      %467 = vmatpush1.bf16.msra.mxu0 %v335
      %468 = vmatprep.subr.bf16.mxu0 0
      %469 = vmatpush1.bf16.msra.mxu0 0
      %470 = vmatprep.subr.bf16.mxu0 0
      %471 = vmatpush1.bf16.msra.mxu0 0
      %472 = vmatprep.subr.bf16.mxu0 0
      %473 = vmatpush1.bf16.msra.mxu0 0
      %474 = vmatprep.subr.bf16.mxu0 0
      %475 = vmatpush1.bf16.msra.mxu0 0
      %476 = vmatprep.subr.bf16.mxu0 0
      %477 = vmatpush1.bf16.msra.mxu0 0
      %478 = vmatprep.subr.bf16.mxu0 0
      %479 = vmatpush1.bf16.msra.mxu0 0
      %480 = vmatprep.subr.bf16.mxu0 0
      %481 = vmatpush1.bf16.msra.mxu0 0
      %482 = vmatprep.subr.bf16.mxu0 0
      %483 = vmatpush1.bf16.msra.mxu0 0
      %484 = vmatprep.subr.bf16.mxu0 0
      %485 = vmatpush1.bf16.msra.mxu0 0
      %486 = vmatprep.subr.bf16.mxu0 0
      %487 = vmatpush1.bf16.msra.mxu0 0
      %488 = vmatprep.subr.bf16.mxu0 0
      %489 = vmatpush1.bf16.msra.mxu0 0
      %490 = vmatprep.subr.bf16.mxu0 0
      %491 = vmatpush1.bf16.msra.mxu0 0
      %492 = vmatprep.subr.bf16.mxu0 0
      %493 = vmatpush1.bf16.msra.mxu0 0
      %494 = vmatprep.subr.bf16.mxu0 0
      %495 = vmatpush1.bf16.msra.mxu0 0
      %496 = vmatprep.subr.bf16.mxu0 0
      %497 = vmatpush1.bf16.msra.mxu0 0
      %498 = vmatprep.mubr.bf16.mxu0 0
      %499 = vmatmul.mubr.bf16.gmra.mrb[0].mxu0 %v310
      %v500 = vpop.f32.mrb[0].mxu0
      %v501 = vadd.f32 %v296, %v500
      %v502 = vpop.f32.mrb[0].mxu0
      %v503 = vpop.f32.mrb[0].mxu0
      %v504 = vadd.f32 %v301, %v503
      %v505 = vpop.f32.mrb[0].mxu0
      %506 = vdwg.mxu0
      %v507 = vmax.f32 %v372, 0.0
      %v508 = vmax.f32 %v374, 0.0
      %v509 = vmax.f32 %v415, 0.0
      %v510 = vmax.f32 %v417, 0.0
      %v511 = vmax.f32 %v458, 0.0
      %v512 = vmax.f32 %v460, 0.0
      %v513 = vmax.f32 %v501, 0.0
      %v514 = vmax.f32 %v376, 0.0
      %v515 = vmax.f32 %v378, 0.0
      %v516 = vmax.f32 %v419, 0.0
      %v517 = vmax.f32 %v421, 0.0
      %v518 = vmax.f32 %v462, 0.0
      %v519 = vmax.f32 %v464, 0.0
      %v520 = vmax.f32 %v504, 0.0
      %v521 = vpack.c.bf16 %v514, %v507
      %v522 = vpack.c.bf16 %v515, %v508
      %v523 = vpack.c.bf16 %v516, %v509
      %v524 = vpack.c.bf16 %v517, %v510
      %v525 = vpack.c.bf16 %v518, %v511
      %v526 = vpack.c.bf16 %v519, %v512
      %v527 = vpack.c.bf16 %v520, %v513
      %v535 = vunpack.c.l.b16 %v521
      %v536 = vunpack.c.l.b16 %v522
      %v537 = vunpack.c.l.b16 %v523
      %v538 = vunpack.c.l.b16 %v524
      %v539 = vunpack.c.l.b16 %v525
      %v540 = vunpack.c.l.b16 %v526
      %v541 = vunpack.c.l.b16 %v527
      %v542 = vunpack.c.h.b16 %v521
      %v543 = vunpack.c.h.b16 %v522
      %v544 = vunpack.c.h.b16 %v523
      %v545 = vunpack.c.h.b16 %v524
      %v546 = vunpack.c.h.b16 %v525
      %v547 = vunpack.c.h.b16 %v526
      %v548 = vunpack.c.h.b16 %v527
      %v549 = vpack.c.b16 %v536, %v535
      %v550 = vpack.c.b16 %v538, %v537
      %v551 = vpack.c.b16 %v540, %v539
      %v552 = vpack.c.b16 %v541, %v541
      %v553 = vpack.c.b16 %v543, %v542
      %v554 = vpack.c.b16 %v545, %v544
      %v555 = vpack.c.b16 %v547, %v546
      %v556 = vpack.c.b16 %v548, %v548
      %565 = vst [vmem:[%s167] sm:$0xff] %v549
      %566 = vst [vmem:[%s167 + $0x8] sm:$0xff] %v550
      %567 = vst [vmem:[%s167 + $0x10] sm:$0xff] %v551
      %vm568 = vcmask 584704
      %569 = vst.msk [vmem:[%s167 + $0x18] sm:$0xf] %vm568, %v552
      %570 = vst [vmem:[%s167 + $0x1c] sm:$0xff] %v553
      %571 = vst [vmem:[%s167 + $0x24] sm:$0xff] %v554
      %572 = vst [vmem:[%s167 + $0x2c] sm:$0xff] %v555
      %573 = vst.msk [vmem:[%s167 + $0x34] sm:$0xf] %vm568, %v556
      %p574 = scmp.lt.s32.totalorder %s14, 1
      %s575 = scalar_select %p574, %s14, 1
      %s576 = smul.addr %s575, 14
      %s577 = smul.addr %s576, 4
      %s578 = scalar_lea.vmem %s3, %s577
      // Predicated region
      $region33: #{neural_ode_mnist_forward.3} parent=31 // pred_check
        %p579 = pneg %p100
      $region34: #{neural_ode_mnist_forward.3} parent=31 // pred_check_branch
        %581 = sbr.rel (%p579) target = $region36
      $region35: #{neural_ode_mnist_forward.3} parent=31 // pred_region
        _
      $region36: #{neural_ode_mnist_forward.3} parent=31 // pred_fallthru
        _
    $region32: #{neural_ode_mnist_forward.3} parent=5 // pred_fallthru
      _
    %p582 = scmp.le.s32.totalorder 2, %s9
    // Predicated region
    $region37: #{neural_ode_mnist_forward.3} parent=5 // pred_check
      %p583 = pneg %p582
    $region38: #{neural_ode_mnist_forward.3} parent=5 // pred_check_branch
      %585 = sbr.rel (%p583) target = $region40
    $region39: #{neural_ode_mnist_forward.3} parent=5 // pred_region
      %s586 = ssub.s32 %s9, 2
      // Predicated region
      $region41: #{neural_ode_mnist_forward.3} parent=39 // pred_check
        %p587 = pneg %p106
      $region42: #{neural_ode_mnist_forward.3} parent=39 // pred_check_branch
        %589 = sbr.rel (%p587) target = $region44
      $region43: #{neural_ode_mnist_forward.3} parent=39 // pred_region
        %p590 = scmp.lt.s32.totalorder %s15, 1
        %s591 = scalar_select %p590, %s15, 1
        %s592 = smul.addr %s591, 14
        %s593 = smul.addr %s592, 4
        %s594 = scalar_lea.vmem %s3, %s593
      $region44: #{neural_ode_mnist_forward.3} parent=39 // pred_fallthru
        _
    $region40: #{neural_ode_mnist_forward.3} parent=5 // pred_fallthru
      _
  $region6: #{neural_ode_mnist_forward.3} parent=0 // loop_footer
    %s13 = sadd.s32 1, %s9
  $region7: #{neural_ode_mnist_forward.3} parent=0 // loop_footer_branch
    %8 = sbr.rel target = $region3
  $region8: #{neural_ode_mnist_forward.3} parent=0 // loop_exit
    _

// kernel: neural_ode_mnist_forward.4
$region0: #{neural_ode_mnist_forward.4}
  #allocation0 [shape = 'u32[]', space=smem, size = 0x4, offset = 0x4, fixed_abs, tag = 'smem constant byte address 0x4 - core index']
  #allocation1 [shape = 'u32[144,128]{1,0:T(1,128)}', space=vmem, size = 0x12000, scoped, tag = 'internal scratch']
  #allocation2 [shape = 'bf16[144,224]{1,0:T(16,128)(2,1)}', space=vmem, size = 0x12000, scoped, tag = 'scratch operand']
  %s0 = inlined_call_operand.vmem [shape: bf16[2,16,272], index: 0, kind: input, shape index: {}]
  %s1 = inlined_call_operand.vmem [shape: bf16[32,144], index: 1, kind: input, shape index: {}]
  %s2 = inlined_call_operand.vmem [shape: f32[32,1], index: 2, kind: input, shape index: {}]
  %s3 = inlined_call_operand.vmem [shape: bf16[2,32,224], index: 3, kind: output, shape index: {}]
  %s4 = sld [smem:[#allocation0]]
  $region45: #{neural_ode_mnist_forward.4} parent=0
    _
  %s6 = ssub.s32 1, %s4
  %s7 = scalar_select 0, %s6, %s4
  loop: start=0, step=1, limit=4
  $region2: #{neural_ode_mnist_forward.4} parent=0 // loop_pre_header
    _
  $region3: #{neural_ode_mnist_forward.4} parent=0 // loop_header
    %s9 = sphi 0, %s13
    %p10 = scmp.ge.s32.totalorder %s9, 4
    %s19 = sphi 0, %s21
    %s22 = sphi 0, %s19
    %s23 = sphi 0, %s22
    %s39 = sphi 0, %s23
    %s43 = sphi 0, %s43
    %s45 = sphi 0, %s43
    %s46 = sphi 0, %s45
    %s60 = sphi 0, %s46
    %s64 = sphi 0, %s64
    %s66 = sphi 0, %s64
    %s67 = sphi 0, %s66
    %s81 = sphi 0, %s67
    %s87 = sphi 0, %s89
    %s90 = sphi 0, %s87
    %s91 = sphi 0, %s90
    %s107 = sphi 0, %s91
  $region4: #{neural_ode_mnist_forward.4} parent=0 // loop_header_branch
    %12 = sbr.rel (%p10) target = $region8
  $region5: #{neural_ode_mnist_forward.4} parent=0 // loop_body
    %s14 = ssub.s32 %s9, 1
    %s15 = ssub.s32 %s9, 2
    %s16 = sadd.s32 %s9, 1
    %s17 = ssub.s32 %s9, %s16
    %p18 = scmp.eq.s32.totalorder %s17, 0
    %s20 = sadd.s32 %s19, 1
    %s21 = scalar_select %p18, %s19, %s20
    %p24 = pneg %p18
    %p25 = scmp.eq.s32.totalorder %s9, 1
    %p26 = por %p24, %p25
    %p27 = scmp.ne.s32.totalorder %s19, %s22
    %p28 = scmp.eq.s32.totalorder %s9, 0
    %p29 = por %p27, %p28
    %p30 = scmp.ne.s32.totalorder %s19, %s22
    %p31 = scmp.eq.s32.totalorder %s14, 1
    %p32 = por %p30, %p31
    %p33 = scmp.ne.s32.totalorder %s22, %s23
    %p34 = scmp.eq.s32.totalorder %s14, 0
    %p35 = por %p33, %p34
    %p36 = scmp.ne.s32.totalorder %s22, %s23
    %p37 = scmp.eq.s32.totalorder %s15, 1
    %p38 = por %p36, %p37
    %p40 = scmp.ne.s32.totalorder %s23, %s39
    %p41 = scmp.eq.s32.totalorder %s15, 0
    %p42 = por %p40, %p41
    %s44 = sadd.s32 %s43, 1
    %p47 = scmp.eq.s32.totalorder %s9, 1
    %p48 = scmp.ne.s32.totalorder %s43, %s45
    %p49 = scmp.eq.s32.totalorder %s9, 0
    %p50 = por %p48, %p49
    %p51 = scmp.ne.s32.totalorder %s43, %s45
    %p52 = scmp.eq.s32.totalorder %s14, 1
    %p53 = por %p51, %p52
    %p54 = scmp.ne.s32.totalorder %s45, %s46
    %p55 = scmp.eq.s32.totalorder %s14, 0
    %p56 = por %p54, %p55
    %p57 = scmp.ne.s32.totalorder %s45, %s46
    %p58 = scmp.eq.s32.totalorder %s15, 1
    %p59 = por %p57, %p58
    %p61 = scmp.ne.s32.totalorder %s46, %s60
    %p62 = scmp.eq.s32.totalorder %s15, 0
    %p63 = por %p61, %p62
    %s65 = sadd.s32 %s64, 1
    %p68 = scmp.eq.s32.totalorder %s9, 1
    %p69 = scmp.ne.s32.totalorder %s64, %s66
    %p70 = scmp.eq.s32.totalorder %s9, 0
    %p71 = por %p69, %p70
    %p72 = scmp.ne.s32.totalorder %s64, %s66
    %p73 = scmp.eq.s32.totalorder %s14, 1
    %p74 = por %p72, %p73
    %p75 = scmp.ne.s32.totalorder %s66, %s67
    %p76 = scmp.eq.s32.totalorder %s14, 0
    %p77 = por %p75, %p76
    %p78 = scmp.ne.s32.totalorder %s66, %s67
    %p79 = scmp.eq.s32.totalorder %s15, 1
    %p80 = por %p78, %p79
    %p82 = scmp.ne.s32.totalorder %s67, %s81
    %p83 = scmp.eq.s32.totalorder %s15, 0
    %p84 = por %p82, %p83
    %s85 = ssub.s32 %s9, %s16
    %p86 = scmp.eq.s32.totalorder %s85, 0
    %s88 = sadd.s32 %s87, 1
    %s89 = scalar_select %p86, %s87, %s88
    %p92 = pneg %p86
    %p93 = scmp.eq.s32.totalorder %s9, 1
    %p94 = por %p92, %p93
    %p95 = scmp.ne.s32.totalorder %s87, %s90
    %p96 = scmp.eq.s32.totalorder %s9, 0
    %p97 = por %p95, %p96
    %p98 = scmp.ne.s32.totalorder %s87, %s90
    %p99 = scmp.eq.s32.totalorder %s14, 1
    %p100 = por %p98, %p99
    %p101 = scmp.ne.s32.totalorder %s90, %s91
    %p102 = scmp.eq.s32.totalorder %s14, 0
    %p103 = por %p101, %p102
    %p104 = scmp.ne.s32.totalorder %s90, %s91
    %p105 = scmp.eq.s32.totalorder %s15, 1
    %p106 = por %p104, %p105
    %p108 = scmp.ne.s32.totalorder %s91, %s107
    %p109 = scmp.eq.s32.totalorder %s15, 0
    %p110 = por %p108, %p109
    %p111 = scmp.le.s32.totalorder 1, %s9
    %p112 = scmp.lt.s32.totalorder %s9, 3
    %p113 = pnand %p111, %p112
    %p114 = pneg %p113
    // Predicated region
    $region9: #{neural_ode_mnist_forward.4} parent=5 // pred_check
      _
    $region10: #{neural_ode_mnist_forward.4} parent=5 // pred_check_branch
      %116 = sbr.rel (%p113) target = $region12
    $region11: #{neural_ode_mnist_forward.4} parent=5 // pred_region
      %s117 = ssub.s32 %s9, 1
      // Predicated region
      $region13: #{neural_ode_mnist_forward.4} parent=11 // pred_check
        %p118 = pneg %p56
      $region14: #{neural_ode_mnist_forward.4} parent=11 // pred_check_branch
        %120 = sbr.rel (%p118) target = $region16
      $region15: #{neural_ode_mnist_forward.4} parent=11 // pred_region
        _
      $region16: #{neural_ode_mnist_forward.4} parent=11 // pred_fallthru
        _
      // Predicated region
      $region17: #{neural_ode_mnist_forward.4} parent=11 // pred_check
        %p121 = pneg %p77
      $region18: #{neural_ode_mnist_forward.4} parent=11 // pred_check_branch
        %123 = sbr.rel (%p121) target = $region20
      $region19: #{neural_ode_mnist_forward.4} parent=11 // pred_region
        _
      $region20: #{neural_ode_mnist_forward.4} parent=11 // pred_fallthru
        _
    $region12: #{neural_ode_mnist_forward.4} parent=5 // pred_fallthru
      _
    %p124 = scmp.lt.s32.totalorder %s9, 2
    // Predicated region
    $region21: #{neural_ode_mnist_forward.4} parent=5 // pred_check
      %p125 = pneg %p124
    $region22: #{neural_ode_mnist_forward.4} parent=5 // pred_check_branch
      %127 = sbr.rel (%p125) target = $region24
    $region23: #{neural_ode_mnist_forward.4} parent=5 // pred_region
      // Predicated region
      $region25: #{neural_ode_mnist_forward.4} parent=23 // pred_check
        %p128 = pneg %p29
      $region26: #{neural_ode_mnist_forward.4} parent=23 // pred_check_branch
        %130 = sbr.rel (%p128) target = $region28
      $region27: #{neural_ode_mnist_forward.4} parent=23 // pred_region
        %p131 = scmp.lt.s32.totalorder %s9, 1
        %s132 = scalar_select %p131, %s9, 1
        %s133 = smul.addr %s132, 6
        %s134 = smul.addr %s133, 4
        %s135 = scalar_lea.vmem %s0, %s134
      $region28: #{neural_ode_mnist_forward.4} parent=23 // pred_fallthru
        _
    $region24: #{neural_ode_mnist_forward.4} parent=5 // pred_fallthru
      _
    %p136 = scmp.le.s32.totalorder 1, %s9
    %p137 = scmp.lt.s32.totalorder %s9, 3
    %p138 = pnand %p136, %p137
    %p139 = pneg %p138
    // Predicated region
    $region29: #{neural_ode_mnist_forward.4} parent=5 // pred_check
      _
    $region30: #{neural_ode_mnist_forward.4} parent=5 // pred_check_branch
      %141 = sbr.rel (%p138) target = $region32
    $region31: #{neural_ode_mnist_forward.4} parent=5 // pred_region
      %s142 = ssub.s32 %s9, 1
      %p143 = scmp.lt.s32.totalorder %s14, 1
      %s144 = scalar_select %p143, %s14, 1
      %s145 = smul.addr %s144, 6
      %s146 = smul.addr %s145, 4
      %s147 = scalar_lea.vmem %s0, %s146
      %p148 = pneg %p35
      %p149 = pneg %p32
      %p150 = pneg %p56
      %p151 = pneg %p53
      %p152 = pneg %p77
      %p153 = pneg %p74
      %p154 = pneg %p103
      %p155 = pneg %p100
      %p156 = scmp.lt.s32.totalorder %s14, 1
      %s157 = scalar_select %p156, %s14, 1
      %s158 = smul.addr %s157, 8
      %s159 = smul.addr %s158, 4
      %s160 = scalar_lea.vmem %s3, %s159
      %p161 = scmp.lt.s32.totalorder %s14, 1
      %s162 = scalar_select %p161, %s14, 1
      %s163 = smul.addr %s162, 6
      %s164 = smul.addr %s163, 4
      %s165 = scalar_lea.vmem %s0, %s164
      %p166 = scmp.lt.s32.totalorder %s14, 1
      %s167 = scalar_select %p166, %s14, 1
      %s168 = smul.addr %s167, 8
      %s169 = smul.addr %s168, 4
      %s170 = scalar_lea.vmem %s3, %s169
      %v172 = vld [vmem:[%s1] sm:$0xff]
      %v173 = vld [vmem:[%s1 + $0x8] sm:$0xff]
      %v174 = vld [vmem:[%s1 + $0x10] sm:$0xff]
      %v175 = vld [vmem:[%s1 + $0x18] sm:$0xff]
      %v176 = vld [vmem:[%s2] sm:$0xff]
      %v177 = vld [vmem:[%s2 + $0x8] sm:$0xff]
      %v178 = vld [vmem:[%s2 + $0x10] sm:$0xff]
      %v179 = vld [vmem:[%s2 + $0x18] sm:$0xff]
      %v180 = vld [vmem:[%s165] sm:$0xff]
      %v181 = vld [vmem:[%s165 + $0x8] sm:$0xf]
      %v182 = vld [vmem:[%s165 + $0xc] sm:$0xff]
      %v183 = vld [vmem:[%s165 + $0x14] sm:$0xf]
      %v186 = vunpack.c.l.b16 %v180
      %v187 = vunpack.c.h.b16 %v180
      %v188 = vunpack.c.l.b16 %v182
      %v189 = vunpack.c.h.b16 %v182
      %v190 = vpack.c.b16 %v188, %v186
      %v191 = vpack.c.b16 %v189, %v187
      %194 = vst [vmem:[#allocation2] sm:$0xff] %v190
      %vm195 = vcmask 785408
      %196 = vst.msk [vmem:[#allocation2 + $0x8] sm:$0xff] %vm195, %v191
      %197 = vrot.lane.b32.xlu0 %v190, 127
      %v198 = vpop.permute.xlu0 %197
      %199 = vrot.lane.b32.xlu0 %v191, 127
      %v200 = vpop.permute.xlu0 %199
      %vm201 = vcmask 1039360
      %v202 = vsel %vm201, %v198, %v200
      %205 = vst [vmem:[#allocation2 + $0x10] sm:$0xff] %v202
      %206 = vst.msk [vmem:[#allocation2 + $0x18] sm:$0xff] %vm195, %v200
      %207 = vrot.lane.b32.xlu0 %v190, 126
      %v208 = vpop.permute.xlu0 %207
      %209 = vrot.lane.b32.xlu0 %v191, 126
      %v210 = vpop.permute.xlu0 %209
      %vm211 = vcmask 1031168
      %v212 = vsel %vm211, %v208, %v210
      %215 = vst [vmem:[#allocation2 + $0x20] sm:$0xff] %v212
      %216 = vst.msk [vmem:[#allocation2 + $0x28] sm:$0xff] %vm195, %v210
      %217 = vrot.lane.b32.xlu0 %v190, 112
      %v218 = vpop.permute.xlu0 %217
      %219 = vrot.lane.b32.xlu0 %v191, 112
      %v220 = vpop.permute.xlu0 %219
      %vm221 = vcmask 916480
      %v222 = vsel %vm221, %v218, %v220
      %225 = vst [vmem:[#allocation2 + $0x30] sm:$0xff] %v222
      %226 = vst.msk [vmem:[#allocation2 + $0x38] sm:$0xff] %vm195, %v220
      %227 = vrot.lane.b32.xlu0 %v190, 111
      %v228 = vpop.permute.xlu0 %227
      %229 = vrot.lane.b32.xlu0 %v191, 111
      %v230 = vpop.permute.xlu0 %229
      %vm231 = vcmask 908288
      %v232 = vsel %vm231, %v228, %v230
      %235 = vst [vmem:[#allocation2 + $0x40] sm:$0xff] %v232
      %236 = vst.msk [vmem:[#allocation2 + $0x48] sm:$0xff] %vm195, %v230
      %237 = vrot.lane.b32.xlu0 %v190, 110
      %v238 = vpop.permute.xlu0 %237
      %239 = vrot.lane.b32.xlu0 %v191, 110
      %v240 = vpop.permute.xlu0 %239
      %vm241 = vcmask 900096
      %v242 = vsel %vm241, %v238, %v240
      %245 = vst [vmem:[#allocation2 + $0x50] sm:$0xff] %v242
      %246 = vst.msk [vmem:[#allocation2 + $0x58] sm:$0xff] %vm195, %v240
      %247 = vrot.lane.b32.xlu0 %v190, 96
      %v248 = vpop.permute.xlu0 %247
      %249 = vrot.lane.b32.xlu0 %v191, 96
      %v250 = vpop.permute.xlu0 %249
      %vm251 = vcmask 785408
      %v252 = vsel %vm251, %v248, %v250
      %255 = vst [vmem:[#allocation2 + $0x60] sm:$0xff] %v252
      %256 = vst.msk [vmem:[#allocation2 + $0x68] sm:$0xff] %vm195, %v250
      %v259 = vunpack.c.l.b16 %v181
      %v260 = vunpack.c.l.b16 %v183
      %v261 = vpack.c.b16 %v260, %v259
      %262 = vrot.lane.b32.xlu0 %v190, 95
      %v263 = vpop.permute.xlu0 %262
      %264 = vrot.lane.b32.xlu0 %v191, 95
      %v265 = vpop.permute.xlu0 %264
      %266 = vrot.lane.b32.xlu0 %v261, 95
      %v267 = vpop.permute.xlu0 %266
      %vm268 = vcmask 777216
      %v269 = vsel %vm268, %v263, %v265
      %v270 = vsel %vm268, %v265, %v267
      %273 = vst [vmem:[#allocation2 + $0x70] sm:$0xff] %v269
      %274 = vst.msk [vmem:[#allocation2 + $0x78] sm:$0xff] %vm195, %v270
      %275 = vrot.lane.b32.xlu0 %v190, 94
      %v276 = vpop.permute.xlu0 %275
      %277 = vrot.lane.b32.xlu0 %v191, 94
      %v278 = vpop.permute.xlu0 %277
      %279 = vrot.lane.b32.xlu0 %v261, 94
      %v280 = vpop.permute.xlu0 %279
      %vm281 = vcmask 769024
      %v282 = vsel %vm281, %v276, %v278
      %v283 = vsel %vm281, %v278, %v280
      %286 = vst [vmem:[#allocation2 + $0x80] sm:$0xff] %v282
      %287 = vst.msk [vmem:[#allocation2 + $0x88] sm:$0xff] %vm195, %v283
      %v288 = vld [vmem:[#allocation2] sm:$0xff]
      %v289 = vld [vmem:[#allocation2 + $0x8] sm:$0xff]
      %v290 = vld [vmem:[#allocation2 + $0x10] sm:$0xff]
      %v291 = vld [vmem:[#allocation2 + $0x18] sm:$0xff]
      %v292 = vld [vmem:[#allocation2 + $0x20] sm:$0xff]
      %v293 = vld [vmem:[#allocation2 + $0x28] sm:$0xff]
      %v294 = vld [vmem:[#allocation2 + $0x30] sm:$0xff]
      %v295 = vld [vmem:[#allocation2 + $0x38] sm:$0xff]
      %v296 = vld [vmem:[#allocation2 + $0x40] sm:$0xff]
      %v297 = vld [vmem:[#allocation2 + $0x48] sm:$0xff]
      %v298 = vld [vmem:[#allocation2 + $0x50] sm:$0xff]
      %v299 = vld [vmem:[#allocation2 + $0x58] sm:$0xff]
      %v300 = vld [vmem:[#allocation2 + $0x60] sm:$0xff]
      %v301 = vld [vmem:[#allocation2 + $0x68] sm:$0xff]
      %v302 = vld [vmem:[#allocation2 + $0x70] sm:$0xff]
      %v303 = vld [vmem:[#allocation2 + $0x78] sm:$0xff]
      %v304 = vld [vmem:[#allocation2 + $0x80] sm:$0xff]
      %v305 = vld [vmem:[#allocation2 + $0x88] sm:$0xff]
      %307 = vset.pattern.permute.xlu0 0
      %308 = vperm.xlu0 %307, %v176
      %v309 = vpop.permute.xlu0 %308
      %312 = vset.pattern.permute.xlu0 0
      %313 = vperm.xlu0 %312, %v177
      %v314 = vpop.permute.xlu0 %313
      %317 = vset.pattern.permute.xlu0 0
      %318 = vperm.xlu0 %317, %v178
      %v319 = vpop.permute.xlu0 %318
      %322 = vset.pattern.permute.xlu0 0
      %323 = vperm.xlu0 %322, %v179
      %v324 = vpop.permute.xlu0 %323
      %v330 = vunpack.c.l.b16 %v172
      %v331 = vunpack.c.h.b16 %v172
      %v332 = vunpack.c.l.b16 %v173
      %v333 = vunpack.c.h.b16 %v173
      %v334 = vunpack.c.l.b16 %v174
      %v335 = vunpack.c.h.b16 %v174
      %v336 = vunpack.c.l.b16 %v175
      %v337 = vunpack.c.h.b16 %v175
      %v338 = vpack.c.b16 %v332, %v330
      %v339 = vpack.c.b16 %v333, %v331
      %v340 = vpack.c.b16 %v336, %v334
      %v341 = vpack.c.b16 %v337, %v335
      %vm344 = vcmask 130048
      %v346 = vsel %vm344, %v339, 0
      %v349 = vsel %vm344, %v341, 0
      %351 = vmatprep.subr.bf16.mxu0 %v289
      %352 = vmatpush1.bf16.msra.mxu0 %v288
      %353 = vmatprep.subr.bf16.mxu0 %v291
      %354 = vmatpush1.bf16.msra.mxu0 %v290
      %355 = vmatprep.subr.bf16.mxu0 %v293
      %356 = vmatpush1.bf16.msra.mxu0 %v292
      %357 = vmatprep.subr.bf16.mxu0 %v295
      %358 = vmatpush1.bf16.msra.mxu0 %v294
      %359 = vmatprep.subr.bf16.mxu0 %v297
      %360 = vmatpush1.bf16.msra.mxu0 %v296
      %361 = vmatprep.subr.bf16.mxu0 %v299
      %362 = vmatpush1.bf16.msra.mxu0 %v298
      %363 = vmatprep.subr.bf16.mxu0 %v301
      %364 = vmatpush1.bf16.msra.mxu0 %v300
      %365 = vmatprep.subr.bf16.mxu0 %v303
      %366 = vmatpush1.bf16.msra.mxu0 %v302
      %367 = vmatprep.subr.bf16.mxu0 %v305
      %368 = vmatpush1.bf16.msra.mxu0 %v304
      %369 = vmatprep.subr.bf16.mxu0 0
      %370 = vmatpush1.bf16.msra.mxu0 0
      %371 = vmatprep.subr.bf16.mxu0 0
      %372 = vmatpush1.bf16.msra.mxu0 0
      %373 = vmatprep.subr.bf16.mxu0 0
      %374 = vmatpush1.bf16.msra.mxu0 0
      %375 = vmatprep.subr.bf16.mxu0 0
      %376 = vmatpush1.bf16.msra.mxu0 0
      %377 = vmatprep.subr.bf16.mxu0 0
      %378 = vmatpush1.bf16.msra.mxu0 0
      %379 = vmatprep.subr.bf16.mxu0 0
      %380 = vmatpush1.bf16.msra.mxu0 0
      %381 = vmatprep.subr.bf16.mxu0 0
      %382 = vmatpush1.bf16.msra.mxu0 0
      %383 = vmatprep.mubr.bf16.mxu0 %v346
      %384 = vmatmul.mubr.bf16.gmra.mrb[0].mxu0 %v338
      %v385 = vpop.f32.mrb[0].mxu0
      %v386 = vadd.f32 %v309, %v385
      %v387 = vpop.f32.mrb[0].mxu0
      %v388 = vadd.f32 %v309, %v387
      %v389 = vpop.f32.mrb[0].mxu0
      %v390 = vadd.f32 %v314, %v389
      %v391 = vpop.f32.mrb[0].mxu0
      %v392 = vadd.f32 %v314, %v391
      %393 = vmatprep.mubr.bf16.mxu0 %v349
      %394 = vmatmul.mubr.bf16.gmra.mrb[0].mxu0 %v340
      %v395 = vpop.f32.mrb[0].mxu0
      %v396 = vadd.f32 %v319, %v395
      %v397 = vpop.f32.mrb[0].mxu0
      %v398 = vadd.f32 %v319, %v397
      %v399 = vpop.f32.mrb[0].mxu0
      %v400 = vadd.f32 %v324, %v399
      %v401 = vpop.f32.mrb[0].mxu0
      %v402 = vadd.f32 %v324, %v401
      %403 = vdwg.mxu0
      %v404 = vmax.f32 %v386, 0.0
      %v405 = vmax.f32 %v388, 0.0
      %v406 = vmax.f32 %v390, 0.0
      %v407 = vmax.f32 %v392, 0.0
      %v408 = vmax.f32 %v396, 0.0
      %v409 = vmax.f32 %v398, 0.0
      %v410 = vmax.f32 %v400, 0.0
      %v411 = vmax.f32 %v402, 0.0
      %v412 = vpack.c.bf16 %v406, %v404
      %v413 = vpack.c.bf16 %v407, %v405
      %v414 = vpack.c.bf16 %v410, %v408
      %v415 = vpack.c.bf16 %v411, %v409
      %v420 = vunpack.c.l.b16 %v412
      %v421 = vunpack.c.l.b16 %v413
      %v422 = vunpack.c.h.b16 %v412
      %v423 = vunpack.c.h.b16 %v413
      %v424 = vunpack.c.l.b16 %v414
      %v425 = vunpack.c.l.b16 %v415
      %v426 = vunpack.c.h.b16 %v414
      %v427 = vunpack.c.h.b16 %v415
      %v428 = vpack.c.b16 %v421, %v420
      %v429 = vpack.c.b16 %v423, %v422
      %v430 = vpack.c.b16 %v425, %v424
      %v431 = vpack.c.b16 %v427, %v426
      %vm436 = vcmask 1043456
      %vm437 = vcmask 785412
      %vm438 = vmor %vm437, %vm436
      %439 = vst.msk [vmem:[%s170] sm:$0xff] %vm438, %v428
      %440 = vst.msk [vmem:[%s170 + $0x8] sm:$0xff] %vm438, %v429
      %441 = vst.msk [vmem:[%s170 + $0x10] sm:$0xff] %vm438, %v430
      %442 = vst.msk [vmem:[%s170 + $0x18] sm:$0xff] %vm438, %v431
      %p443 = scmp.lt.s32.totalorder %s14, 1
      %s444 = scalar_select %p443, %s14, 1
      %s445 = smul.addr %s444, 8
      %s446 = smul.addr %s445, 4
      %s447 = scalar_lea.vmem %s3, %s446
      // Predicated region
      $region33: #{neural_ode_mnist_forward.4} parent=31 // pred_check
        %p448 = pneg %p100
      $region34: #{neural_ode_mnist_forward.4} parent=31 // pred_check_branch
        %450 = sbr.rel (%p448) target = $region36
      $region35: #{neural_ode_mnist_forward.4} parent=31 // pred_region
        _
      $region36: #{neural_ode_mnist_forward.4} parent=31 // pred_fallthru
        _
    $region32: #{neural_ode_mnist_forward.4} parent=5 // pred_fallthru
      _
    %p451 = scmp.le.s32.totalorder 2, %s9
    // Predicated region
    $region37: #{neural_ode_mnist_forward.4} parent=5 // pred_check
      %p452 = pneg %p451
    $region38: #{neural_ode_mnist_forward.4} parent=5 // pred_check_branch
      %454 = sbr.rel (%p452) target = $region40
    $region39: #{neural_ode_mnist_forward.4} parent=5 // pred_region
      %s455 = ssub.s32 %s9, 2
      // Predicated region
      $region41: #{neural_ode_mnist_forward.4} parent=39 // pred_check
        %p456 = pneg %p106
      $region42: #{neural_ode_mnist_forward.4} parent=39 // pred_check_branch
        %458 = sbr.rel (%p456) target = $region44
      $region43: #{neural_ode_mnist_forward.4} parent=39 // pred_region
        %p459 = scmp.lt.s32.totalorder %s15, 1
        %s460 = scalar_select %p459, %s15, 1
        %s461 = smul.addr %s460, 8
        %s462 = smul.addr %s461, 4
        %s463 = scalar_lea.vmem %s3, %s462
      $region44: #{neural_ode_mnist_forward.4} parent=39 // pred_fallthru
        _
    $region40: #{neural_ode_mnist_forward.4} parent=5 // pred_fallthru
      _
  $region6: #{neural_ode_mnist_forward.4} parent=0 // loop_footer
    %s13 = sadd.s32 1, %s9
  $region7: #{neural_ode_mnist_forward.4} parent=0 // loop_footer_branch
    %8 = sbr.rel target = $region3
  $region8: #{neural_ode_mnist_forward.4} parent=0 // loop_exit
    _

// kernel: neural_ode_mnist_forward.5
$region0: #{neural_ode_mnist_forward.5}
  #allocation0 [shape = 'u32[]', space=smem, size = 0x4, offset = 0x4, fixed_abs, tag = 'smem constant byte address 0x4 - core index']
  #allocation1 [shape = 'u32[144,128]{1,0:T(1,128)}', space=vmem, size = 0x12000, scoped, tag = 'internal scratch']
  %s0 = inlined_call_operand.vmem [shape: bf16[8,1568], index: 0, kind: input, shape index: {}]
  %s1 = inlined_call_operand.vmem [shape: bf16[1568,64], index: 1, kind: input, shape index: {}]
  %s2 = inlined_call_operand.vmem [shape: f32[1,64], index: 2, kind: input, shape index: {}]
  %s3 = inlined_call_operand.vmem [shape: bf16[64,64], index: 3, kind: input, shape index: {}]
  %s4 = inlined_call_operand.vmem [shape: f32[1,64], index: 4, kind: input, shape index: {}]
  %s5 = inlined_call_operand.vmem [shape: bf16[64,64], index: 5, kind: input, shape index: {}]
  %s6 = inlined_call_operand.vmem [shape: f32[1,64], index: 6, kind: input, shape index: {}]
  %s7 = inlined_call_operand.vmem [shape: bf16[64,128], index: 7, kind: input, shape index: {}]
  %s8 = inlined_call_operand.vmem [shape: f32[1,128], index: 8, kind: input, shape index: {}]
  %s9 = inlined_call_operand.vmem [shape: f32[8,128], index: 9, kind: output, shape index: {}]
  %s10 = sld [smem:[#allocation0]]
  $region46: #{neural_ode_mnist_forward.5} parent=0
    _
  %s12 = ssub.s32 1, %s10
  %s13 = scalar_select 0, %s12, %s10
  // Predicated region
  $region2: #{neural_ode_mnist_forward.5} parent=0 // pred_check
    _
  $region3: #{neural_ode_mnist_forward.5} parent=0 // pred_check_branch
    %15 = sbr.rel (0) target = $region5
  $region4: #{neural_ode_mnist_forward.5} parent=0 // pred_region
    _
  $region5: #{neural_ode_mnist_forward.5} parent=0 // pred_fallthru
    _
  // Predicated region
  $region6: #{neural_ode_mnist_forward.5} parent=0 // pred_check
    _
  $region7: #{neural_ode_mnist_forward.5} parent=0 // pred_check_branch
    %17 = sbr.rel (0) target = $region9
  $region8: #{neural_ode_mnist_forward.5} parent=0 // pred_region
    _
  $region9: #{neural_ode_mnist_forward.5} parent=0 // pred_fallthru
    _
  // Predicated region
  $region10: #{neural_ode_mnist_forward.5} parent=0 // pred_check
    _
  $region11: #{neural_ode_mnist_forward.5} parent=0 // pred_check_branch
    %19 = sbr.rel (0) target = $region13
  $region12: #{neural_ode_mnist_forward.5} parent=0 // pred_region
    _
  $region13: #{neural_ode_mnist_forward.5} parent=0 // pred_fallthru
    _
  // Predicated region
  $region14: #{neural_ode_mnist_forward.5} parent=0 // pred_check
    _
  $region15: #{neural_ode_mnist_forward.5} parent=0 // pred_check_branch
    %21 = sbr.rel (0) target = $region17
  $region16: #{neural_ode_mnist_forward.5} parent=0 // pred_region
    _
  $region17: #{neural_ode_mnist_forward.5} parent=0 // pred_fallthru
    _
  // Predicated region
  $region18: #{neural_ode_mnist_forward.5} parent=0 // pred_check
    _
  $region19: #{neural_ode_mnist_forward.5} parent=0 // pred_check_branch
    %23 = sbr.rel (0) target = $region21
  $region20: #{neural_ode_mnist_forward.5} parent=0 // pred_region
    _
  $region21: #{neural_ode_mnist_forward.5} parent=0 // pred_fallthru
    _
  // Predicated region
  $region22: #{neural_ode_mnist_forward.5} parent=0 // pred_check
    _
  $region23: #{neural_ode_mnist_forward.5} parent=0 // pred_check_branch
    %25 = sbr.rel (0) target = $region25
  $region24: #{neural_ode_mnist_forward.5} parent=0 // pred_region
    _
  $region25: #{neural_ode_mnist_forward.5} parent=0 // pred_fallthru
    _
  // Predicated region
  $region26: #{neural_ode_mnist_forward.5} parent=0 // pred_check
    _
  $region27: #{neural_ode_mnist_forward.5} parent=0 // pred_check_branch
    %27 = sbr.rel (0) target = $region29
  $region28: #{neural_ode_mnist_forward.5} parent=0 // pred_region
    _
  $region29: #{neural_ode_mnist_forward.5} parent=0 // pred_fallthru
    _
  // Predicated region
  $region30: #{neural_ode_mnist_forward.5} parent=0 // pred_check
    _
  $region31: #{neural_ode_mnist_forward.5} parent=0 // pred_check_branch
    %29 = sbr.rel (0) target = $region33
  $region32: #{neural_ode_mnist_forward.5} parent=0 // pred_region
    _
  $region33: #{neural_ode_mnist_forward.5} parent=0 // pred_fallthru
    _
  // Predicated region
  $region34: #{neural_ode_mnist_forward.5} parent=0 // pred_check
    _
  $region35: #{neural_ode_mnist_forward.5} parent=0 // pred_check_branch
    %31 = sbr.rel (0) target = $region37
  $region36: #{neural_ode_mnist_forward.5} parent=0 // pred_region
    _
  $region37: #{neural_ode_mnist_forward.5} parent=0 // pred_fallthru
    _
  %v33 = vld [vmem:[%s1] sm:$0xf]
  %v34 = vld [vmem:[%s1 + $0x4] sm:$0xf]
  %v35 = vld [vmem:[%s1 + $0x8] sm:$0xf]
  %v36 = vld [vmem:[%s1 + $0xc] sm:$0xf]
  %v37 = vld [vmem:[%s1 + $0x10] sm:$0xf]
  %v38 = vld [vmem:[%s1 + $0x14] sm:$0xf]
  %v39 = vld [vmem:[%s1 + $0x18] sm:$0xf]
  %v40 = vld [vmem:[%s1 + $0x1c] sm:$0xf]
  %v41 = vld [vmem:[%s1 + $0x20] sm:$0xf]
  %v42 = vld [vmem:[%s1 + $0x24] sm:$0xf]
  %v43 = vld [vmem:[%s1 + $0x28] sm:$0xf]
  %v44 = vld [vmem:[%s1 + $0x2c] sm:$0xf]
  %v45 = vld [vmem:[%s1 + $0x30] sm:$0xf]
  %v46 = vld [vmem:[%s1 + $0x34] sm:$0xf]
  %v47 = vld [vmem:[%s1 + $0x38] sm:$0xf]
  %v48 = vld [vmem:[%s1 + $0x3c] sm:$0xf]
  %v49 = vld [vmem:[%s1 + $0x40] sm:$0xf]
  %v50 = vld [vmem:[%s1 + $0x44] sm:$0xf]
  %v51 = vld [vmem:[%s1 + $0x48] sm:$0xf]
  %v52 = vld [vmem:[%s1 + $0x4c] sm:$0xf]
  %v53 = vld [vmem:[%s1 + $0x50] sm:$0xf]
  %v54 = vld [vmem:[%s1 + $0x54] sm:$0xf]
  %v55 = vld [vmem:[%s1 + $0x58] sm:$0xf]
  %v56 = vld [vmem:[%s1 + $0x5c] sm:$0xf]
  %v57 = vld [vmem:[%s1 + $0x60] sm:$0xf]
  %v58 = vld [vmem:[%s1 + $0x64] sm:$0xf]
  %v59 = vld [vmem:[%s1 + $0x68] sm:$0xf]
  %v60 = vld [vmem:[%s1 + $0x6c] sm:$0xf]
  %v61 = vld [vmem:[%s1 + $0x70] sm:$0xf]
  %v62 = vld [vmem:[%s1 + $0x74] sm:$0xf]
  %v63 = vld [vmem:[%s1 + $0x78] sm:$0xf]
  %v64 = vld [vmem:[%s1 + $0x7c] sm:$0xf]
  %v65 = vld [vmem:[%s1 + $0x80] sm:$0xf]
  %v66 = vld [vmem:[%s1 + $0x84] sm:$0xf]
  %v67 = vld [vmem:[%s1 + $0x88] sm:$0xf]
  %v68 = vld [vmem:[%s1 + $0x8c] sm:$0xf]
  %v69 = vld [vmem:[%s1 + $0x90] sm:$0xf]
  %v70 = vld [vmem:[%s1 + $0x94] sm:$0xf]
  %v71 = vld [vmem:[%s1 + $0x98] sm:$0xf]
  %v72 = vld [vmem:[%s1 + $0x9c] sm:$0xf]
  %v73 = vld [vmem:[%s1 + $0xa0] sm:$0xf]
  %v74 = vld [vmem:[%s1 + $0xa4] sm:$0xf]
  %v75 = vld [vmem:[%s1 + $0xa8] sm:$0xf]
  %v76 = vld [vmem:[%s1 + $0xac] sm:$0xf]
  %v77 = vld [vmem:[%s1 + $0xb0] sm:$0xf]
  %v78 = vld [vmem:[%s1 + $0xb4] sm:$0xf]
  %v79 = vld [vmem:[%s1 + $0xb8] sm:$0xf]
  %v80 = vld [vmem:[%s1 + $0xbc] sm:$0xf]
  %v81 = vld [vmem:[%s1 + $0xc0] sm:$0xf]
  %v82 = vld [vmem:[%s1 + $0xc4] sm:$0xf]
  %v83 = vld [vmem:[%s1 + $0xc8] sm:$0xf]
  %v84 = vld [vmem:[%s1 + $0xcc] sm:$0xf]
  %v85 = vld [vmem:[%s1 + $0xd0] sm:$0xf]
  %v86 = vld [vmem:[%s1 + $0xd4] sm:$0xf]
  %v87 = vld [vmem:[%s1 + $0xd8] sm:$0xf]
  %v88 = vld [vmem:[%s1 + $0xdc] sm:$0xf]
  %v89 = vld [vmem:[%s1 + $0xe0] sm:$0xf]
  %v90 = vld [vmem:[%s1 + $0xe4] sm:$0xf]
  %v91 = vld [vmem:[%s1 + $0xe8] sm:$0xf]
  %v92 = vld [vmem:[%s1 + $0xec] sm:$0xf]
  %v93 = vld [vmem:[%s1 + $0xf0] sm:$0xf]
  %v94 = vld [vmem:[%s1 + $0xf4] sm:$0xf]
  %v95 = vld [vmem:[%s1 + $0xf8] sm:$0xf]
  %v96 = vld [vmem:[%s1 + $0xfc] sm:$0xf]
  %v97 = vld [vmem:[%s1 + $0x100] sm:$0xf]
  %v98 = vld [vmem:[%s1 + $0x104] sm:$0xf]
  %v99 = vld [vmem:[%s1 + $0x108] sm:$0xf]
  %v100 = vld [vmem:[%s1 + $0x10c] sm:$0xf]
  %v101 = vld [vmem:[%s1 + $0x110] sm:$0xf]
  %v102 = vld [vmem:[%s1 + $0x114] sm:$0xf]
  %v103 = vld [vmem:[%s1 + $0x118] sm:$0xf]
  %v104 = vld [vmem:[%s1 + $0x11c] sm:$0xf]
  %v105 = vld [vmem:[%s1 + $0x120] sm:$0xf]
  %v106 = vld [vmem:[%s1 + $0x124] sm:$0xf]
  %v107 = vld [vmem:[%s1 + $0x128] sm:$0xf]
  %v108 = vld [vmem:[%s1 + $0x12c] sm:$0xf]
  %v109 = vld [vmem:[%s1 + $0x130] sm:$0xf]
  %v110 = vld [vmem:[%s1 + $0x134] sm:$0xf]
  %v111 = vld [vmem:[%s1 + $0x138] sm:$0xf]
  %v112 = vld [vmem:[%s1 + $0x13c] sm:$0xf]
  %v113 = vld [vmem:[%s1 + $0x140] sm:$0xf]
  %v114 = vld [vmem:[%s1 + $0x144] sm:$0xf]
  %v115 = vld [vmem:[%s1 + $0x148] sm:$0xf]
  %v116 = vld [vmem:[%s1 + $0x14c] sm:$0xf]
  %v117 = vld [vmem:[%s1 + $0x150] sm:$0xf]
  %v118 = vld [vmem:[%s1 + $0x154] sm:$0xf]
  %v119 = vld [vmem:[%s1 + $0x158] sm:$0xf]
  %v120 = vld [vmem:[%s1 + $0x15c] sm:$0xf]
  %v121 = vld [vmem:[%s1 + $0x160] sm:$0xf]
  %v122 = vld [vmem:[%s1 + $0x164] sm:$0xf]
  %v123 = vld [vmem:[%s1 + $0x168] sm:$0xf]
  %v124 = vld [vmem:[%s1 + $0x16c] sm:$0xf]
  %v125 = vld [vmem:[%s1 + $0x170] sm:$0xf]
  %v126 = vld [vmem:[%s1 + $0x174] sm:$0xf]
  %v127 = vld [vmem:[%s1 + $0x178] sm:$0xf]
  %v128 = vld [vmem:[%s1 + $0x17c] sm:$0xf]
  %v129 = vld [vmem:[%s1 + $0x180] sm:$0xf]
  %v130 = vld [vmem:[%s1 + $0x184] sm:$0xf]
  %v131 = vld [vmem:[%s1 + $0x188] sm:$0xf]
  %v132 = vld [vmem:[%s1 + $0x18c] sm:$0xf]
  %v133 = vld [vmem:[%s1 + $0x190] sm:$0xf]
  %v134 = vld [vmem:[%s1 + $0x194] sm:$0xf]
  %v135 = vld [vmem:[%s1 + $0x198] sm:$0xf]
  %v136 = vld [vmem:[%s1 + $0x19c] sm:$0xf]
  %v137 = vld [vmem:[%s1 + $0x1a0] sm:$0xf]
  %v138 = vld [vmem:[%s1 + $0x1a4] sm:$0xf]
  %v139 = vld [vmem:[%s1 + $0x1a8] sm:$0xf]
  %v140 = vld [vmem:[%s1 + $0x1ac] sm:$0xf]
  %v141 = vld [vmem:[%s1 + $0x1b0] sm:$0xf]
  %v142 = vld [vmem:[%s1 + $0x1b4] sm:$0xf]
  %v143 = vld [vmem:[%s1 + $0x1b8] sm:$0xf]
  %v144 = vld [vmem:[%s1 + $0x1bc] sm:$0xf]
  %v145 = vld [vmem:[%s1 + $0x1c0] sm:$0xf]
  %v146 = vld [vmem:[%s1 + $0x1c4] sm:$0xf]
  %v147 = vld [vmem:[%s1 + $0x1c8] sm:$0xf]
  %v148 = vld [vmem:[%s1 + $0x1cc] sm:$0xf]
  %v149 = vld [vmem:[%s1 + $0x1d0] sm:$0xf]
  %v150 = vld [vmem:[%s1 + $0x1d4] sm:$0xf]
  %v151 = vld [vmem:[%s1 + $0x1d8] sm:$0xf]
  %v152 = vld [vmem:[%s1 + $0x1dc] sm:$0xf]
  %v153 = vld [vmem:[%s1 + $0x1e0] sm:$0xf]
  %v154 = vld [vmem:[%s1 + $0x1e4] sm:$0xf]
  %v155 = vld [vmem:[%s1 + $0x1e8] sm:$0xf]
  %v156 = vld [vmem:[%s1 + $0x1ec] sm:$0xf]
  %v157 = vld [vmem:[%s1 + $0x1f0] sm:$0xf]
  %v158 = vld [vmem:[%s1 + $0x1f4] sm:$0xf]
  %v159 = vld [vmem:[%s1 + $0x1f8] sm:$0xf]
  %v160 = vld [vmem:[%s1 + $0x1fc] sm:$0xf]
  %v161 = vld [vmem:[%s1 + $0x200] sm:$0xf]
  %v162 = vld [vmem:[%s1 + $0x204] sm:$0xf]
  %v163 = vld [vmem:[%s1 + $0x208] sm:$0xf]
  %v164 = vld [vmem:[%s1 + $0x20c] sm:$0xf]
  %v165 = vld [vmem:[%s1 + $0x210] sm:$0xf]
  %v166 = vld [vmem:[%s1 + $0x214] sm:$0xf]
  %v167 = vld [vmem:[%s1 + $0x218] sm:$0xf]
  %v168 = vld [vmem:[%s1 + $0x21c] sm:$0xf]
  %v169 = vld [vmem:[%s1 + $0x220] sm:$0xf]
  %v170 = vld [vmem:[%s1 + $0x224] sm:$0xf]
  %v171 = vld [vmem:[%s1 + $0x228] sm:$0xf]
  %v172 = vld [vmem:[%s1 + $0x22c] sm:$0xf]
  %v173 = vld [vmem:[%s1 + $0x230] sm:$0xf]
  %v174 = vld [vmem:[%s1 + $0x234] sm:$0xf]
  %v175 = vld [vmem:[%s1 + $0x238] sm:$0xf]
  %v176 = vld [vmem:[%s1 + $0x23c] sm:$0xf]
  %v177 = vld [vmem:[%s1 + $0x240] sm:$0xf]
  %v178 = vld [vmem:[%s1 + $0x244] sm:$0xf]
  %v179 = vld [vmem:[%s1 + $0x248] sm:$0xf]
  %v180 = vld [vmem:[%s1 + $0x24c] sm:$0xf]
  %v181 = vld [vmem:[%s1 + $0x250] sm:$0xf]
  %v182 = vld [vmem:[%s1 + $0x254] sm:$0xf]
  %v183 = vld [vmem:[%s1 + $0x258] sm:$0xf]
  %v184 = vld [vmem:[%s1 + $0x25c] sm:$0xf]
  %v185 = vld [vmem:[%s1 + $0x260] sm:$0xf]
  %v186 = vld [vmem:[%s1 + $0x264] sm:$0xf]
  %v187 = vld [vmem:[%s1 + $0x268] sm:$0xf]
  %v188 = vld [vmem:[%s1 + $0x26c] sm:$0xf]
  %v189 = vld [vmem:[%s1 + $0x270] sm:$0xf]
  %v190 = vld [vmem:[%s1 + $0x274] sm:$0xf]
  %v191 = vld [vmem:[%s1 + $0x278] sm:$0xf]
  %v192 = vld [vmem:[%s1 + $0x27c] sm:$0xf]
  %v193 = vld [vmem:[%s1 + $0x280] sm:$0xf]
  %v194 = vld [vmem:[%s1 + $0x284] sm:$0xf]
  %v195 = vld [vmem:[%s1 + $0x288] sm:$0xf]
  %v196 = vld [vmem:[%s1 + $0x28c] sm:$0xf]
  %v197 = vld [vmem:[%s1 + $0x290] sm:$0xf]
  %v198 = vld [vmem:[%s1 + $0x294] sm:$0xf]
  %v199 = vld [vmem:[%s1 + $0x298] sm:$0xf]
  %v200 = vld [vmem:[%s1 + $0x29c] sm:$0xf]
  %v201 = vld [vmem:[%s1 + $0x2a0] sm:$0xf]
  %v202 = vld [vmem:[%s1 + $0x2a4] sm:$0xf]
  %v203 = vld [vmem:[%s1 + $0x2a8] sm:$0xf]
  %v204 = vld [vmem:[%s1 + $0x2ac] sm:$0xf]
  %v205 = vld [vmem:[%s1 + $0x2b0] sm:$0xf]
  %v206 = vld [vmem:[%s1 + $0x2b4] sm:$0xf]
  %v207 = vld [vmem:[%s1 + $0x2b8] sm:$0xf]
  %v208 = vld [vmem:[%s1 + $0x2bc] sm:$0xf]
  %v209 = vld [vmem:[%s1 + $0x2c0] sm:$0xf]
  %v210 = vld [vmem:[%s1 + $0x2c4] sm:$0xf]
  %v211 = vld [vmem:[%s1 + $0x2c8] sm:$0xf]
  %v212 = vld [vmem:[%s1 + $0x2cc] sm:$0xf]
  %v213 = vld [vmem:[%s1 + $0x2d0] sm:$0xf]
  %v214 = vld [vmem:[%s1 + $0x2d4] sm:$0xf]
  %v215 = vld [vmem:[%s1 + $0x2d8] sm:$0xf]
  %v216 = vld [vmem:[%s1 + $0x2dc] sm:$0xf]
  %v217 = vld [vmem:[%s1 + $0x2e0] sm:$0xf]
  %v218 = vld [vmem:[%s1 + $0x2e4] sm:$0xf]
  %v219 = vld [vmem:[%s1 + $0x2e8] sm:$0xf]
  %v220 = vld [vmem:[%s1 + $0x2ec] sm:$0xf]
  %v221 = vld [vmem:[%s1 + $0x2f0] sm:$0xf]
  %v222 = vld [vmem:[%s1 + $0x2f4] sm:$0xf]
  %v223 = vld [vmem:[%s1 + $0x2f8] sm:$0xf]
  %v224 = vld [vmem:[%s1 + $0x2fc] sm:$0xf]
  %v225 = vld [vmem:[%s1 + $0x300] sm:$0xf]
  %v226 = vld [vmem:[%s1 + $0x304] sm:$0xf]
  %v227 = vld [vmem:[%s1 + $0x308] sm:$0xf]
  %v228 = vld [vmem:[%s1 + $0x30c] sm:$0xf]
  %v229 = vld [vmem:[%s3] sm:$0xf]
  %v230 = vld [vmem:[%s3 + $0x4] sm:$0xf]
  %v231 = vld [vmem:[%s3 + $0x8] sm:$0xf]
  %v232 = vld [vmem:[%s3 + $0xc] sm:$0xf]
  %v233 = vld [vmem:[%s3 + $0x10] sm:$0xf]
  %v234 = vld [vmem:[%s3 + $0x14] sm:$0xf]
  %v235 = vld [vmem:[%s3 + $0x18] sm:$0xf]
  %v236 = vld [vmem:[%s3 + $0x1c] sm:$0xf]
  %v237 = vld [vmem:[%s5] sm:$0xf]
  %v238 = vld [vmem:[%s5 + $0x4] sm:$0xf]
  %v239 = vld [vmem:[%s5 + $0x8] sm:$0xf]
  %v240 = vld [vmem:[%s5 + $0xc] sm:$0xf]
  %v241 = vld [vmem:[%s5 + $0x10] sm:$0xf]
  %v242 = vld [vmem:[%s5 + $0x14] sm:$0xf]
  %v243 = vld [vmem:[%s5 + $0x18] sm:$0xf]
  %v244 = vld [vmem:[%s5 + $0x1c] sm:$0xf]
  %v245 = vld [vmem:[%s7] sm:$0xf]
  %v246 = vld [vmem:[%s7 + $0x4] sm:$0xf]
  %v247 = vld [vmem:[%s7 + $0x8] sm:$0xf]
  %v248 = vld [vmem:[%s7 + $0xc] sm:$0xf]
  %v249 = vld [vmem:[%s7 + $0x10] sm:$0xf]
  %v250 = vld [vmem:[%s7 + $0x14] sm:$0xf]
  %v251 = vld [vmem:[%s7 + $0x18] sm:$0xf]
  %v252 = vld [vmem:[%s7 + $0x1c] sm:$0xf]
  %v253 = vld [vmem:[%s4] sm:$0x1]
  %v255 = vlaneseq
  %v256 = vshrl.u32 %v255, 7
  %v257 = vsub.s32 0, %v256
  %v258 = vrot.slane %v253, %v257
  %v260 = vld [vmem:[%s6] sm:$0x1]
  %v262 = vlaneseq
  %v263 = vshrl.u32 %v262, 7
  %v264 = vsub.s32 0, %v263
  %v265 = vrot.slane %v260, %v264
  %v267 = vld [vmem:[%s0] sm:$0xff]
  %v268 = vld [vmem:[%s0 + $0x8] sm:$0xff]
  %v269 = vld [vmem:[%s0 + $0x10] sm:$0xff]
  %v270 = vld [vmem:[%s0 + $0x18] sm:$0xff]
  %v271 = vld [vmem:[%s0 + $0x20] sm:$0xff]
  %v272 = vld [vmem:[%s0 + $0x28] sm:$0xff]
  %v273 = vld [vmem:[%s0 + $0x30] sm:$0xf]
  %v274 = vld [vmem:[%s2] sm:$0x1]
  %v276 = vlaneseq
  %v277 = vshrl.u32 %v276, 7
  %v278 = vsub.s32 0, %v277
  %v279 = vrot.slane %v274, %v278
  %v288 = vunpack.c.l.b16 %v267
  %v289 = vunpack.c.h.b16 %v267
  %v290 = vunpack.c.l.b16 %v268
  %v291 = vunpack.c.h.b16 %v268
  %v292 = vunpack.c.l.b16 %v269
  %v293 = vunpack.c.h.b16 %v269
  %v294 = vunpack.c.l.b16 %v270
  %v295 = vunpack.c.h.b16 %v270
  %v296 = vunpack.c.l.b16 %v271
  %v297 = vunpack.c.h.b16 %v271
  %v298 = vunpack.c.l.b16 %v272
  %v299 = vunpack.c.h.b16 %v272
  %v300 = vunpack.c.l.b16 %v273
  %v301 = vpack.c.b16 %v288, %v288
  %v302 = vpack.c.b16 %v289, %v289
  %v303 = vpack.c.b16 %v290, %v290
  %v304 = vpack.c.b16 %v291, %v291
  %v305 = vpack.c.b16 %v292, %v292
  %v306 = vpack.c.b16 %v293, %v293
  %v307 = vpack.c.b16 %v294, %v294
  %v308 = vpack.c.b16 %v295, %v295
  %v309 = vpack.c.b16 %v296, %v296
  %v310 = vpack.c.b16 %v297, %v297
  %v311 = vpack.c.b16 %v298, %v298
  %v312 = vpack.c.b16 %v299, %v299
  %v313 = vpack.c.b16 %v300, %v300
  %v522 = vunpack.c.l.b16 %v33
  %v523 = vunpack.c.l.b16 %v34
  %v524 = vunpack.c.l.b16 %v35
  %v525 = vunpack.c.l.b16 %v36
  %v526 = vunpack.c.l.b16 %v37
  %v527 = vunpack.c.l.b16 %v38
  %v528 = vunpack.c.l.b16 %v39
  %v529 = vunpack.c.l.b16 %v40
  %v530 = vunpack.c.l.b16 %v41
  %v531 = vunpack.c.l.b16 %v42
  %v532 = vunpack.c.l.b16 %v43
  %v533 = vunpack.c.l.b16 %v44
  %v534 = vunpack.c.l.b16 %v45
  %v535 = vunpack.c.l.b16 %v46
  %v536 = vunpack.c.l.b16 %v47
  %v537 = vunpack.c.l.b16 %v48
  %v538 = vunpack.c.l.b16 %v49
  %v539 = vunpack.c.l.b16 %v50
  %v540 = vunpack.c.l.b16 %v51
  %v541 = vunpack.c.l.b16 %v52
  %v542 = vunpack.c.l.b16 %v53
  %v543 = vunpack.c.l.b16 %v54
  %v544 = vunpack.c.l.b16 %v55
  %v545 = vunpack.c.l.b16 %v56
  %v546 = vunpack.c.l.b16 %v57
  %v547 = vunpack.c.l.b16 %v58
  %v548 = vunpack.c.l.b16 %v59
  %v549 = vunpack.c.l.b16 %v60
  %v550 = vunpack.c.l.b16 %v61
  %v551 = vunpack.c.l.b16 %v62
  %v552 = vunpack.c.l.b16 %v63
  %v553 = vunpack.c.l.b16 %v64
  %v554 = vunpack.c.l.b16 %v65
  %v555 = vunpack.c.l.b16 %v66
  %v556 = vunpack.c.l.b16 %v67
  %v557 = vunpack.c.l.b16 %v68
  %v558 = vunpack.c.l.b16 %v69
  %v559 = vunpack.c.l.b16 %v70
  %v560 = vunpack.c.l.b16 %v71
  %v561 = vunpack.c.l.b16 %v72
  %v562 = vunpack.c.l.b16 %v73
  %v563 = vunpack.c.l.b16 %v74
  %v564 = vunpack.c.l.b16 %v75
  %v565 = vunpack.c.l.b16 %v76
  %v566 = vunpack.c.l.b16 %v77
  %v567 = vunpack.c.l.b16 %v78
  %v568 = vunpack.c.l.b16 %v79
  %v569 = vunpack.c.l.b16 %v80
  %v570 = vunpack.c.l.b16 %v81
  %v571 = vunpack.c.l.b16 %v82
  %v572 = vunpack.c.l.b16 %v83
  %v573 = vunpack.c.l.b16 %v84
  %v574 = vunpack.c.l.b16 %v85
  %v575 = vunpack.c.l.b16 %v86
  %v576 = vunpack.c.l.b16 %v87
  %v577 = vunpack.c.l.b16 %v88
  %v578 = vunpack.c.l.b16 %v89
  %v579 = vunpack.c.l.b16 %v90
  %v580 = vunpack.c.l.b16 %v91
  %v581 = vunpack.c.l.b16 %v92
  %v582 = vunpack.c.l.b16 %v93
  %v583 = vunpack.c.l.b16 %v94
  %v584 = vunpack.c.l.b16 %v95
  %v585 = vunpack.c.l.b16 %v96
  %v586 = vunpack.c.l.b16 %v97
  %v587 = vunpack.c.l.b16 %v98
  %v588 = vunpack.c.l.b16 %v99
  %v589 = vunpack.c.l.b16 %v100
  %v590 = vunpack.c.l.b16 %v101
  %v591 = vunpack.c.l.b16 %v102
  %v592 = vunpack.c.l.b16 %v103
  %v593 = vunpack.c.l.b16 %v104
  %v594 = vunpack.c.l.b16 %v105
  %v595 = vunpack.c.l.b16 %v106
  %v596 = vunpack.c.l.b16 %v107
  %v597 = vunpack.c.l.b16 %v108
  %v598 = vunpack.c.l.b16 %v109
  %v599 = vunpack.c.l.b16 %v110
  %v600 = vunpack.c.l.b16 %v111
  %v601 = vunpack.c.l.b16 %v112
  %v602 = vunpack.c.l.b16 %v113
  %v603 = vunpack.c.l.b16 %v114
  %v604 = vunpack.c.l.b16 %v115
  %v605 = vunpack.c.l.b16 %v116
  %v606 = vunpack.c.l.b16 %v117
  %v607 = vunpack.c.l.b16 %v118
  %v608 = vunpack.c.l.b16 %v119
  %v609 = vunpack.c.l.b16 %v120
  %v610 = vunpack.c.l.b16 %v121
  %v611 = vunpack.c.l.b16 %v122
  %v612 = vunpack.c.l.b16 %v123
  %v613 = vunpack.c.l.b16 %v124
  %v614 = vunpack.c.l.b16 %v125
  %v615 = vunpack.c.l.b16 %v126
  %v616 = vunpack.c.l.b16 %v127
  %v617 = vunpack.c.l.b16 %v128
  %v618 = vunpack.c.l.b16 %v129
  %v619 = vunpack.c.l.b16 %v130
  %v620 = vunpack.c.l.b16 %v131
  %v621 = vunpack.c.l.b16 %v132
  %v622 = vunpack.c.l.b16 %v133
  %v623 = vunpack.c.l.b16 %v134
  %v624 = vunpack.c.l.b16 %v135
  %v625 = vunpack.c.l.b16 %v136
  %v626 = vunpack.c.l.b16 %v137
  %v627 = vunpack.c.l.b16 %v138
  %v628 = vunpack.c.l.b16 %v139
  %v629 = vunpack.c.l.b16 %v140
  %v630 = vunpack.c.l.b16 %v141
  %v631 = vunpack.c.l.b16 %v142
  %v632 = vunpack.c.l.b16 %v143
  %v633 = vunpack.c.l.b16 %v144
  %v634 = vunpack.c.l.b16 %v145
  %v635 = vunpack.c.l.b16 %v146
  %v636 = vunpack.c.l.b16 %v147
  %v637 = vunpack.c.l.b16 %v148
  %v638 = vunpack.c.l.b16 %v149
  %v639 = vunpack.c.l.b16 %v150
  %v640 = vunpack.c.l.b16 %v151
  %v641 = vunpack.c.l.b16 %v152
  %v642 = vunpack.c.l.b16 %v153
  %v643 = vunpack.c.l.b16 %v154
  %v644 = vunpack.c.l.b16 %v155
  %v645 = vunpack.c.l.b16 %v156
  %v646 = vunpack.c.l.b16 %v157
  %v647 = vunpack.c.l.b16 %v158
  %v648 = vunpack.c.l.b16 %v159
  %v649 = vunpack.c.l.b16 %v160
  %v650 = vunpack.c.l.b16 %v161
  %v651 = vunpack.c.l.b16 %v162
  %v652 = vunpack.c.l.b16 %v163
  %v653 = vunpack.c.l.b16 %v164
  %v654 = vunpack.c.l.b16 %v165
  %v655 = vunpack.c.l.b16 %v166
  %v656 = vunpack.c.l.b16 %v167
  %v657 = vunpack.c.l.b16 %v168
  %v658 = vunpack.c.l.b16 %v169
  %v659 = vunpack.c.l.b16 %v170
  %v660 = vunpack.c.l.b16 %v171
  %v661 = vunpack.c.l.b16 %v172
  %v662 = vunpack.c.l.b16 %v173
  %v663 = vunpack.c.l.b16 %v174
  %v664 = vunpack.c.l.b16 %v175
  %v665 = vunpack.c.l.b16 %v176
  %v666 = vunpack.c.l.b16 %v177
  %v667 = vunpack.c.l.b16 %v178
  %v668 = vunpack.c.l.b16 %v179
  %v669 = vunpack.c.l.b16 %v180
  %v670 = vunpack.c.l.b16 %v181
  %v671 = vunpack.c.l.b16 %v182
  %v672 = vunpack.c.l.b16 %v183
  %v673 = vunpack.c.l.b16 %v184
  %v674 = vunpack.c.l.b16 %v185
  %v675 = vunpack.c.l.b16 %v186
  %v676 = vunpack.c.l.b16 %v187
  %v677 = vunpack.c.l.b16 %v188
  %v678 = vunpack.c.l.b16 %v189
  %v679 = vunpack.c.l.b16 %v190
  %v680 = vunpack.c.l.b16 %v191
  %v681 = vunpack.c.l.b16 %v192
  %v682 = vunpack.c.l.b16 %v193
  %v683 = vunpack.c.l.b16 %v194
  %v684 = vunpack.c.l.b16 %v195
  %v685 = vunpack.c.l.b16 %v196
  %v686 = vunpack.c.l.b16 %v197
  %v687 = vunpack.c.l.b16 %v198
  %v688 = vunpack.c.l.b16 %v199
  %v689 = vunpack.c.l.b16 %v200
  %v690 = vunpack.c.l.b16 %v201
  %v691 = vunpack.c.l.b16 %v202
  %v692 = vunpack.c.l.b16 %v203
  %v693 = vunpack.c.l.b16 %v204
  %v694 = vunpack.c.l.b16 %v205
  %v695 = vunpack.c.l.b16 %v206
  %v696 = vunpack.c.l.b16 %v207
  %v697 = vunpack.c.l.b16 %v208
  %v698 = vunpack.c.l.b16 %v209
  %v699 = vunpack.c.l.b16 %v210
  %v700 = vunpack.c.l.b16 %v211
  %v701 = vunpack.c.l.b16 %v212
  %v702 = vunpack.c.l.b16 %v213
  %v703 = vunpack.c.l.b16 %v214
  %v704 = vunpack.c.l.b16 %v215
  %v705 = vunpack.c.l.b16 %v216
  %v706 = vunpack.c.l.b16 %v217
  %v707 = vunpack.c.l.b16 %v218
  %v708 = vunpack.c.l.b16 %v219
  %v709 = vunpack.c.l.b16 %v220
  %v710 = vunpack.c.l.b16 %v221
  %v711 = vunpack.c.l.b16 %v222
  %v712 = vunpack.c.l.b16 %v223
  %v713 = vunpack.c.l.b16 %v224
  %v714 = vunpack.c.l.b16 %v225
  %v715 = vunpack.c.l.b16 %v226
  %v716 = vunpack.c.l.b16 %v227
  %v717 = vunpack.c.l.b16 %v228
  %v718 = vpack.c.b16 %v523, %v522
  %v719 = vpack.c.b16 %v525, %v524
  %v720 = vpack.c.b16 %v527, %v526
  %v721 = vpack.c.b16 %v529, %v528
  %v722 = vpack.c.b16 %v531, %v530
  %v723 = vpack.c.b16 %v533, %v532
  %v724 = vpack.c.b16 %v535, %v534
  %v725 = vpack.c.b16 %v537, %v536
  %v726 = vpack.c.b16 %v539, %v538
  %v727 = vpack.c.b16 %v541, %v540
  %v728 = vpack.c.b16 %v543, %v542
  %v729 = vpack.c.b16 %v545, %v544
  %v730 = vpack.c.b16 %v547, %v546
  %v731 = vpack.c.b16 %v549, %v548
  %v732 = vpack.c.b16 %v551, %v550
  %v733 = vpack.c.b16 %v553, %v552
  %v734 = vpack.c.b16 %v555, %v554
  %v735 = vpack.c.b16 %v557, %v556
  %v736 = vpack.c.b16 %v559, %v558
  %v737 = vpack.c.b16 %v561, %v560
  %v738 = vpack.c.b16 %v563, %v562
  %v739 = vpack.c.b16 %v565, %v564
  %v740 = vpack.c.b16 %v567, %v566
  %v741 = vpack.c.b16 %v569, %v568
  %v742 = vpack.c.b16 %v571, %v570
  %v743 = vpack.c.b16 %v573, %v572
  %v744 = vpack.c.b16 %v575, %v574
  %v745 = vpack.c.b16 %v577, %v576
  %v746 = vpack.c.b16 %v579, %v578
  %v747 = vpack.c.b16 %v581, %v580
  %v748 = vpack.c.b16 %v583, %v582
  %v749 = vpack.c.b16 %v585, %v584
  %v750 = vpack.c.b16 %v587, %v586
  %v751 = vpack.c.b16 %v589, %v588
  %v752 = vpack.c.b16 %v591, %v590
  %v753 = vpack.c.b16 %v593, %v592
  %v754 = vpack.c.b16 %v595, %v594
  %v755 = vpack.c.b16 %v597, %v596
  %v756 = vpack.c.b16 %v599, %v598
  %v757 = vpack.c.b16 %v601, %v600
  %v758 = vpack.c.b16 %v603, %v602
  %v759 = vpack.c.b16 %v605, %v604
  %v760 = vpack.c.b16 %v607, %v606
  %v761 = vpack.c.b16 %v609, %v608
  %v762 = vpack.c.b16 %v611, %v610
  %v763 = vpack.c.b16 %v613, %v612
  %v764 = vpack.c.b16 %v615, %v614
  %v765 = vpack.c.b16 %v617, %v616
  %v766 = vpack.c.b16 %v619, %v618
  %v767 = vpack.c.b16 %v621, %v620
  %v768 = vpack.c.b16 %v623, %v622
  %v769 = vpack.c.b16 %v625, %v624
  %v770 = vpack.c.b16 %v627, %v626
  %v771 = vpack.c.b16 %v629, %v628
  %v772 = vpack.c.b16 %v631, %v630
  %v773 = vpack.c.b16 %v633, %v632
  %v774 = vpack.c.b16 %v635, %v634
  %v775 = vpack.c.b16 %v637, %v636
  %v776 = vpack.c.b16 %v639, %v638
  %v777 = vpack.c.b16 %v641, %v640
  %v778 = vpack.c.b16 %v643, %v642
  %v779 = vpack.c.b16 %v645, %v644
  %v780 = vpack.c.b16 %v647, %v646
  %v781 = vpack.c.b16 %v649, %v648
  %v782 = vpack.c.b16 %v651, %v650
  %v783 = vpack.c.b16 %v653, %v652
  %v784 = vpack.c.b16 %v655, %v654
  %v785 = vpack.c.b16 %v657, %v656
  %v786 = vpack.c.b16 %v659, %v658
  %v787 = vpack.c.b16 %v661, %v660
  %v788 = vpack.c.b16 %v663, %v662
  %v789 = vpack.c.b16 %v665, %v664
  %v790 = vpack.c.b16 %v667, %v666
  %v791 = vpack.c.b16 %v669, %v668
  %v792 = vpack.c.b16 %v671, %v670
  %v793 = vpack.c.b16 %v673, %v672
  %v794 = vpack.c.b16 %v675, %v674
  %v795 = vpack.c.b16 %v677, %v676
  %v796 = vpack.c.b16 %v679, %v678
  %v797 = vpack.c.b16 %v681, %v680
  %v798 = vpack.c.b16 %v683, %v682
  %v799 = vpack.c.b16 %v685, %v684
  %v800 = vpack.c.b16 %v687, %v686
  %v801 = vpack.c.b16 %v689, %v688
  %v802 = vpack.c.b16 %v691, %v690
  %v803 = vpack.c.b16 %v693, %v692
  %v804 = vpack.c.b16 %v695, %v694
  %v805 = vpack.c.b16 %v697, %v696
  %v806 = vpack.c.b16 %v699, %v698
  %v807 = vpack.c.b16 %v701, %v700
  %v808 = vpack.c.b16 %v703, %v702
  %v809 = vpack.c.b16 %v705, %v704
  %v810 = vpack.c.b16 %v707, %v706
  %v811 = vpack.c.b16 %v709, %v708
  %v812 = vpack.c.b16 %v711, %v710
  %v813 = vpack.c.b16 %v713, %v712
  %v814 = vpack.c.b16 %v715, %v714
  %v815 = vpack.c.b16 %v717, %v716
  %vm914 = vcmask 261120
  %v916 = vsel %vm914, %v313, 0
  %918 = vmatprep.subr.bf16.mxu0 0
  %919 = vmatpush1.bf16.msra.mxu0 %v718
  %920 = vmatprep.subr.bf16.mxu0 0
  %921 = vmatpush1.bf16.msra.mxu0 %v719
  %922 = vmatprep.subr.bf16.mxu0 0
  %923 = vmatpush1.bf16.msra.mxu0 %v720
  %924 = vmatprep.subr.bf16.mxu0 0
  %925 = vmatpush1.bf16.msra.mxu0 %v721
  %926 = vmatprep.subr.bf16.mxu0 0
  %927 = vmatpush1.bf16.msra.mxu0 %v722
  %928 = vmatprep.subr.bf16.mxu0 0
  %929 = vmatpush1.bf16.msra.mxu0 %v723
  %930 = vmatprep.subr.bf16.mxu0 0
  %931 = vmatpush1.bf16.msra.mxu0 %v724
  %932 = vmatprep.subr.bf16.mxu0 0
  %933 = vmatpush1.bf16.msra.mxu0 %v725
  %934 = vmatprep.subr.bf16.mxu0 0
  %935 = vmatpush1.bf16.msra.mxu0 %v726
  %936 = vmatprep.subr.bf16.mxu0 0
  %937 = vmatpush1.bf16.msra.mxu0 %v727
  %938 = vmatprep.subr.bf16.mxu0 0
  %939 = vmatpush1.bf16.msra.mxu0 %v728
  %940 = vmatprep.subr.bf16.mxu0 0
  %941 = vmatpush1.bf16.msra.mxu0 %v729
  %942 = vmatprep.subr.bf16.mxu0 0
  %943 = vmatpush1.bf16.msra.mxu0 %v730
  %944 = vmatprep.subr.bf16.mxu0 0
  %945 = vmatpush1.bf16.msra.mxu0 %v731
  %946 = vmatprep.subr.bf16.mxu0 0
  %947 = vmatpush1.bf16.msra.mxu0 %v732
  %948 = vmatprep.subr.bf16.mxu0 0
  %949 = vmatpush1.bf16.msra.mxu0 %v733
  %950 = vmatprep.mubr.bf16.mxu0 %v302
  %951 = vmatmul.mubr.bf16.gmra.mrb[0].mxu0 %v301
  %v952 = vpop.f32.mrb[0].mxu0
  %v953 = vadd.f32 %v279, %v952
  %v954 = vpop.f32.mrb[0].mxu0
  %v955 = vpop.f32.mrb[0].mxu0
  %v956 = vpop.f32.mrb[0].mxu0
  %957 = vdwg.mxu0
  %958 = vmatprep.subr.bf16.mxu0 0
  %959 = vmatpush1.bf16.msra.mxu0 %v734
  %960 = vmatprep.subr.bf16.mxu0 0
  %961 = vmatpush1.bf16.msra.mxu0 %v735
  %962 = vmatprep.subr.bf16.mxu0 0
  %963 = vmatpush1.bf16.msra.mxu0 %v736
  %964 = vmatprep.subr.bf16.mxu0 0
  %965 = vmatpush1.bf16.msra.mxu0 %v737
  %966 = vmatprep.subr.bf16.mxu0 0
  %967 = vmatpush1.bf16.msra.mxu0 %v738
  %968 = vmatprep.subr.bf16.mxu0 0
  %969 = vmatpush1.bf16.msra.mxu0 %v739
  %970 = vmatprep.subr.bf16.mxu0 0
  %971 = vmatpush1.bf16.msra.mxu0 %v740
  %972 = vmatprep.subr.bf16.mxu0 0
  %973 = vmatpush1.bf16.msra.mxu0 %v741
  %974 = vmatprep.subr.bf16.mxu0 0
  %975 = vmatpush1.bf16.msra.mxu0 %v742
  %976 = vmatprep.subr.bf16.mxu0 0
  %977 = vmatpush1.bf16.msra.mxu0 %v743
  %978 = vmatprep.subr.bf16.mxu0 0
  %979 = vmatpush1.bf16.msra.mxu0 %v744
  %980 = vmatprep.subr.bf16.mxu0 0
  %981 = vmatpush1.bf16.msra.mxu0 %v745
  %982 = vmatprep.subr.bf16.mxu0 0
  %983 = vmatpush1.bf16.msra.mxu0 %v746
  %984 = vmatprep.subr.bf16.mxu0 0
  %985 = vmatpush1.bf16.msra.mxu0 %v747
  %986 = vmatprep.subr.bf16.mxu0 0
  %987 = vmatpush1.bf16.msra.mxu0 %v748
  %988 = vmatprep.subr.bf16.mxu0 0
  %989 = vmatpush1.bf16.msra.mxu0 %v749
  %990 = vmatprep.mubr.bf16.mxu0 %v304
  %991 = vmatmul.mubr.bf16.gmra.mrb[0].mxu0 %v303
  %v992 = vpop.f32.mrb[0].mxu0
  %v993 = vadd.f32 %v953, %v992
  %v994 = vpop.f32.mrb[0].mxu0
  %v995 = vpop.f32.mrb[0].mxu0
  %v996 = vpop.f32.mrb[0].mxu0
  %997 = vdwg.mxu0
  %998 = vmatprep.subr.bf16.mxu0 0
  %999 = vmatpush1.bf16.msra.mxu0 %v750
  %1000 = vmatprep.subr.bf16.mxu0 0
  %1001 = vmatpush1.bf16.msra.mxu0 %v751
  %1002 = vmatprep.subr.bf16.mxu0 0
  %1003 = vmatpush1.bf16.msra.mxu0 %v752
  %1004 = vmatprep.subr.bf16.mxu0 0
  %1005 = vmatpush1.bf16.msra.mxu0 %v753
  %1006 = vmatprep.subr.bf16.mxu0 0
  %1007 = vmatpush1.bf16.msra.mxu0 %v754
  %1008 = vmatprep.subr.bf16.mxu0 0
  %1009 = vmatpush1.bf16.msra.mxu0 %v755
  %1010 = vmatprep.subr.bf16.mxu0 0
  %1011 = vmatpush1.bf16.msra.mxu0 %v756
  %1012 = vmatprep.subr.bf16.mxu0 0
  %1013 = vmatpush1.bf16.msra.mxu0 %v757
  %1014 = vmatprep.subr.bf16.mxu0 0
  %1015 = vmatpush1.bf16.msra.mxu0 %v758
  %1016 = vmatprep.subr.bf16.mxu0 0
  %1017 = vmatpush1.bf16.msra.mxu0 %v759
  %1018 = vmatprep.subr.bf16.mxu0 0
  %1019 = vmatpush1.bf16.msra.mxu0 %v760
  %1020 = vmatprep.subr.bf16.mxu0 0
  %1021 = vmatpush1.bf16.msra.mxu0 %v761
  %1022 = vmatprep.subr.bf16.mxu0 0
  %1023 = vmatpush1.bf16.msra.mxu0 %v762
  %1024 = vmatprep.subr.bf16.mxu0 0
  %1025 = vmatpush1.bf16.msra.mxu0 %v763
  %1026 = vmatprep.subr.bf16.mxu0 0
  %1027 = vmatpush1.bf16.msra.mxu0 %v764
  %1028 = vmatprep.subr.bf16.mxu0 0
  %1029 = vmatpush1.bf16.msra.mxu0 %v765
  %1030 = vmatprep.mubr.bf16.mxu0 %v306
  %1031 = vmatmul.mubr.bf16.gmra.mrb[0].mxu0 %v305
  %v1032 = vpop.f32.mrb[0].mxu0
  %v1033 = vadd.f32 %v993, %v1032
  %v1034 = vpop.f32.mrb[0].mxu0
  %v1035 = vpop.f32.mrb[0].mxu0
  %v1036 = vpop.f32.mrb[0].mxu0
  %1037 = vdwg.mxu0
  %1038 = vmatprep.subr.bf16.mxu0 0
  %1039 = vmatpush1.bf16.msra.mxu0 %v766
  %1040 = vmatprep.subr.bf16.mxu0 0
  %1041 = vmatpush1.bf16.msra.mxu0 %v767
  %1042 = vmatprep.subr.bf16.mxu0 0
  %1043 = vmatpush1.bf16.msra.mxu0 %v768
  %1044 = vmatprep.subr.bf16.mxu0 0
  %1045 = vmatpush1.bf16.msra.mxu0 %v769
  %1046 = vmatprep.subr.bf16.mxu0 0
  %1047 = vmatpush1.bf16.msra.mxu0 %v770
  %1048 = vmatprep.subr.bf16.mxu0 0
  %1049 = vmatpush1.bf16.msra.mxu0 %v771
  %1050 = vmatprep.subr.bf16.mxu0 0
  %1051 = vmatpush1.bf16.msra.mxu0 %v772
  %1052 = vmatprep.subr.bf16.mxu0 0
  %1053 = vmatpush1.bf16.msra.mxu0 %v773
  %1054 = vmatprep.subr.bf16.mxu0 0
  %1055 = vmatpush1.bf16.msra.mxu0 %v774
  %1056 = vmatprep.subr.bf16.mxu0 0
  %1057 = vmatpush1.bf16.msra.mxu0 %v775
  %1058 = vmatprep.subr.bf16.mxu0 0
  %1059 = vmatpush1.bf16.msra.mxu0 %v776
  %1060 = vmatprep.subr.bf16.mxu0 0
  %1061 = vmatpush1.bf16.msra.mxu0 %v777
  %1062 = vmatprep.subr.bf16.mxu0 0
  %1063 = vmatpush1.bf16.msra.mxu0 %v778
  %1064 = vmatprep.subr.bf16.mxu0 0
  %1065 = vmatpush1.bf16.msra.mxu0 %v779
  %1066 = vmatprep.subr.bf16.mxu0 0
  %1067 = vmatpush1.bf16.msra.mxu0 %v780
  %1068 = vmatprep.subr.bf16.mxu0 0
  %1069 = vmatpush1.bf16.msra.mxu0 %v781
  %1070 = vmatprep.mubr.bf16.mxu0 %v308
  %1071 = vmatmul.mubr.bf16.gmra.mrb[0].mxu0 %v307
  %v1072 = vpop.f32.mrb[0].mxu0
  %v1073 = vadd.f32 %v1033, %v1072
  %v1074 = vpop.f32.mrb[0].mxu0
  %v1075 = vpop.f32.mrb[0].mxu0
  %v1076 = vpop.f32.mrb[0].mxu0
  %1077 = vdwg.mxu0
  %1078 = vmatprep.subr.bf16.mxu0 0
  %1079 = vmatpush1.bf16.msra.mxu0 %v782
  %1080 = vmatprep.subr.bf16.mxu0 0
  %1081 = vmatpush1.bf16.msra.mxu0 %v783
  %1082 = vmatprep.subr.bf16.mxu0 0
  %1083 = vmatpush1.bf16.msra.mxu0 %v784
  %1084 = vmatprep.subr.bf16.mxu0 0
  %1085 = vmatpush1.bf16.msra.mxu0 %v785
  %1086 = vmatprep.subr.bf16.mxu0 0
  %1087 = vmatpush1.bf16.msra.mxu0 %v786
  %1088 = vmatprep.subr.bf16.mxu0 0
  %1089 = vmatpush1.bf16.msra.mxu0 %v787
  %1090 = vmatprep.subr.bf16.mxu0 0
  %1091 = vmatpush1.bf16.msra.mxu0 %v788
  %1092 = vmatprep.subr.bf16.mxu0 0
  %1093 = vmatpush1.bf16.msra.mxu0 %v789
  %1094 = vmatprep.subr.bf16.mxu0 0
  %1095 = vmatpush1.bf16.msra.mxu0 %v790
  %1096 = vmatprep.subr.bf16.mxu0 0
  %1097 = vmatpush1.bf16.msra.mxu0 %v791
  %1098 = vmatprep.subr.bf16.mxu0 0
  %1099 = vmatpush1.bf16.msra.mxu0 %v792
  %1100 = vmatprep.subr.bf16.mxu0 0
  %1101 = vmatpush1.bf16.msra.mxu0 %v793
  %1102 = vmatprep.subr.bf16.mxu0 0
  %1103 = vmatpush1.bf16.msra.mxu0 %v794
  %1104 = vmatprep.subr.bf16.mxu0 0
  %1105 = vmatpush1.bf16.msra.mxu0 %v795
  %1106 = vmatprep.subr.bf16.mxu0 0
  %1107 = vmatpush1.bf16.msra.mxu0 %v796
  %1108 = vmatprep.subr.bf16.mxu0 0
  %1109 = vmatpush1.bf16.msra.mxu0 %v797
  %1110 = vmatprep.mubr.bf16.mxu0 %v310
  %1111 = vmatmul.mubr.bf16.gmra.mrb[0].mxu0 %v309
  %v1112 = vpop.f32.mrb[0].mxu0
  %v1113 = vadd.f32 %v1073, %v1112
  %v1114 = vpop.f32.mrb[0].mxu0
  %v1115 = vpop.f32.mrb[0].mxu0
  %v1116 = vpop.f32.mrb[0].mxu0
  %1117 = vdwg.mxu0
  %1118 = vmatprep.subr.bf16.mxu0 0
  %1119 = vmatpush1.bf16.msra.mxu0 %v798
  %1120 = vmatprep.subr.bf16.mxu0 0
  %1121 = vmatpush1.bf16.msra.mxu0 %v799
  %1122 = vmatprep.subr.bf16.mxu0 0
  %1123 = vmatpush1.bf16.msra.mxu0 %v800
  %1124 = vmatprep.subr.bf16.mxu0 0
  %1125 = vmatpush1.bf16.msra.mxu0 %v801
  %1126 = vmatprep.subr.bf16.mxu0 0
  %1127 = vmatpush1.bf16.msra.mxu0 %v802
  %1128 = vmatprep.subr.bf16.mxu0 0
  %1129 = vmatpush1.bf16.msra.mxu0 %v803
  %1130 = vmatprep.subr.bf16.mxu0 0
  %1131 = vmatpush1.bf16.msra.mxu0 %v804
  %1132 = vmatprep.subr.bf16.mxu0 0
  %1133 = vmatpush1.bf16.msra.mxu0 %v805
  %1134 = vmatprep.subr.bf16.mxu0 0
  %1135 = vmatpush1.bf16.msra.mxu0 %v806
  %1136 = vmatprep.subr.bf16.mxu0 0
  %1137 = vmatpush1.bf16.msra.mxu0 %v807
  %1138 = vmatprep.subr.bf16.mxu0 0
  %1139 = vmatpush1.bf16.msra.mxu0 %v808
  %1140 = vmatprep.subr.bf16.mxu0 0
  %1141 = vmatpush1.bf16.msra.mxu0 %v809
  %1142 = vmatprep.subr.bf16.mxu0 0
  %1143 = vmatpush1.bf16.msra.mxu0 %v810
  %1144 = vmatprep.subr.bf16.mxu0 0
  %1145 = vmatpush1.bf16.msra.mxu0 %v811
  %1146 = vmatprep.subr.bf16.mxu0 0
  %1147 = vmatpush1.bf16.msra.mxu0 %v812
  %1148 = vmatprep.subr.bf16.mxu0 0
  %1149 = vmatpush1.bf16.msra.mxu0 %v813
  %1150 = vmatprep.mubr.bf16.mxu0 %v312
  %1151 = vmatmul.mubr.bf16.gmra.mrb[0].mxu0 %v311
  %v1152 = vpop.f32.mrb[0].mxu0
  %v1153 = vadd.f32 %v1113, %v1152
  %v1154 = vpop.f32.mrb[0].mxu0
  %v1155 = vpop.f32.mrb[0].mxu0
  %v1156 = vpop.f32.mrb[0].mxu0
  %1157 = vdwg.mxu0
  %1158 = vmatprep.subr.bf16.mxu0 0
  %1159 = vmatpush1.bf16.msra.mxu0 %v814
  %1160 = vmatprep.subr.bf16.mxu0 0
  %1161 = vmatpush1.bf16.msra.mxu0 %v815
  %1162 = vmatprep.subr.bf16.mxu0 0
  %1163 = vmatpush1.bf16.msra.mxu0 0
  %1164 = vmatprep.subr.bf16.mxu0 0
  %1165 = vmatpush1.bf16.msra.mxu0 0
  %1166 = vmatprep.subr.bf16.mxu0 0
  %1167 = vmatpush1.bf16.msra.mxu0 0
  %1168 = vmatprep.subr.bf16.mxu0 0
  %1169 = vmatpush1.bf16.msra.mxu0 0
  %1170 = vmatprep.subr.bf16.mxu0 0
  %1171 = vmatpush1.bf16.msra.mxu0 0
  %1172 = vmatprep.subr.bf16.mxu0 0
  %1173 = vmatpush1.bf16.msra.mxu0 0
  %1174 = vmatprep.subr.bf16.mxu0 0
  %1175 = vmatpush1.bf16.msra.mxu0 0
  %1176 = vmatprep.subr.bf16.mxu0 0
  %1177 = vmatpush1.bf16.msra.mxu0 0
  %1178 = vmatprep.subr.bf16.mxu0 0
  %1179 = vmatpush1.bf16.msra.mxu0 0
  %1180 = vmatprep.subr.bf16.mxu0 0
  %1181 = vmatpush1.bf16.msra.mxu0 0
  %1182 = vmatprep.subr.bf16.mxu0 0
  %1183 = vmatpush1.bf16.msra.mxu0 0
  %1184 = vmatprep.subr.bf16.mxu0 0
  %1185 = vmatpush1.bf16.msra.mxu0 0
  %1186 = vmatprep.subr.bf16.mxu0 0
  %1187 = vmatpush1.bf16.msra.mxu0 0
  %1188 = vmatprep.subr.bf16.mxu0 0
  %1189 = vmatpush1.bf16.msra.mxu0 0
  %1190 = vmatprep.mubr.bf16.mxu0 0
  %1191 = vmatmul.mubr.bf16.gmra.mrb[0].mxu0 %v916
  %v1192 = vpop.f32.mrb[0].mxu0
  %v1193 = vadd.f32 %v1153, %v1192
  %v1194 = vpop.f32.mrb[0].mxu0
  %v1195 = vpop.f32.mrb[0].mxu0
  %v1196 = vpop.f32.mrb[0].mxu0
  %1197 = vdwg.mxu0
  %v1198 = vpack.c.bf16 %v1193, %v1193
  %v1207 = vunpack.c.l.b16 %v229
  %v1208 = vunpack.c.l.b16 %v230
  %v1209 = vunpack.c.l.b16 %v231
  %v1210 = vunpack.c.l.b16 %v232
  %v1211 = vunpack.c.l.b16 %v233
  %v1212 = vunpack.c.l.b16 %v234
  %v1213 = vunpack.c.l.b16 %v235
  %v1214 = vunpack.c.l.b16 %v236
  %v1215 = vpack.c.b16 %v1208, %v1207
  %v1216 = vpack.c.b16 %v1210, %v1209
  %v1217 = vpack.c.b16 %v1212, %v1211
  %v1218 = vpack.c.b16 %v1214, %v1213
  %vm1223 = vcmask 523264
  %v1225 = vsel %vm1223, %v1198, 0
  %1227 = vmatprep.subr.bf16.mxu0 0
  %1228 = vmatpush1.bf16.msra.mxu0 %v1215
  %1229 = vmatprep.subr.bf16.mxu0 0
  %1230 = vmatpush1.bf16.msra.mxu0 %v1216
  %1231 = vmatprep.subr.bf16.mxu0 0
  %1232 = vmatpush1.bf16.msra.mxu0 %v1217
  %1233 = vmatprep.subr.bf16.mxu0 0
  %1234 = vmatpush1.bf16.msra.mxu0 %v1218
  %1235 = vmatprep.subr.bf16.mxu0 0
  %1236 = vmatpush1.bf16.msra.mxu0 0
  %1237 = vmatprep.subr.bf16.mxu0 0
  %1238 = vmatpush1.bf16.msra.mxu0 0
  %1239 = vmatprep.subr.bf16.mxu0 0
  %1240 = vmatpush1.bf16.msra.mxu0 0
  %1241 = vmatprep.subr.bf16.mxu0 0
  %1242 = vmatpush1.bf16.msra.mxu0 0
  %1243 = vmatprep.subr.bf16.mxu0 0
  %1244 = vmatpush1.bf16.msra.mxu0 0
  %1245 = vmatprep.subr.bf16.mxu0 0
  %1246 = vmatpush1.bf16.msra.mxu0 0
  %1247 = vmatprep.subr.bf16.mxu0 0
  %1248 = vmatpush1.bf16.msra.mxu0 0
  %1249 = vmatprep.subr.bf16.mxu0 0
  %1250 = vmatpush1.bf16.msra.mxu0 0
  %1251 = vmatprep.subr.bf16.mxu0 0
  %1252 = vmatpush1.bf16.msra.mxu0 0
  %1253 = vmatprep.subr.bf16.mxu0 0
  %1254 = vmatpush1.bf16.msra.mxu0 0
  %1255 = vmatprep.subr.bf16.mxu0 0
  %1256 = vmatpush1.bf16.msra.mxu0 0
  %1257 = vmatprep.subr.bf16.mxu0 0
  %1258 = vmatpush1.bf16.msra.mxu0 0
  %1259 = vmatprep.mubr.bf16.mxu0 0
  %1260 = vmatmul.mubr.bf16.gmra.mrb[0].mxu0 %v1225
  %v1261 = vpop.f32.mrb[0].mxu0
  %v1262 = vadd.f32 %v258, %v1261
  %v1263 = vpop.f32.mrb[0].mxu0
  %v1264 = vpop.f32.mrb[0].mxu0
  %v1265 = vpop.f32.mrb[0].mxu0
  %1266 = vdwg.mxu0
  %v1267 = vmax.f32 %v1262, 0.0
  %v1268 = vpack.c.bf16 %v1267, %v1267
  %v1277 = vunpack.c.l.b16 %v237
  %v1278 = vunpack.c.l.b16 %v238
  %v1279 = vunpack.c.l.b16 %v239
  %v1280 = vunpack.c.l.b16 %v240
  %v1281 = vunpack.c.l.b16 %v241
  %v1282 = vunpack.c.l.b16 %v242
  %v1283 = vunpack.c.l.b16 %v243
  %v1284 = vunpack.c.l.b16 %v244
  %v1285 = vpack.c.b16 %v1278, %v1277
  %v1286 = vpack.c.b16 %v1280, %v1279
  %v1287 = vpack.c.b16 %v1282, %v1281
  %v1288 = vpack.c.b16 %v1284, %v1283
  %v1294 = vsel %vm1223, %v1268, 0
  %1296 = vmatprep.subr.bf16.mxu0 0
  %1297 = vmatpush1.bf16.msra.mxu0 %v1285
  %1298 = vmatprep.subr.bf16.mxu0 0
  %1299 = vmatpush1.bf16.msra.mxu0 %v1286
  %1300 = vmatprep.subr.bf16.mxu0 0
  %1301 = vmatpush1.bf16.msra.mxu0 %v1287
  %1302 = vmatprep.subr.bf16.mxu0 0
  %1303 = vmatpush1.bf16.msra.mxu0 %v1288
  %1304 = vmatprep.subr.bf16.mxu0 0
  %1305 = vmatpush1.bf16.msra.mxu0 0
  %1306 = vmatprep.subr.bf16.mxu0 0
  %1307 = vmatpush1.bf16.msra.mxu0 0
  %1308 = vmatprep.subr.bf16.mxu0 0
  %1309 = vmatpush1.bf16.msra.mxu0 0
  %1310 = vmatprep.subr.bf16.mxu0 0
  %1311 = vmatpush1.bf16.msra.mxu0 0
  %1312 = vmatprep.subr.bf16.mxu0 0
  %1313 = vmatpush1.bf16.msra.mxu0 0
  %1314 = vmatprep.subr.bf16.mxu0 0
  %1315 = vmatpush1.bf16.msra.mxu0 0
  %1316 = vmatprep.subr.bf16.mxu0 0
  %1317 = vmatpush1.bf16.msra.mxu0 0
  %1318 = vmatprep.subr.bf16.mxu0 0
  %1319 = vmatpush1.bf16.msra.mxu0 0
  %1320 = vmatprep.subr.bf16.mxu0 0
  %1321 = vmatpush1.bf16.msra.mxu0 0
  %1322 = vmatprep.subr.bf16.mxu0 0
  %1323 = vmatpush1.bf16.msra.mxu0 0
  %1324 = vmatprep.subr.bf16.mxu0 0
  %1325 = vmatpush1.bf16.msra.mxu0 0
  %1326 = vmatprep.subr.bf16.mxu0 0
  %1327 = vmatpush1.bf16.msra.mxu0 0
  %1328 = vmatprep.mubr.bf16.mxu0 0
  %1329 = vmatmul.mubr.bf16.gmra.mrb[0].mxu0 %v1294
  %v1330 = vpop.f32.mrb[0].mxu0
  %v1331 = vadd.f32 %v265, %v1330
  %v1332 = vpop.f32.mrb[0].mxu0
  %v1333 = vpop.f32.mrb[0].mxu0
  %v1334 = vpop.f32.mrb[0].mxu0
  %1335 = vdwg.mxu0
  %v1336 = vmul.f32 %v1331, 0.020833334
  %v1337 = vadd.f32 %v1193, %v1336
  %v1338 = vmul.f32 %v1331, 0.0625
  %v1339 = vadd.f32 %v1193, %v1338
  %v1340 = vpack.c.bf16 %v1339, %v1339
  %v1342 = vsel %vm1223, %v1340, 0
  %1344 = vmatprep.subr.bf16.mxu0 0
  %1345 = vmatpush1.bf16.msra.mxu0 %v1215
  %1346 = vmatprep.subr.bf16.mxu0 0
  %1347 = vmatpush1.bf16.msra.mxu0 %v1216
  %1348 = vmatprep.subr.bf16.mxu0 0
  %1349 = vmatpush1.bf16.msra.mxu0 %v1217
  %1350 = vmatprep.subr.bf16.mxu0 0
  %1351 = vmatpush1.bf16.msra.mxu0 %v1218
  %1352 = vmatprep.subr.bf16.mxu0 0
  %1353 = vmatpush1.bf16.msra.mxu0 0
  %1354 = vmatprep.subr.bf16.mxu0 0
  %1355 = vmatpush1.bf16.msra.mxu0 0
  %1356 = vmatprep.subr.bf16.mxu0 0
  %1357 = vmatpush1.bf16.msra.mxu0 0
  %1358 = vmatprep.subr.bf16.mxu0 0
  %1359 = vmatpush1.bf16.msra.mxu0 0
  %1360 = vmatprep.subr.bf16.mxu0 0
  %1361 = vmatpush1.bf16.msra.mxu0 0
  %1362 = vmatprep.subr.bf16.mxu0 0
  %1363 = vmatpush1.bf16.msra.mxu0 0
  %1364 = vmatprep.subr.bf16.mxu0 0
  %1365 = vmatpush1.bf16.msra.mxu0 0
  %1366 = vmatprep.subr.bf16.mxu0 0
  %1367 = vmatpush1.bf16.msra.mxu0 0
  %1368 = vmatprep.subr.bf16.mxu0 0
  %1369 = vmatpush1.bf16.msra.mxu0 0
  %1370 = vmatprep.subr.bf16.mxu0 0
  %1371 = vmatpush1.bf16.msra.mxu0 0
  %1372 = vmatprep.subr.bf16.mxu0 0
  %1373 = vmatpush1.bf16.msra.mxu0 0
  %1374 = vmatprep.subr.bf16.mxu0 0
  %1375 = vmatpush1.bf16.msra.mxu0 0
  %1376 = vmatprep.mubr.bf16.mxu0 0
  %1377 = vmatmul.mubr.bf16.gmra.mrb[0].mxu0 %v1342
  %v1378 = vpop.f32.mrb[0].mxu0
  %v1379 = vadd.f32 %v258, %v1378
  %v1380 = vpop.f32.mrb[0].mxu0
  %v1381 = vpop.f32.mrb[0].mxu0
  %v1382 = vpop.f32.mrb[0].mxu0
  %1383 = vdwg.mxu0
  %v1384 = vmax.f32 %v1379, 0.0
  %v1385 = vpack.c.bf16 %v1384, %v1384
  %v1387 = vsel %vm1223, %v1385, 0
  %1389 = vmatprep.subr.bf16.mxu0 0
  %1390 = vmatpush1.bf16.msra.mxu0 %v1285
  %1391 = vmatprep.subr.bf16.mxu0 0
  %1392 = vmatpush1.bf16.msra.mxu0 %v1286
  %1393 = vmatprep.subr.bf16.mxu0 0
  %1394 = vmatpush1.bf16.msra.mxu0 %v1287
  %1395 = vmatprep.subr.bf16.mxu0 0
  %1396 = vmatpush1.bf16.msra.mxu0 %v1288
  %1397 = vmatprep.subr.bf16.mxu0 0
  %1398 = vmatpush1.bf16.msra.mxu0 0
  %1399 = vmatprep.subr.bf16.mxu0 0
  %1400 = vmatpush1.bf16.msra.mxu0 0
  %1401 = vmatprep.subr.bf16.mxu0 0
  %1402 = vmatpush1.bf16.msra.mxu0 0
  %1403 = vmatprep.subr.bf16.mxu0 0
  %1404 = vmatpush1.bf16.msra.mxu0 0
  %1405 = vmatprep.subr.bf16.mxu0 0
  %1406 = vmatpush1.bf16.msra.mxu0 0
  %1407 = vmatprep.subr.bf16.mxu0 0
  %1408 = vmatpush1.bf16.msra.mxu0 0
  %1409 = vmatprep.subr.bf16.mxu0 0
  %1410 = vmatpush1.bf16.msra.mxu0 0
  %1411 = vmatprep.subr.bf16.mxu0 0
  %1412 = vmatpush1.bf16.msra.mxu0 0
  %1413 = vmatprep.subr.bf16.mxu0 0
  %1414 = vmatpush1.bf16.msra.mxu0 0
  %1415 = vmatprep.subr.bf16.mxu0 0
  %1416 = vmatpush1.bf16.msra.mxu0 0
  %1417 = vmatprep.subr.bf16.mxu0 0
  %1418 = vmatpush1.bf16.msra.mxu0 0
  %1419 = vmatprep.subr.bf16.mxu0 0
  %1420 = vmatpush1.bf16.msra.mxu0 0
  %1421 = vmatprep.mubr.bf16.mxu0 0
  %1422 = vmatmul.mubr.bf16.gmra.mrb[0].mxu0 %v1387
  %v1423 = vpop.f32.mrb[0].mxu0
  %v1424 = vadd.f32 %v265, %v1423
  %v1425 = vpop.f32.mrb[0].mxu0
  %v1426 = vpop.f32.mrb[0].mxu0
  %v1427 = vpop.f32.mrb[0].mxu0
  %1428 = vdwg.mxu0
  %v1429 = vmul.f32 %v1424, 0.041666668
  %v1430 = vadd.f32 %v1337, %v1429
  %v1431 = vmul.f32 %v1424, 0.0625
  %v1432 = vadd.f32 %v1193, %v1431
  %v1433 = vpack.c.bf16 %v1432, %v1432
  %v1435 = vsel %vm1223, %v1433, 0
  %1437 = vmatprep.subr.bf16.mxu0 0
  %1438 = vmatpush1.bf16.msra.mxu0 %v1215
  %1439 = vmatprep.subr.bf16.mxu0 0
  %1440 = vmatpush1.bf16.msra.mxu0 %v1216
  %1441 = vmatprep.subr.bf16.mxu0 0
  %1442 = vmatpush1.bf16.msra.mxu0 %v1217
  %1443 = vmatprep.subr.bf16.mxu0 0
  %1444 = vmatpush1.bf16.msra.mxu0 %v1218
  %1445 = vmatprep.subr.bf16.mxu0 0
  %1446 = vmatpush1.bf16.msra.mxu0 0
  %1447 = vmatprep.subr.bf16.mxu0 0
  %1448 = vmatpush1.bf16.msra.mxu0 0
  %1449 = vmatprep.subr.bf16.mxu0 0
  %1450 = vmatpush1.bf16.msra.mxu0 0
  %1451 = vmatprep.subr.bf16.mxu0 0
  %1452 = vmatpush1.bf16.msra.mxu0 0
  %1453 = vmatprep.subr.bf16.mxu0 0
  %1454 = vmatpush1.bf16.msra.mxu0 0
  %1455 = vmatprep.subr.bf16.mxu0 0
  %1456 = vmatpush1.bf16.msra.mxu0 0
  %1457 = vmatprep.subr.bf16.mxu0 0
  %1458 = vmatpush1.bf16.msra.mxu0 0
  %1459 = vmatprep.subr.bf16.mxu0 0
  %1460 = vmatpush1.bf16.msra.mxu0 0
  %1461 = vmatprep.subr.bf16.mxu0 0
  %1462 = vmatpush1.bf16.msra.mxu0 0
  %1463 = vmatprep.subr.bf16.mxu0 0
  %1464 = vmatpush1.bf16.msra.mxu0 0
  %1465 = vmatprep.subr.bf16.mxu0 0
  %1466 = vmatpush1.bf16.msra.mxu0 0
  %1467 = vmatprep.subr.bf16.mxu0 0
  %1468 = vmatpush1.bf16.msra.mxu0 0
  %1469 = vmatprep.mubr.bf16.mxu0 0
  %1470 = vmatmul.mubr.bf16.gmra.mrb[0].mxu0 %v1435
  %v1471 = vpop.f32.mrb[0].mxu0
  %v1472 = vadd.f32 %v258, %v1471
  %v1473 = vpop.f32.mrb[0].mxu0
  %v1474 = vpop.f32.mrb[0].mxu0
  %v1475 = vpop.f32.mrb[0].mxu0
  %1476 = vdwg.mxu0
  %v1477 = vmax.f32 %v1472, 0.0
  %v1478 = vpack.c.bf16 %v1477, %v1477
  %v1480 = vsel %vm1223, %v1478, 0
  %1482 = vmatprep.subr.bf16.mxu0 0
  %1483 = vmatpush1.bf16.msra.mxu0 %v1285
  %1484 = vmatprep.subr.bf16.mxu0 0
  %1485 = vmatpush1.bf16.msra.mxu0 %v1286
  %1486 = vmatprep.subr.bf16.mxu0 0
  %1487 = vmatpush1.bf16.msra.mxu0 %v1287
  %1488 = vmatprep.subr.bf16.mxu0 0
  %1489 = vmatpush1.bf16.msra.mxu0 %v1288
  %1490 = vmatprep.subr.bf16.mxu0 0
  %1491 = vmatpush1.bf16.msra.mxu0 0
  %1492 = vmatprep.subr.bf16.mxu0 0
  %1493 = vmatpush1.bf16.msra.mxu0 0
  %1494 = vmatprep.subr.bf16.mxu0 0
  %1495 = vmatpush1.bf16.msra.mxu0 0
  %1496 = vmatprep.subr.bf16.mxu0 0
  %1497 = vmatpush1.bf16.msra.mxu0 0
  %1498 = vmatprep.subr.bf16.mxu0 0
  %1499 = vmatpush1.bf16.msra.mxu0 0
  %1500 = vmatprep.subr.bf16.mxu0 0
  %1501 = vmatpush1.bf16.msra.mxu0 0
  %1502 = vmatprep.subr.bf16.mxu0 0
  %1503 = vmatpush1.bf16.msra.mxu0 0
  %1504 = vmatprep.subr.bf16.mxu0 0
  %1505 = vmatpush1.bf16.msra.mxu0 0
  %1506 = vmatprep.subr.bf16.mxu0 0
  %1507 = vmatpush1.bf16.msra.mxu0 0
  %1508 = vmatprep.subr.bf16.mxu0 0
  %1509 = vmatpush1.bf16.msra.mxu0 0
  %1510 = vmatprep.subr.bf16.mxu0 0
  %1511 = vmatpush1.bf16.msra.mxu0 0
  %1512 = vmatprep.subr.bf16.mxu0 0
  %1513 = vmatpush1.bf16.msra.mxu0 0
  %1514 = vmatprep.mubr.bf16.mxu0 0
  %1515 = vmatmul.mubr.bf16.gmra.mrb[0].mxu0 %v1480
  %v1516 = vpop.f32.mrb[0].mxu0
  %v1517 = vadd.f32 %v265, %v1516
  %v1518 = vpop.f32.mrb[0].mxu0
  %v1519 = vpop.f32.mrb[0].mxu0
  %v1520 = vpop.f32.mrb[0].mxu0
  %1521 = vdwg.mxu0
  %v1522 = vmul.f32 %v1517, 0.041666668
  %v1523 = vadd.f32 %v1430, %v1522
  %v1524 = vmul.f32 %v1517, 0.125
  %v1525 = vadd.f32 %v1193, %v1524
  %v1526 = vpack.c.bf16 %v1525, %v1525
  %v1528 = vsel %vm1223, %v1526, 0
  %1530 = vmatprep.subr.bf16.mxu0 0
  %1531 = vmatpush1.bf16.msra.mxu0 %v1215
  %1532 = vmatprep.subr.bf16.mxu0 0
  %1533 = vmatpush1.bf16.msra.mxu0 %v1216
  %1534 = vmatprep.subr.bf16.mxu0 0
  %1535 = vmatpush1.bf16.msra.mxu0 %v1217
  %1536 = vmatprep.subr.bf16.mxu0 0
  %1537 = vmatpush1.bf16.msra.mxu0 %v1218
  %1538 = vmatprep.subr.bf16.mxu0 0
  %1539 = vmatpush1.bf16.msra.mxu0 0
  %1540 = vmatprep.subr.bf16.mxu0 0
  %1541 = vmatpush1.bf16.msra.mxu0 0
  %1542 = vmatprep.subr.bf16.mxu0 0
  %1543 = vmatpush1.bf16.msra.mxu0 0
  %1544 = vmatprep.subr.bf16.mxu0 0
  %1545 = vmatpush1.bf16.msra.mxu0 0
  %1546 = vmatprep.subr.bf16.mxu0 0
  %1547 = vmatpush1.bf16.msra.mxu0 0
  %1548 = vmatprep.subr.bf16.mxu0 0
  %1549 = vmatpush1.bf16.msra.mxu0 0
  %1550 = vmatprep.subr.bf16.mxu0 0
  %1551 = vmatpush1.bf16.msra.mxu0 0
  %1552 = vmatprep.subr.bf16.mxu0 0
  %1553 = vmatpush1.bf16.msra.mxu0 0
  %1554 = vmatprep.subr.bf16.mxu0 0
  %1555 = vmatpush1.bf16.msra.mxu0 0
  %1556 = vmatprep.subr.bf16.mxu0 0
  %1557 = vmatpush1.bf16.msra.mxu0 0
  %1558 = vmatprep.subr.bf16.mxu0 0
  %1559 = vmatpush1.bf16.msra.mxu0 0
  %1560 = vmatprep.subr.bf16.mxu0 0
  %1561 = vmatpush1.bf16.msra.mxu0 0
  %1562 = vmatprep.mubr.bf16.mxu0 0
  %1563 = vmatmul.mubr.bf16.gmra.mrb[0].mxu0 %v1528
  %v1564 = vpop.f32.mrb[0].mxu0
  %v1565 = vadd.f32 %v258, %v1564
  %v1566 = vpop.f32.mrb[0].mxu0
  %v1567 = vpop.f32.mrb[0].mxu0
  %v1568 = vpop.f32.mrb[0].mxu0
  %1569 = vdwg.mxu0
  %v1570 = vmax.f32 %v1565, 0.0
  %v1571 = vpack.c.bf16 %v1570, %v1570
  %v1573 = vsel %vm1223, %v1571, 0
  %1575 = vmatprep.subr.bf16.mxu0 0
  %1576 = vmatpush1.bf16.msra.mxu0 %v1285
  %1577 = vmatprep.subr.bf16.mxu0 0
  %1578 = vmatpush1.bf16.msra.mxu0 %v1286
  %1579 = vmatprep.subr.bf16.mxu0 0
  %1580 = vmatpush1.bf16.msra.mxu0 %v1287
  %1581 = vmatprep.subr.bf16.mxu0 0
  %1582 = vmatpush1.bf16.msra.mxu0 %v1288
  %1583 = vmatprep.subr.bf16.mxu0 0
  %1584 = vmatpush1.bf16.msra.mxu0 0
  %1585 = vmatprep.subr.bf16.mxu0 0
  %1586 = vmatpush1.bf16.msra.mxu0 0
  %1587 = vmatprep.subr.bf16.mxu0 0
  %1588 = vmatpush1.bf16.msra.mxu0 0
  %1589 = vmatprep.subr.bf16.mxu0 0
  %1590 = vmatpush1.bf16.msra.mxu0 0
  %1591 = vmatprep.subr.bf16.mxu0 0
  %1592 = vmatpush1.bf16.msra.mxu0 0
  %1593 = vmatprep.subr.bf16.mxu0 0
  %1594 = vmatpush1.bf16.msra.mxu0 0
  %1595 = vmatprep.subr.bf16.mxu0 0
  %1596 = vmatpush1.bf16.msra.mxu0 0
  %1597 = vmatprep.subr.bf16.mxu0 0
  %1598 = vmatpush1.bf16.msra.mxu0 0
  %1599 = vmatprep.subr.bf16.mxu0 0
  %1600 = vmatpush1.bf16.msra.mxu0 0
  %1601 = vmatprep.subr.bf16.mxu0 0
  %1602 = vmatpush1.bf16.msra.mxu0 0
  %1603 = vmatprep.subr.bf16.mxu0 0
  %1604 = vmatpush1.bf16.msra.mxu0 0
  %1605 = vmatprep.subr.bf16.mxu0 0
  %1606 = vmatpush1.bf16.msra.mxu0 0
  %1607 = vmatprep.mubr.bf16.mxu0 0
  %1608 = vmatmul.mubr.bf16.gmra.mrb[0].mxu0 %v1573
  %v1609 = vpop.f32.mrb[0].mxu0
  %v1610 = vadd.f32 %v265, %v1609
  %v1611 = vpop.f32.mrb[0].mxu0
  %v1612 = vpop.f32.mrb[0].mxu0
  %v1613 = vpop.f32.mrb[0].mxu0
  %1614 = vdwg.mxu0
  %v1615 = vmul.f32 %v1610, 0.020833334
  %v1616 = vadd.f32 %v1523, %v1615
  %v1617 = vpack.c.bf16 %v1616, %v1616
  %v1619 = vsel %vm1223, %v1617, 0
  %1621 = vmatprep.subr.bf16.mxu0 0
  %1622 = vmatpush1.bf16.msra.mxu0 %v1215
  %1623 = vmatprep.subr.bf16.mxu0 0
  %1624 = vmatpush1.bf16.msra.mxu0 %v1216
  %1625 = vmatprep.subr.bf16.mxu0 0
  %1626 = vmatpush1.bf16.msra.mxu0 %v1217
  %1627 = vmatprep.subr.bf16.mxu0 0
  %1628 = vmatpush1.bf16.msra.mxu0 %v1218
  %1629 = vmatprep.subr.bf16.mxu0 0
  %1630 = vmatpush1.bf16.msra.mxu0 0
  %1631 = vmatprep.subr.bf16.mxu0 0
  %1632 = vmatpush1.bf16.msra.mxu0 0
  %1633 = vmatprep.subr.bf16.mxu0 0
  %1634 = vmatpush1.bf16.msra.mxu0 0
  %1635 = vmatprep.subr.bf16.mxu0 0
  %1636 = vmatpush1.bf16.msra.mxu0 0
  %1637 = vmatprep.subr.bf16.mxu0 0
  %1638 = vmatpush1.bf16.msra.mxu0 0
  %1639 = vmatprep.subr.bf16.mxu0 0
  %1640 = vmatpush1.bf16.msra.mxu0 0
  %1641 = vmatprep.subr.bf16.mxu0 0
  %1642 = vmatpush1.bf16.msra.mxu0 0
  %1643 = vmatprep.subr.bf16.mxu0 0
  %1644 = vmatpush1.bf16.msra.mxu0 0
  %1645 = vmatprep.subr.bf16.mxu0 0
  %1646 = vmatpush1.bf16.msra.mxu0 0
  %1647 = vmatprep.subr.bf16.mxu0 0
  %1648 = vmatpush1.bf16.msra.mxu0 0
  %1649 = vmatprep.subr.bf16.mxu0 0
  %1650 = vmatpush1.bf16.msra.mxu0 0
  %1651 = vmatprep.subr.bf16.mxu0 0
  %1652 = vmatpush1.bf16.msra.mxu0 0
  %1653 = vmatprep.mubr.bf16.mxu0 0
  %1654 = vmatmul.mubr.bf16.gmra.mrb[0].mxu0 %v1619
  %v1655 = vpop.f32.mrb[0].mxu0
  %v1656 = vadd.f32 %v258, %v1655
  %v1657 = vpop.f32.mrb[0].mxu0
  %v1658 = vpop.f32.mrb[0].mxu0
  %v1659 = vpop.f32.mrb[0].mxu0
  %1660 = vdwg.mxu0
  %v1661 = vmax.f32 %v1656, 0.0
  %v1662 = vpack.c.bf16 %v1661, %v1661
  %v1664 = vsel %vm1223, %v1662, 0
  %1666 = vmatprep.subr.bf16.mxu0 0
  %1667 = vmatpush1.bf16.msra.mxu0 %v1285
  %1668 = vmatprep.subr.bf16.mxu0 0
  %1669 = vmatpush1.bf16.msra.mxu0 %v1286
  %1670 = vmatprep.subr.bf16.mxu0 0
  %1671 = vmatpush1.bf16.msra.mxu0 %v1287
  %1672 = vmatprep.subr.bf16.mxu0 0
  %1673 = vmatpush1.bf16.msra.mxu0 %v1288
  %1674 = vmatprep.subr.bf16.mxu0 0
  %1675 = vmatpush1.bf16.msra.mxu0 0
  %1676 = vmatprep.subr.bf16.mxu0 0
  %1677 = vmatpush1.bf16.msra.mxu0 0
  %1678 = vmatprep.subr.bf16.mxu0 0
  %1679 = vmatpush1.bf16.msra.mxu0 0
  %1680 = vmatprep.subr.bf16.mxu0 0
  %1681 = vmatpush1.bf16.msra.mxu0 0
  %1682 = vmatprep.subr.bf16.mxu0 0
  %1683 = vmatpush1.bf16.msra.mxu0 0
  %1684 = vmatprep.subr.bf16.mxu0 0
  %1685 = vmatpush1.bf16.msra.mxu0 0
  %1686 = vmatprep.subr.bf16.mxu0 0
  %1687 = vmatpush1.bf16.msra.mxu0 0
  %1688 = vmatprep.subr.bf16.mxu0 0
  %1689 = vmatpush1.bf16.msra.mxu0 0
  %1690 = vmatprep.subr.bf16.mxu0 0
  %1691 = vmatpush1.bf16.msra.mxu0 0
  %1692 = vmatprep.subr.bf16.mxu0 0
  %1693 = vmatpush1.bf16.msra.mxu0 0
  %1694 = vmatprep.subr.bf16.mxu0 0
  %1695 = vmatpush1.bf16.msra.mxu0 0
  %1696 = vmatprep.subr.bf16.mxu0 0
  %1697 = vmatpush1.bf16.msra.mxu0 0
  %1698 = vmatprep.mubr.bf16.mxu0 0
  %1699 = vmatmul.mubr.bf16.gmra.mrb[0].mxu0 %v1664
  %v1700 = vpop.f32.mrb[0].mxu0
  %v1701 = vadd.f32 %v265, %v1700
  %v1702 = vpop.f32.mrb[0].mxu0
  %v1703 = vpop.f32.mrb[0].mxu0
  %v1704 = vpop.f32.mrb[0].mxu0
  %1705 = vdwg.mxu0
  %v1706 = vmul.f32 %v1701, 0.020833334
  %v1707 = vadd.f32 %v1616, %v1706
  %v1708 = vmul.f32 %v1701, 0.0625
  %v1709 = vadd.f32 %v1616, %v1708
  %v1710 = vpack.c.bf16 %v1709, %v1709
  %v1712 = vsel %vm1223, %v1710, 0
  %1714 = vmatprep.subr.bf16.mxu0 0
  %1715 = vmatpush1.bf16.msra.mxu0 %v1215
  %1716 = vmatprep.subr.bf16.mxu0 0
  %1717 = vmatpush1.bf16.msra.mxu0 %v1216
  %1718 = vmatprep.subr.bf16.mxu0 0
  %1719 = vmatpush1.bf16.msra.mxu0 %v1217
  %1720 = vmatprep.subr.bf16.mxu0 0
  %1721 = vmatpush1.bf16.msra.mxu0 %v1218
  %1722 = vmatprep.subr.bf16.mxu0 0
  %1723 = vmatpush1.bf16.msra.mxu0 0
  %1724 = vmatprep.subr.bf16.mxu0 0
  %1725 = vmatpush1.bf16.msra.mxu0 0
  %1726 = vmatprep.subr.bf16.mxu0 0
  %1727 = vmatpush1.bf16.msra.mxu0 0
  %1728 = vmatprep.subr.bf16.mxu0 0
  %1729 = vmatpush1.bf16.msra.mxu0 0
  %1730 = vmatprep.subr.bf16.mxu0 0
  %1731 = vmatpush1.bf16.msra.mxu0 0
  %1732 = vmatprep.subr.bf16.mxu0 0
  %1733 = vmatpush1.bf16.msra.mxu0 0
  %1734 = vmatprep.subr.bf16.mxu0 0
  %1735 = vmatpush1.bf16.msra.mxu0 0
  %1736 = vmatprep.subr.bf16.mxu0 0
  %1737 = vmatpush1.bf16.msra.mxu0 0
  %1738 = vmatprep.subr.bf16.mxu0 0
  %1739 = vmatpush1.bf16.msra.mxu0 0
  %1740 = vmatprep.subr.bf16.mxu0 0
  %1741 = vmatpush1.bf16.msra.mxu0 0
  %1742 = vmatprep.subr.bf16.mxu0 0
  %1743 = vmatpush1.bf16.msra.mxu0 0
  %1744 = vmatprep.subr.bf16.mxu0 0
  %1745 = vmatpush1.bf16.msra.mxu0 0
  %1746 = vmatprep.mubr.bf16.mxu0 0
  %1747 = vmatmul.mubr.bf16.gmra.mrb[0].mxu0 %v1712
  %v1748 = vpop.f32.mrb[0].mxu0
  %v1749 = vadd.f32 %v258, %v1748
  %v1750 = vpop.f32.mrb[0].mxu0
  %v1751 = vpop.f32.mrb[0].mxu0
  %v1752 = vpop.f32.mrb[0].mxu0
  %1753 = vdwg.mxu0
  %v1754 = vmax.f32 %v1749, 0.0
  %v1755 = vpack.c.bf16 %v1754, %v1754
  %v1757 = vsel %vm1223, %v1755, 0
  %1759 = vmatprep.subr.bf16.mxu0 0
  %1760 = vmatpush1.bf16.msra.mxu0 %v1285
  %1761 = vmatprep.subr.bf16.mxu0 0
  %1762 = vmatpush1.bf16.msra.mxu0 %v1286
  %1763 = vmatprep.subr.bf16.mxu0 0
  %1764 = vmatpush1.bf16.msra.mxu0 %v1287
  %1765 = vmatprep.subr.bf16.mxu0 0
  %1766 = vmatpush1.bf16.msra.mxu0 %v1288
  %1767 = vmatprep.subr.bf16.mxu0 0
  %1768 = vmatpush1.bf16.msra.mxu0 0
  %1769 = vmatprep.subr.bf16.mxu0 0
  %1770 = vmatpush1.bf16.msra.mxu0 0
  %1771 = vmatprep.subr.bf16.mxu0 0
  %1772 = vmatpush1.bf16.msra.mxu0 0
  %1773 = vmatprep.subr.bf16.mxu0 0
  %1774 = vmatpush1.bf16.msra.mxu0 0
  %1775 = vmatprep.subr.bf16.mxu0 0
  %1776 = vmatpush1.bf16.msra.mxu0 0
  %1777 = vmatprep.subr.bf16.mxu0 0
  %1778 = vmatpush1.bf16.msra.mxu0 0
  %1779 = vmatprep.subr.bf16.mxu0 0
  %1780 = vmatpush1.bf16.msra.mxu0 0
  %1781 = vmatprep.subr.bf16.mxu0 0
  %1782 = vmatpush1.bf16.msra.mxu0 0
  %1783 = vmatprep.subr.bf16.mxu0 0
  %1784 = vmatpush1.bf16.msra.mxu0 0
  %1785 = vmatprep.subr.bf16.mxu0 0
  %1786 = vmatpush1.bf16.msra.mxu0 0
  %1787 = vmatprep.subr.bf16.mxu0 0
  %1788 = vmatpush1.bf16.msra.mxu0 0
  %1789 = vmatprep.subr.bf16.mxu0 0
  %1790 = vmatpush1.bf16.msra.mxu0 0
  %1791 = vmatprep.mubr.bf16.mxu0 0
  %1792 = vmatmul.mubr.bf16.gmra.mrb[0].mxu0 %v1757
  %v1793 = vpop.f32.mrb[0].mxu0
  %v1794 = vadd.f32 %v265, %v1793
  %v1795 = vpop.f32.mrb[0].mxu0
  %v1796 = vpop.f32.mrb[0].mxu0
  %v1797 = vpop.f32.mrb[0].mxu0
  %1798 = vdwg.mxu0
  %v1799 = vmul.f32 %v1794, 0.041666668
  %v1800 = vadd.f32 %v1707, %v1799
  %v1801 = vmul.f32 %v1794, 0.0625
  %v1802 = vadd.f32 %v1616, %v1801
  %v1803 = vpack.c.bf16 %v1802, %v1802
  %v1805 = vsel %vm1223, %v1803, 0
  %1807 = vmatprep.subr.bf16.mxu0 0
  %1808 = vmatpush1.bf16.msra.mxu0 %v1215
  %1809 = vmatprep.subr.bf16.mxu0 0
  %1810 = vmatpush1.bf16.msra.mxu0 %v1216
  %1811 = vmatprep.subr.bf16.mxu0 0
  %1812 = vmatpush1.bf16.msra.mxu0 %v1217
  %1813 = vmatprep.subr.bf16.mxu0 0
  %1814 = vmatpush1.bf16.msra.mxu0 %v1218
  %1815 = vmatprep.subr.bf16.mxu0 0
  %1816 = vmatpush1.bf16.msra.mxu0 0
  %1817 = vmatprep.subr.bf16.mxu0 0
  %1818 = vmatpush1.bf16.msra.mxu0 0
  %1819 = vmatprep.subr.bf16.mxu0 0
  %1820 = vmatpush1.bf16.msra.mxu0 0
  %1821 = vmatprep.subr.bf16.mxu0 0
  %1822 = vmatpush1.bf16.msra.mxu0 0
  %1823 = vmatprep.subr.bf16.mxu0 0
  %1824 = vmatpush1.bf16.msra.mxu0 0
  %1825 = vmatprep.subr.bf16.mxu0 0
  %1826 = vmatpush1.bf16.msra.mxu0 0
  %1827 = vmatprep.subr.bf16.mxu0 0
  %1828 = vmatpush1.bf16.msra.mxu0 0
  %1829 = vmatprep.subr.bf16.mxu0 0
  %1830 = vmatpush1.bf16.msra.mxu0 0
  %1831 = vmatprep.subr.bf16.mxu0 0
  %1832 = vmatpush1.bf16.msra.mxu0 0
  %1833 = vmatprep.subr.bf16.mxu0 0
  %1834 = vmatpush1.bf16.msra.mxu0 0
  %1835 = vmatprep.subr.bf16.mxu0 0
  %1836 = vmatpush1.bf16.msra.mxu0 0
  %1837 = vmatprep.subr.bf16.mxu0 0
  %1838 = vmatpush1.bf16.msra.mxu0 0
  %1839 = vmatprep.mubr.bf16.mxu0 0
  %1840 = vmatmul.mubr.bf16.gmra.mrb[0].mxu0 %v1805
  %v1841 = vpop.f32.mrb[0].mxu0
  %v1842 = vadd.f32 %v258, %v1841
  %v1843 = vpop.f32.mrb[0].mxu0
  %v1844 = vpop.f32.mrb[0].mxu0
  %v1845 = vpop.f32.mrb[0].mxu0
  %1846 = vdwg.mxu0
  %v1847 = vmax.f32 %v1842, 0.0
  %v1848 = vpack.c.bf16 %v1847, %v1847
  %v1850 = vsel %vm1223, %v1848, 0
  %1852 = vmatprep.subr.bf16.mxu0 0
  %1853 = vmatpush1.bf16.msra.mxu0 %v1285
  %1854 = vmatprep.subr.bf16.mxu0 0
  %1855 = vmatpush1.bf16.msra.mxu0 %v1286
  %1856 = vmatprep.subr.bf16.mxu0 0
  %1857 = vmatpush1.bf16.msra.mxu0 %v1287
  %1858 = vmatprep.subr.bf16.mxu0 0
  %1859 = vmatpush1.bf16.msra.mxu0 %v1288
  %1860 = vmatprep.subr.bf16.mxu0 0
  %1861 = vmatpush1.bf16.msra.mxu0 0
  %1862 = vmatprep.subr.bf16.mxu0 0
  %1863 = vmatpush1.bf16.msra.mxu0 0
  %1864 = vmatprep.subr.bf16.mxu0 0
  %1865 = vmatpush1.bf16.msra.mxu0 0
  %1866 = vmatprep.subr.bf16.mxu0 0
  %1867 = vmatpush1.bf16.msra.mxu0 0
  %1868 = vmatprep.subr.bf16.mxu0 0
  %1869 = vmatpush1.bf16.msra.mxu0 0
  %1870 = vmatprep.subr.bf16.mxu0 0
  %1871 = vmatpush1.bf16.msra.mxu0 0
  %1872 = vmatprep.subr.bf16.mxu0 0
  %1873 = vmatpush1.bf16.msra.mxu0 0
  %1874 = vmatprep.subr.bf16.mxu0 0
  %1875 = vmatpush1.bf16.msra.mxu0 0
  %1876 = vmatprep.subr.bf16.mxu0 0
  %1877 = vmatpush1.bf16.msra.mxu0 0
  %1878 = vmatprep.subr.bf16.mxu0 0
  %1879 = vmatpush1.bf16.msra.mxu0 0
  %1880 = vmatprep.subr.bf16.mxu0 0
  %1881 = vmatpush1.bf16.msra.mxu0 0
  %1882 = vmatprep.subr.bf16.mxu0 0
  %1883 = vmatpush1.bf16.msra.mxu0 0
  %1884 = vmatprep.mubr.bf16.mxu0 0
  %1885 = vmatmul.mubr.bf16.gmra.mrb[0].mxu0 %v1850
  %v1886 = vpop.f32.mrb[0].mxu0
  %v1887 = vadd.f32 %v265, %v1886
  %v1888 = vpop.f32.mrb[0].mxu0
  %v1889 = vpop.f32.mrb[0].mxu0
  %v1890 = vpop.f32.mrb[0].mxu0
  %1891 = vdwg.mxu0
  %v1892 = vmul.f32 %v1887, 0.041666668
  %v1893 = vadd.f32 %v1800, %v1892
  %v1894 = vmul.f32 %v1887, 0.125
  %v1895 = vadd.f32 %v1616, %v1894
  %v1896 = vpack.c.bf16 %v1895, %v1895
  %v1898 = vsel %vm1223, %v1896, 0
  %1900 = vmatprep.subr.bf16.mxu0 0
  %1901 = vmatpush1.bf16.msra.mxu0 %v1215
  %1902 = vmatprep.subr.bf16.mxu0 0
  %1903 = vmatpush1.bf16.msra.mxu0 %v1216
  %1904 = vmatprep.subr.bf16.mxu0 0
  %1905 = vmatpush1.bf16.msra.mxu0 %v1217
  %1906 = vmatprep.subr.bf16.mxu0 0
  %1907 = vmatpush1.bf16.msra.mxu0 %v1218
  %1908 = vmatprep.subr.bf16.mxu0 0
  %1909 = vmatpush1.bf16.msra.mxu0 0
  %1910 = vmatprep.subr.bf16.mxu0 0
  %1911 = vmatpush1.bf16.msra.mxu0 0
  %1912 = vmatprep.subr.bf16.mxu0 0
  %1913 = vmatpush1.bf16.msra.mxu0 0
  %1914 = vmatprep.subr.bf16.mxu0 0
  %1915 = vmatpush1.bf16.msra.mxu0 0
  %1916 = vmatprep.subr.bf16.mxu0 0
  %1917 = vmatpush1.bf16.msra.mxu0 0
  %1918 = vmatprep.subr.bf16.mxu0 0
  %1919 = vmatpush1.bf16.msra.mxu0 0
  %1920 = vmatprep.subr.bf16.mxu0 0
  %1921 = vmatpush1.bf16.msra.mxu0 0
  %1922 = vmatprep.subr.bf16.mxu0 0
  %1923 = vmatpush1.bf16.msra.mxu0 0
  %1924 = vmatprep.subr.bf16.mxu0 0
  %1925 = vmatpush1.bf16.msra.mxu0 0
  %1926 = vmatprep.subr.bf16.mxu0 0
  %1927 = vmatpush1.bf16.msra.mxu0 0
  %1928 = vmatprep.subr.bf16.mxu0 0
  %1929 = vmatpush1.bf16.msra.mxu0 0
  %1930 = vmatprep.subr.bf16.mxu0 0
  %1931 = vmatpush1.bf16.msra.mxu0 0
  %1932 = vmatprep.mubr.bf16.mxu0 0
  %1933 = vmatmul.mubr.bf16.gmra.mrb[0].mxu0 %v1898
  %v1934 = vpop.f32.mrb[0].mxu0
  %v1935 = vadd.f32 %v258, %v1934
  %v1936 = vpop.f32.mrb[0].mxu0
  %v1937 = vpop.f32.mrb[0].mxu0
  %v1938 = vpop.f32.mrb[0].mxu0
  %1939 = vdwg.mxu0
  %v1940 = vmax.f32 %v1935, 0.0
  %v1941 = vpack.c.bf16 %v1940, %v1940
  %v1943 = vsel %vm1223, %v1941, 0
  %1945 = vmatprep.subr.bf16.mxu0 0
  %1946 = vmatpush1.bf16.msra.mxu0 %v1285
  %1947 = vmatprep.subr.bf16.mxu0 0
  %1948 = vmatpush1.bf16.msra.mxu0 %v1286
  %1949 = vmatprep.subr.bf16.mxu0 0
  %1950 = vmatpush1.bf16.msra.mxu0 %v1287
  %1951 = vmatprep.subr.bf16.mxu0 0
  %1952 = vmatpush1.bf16.msra.mxu0 %v1288
  %1953 = vmatprep.subr.bf16.mxu0 0
  %1954 = vmatpush1.bf16.msra.mxu0 0
  %1955 = vmatprep.subr.bf16.mxu0 0
  %1956 = vmatpush1.bf16.msra.mxu0 0
  %1957 = vmatprep.subr.bf16.mxu0 0
  %1958 = vmatpush1.bf16.msra.mxu0 0
  %1959 = vmatprep.subr.bf16.mxu0 0
  %1960 = vmatpush1.bf16.msra.mxu0 0
  %1961 = vmatprep.subr.bf16.mxu0 0
  %1962 = vmatpush1.bf16.msra.mxu0 0
  %1963 = vmatprep.subr.bf16.mxu0 0
  %1964 = vmatpush1.bf16.msra.mxu0 0
  %1965 = vmatprep.subr.bf16.mxu0 0
  %1966 = vmatpush1.bf16.msra.mxu0 0
  %1967 = vmatprep.subr.bf16.mxu0 0
  %1968 = vmatpush1.bf16.msra.mxu0 0
  %1969 = vmatprep.subr.bf16.mxu0 0
  %1970 = vmatpush1.bf16.msra.mxu0 0
  %1971 = vmatprep.subr.bf16.mxu0 0
  %1972 = vmatpush1.bf16.msra.mxu0 0
  %1973 = vmatprep.subr.bf16.mxu0 0
  %1974 = vmatpush1.bf16.msra.mxu0 0
  %1975 = vmatprep.subr.bf16.mxu0 0
  %1976 = vmatpush1.bf16.msra.mxu0 0
  %1977 = vmatprep.mubr.bf16.mxu0 0
  %1978 = vmatmul.mubr.bf16.gmra.mrb[0].mxu0 %v1943
  %v1979 = vpop.f32.mrb[0].mxu0
  %v1980 = vadd.f32 %v265, %v1979
  %v1981 = vpop.f32.mrb[0].mxu0
  %v1982 = vpop.f32.mrb[0].mxu0
  %v1983 = vpop.f32.mrb[0].mxu0
  %1984 = vdwg.mxu0
  %v1985 = vmul.f32 %v1980, 0.020833334
  %v1986 = vadd.f32 %v1893, %v1985
  %v1987 = vpack.c.bf16 %v1986, %v1986
  %v1989 = vsel %vm1223, %v1987, 0
  %1991 = vmatprep.subr.bf16.mxu0 0
  %1992 = vmatpush1.bf16.msra.mxu0 %v1215
  %1993 = vmatprep.subr.bf16.mxu0 0
  %1994 = vmatpush1.bf16.msra.mxu0 %v1216
  %1995 = vmatprep.subr.bf16.mxu0 0
  %1996 = vmatpush1.bf16.msra.mxu0 %v1217
  %1997 = vmatprep.subr.bf16.mxu0 0
  %1998 = vmatpush1.bf16.msra.mxu0 %v1218
  %1999 = vmatprep.subr.bf16.mxu0 0
  %2000 = vmatpush1.bf16.msra.mxu0 0
  %2001 = vmatprep.subr.bf16.mxu0 0
  %2002 = vmatpush1.bf16.msra.mxu0 0
  %2003 = vmatprep.subr.bf16.mxu0 0
  %2004 = vmatpush1.bf16.msra.mxu0 0
  %2005 = vmatprep.subr.bf16.mxu0 0
  %2006 = vmatpush1.bf16.msra.mxu0 0
  %2007 = vmatprep.subr.bf16.mxu0 0
  %2008 = vmatpush1.bf16.msra.mxu0 0
  %2009 = vmatprep.subr.bf16.mxu0 0
  %2010 = vmatpush1.bf16.msra.mxu0 0
  %2011 = vmatprep.subr.bf16.mxu0 0
  %2012 = vmatpush1.bf16.msra.mxu0 0
  %2013 = vmatprep.subr.bf16.mxu0 0
  %2014 = vmatpush1.bf16.msra.mxu0 0
  %2015 = vmatprep.subr.bf16.mxu0 0
  %2016 = vmatpush1.bf16.msra.mxu0 0
  %2017 = vmatprep.subr.bf16.mxu0 0
  %2018 = vmatpush1.bf16.msra.mxu0 0
  %2019 = vmatprep.subr.bf16.mxu0 0
  %2020 = vmatpush1.bf16.msra.mxu0 0
  %2021 = vmatprep.subr.bf16.mxu0 0
  %2022 = vmatpush1.bf16.msra.mxu0 0
  %2023 = vmatprep.mubr.bf16.mxu0 0
  %2024 = vmatmul.mubr.bf16.gmra.mrb[0].mxu0 %v1989
  %v2025 = vpop.f32.mrb[0].mxu0
  %v2026 = vadd.f32 %v258, %v2025
  %v2027 = vpop.f32.mrb[0].mxu0
  %v2028 = vpop.f32.mrb[0].mxu0
  %v2029 = vpop.f32.mrb[0].mxu0
  %2030 = vdwg.mxu0
  %v2031 = vmax.f32 %v2026, 0.0
  %v2032 = vpack.c.bf16 %v2031, %v2031
  %v2034 = vsel %vm1223, %v2032, 0
  %2036 = vmatprep.subr.bf16.mxu0 0
  %2037 = vmatpush1.bf16.msra.mxu0 %v1285
  %2038 = vmatprep.subr.bf16.mxu0 0
  %2039 = vmatpush1.bf16.msra.mxu0 %v1286
  %2040 = vmatprep.subr.bf16.mxu0 0
  %2041 = vmatpush1.bf16.msra.mxu0 %v1287
  %2042 = vmatprep.subr.bf16.mxu0 0
  %2043 = vmatpush1.bf16.msra.mxu0 %v1288
  %2044 = vmatprep.subr.bf16.mxu0 0
  %2045 = vmatpush1.bf16.msra.mxu0 0
  %2046 = vmatprep.subr.bf16.mxu0 0
  %2047 = vmatpush1.bf16.msra.mxu0 0
  %2048 = vmatprep.subr.bf16.mxu0 0
  %2049 = vmatpush1.bf16.msra.mxu0 0
  %2050 = vmatprep.subr.bf16.mxu0 0
  %2051 = vmatpush1.bf16.msra.mxu0 0
  %2052 = vmatprep.subr.bf16.mxu0 0
  %2053 = vmatpush1.bf16.msra.mxu0 0
  %2054 = vmatprep.subr.bf16.mxu0 0
  %2055 = vmatpush1.bf16.msra.mxu0 0
  %2056 = vmatprep.subr.bf16.mxu0 0
  %2057 = vmatpush1.bf16.msra.mxu0 0
  %2058 = vmatprep.subr.bf16.mxu0 0
  %2059 = vmatpush1.bf16.msra.mxu0 0
  %2060 = vmatprep.subr.bf16.mxu0 0
  %2061 = vmatpush1.bf16.msra.mxu0 0
  %2062 = vmatprep.subr.bf16.mxu0 0
  %2063 = vmatpush1.bf16.msra.mxu0 0
  %2064 = vmatprep.subr.bf16.mxu0 0
  %2065 = vmatpush1.bf16.msra.mxu0 0
  %2066 = vmatprep.subr.bf16.mxu0 0
  %2067 = vmatpush1.bf16.msra.mxu0 0
  %2068 = vmatprep.mubr.bf16.mxu0 0
  %2069 = vmatmul.mubr.bf16.gmra.mrb[0].mxu0 %v2034
  %v2070 = vpop.f32.mrb[0].mxu0
  %v2071 = vadd.f32 %v265, %v2070
  %v2072 = vpop.f32.mrb[0].mxu0
  %v2073 = vpop.f32.mrb[0].mxu0
  %v2074 = vpop.f32.mrb[0].mxu0
  %2075 = vdwg.mxu0
  %v2076 = vmul.f32 %v2071, 0.020833334
  %v2077 = vadd.f32 %v1986, %v2076
  %v2078 = vmul.f32 %v2071, 0.0625
  %v2079 = vadd.f32 %v1986, %v2078
  %v2080 = vpack.c.bf16 %v2079, %v2079
  %v2082 = vsel %vm1223, %v2080, 0
  %2084 = vmatprep.subr.bf16.mxu0 0
  %2085 = vmatpush1.bf16.msra.mxu0 %v1215
  %2086 = vmatprep.subr.bf16.mxu0 0
  %2087 = vmatpush1.bf16.msra.mxu0 %v1216
  %2088 = vmatprep.subr.bf16.mxu0 0
  %2089 = vmatpush1.bf16.msra.mxu0 %v1217
  %2090 = vmatprep.subr.bf16.mxu0 0
  %2091 = vmatpush1.bf16.msra.mxu0 %v1218
  %2092 = vmatprep.subr.bf16.mxu0 0
  %2093 = vmatpush1.bf16.msra.mxu0 0
  %2094 = vmatprep.subr.bf16.mxu0 0
  %2095 = vmatpush1.bf16.msra.mxu0 0
  %2096 = vmatprep.subr.bf16.mxu0 0
  %2097 = vmatpush1.bf16.msra.mxu0 0
  %2098 = vmatprep.subr.bf16.mxu0 0
  %2099 = vmatpush1.bf16.msra.mxu0 0
  %2100 = vmatprep.subr.bf16.mxu0 0
  %2101 = vmatpush1.bf16.msra.mxu0 0
  %2102 = vmatprep.subr.bf16.mxu0 0
  %2103 = vmatpush1.bf16.msra.mxu0 0
  %2104 = vmatprep.subr.bf16.mxu0 0
  %2105 = vmatpush1.bf16.msra.mxu0 0
  %2106 = vmatprep.subr.bf16.mxu0 0
  %2107 = vmatpush1.bf16.msra.mxu0 0
  %2108 = vmatprep.subr.bf16.mxu0 0
  %2109 = vmatpush1.bf16.msra.mxu0 0
  %2110 = vmatprep.subr.bf16.mxu0 0
  %2111 = vmatpush1.bf16.msra.mxu0 0
  %2112 = vmatprep.subr.bf16.mxu0 0
  %2113 = vmatpush1.bf16.msra.mxu0 0
  %2114 = vmatprep.subr.bf16.mxu0 0
  %2115 = vmatpush1.bf16.msra.mxu0 0
  %2116 = vmatprep.mubr.bf16.mxu0 0
  %2117 = vmatmul.mubr.bf16.gmra.mrb[0].mxu0 %v2082
  %v2118 = vpop.f32.mrb[0].mxu0
  %v2119 = vadd.f32 %v258, %v2118
  %v2120 = vpop.f32.mrb[0].mxu0
  %v2121 = vpop.f32.mrb[0].mxu0
  %v2122 = vpop.f32.mrb[0].mxu0
  %2123 = vdwg.mxu0
  %v2124 = vmax.f32 %v2119, 0.0
  %v2125 = vpack.c.bf16 %v2124, %v2124
  %v2127 = vsel %vm1223, %v2125, 0
  %2129 = vmatprep.subr.bf16.mxu0 0
  %2130 = vmatpush1.bf16.msra.mxu0 %v1285
  %2131 = vmatprep.subr.bf16.mxu0 0
  %2132 = vmatpush1.bf16.msra.mxu0 %v1286
  %2133 = vmatprep.subr.bf16.mxu0 0
  %2134 = vmatpush1.bf16.msra.mxu0 %v1287
  %2135 = vmatprep.subr.bf16.mxu0 0
  %2136 = vmatpush1.bf16.msra.mxu0 %v1288
  %2137 = vmatprep.subr.bf16.mxu0 0
  %2138 = vmatpush1.bf16.msra.mxu0 0
  %2139 = vmatprep.subr.bf16.mxu0 0
  %2140 = vmatpush1.bf16.msra.mxu0 0
  %2141 = vmatprep.subr.bf16.mxu0 0
  %2142 = vmatpush1.bf16.msra.mxu0 0
  %2143 = vmatprep.subr.bf16.mxu0 0
  %2144 = vmatpush1.bf16.msra.mxu0 0
  %2145 = vmatprep.subr.bf16.mxu0 0
  %2146 = vmatpush1.bf16.msra.mxu0 0
  %2147 = vmatprep.subr.bf16.mxu0 0
  %2148 = vmatpush1.bf16.msra.mxu0 0
  %2149 = vmatprep.subr.bf16.mxu0 0
  %2150 = vmatpush1.bf16.msra.mxu0 0
  %2151 = vmatprep.subr.bf16.mxu0 0
  %2152 = vmatpush1.bf16.msra.mxu0 0
  %2153 = vmatprep.subr.bf16.mxu0 0
  %2154 = vmatpush1.bf16.msra.mxu0 0
  %2155 = vmatprep.subr.bf16.mxu0 0
  %2156 = vmatpush1.bf16.msra.mxu0 0
  %2157 = vmatprep.subr.bf16.mxu0 0
  %2158 = vmatpush1.bf16.msra.mxu0 0
  %2159 = vmatprep.subr.bf16.mxu0 0
  %2160 = vmatpush1.bf16.msra.mxu0 0
  %2161 = vmatprep.mubr.bf16.mxu0 0
  %2162 = vmatmul.mubr.bf16.gmra.mrb[0].mxu0 %v2127
  %v2163 = vpop.f32.mrb[0].mxu0
  %v2164 = vadd.f32 %v265, %v2163
  %v2165 = vpop.f32.mrb[0].mxu0
  %v2166 = vpop.f32.mrb[0].mxu0
  %v2167 = vpop.f32.mrb[0].mxu0
  %2168 = vdwg.mxu0
  %v2169 = vmul.f32 %v2164, 0.041666668
  %v2170 = vadd.f32 %v2077, %v2169
  %v2171 = vmul.f32 %v2164, 0.0625
  %v2172 = vadd.f32 %v1986, %v2171
  %v2173 = vpack.c.bf16 %v2172, %v2172
  %v2175 = vsel %vm1223, %v2173, 0
  %2177 = vmatprep.subr.bf16.mxu0 0
  %2178 = vmatpush1.bf16.msra.mxu0 %v1215
  %2179 = vmatprep.subr.bf16.mxu0 0
  %2180 = vmatpush1.bf16.msra.mxu0 %v1216
  %2181 = vmatprep.subr.bf16.mxu0 0
  %2182 = vmatpush1.bf16.msra.mxu0 %v1217
  %2183 = vmatprep.subr.bf16.mxu0 0
  %2184 = vmatpush1.bf16.msra.mxu0 %v1218
  %2185 = vmatprep.subr.bf16.mxu0 0
  %2186 = vmatpush1.bf16.msra.mxu0 0
  %2187 = vmatprep.subr.bf16.mxu0 0
  %2188 = vmatpush1.bf16.msra.mxu0 0
  %2189 = vmatprep.subr.bf16.mxu0 0
  %2190 = vmatpush1.bf16.msra.mxu0 0
  %2191 = vmatprep.subr.bf16.mxu0 0
  %2192 = vmatpush1.bf16.msra.mxu0 0
  %2193 = vmatprep.subr.bf16.mxu0 0
  %2194 = vmatpush1.bf16.msra.mxu0 0
  %2195 = vmatprep.subr.bf16.mxu0 0
  %2196 = vmatpush1.bf16.msra.mxu0 0
  %2197 = vmatprep.subr.bf16.mxu0 0
  %2198 = vmatpush1.bf16.msra.mxu0 0
  %2199 = vmatprep.subr.bf16.mxu0 0
  %2200 = vmatpush1.bf16.msra.mxu0 0
  %2201 = vmatprep.subr.bf16.mxu0 0
  %2202 = vmatpush1.bf16.msra.mxu0 0
  %2203 = vmatprep.subr.bf16.mxu0 0
  %2204 = vmatpush1.bf16.msra.mxu0 0
  %2205 = vmatprep.subr.bf16.mxu0 0
  %2206 = vmatpush1.bf16.msra.mxu0 0
  %2207 = vmatprep.subr.bf16.mxu0 0
  %2208 = vmatpush1.bf16.msra.mxu0 0
  %2209 = vmatprep.mubr.bf16.mxu0 0
  %2210 = vmatmul.mubr.bf16.gmra.mrb[0].mxu0 %v2175
  %v2211 = vpop.f32.mrb[0].mxu0
  %v2212 = vadd.f32 %v258, %v2211
  %v2213 = vpop.f32.mrb[0].mxu0
  %v2214 = vpop.f32.mrb[0].mxu0
  %v2215 = vpop.f32.mrb[0].mxu0
  %2216 = vdwg.mxu0
  %v2217 = vmax.f32 %v2212, 0.0
  %v2218 = vpack.c.bf16 %v2217, %v2217
  %v2220 = vsel %vm1223, %v2218, 0
  %2222 = vmatprep.subr.bf16.mxu0 0
  %2223 = vmatpush1.bf16.msra.mxu0 %v1285
  %2224 = vmatprep.subr.bf16.mxu0 0
  %2225 = vmatpush1.bf16.msra.mxu0 %v1286
  %2226 = vmatprep.subr.bf16.mxu0 0
  %2227 = vmatpush1.bf16.msra.mxu0 %v1287
  %2228 = vmatprep.subr.bf16.mxu0 0
  %2229 = vmatpush1.bf16.msra.mxu0 %v1288
  %2230 = vmatprep.subr.bf16.mxu0 0
  %2231 = vmatpush1.bf16.msra.mxu0 0
  %2232 = vmatprep.subr.bf16.mxu0 0
  %2233 = vmatpush1.bf16.msra.mxu0 0
  %2234 = vmatprep.subr.bf16.mxu0 0
  %2235 = vmatpush1.bf16.msra.mxu0 0
  %2236 = vmatprep.subr.bf16.mxu0 0
  %2237 = vmatpush1.bf16.msra.mxu0 0
  %2238 = vmatprep.subr.bf16.mxu0 0
  %2239 = vmatpush1.bf16.msra.mxu0 0
  %2240 = vmatprep.subr.bf16.mxu0 0
  %2241 = vmatpush1.bf16.msra.mxu0 0
  %2242 = vmatprep.subr.bf16.mxu0 0
  %2243 = vmatpush1.bf16.msra.mxu0 0
  %2244 = vmatprep.subr.bf16.mxu0 0
  %2245 = vmatpush1.bf16.msra.mxu0 0
  %2246 = vmatprep.subr.bf16.mxu0 0
  %2247 = vmatpush1.bf16.msra.mxu0 0
  %2248 = vmatprep.subr.bf16.mxu0 0
  %2249 = vmatpush1.bf16.msra.mxu0 0
  %2250 = vmatprep.subr.bf16.mxu0 0
  %2251 = vmatpush1.bf16.msra.mxu0 0
  %2252 = vmatprep.subr.bf16.mxu0 0
  %2253 = vmatpush1.bf16.msra.mxu0 0
  %2254 = vmatprep.mubr.bf16.mxu0 0
  %2255 = vmatmul.mubr.bf16.gmra.mrb[0].mxu0 %v2220
  %v2256 = vpop.f32.mrb[0].mxu0
  %v2257 = vadd.f32 %v265, %v2256
  %v2258 = vpop.f32.mrb[0].mxu0
  %v2259 = vpop.f32.mrb[0].mxu0
  %v2260 = vpop.f32.mrb[0].mxu0
  %2261 = vdwg.mxu0
  %v2262 = vmul.f32 %v2257, 0.041666668
  %v2263 = vadd.f32 %v2170, %v2262
  %v2264 = vmul.f32 %v2257, 0.125
  %v2265 = vadd.f32 %v1986, %v2264
  %v2266 = vpack.c.bf16 %v2265, %v2265
  %v2268 = vsel %vm1223, %v2266, 0
  %2270 = vmatprep.subr.bf16.mxu0 0
  %2271 = vmatpush1.bf16.msra.mxu0 %v1215
  %2272 = vmatprep.subr.bf16.mxu0 0
  %2273 = vmatpush1.bf16.msra.mxu0 %v1216
  %2274 = vmatprep.subr.bf16.mxu0 0
  %2275 = vmatpush1.bf16.msra.mxu0 %v1217
  %2276 = vmatprep.subr.bf16.mxu0 0
  %2277 = vmatpush1.bf16.msra.mxu0 %v1218
  %2278 = vmatprep.subr.bf16.mxu0 0
  %2279 = vmatpush1.bf16.msra.mxu0 0
  %2280 = vmatprep.subr.bf16.mxu0 0
  %2281 = vmatpush1.bf16.msra.mxu0 0
  %2282 = vmatprep.subr.bf16.mxu0 0
  %2283 = vmatpush1.bf16.msra.mxu0 0
  %2284 = vmatprep.subr.bf16.mxu0 0
  %2285 = vmatpush1.bf16.msra.mxu0 0
  %2286 = vmatprep.subr.bf16.mxu0 0
  %2287 = vmatpush1.bf16.msra.mxu0 0
  %2288 = vmatprep.subr.bf16.mxu0 0
  %2289 = vmatpush1.bf16.msra.mxu0 0
  %2290 = vmatprep.subr.bf16.mxu0 0
  %2291 = vmatpush1.bf16.msra.mxu0 0
  %2292 = vmatprep.subr.bf16.mxu0 0
  %2293 = vmatpush1.bf16.msra.mxu0 0
  %2294 = vmatprep.subr.bf16.mxu0 0
  %2295 = vmatpush1.bf16.msra.mxu0 0
  %2296 = vmatprep.subr.bf16.mxu0 0
  %2297 = vmatpush1.bf16.msra.mxu0 0
  %2298 = vmatprep.subr.bf16.mxu0 0
  %2299 = vmatpush1.bf16.msra.mxu0 0
  %2300 = vmatprep.subr.bf16.mxu0 0
  %2301 = vmatpush1.bf16.msra.mxu0 0
  %2302 = vmatprep.mubr.bf16.mxu0 0
  %2303 = vmatmul.mubr.bf16.gmra.mrb[0].mxu0 %v2268
  %v2304 = vpop.f32.mrb[0].mxu0
  %v2305 = vadd.f32 %v258, %v2304
  %v2306 = vpop.f32.mrb[0].mxu0
  %v2307 = vpop.f32.mrb[0].mxu0
  %v2308 = vpop.f32.mrb[0].mxu0
  %2309 = vdwg.mxu0
  %v2310 = vmax.f32 %v2305, 0.0
  %v2311 = vpack.c.bf16 %v2310, %v2310
  %v2313 = vsel %vm1223, %v2311, 0
  %2315 = vmatprep.subr.bf16.mxu0 0
  %2316 = vmatpush1.bf16.msra.mxu0 %v1285
  %2317 = vmatprep.subr.bf16.mxu0 0
  %2318 = vmatpush1.bf16.msra.mxu0 %v1286
  %2319 = vmatprep.subr.bf16.mxu0 0
  %2320 = vmatpush1.bf16.msra.mxu0 %v1287
  %2321 = vmatprep.subr.bf16.mxu0 0
  %2322 = vmatpush1.bf16.msra.mxu0 %v1288
  %2323 = vmatprep.subr.bf16.mxu0 0
  %2324 = vmatpush1.bf16.msra.mxu0 0
  %2325 = vmatprep.subr.bf16.mxu0 0
  %2326 = vmatpush1.bf16.msra.mxu0 0
  %2327 = vmatprep.subr.bf16.mxu0 0
  %2328 = vmatpush1.bf16.msra.mxu0 0
  %2329 = vmatprep.subr.bf16.mxu0 0
  %2330 = vmatpush1.bf16.msra.mxu0 0
  %2331 = vmatprep.subr.bf16.mxu0 0
  %2332 = vmatpush1.bf16.msra.mxu0 0
  %2333 = vmatprep.subr.bf16.mxu0 0
  %2334 = vmatpush1.bf16.msra.mxu0 0
  %2335 = vmatprep.subr.bf16.mxu0 0
  %2336 = vmatpush1.bf16.msra.mxu0 0
  %2337 = vmatprep.subr.bf16.mxu0 0
  %2338 = vmatpush1.bf16.msra.mxu0 0
  %2339 = vmatprep.subr.bf16.mxu0 0
  %2340 = vmatpush1.bf16.msra.mxu0 0
  %2341 = vmatprep.subr.bf16.mxu0 0
  %2342 = vmatpush1.bf16.msra.mxu0 0
  %2343 = vmatprep.subr.bf16.mxu0 0
  %2344 = vmatpush1.bf16.msra.mxu0 0
  %2345 = vmatprep.subr.bf16.mxu0 0
  %2346 = vmatpush1.bf16.msra.mxu0 0
  %2347 = vmatprep.mubr.bf16.mxu0 0
  %2348 = vmatmul.mubr.bf16.gmra.mrb[0].mxu0 %v2313
  %v2349 = vpop.f32.mrb[0].mxu0
  %v2350 = vadd.f32 %v265, %v2349
  %v2351 = vpop.f32.mrb[0].mxu0
  %v2352 = vpop.f32.mrb[0].mxu0
  %v2353 = vpop.f32.mrb[0].mxu0
  %2354 = vdwg.mxu0
  %v2355 = vmul.f32 %v2350, 0.020833334
  %v2356 = vadd.f32 %v2263, %v2355
  %v2357 = vpack.c.bf16 %v2356, %v2356
  %v2359 = vsel %vm1223, %v2357, 0
  %2361 = vmatprep.subr.bf16.mxu0 0
  %2362 = vmatpush1.bf16.msra.mxu0 %v1215
  %2363 = vmatprep.subr.bf16.mxu0 0
  %2364 = vmatpush1.bf16.msra.mxu0 %v1216
  %2365 = vmatprep.subr.bf16.mxu0 0
  %2366 = vmatpush1.bf16.msra.mxu0 %v1217
  %2367 = vmatprep.subr.bf16.mxu0 0
  %2368 = vmatpush1.bf16.msra.mxu0 %v1218
  %2369 = vmatprep.subr.bf16.mxu0 0
  %2370 = vmatpush1.bf16.msra.mxu0 0
  %2371 = vmatprep.subr.bf16.mxu0 0
  %2372 = vmatpush1.bf16.msra.mxu0 0
  %2373 = vmatprep.subr.bf16.mxu0 0
  %2374 = vmatpush1.bf16.msra.mxu0 0
  %2375 = vmatprep.subr.bf16.mxu0 0
  %2376 = vmatpush1.bf16.msra.mxu0 0
  %2377 = vmatprep.subr.bf16.mxu0 0
  %2378 = vmatpush1.bf16.msra.mxu0 0
  %2379 = vmatprep.subr.bf16.mxu0 0
  %2380 = vmatpush1.bf16.msra.mxu0 0
  %2381 = vmatprep.subr.bf16.mxu0 0
  %2382 = vmatpush1.bf16.msra.mxu0 0
  %2383 = vmatprep.subr.bf16.mxu0 0
  %2384 = vmatpush1.bf16.msra.mxu0 0
  %2385 = vmatprep.subr.bf16.mxu0 0
  %2386 = vmatpush1.bf16.msra.mxu0 0
  %2387 = vmatprep.subr.bf16.mxu0 0
  %2388 = vmatpush1.bf16.msra.mxu0 0
  %2389 = vmatprep.subr.bf16.mxu0 0
  %2390 = vmatpush1.bf16.msra.mxu0 0
  %2391 = vmatprep.subr.bf16.mxu0 0
  %2392 = vmatpush1.bf16.msra.mxu0 0
  %2393 = vmatprep.mubr.bf16.mxu0 0
  %2394 = vmatmul.mubr.bf16.gmra.mrb[0].mxu0 %v2359
  %v2395 = vpop.f32.mrb[0].mxu0
  %v2396 = vadd.f32 %v258, %v2395
  %v2397 = vpop.f32.mrb[0].mxu0
  %v2398 = vpop.f32.mrb[0].mxu0
  %v2399 = vpop.f32.mrb[0].mxu0
  %2400 = vdwg.mxu0
  %v2401 = vmax.f32 %v2396, 0.0
  %v2402 = vpack.c.bf16 %v2401, %v2401
  %v2404 = vsel %vm1223, %v2402, 0
  %2406 = vmatprep.subr.bf16.mxu0 0
  %2407 = vmatpush1.bf16.msra.mxu0 %v1285
  %2408 = vmatprep.subr.bf16.mxu0 0
  %2409 = vmatpush1.bf16.msra.mxu0 %v1286
  %2410 = vmatprep.subr.bf16.mxu0 0
  %2411 = vmatpush1.bf16.msra.mxu0 %v1287
  %2412 = vmatprep.subr.bf16.mxu0 0
  %2413 = vmatpush1.bf16.msra.mxu0 %v1288
  %2414 = vmatprep.subr.bf16.mxu0 0
  %2415 = vmatpush1.bf16.msra.mxu0 0
  %2416 = vmatprep.subr.bf16.mxu0 0
  %2417 = vmatpush1.bf16.msra.mxu0 0
  %2418 = vmatprep.subr.bf16.mxu0 0
  %2419 = vmatpush1.bf16.msra.mxu0 0
  %2420 = vmatprep.subr.bf16.mxu0 0
  %2421 = vmatpush1.bf16.msra.mxu0 0
  %2422 = vmatprep.subr.bf16.mxu0 0
  %2423 = vmatpush1.bf16.msra.mxu0 0
  %2424 = vmatprep.subr.bf16.mxu0 0
  %2425 = vmatpush1.bf16.msra.mxu0 0
  %2426 = vmatprep.subr.bf16.mxu0 0
  %2427 = vmatpush1.bf16.msra.mxu0 0
  %2428 = vmatprep.subr.bf16.mxu0 0
  %2429 = vmatpush1.bf16.msra.mxu0 0
  %2430 = vmatprep.subr.bf16.mxu0 0
  %2431 = vmatpush1.bf16.msra.mxu0 0
  %2432 = vmatprep.subr.bf16.mxu0 0
  %2433 = vmatpush1.bf16.msra.mxu0 0
  %2434 = vmatprep.subr.bf16.mxu0 0
  %2435 = vmatpush1.bf16.msra.mxu0 0
  %2436 = vmatprep.subr.bf16.mxu0 0
  %2437 = vmatpush1.bf16.msra.mxu0 0
  %2438 = vmatprep.mubr.bf16.mxu0 0
  %2439 = vmatmul.mubr.bf16.gmra.mrb[0].mxu0 %v2404
  %v2440 = vpop.f32.mrb[0].mxu0
  %v2441 = vadd.f32 %v265, %v2440
  %v2442 = vpop.f32.mrb[0].mxu0
  %v2443 = vpop.f32.mrb[0].mxu0
  %v2444 = vpop.f32.mrb[0].mxu0
  %2445 = vdwg.mxu0
  %v2446 = vmul.f32 %v2441, 0.020833334
  %v2447 = vadd.f32 %v2356, %v2446
  %v2448 = vmul.f32 %v2441, 0.0625
  %v2449 = vadd.f32 %v2356, %v2448
  %v2450 = vpack.c.bf16 %v2449, %v2449
  %v2452 = vsel %vm1223, %v2450, 0
  %2454 = vmatprep.subr.bf16.mxu0 0
  %2455 = vmatpush1.bf16.msra.mxu0 %v1215
  %2456 = vmatprep.subr.bf16.mxu0 0
  %2457 = vmatpush1.bf16.msra.mxu0 %v1216
  %2458 = vmatprep.subr.bf16.mxu0 0
  %2459 = vmatpush1.bf16.msra.mxu0 %v1217
  %2460 = vmatprep.subr.bf16.mxu0 0
  %2461 = vmatpush1.bf16.msra.mxu0 %v1218
  %2462 = vmatprep.subr.bf16.mxu0 0
  %2463 = vmatpush1.bf16.msra.mxu0 0
  %2464 = vmatprep.subr.bf16.mxu0 0
  %2465 = vmatpush1.bf16.msra.mxu0 0
  %2466 = vmatprep.subr.bf16.mxu0 0
  %2467 = vmatpush1.bf16.msra.mxu0 0
  %2468 = vmatprep.subr.bf16.mxu0 0
  %2469 = vmatpush1.bf16.msra.mxu0 0
  %2470 = vmatprep.subr.bf16.mxu0 0
  %2471 = vmatpush1.bf16.msra.mxu0 0
  %2472 = vmatprep.subr.bf16.mxu0 0
  %2473 = vmatpush1.bf16.msra.mxu0 0
  %2474 = vmatprep.subr.bf16.mxu0 0
  %2475 = vmatpush1.bf16.msra.mxu0 0
  %2476 = vmatprep.subr.bf16.mxu0 0
  %2477 = vmatpush1.bf16.msra.mxu0 0
  %2478 = vmatprep.subr.bf16.mxu0 0
  %2479 = vmatpush1.bf16.msra.mxu0 0
  %2480 = vmatprep.subr.bf16.mxu0 0
  %2481 = vmatpush1.bf16.msra.mxu0 0
  %2482 = vmatprep.subr.bf16.mxu0 0
  %2483 = vmatpush1.bf16.msra.mxu0 0
  %2484 = vmatprep.subr.bf16.mxu0 0
  %2485 = vmatpush1.bf16.msra.mxu0 0
  %2486 = vmatprep.mubr.bf16.mxu0 0
  %2487 = vmatmul.mubr.bf16.gmra.mrb[0].mxu0 %v2452
  %v2488 = vpop.f32.mrb[0].mxu0
  %v2489 = vadd.f32 %v258, %v2488
  %v2490 = vpop.f32.mrb[0].mxu0
  %v2491 = vpop.f32.mrb[0].mxu0
  %v2492 = vpop.f32.mrb[0].mxu0
  %2493 = vdwg.mxu0
  %v2494 = vmax.f32 %v2489, 0.0
  %v2495 = vpack.c.bf16 %v2494, %v2494
  %v2497 = vsel %vm1223, %v2495, 0
  %2499 = vmatprep.subr.bf16.mxu0 0
  %2500 = vmatpush1.bf16.msra.mxu0 %v1285
  %2501 = vmatprep.subr.bf16.mxu0 0
  %2502 = vmatpush1.bf16.msra.mxu0 %v1286
  %2503 = vmatprep.subr.bf16.mxu0 0
  %2504 = vmatpush1.bf16.msra.mxu0 %v1287
  %2505 = vmatprep.subr.bf16.mxu0 0
  %2506 = vmatpush1.bf16.msra.mxu0 %v1288
  %2507 = vmatprep.subr.bf16.mxu0 0
  %2508 = vmatpush1.bf16.msra.mxu0 0
  %2509 = vmatprep.subr.bf16.mxu0 0
  %2510 = vmatpush1.bf16.msra.mxu0 0
  %2511 = vmatprep.subr.bf16.mxu0 0
  %2512 = vmatpush1.bf16.msra.mxu0 0
  %2513 = vmatprep.subr.bf16.mxu0 0
  %2514 = vmatpush1.bf16.msra.mxu0 0
  %2515 = vmatprep.subr.bf16.mxu0 0
  %2516 = vmatpush1.bf16.msra.mxu0 0
  %2517 = vmatprep.subr.bf16.mxu0 0
  %2518 = vmatpush1.bf16.msra.mxu0 0
  %2519 = vmatprep.subr.bf16.mxu0 0
  %2520 = vmatpush1.bf16.msra.mxu0 0
  %2521 = vmatprep.subr.bf16.mxu0 0
  %2522 = vmatpush1.bf16.msra.mxu0 0
  %2523 = vmatprep.subr.bf16.mxu0 0
  %2524 = vmatpush1.bf16.msra.mxu0 0
  %2525 = vmatprep.subr.bf16.mxu0 0
  %2526 = vmatpush1.bf16.msra.mxu0 0
  %2527 = vmatprep.subr.bf16.mxu0 0
  %2528 = vmatpush1.bf16.msra.mxu0 0
  %2529 = vmatprep.subr.bf16.mxu0 0
  %2530 = vmatpush1.bf16.msra.mxu0 0
  %2531 = vmatprep.mubr.bf16.mxu0 0
  %2532 = vmatmul.mubr.bf16.gmra.mrb[0].mxu0 %v2497
  %v2533 = vpop.f32.mrb[0].mxu0
  %v2534 = vadd.f32 %v265, %v2533
  %v2535 = vpop.f32.mrb[0].mxu0
  %v2536 = vpop.f32.mrb[0].mxu0
  %v2537 = vpop.f32.mrb[0].mxu0
  %2538 = vdwg.mxu0
  %v2539 = vmul.f32 %v2534, 0.041666668
  %v2540 = vadd.f32 %v2447, %v2539
  %v2541 = vmul.f32 %v2534, 0.0625
  %v2542 = vadd.f32 %v2356, %v2541
  %v2543 = vpack.c.bf16 %v2542, %v2542
  %v2545 = vsel %vm1223, %v2543, 0
  %2547 = vmatprep.subr.bf16.mxu0 0
  %2548 = vmatpush1.bf16.msra.mxu0 %v1215
  %2549 = vmatprep.subr.bf16.mxu0 0
  %2550 = vmatpush1.bf16.msra.mxu0 %v1216
  %2551 = vmatprep.subr.bf16.mxu0 0
  %2552 = vmatpush1.bf16.msra.mxu0 %v1217
  %2553 = vmatprep.subr.bf16.mxu0 0
  %2554 = vmatpush1.bf16.msra.mxu0 %v1218
  %2555 = vmatprep.subr.bf16.mxu0 0
  %2556 = vmatpush1.bf16.msra.mxu0 0
  %2557 = vmatprep.subr.bf16.mxu0 0
  %2558 = vmatpush1.bf16.msra.mxu0 0
  %2559 = vmatprep.subr.bf16.mxu0 0
  %2560 = vmatpush1.bf16.msra.mxu0 0
  %2561 = vmatprep.subr.bf16.mxu0 0
  %2562 = vmatpush1.bf16.msra.mxu0 0
  %2563 = vmatprep.subr.bf16.mxu0 0
  %2564 = vmatpush1.bf16.msra.mxu0 0
  %2565 = vmatprep.subr.bf16.mxu0 0
  %2566 = vmatpush1.bf16.msra.mxu0 0
  %2567 = vmatprep.subr.bf16.mxu0 0
  %2568 = vmatpush1.bf16.msra.mxu0 0
  %2569 = vmatprep.subr.bf16.mxu0 0
  %2570 = vmatpush1.bf16.msra.mxu0 0
  %2571 = vmatprep.subr.bf16.mxu0 0
  %2572 = vmatpush1.bf16.msra.mxu0 0
  %2573 = vmatprep.subr.bf16.mxu0 0
  %2574 = vmatpush1.bf16.msra.mxu0 0
  %2575 = vmatprep.subr.bf16.mxu0 0
  %2576 = vmatpush1.bf16.msra.mxu0 0
  %2577 = vmatprep.subr.bf16.mxu0 0
  %2578 = vmatpush1.bf16.msra.mxu0 0
  %2579 = vmatprep.mubr.bf16.mxu0 0
  %2580 = vmatmul.mubr.bf16.gmra.mrb[0].mxu0 %v2545
  %v2581 = vpop.f32.mrb[0].mxu0
  %v2582 = vadd.f32 %v258, %v2581
  %v2583 = vpop.f32.mrb[0].mxu0
  %v2584 = vpop.f32.mrb[0].mxu0
  %v2585 = vpop.f32.mrb[0].mxu0
  %2586 = vdwg.mxu0
  %v2587 = vmax.f32 %v2582, 0.0
  %v2588 = vpack.c.bf16 %v2587, %v2587
  %v2590 = vsel %vm1223, %v2588, 0
  %2592 = vmatprep.subr.bf16.mxu0 0
  %2593 = vmatpush1.bf16.msra.mxu0 %v1285
  %2594 = vmatprep.subr.bf16.mxu0 0
  %2595 = vmatpush1.bf16.msra.mxu0 %v1286
  %2596 = vmatprep.subr.bf16.mxu0 0
  %2597 = vmatpush1.bf16.msra.mxu0 %v1287
  %2598 = vmatprep.subr.bf16.mxu0 0
  %2599 = vmatpush1.bf16.msra.mxu0 %v1288
  %2600 = vmatprep.subr.bf16.mxu0 0
  %2601 = vmatpush1.bf16.msra.mxu0 0
  %2602 = vmatprep.subr.bf16.mxu0 0
  %2603 = vmatpush1.bf16.msra.mxu0 0
  %2604 = vmatprep.subr.bf16.mxu0 0
  %2605 = vmatpush1.bf16.msra.mxu0 0
  %2606 = vmatprep.subr.bf16.mxu0 0
  %2607 = vmatpush1.bf16.msra.mxu0 0
  %2608 = vmatprep.subr.bf16.mxu0 0
  %2609 = vmatpush1.bf16.msra.mxu0 0
  %2610 = vmatprep.subr.bf16.mxu0 0
  %2611 = vmatpush1.bf16.msra.mxu0 0
  %2612 = vmatprep.subr.bf16.mxu0 0
  %2613 = vmatpush1.bf16.msra.mxu0 0
  %2614 = vmatprep.subr.bf16.mxu0 0
  %2615 = vmatpush1.bf16.msra.mxu0 0
  %2616 = vmatprep.subr.bf16.mxu0 0
  %2617 = vmatpush1.bf16.msra.mxu0 0
  %2618 = vmatprep.subr.bf16.mxu0 0
  %2619 = vmatpush1.bf16.msra.mxu0 0
  %2620 = vmatprep.subr.bf16.mxu0 0
  %2621 = vmatpush1.bf16.msra.mxu0 0
  %2622 = vmatprep.subr.bf16.mxu0 0
  %2623 = vmatpush1.bf16.msra.mxu0 0
  %2624 = vmatprep.mubr.bf16.mxu0 0
  %2625 = vmatmul.mubr.bf16.gmra.mrb[0].mxu0 %v2590
  %v2626 = vpop.f32.mrb[0].mxu0
  %v2627 = vadd.f32 %v265, %v2626
  %v2628 = vpop.f32.mrb[0].mxu0
  %v2629 = vpop.f32.mrb[0].mxu0
  %v2630 = vpop.f32.mrb[0].mxu0
  %2631 = vdwg.mxu0
  %v2632 = vmul.f32 %v2627, 0.041666668
  %v2633 = vadd.f32 %v2540, %v2632
  %v2634 = vmul.f32 %v2627, 0.125
  %v2635 = vadd.f32 %v2356, %v2634
  %v2636 = vpack.c.bf16 %v2635, %v2635
  %v2638 = vsel %vm1223, %v2636, 0
  %2640 = vmatprep.subr.bf16.mxu0 0
  %2641 = vmatpush1.bf16.msra.mxu0 %v1215
  %2642 = vmatprep.subr.bf16.mxu0 0
  %2643 = vmatpush1.bf16.msra.mxu0 %v1216
  %2644 = vmatprep.subr.bf16.mxu0 0
  %2645 = vmatpush1.bf16.msra.mxu0 %v1217
  %2646 = vmatprep.subr.bf16.mxu0 0
  %2647 = vmatpush1.bf16.msra.mxu0 %v1218
  %2648 = vmatprep.subr.bf16.mxu0 0
  %2649 = vmatpush1.bf16.msra.mxu0 0
  %2650 = vmatprep.subr.bf16.mxu0 0
  %2651 = vmatpush1.bf16.msra.mxu0 0
  %2652 = vmatprep.subr.bf16.mxu0 0
  %2653 = vmatpush1.bf16.msra.mxu0 0
  %2654 = vmatprep.subr.bf16.mxu0 0
  %2655 = vmatpush1.bf16.msra.mxu0 0
  %2656 = vmatprep.subr.bf16.mxu0 0
  %2657 = vmatpush1.bf16.msra.mxu0 0
  %2658 = vmatprep.subr.bf16.mxu0 0
  %2659 = vmatpush1.bf16.msra.mxu0 0
  %2660 = vmatprep.subr.bf16.mxu0 0
  %2661 = vmatpush1.bf16.msra.mxu0 0
  %2662 = vmatprep.subr.bf16.mxu0 0
  %2663 = vmatpush1.bf16.msra.mxu0 0
  %2664 = vmatprep.subr.bf16.mxu0 0
  %2665 = vmatpush1.bf16.msra.mxu0 0
  %2666 = vmatprep.subr.bf16.mxu0 0
  %2667 = vmatpush1.bf16.msra.mxu0 0
  %2668 = vmatprep.subr.bf16.mxu0 0
  %2669 = vmatpush1.bf16.msra.mxu0 0
  %2670 = vmatprep.subr.bf16.mxu0 0
  %2671 = vmatpush1.bf16.msra.mxu0 0
  %2672 = vmatprep.mubr.bf16.mxu0 0
  %2673 = vmatmul.mubr.bf16.gmra.mrb[0].mxu0 %v2638
  %v2674 = vpop.f32.mrb[0].mxu0
  %v2675 = vadd.f32 %v258, %v2674
  %v2676 = vpop.f32.mrb[0].mxu0
  %v2677 = vpop.f32.mrb[0].mxu0
  %v2678 = vpop.f32.mrb[0].mxu0
  %2679 = vdwg.mxu0
  %v2680 = vmax.f32 %v2675, 0.0
  %v2681 = vpack.c.bf16 %v2680, %v2680
  %v2683 = vsel %vm1223, %v2681, 0
  %2685 = vmatprep.subr.bf16.mxu0 0
  %2686 = vmatpush1.bf16.msra.mxu0 %v1285
  %2687 = vmatprep.subr.bf16.mxu0 0
  %2688 = vmatpush1.bf16.msra.mxu0 %v1286
  %2689 = vmatprep.subr.bf16.mxu0 0
  %2690 = vmatpush1.bf16.msra.mxu0 %v1287
  %2691 = vmatprep.subr.bf16.mxu0 0
  %2692 = vmatpush1.bf16.msra.mxu0 %v1288
  %2693 = vmatprep.subr.bf16.mxu0 0
  %2694 = vmatpush1.bf16.msra.mxu0 0
  %2695 = vmatprep.subr.bf16.mxu0 0
  %2696 = vmatpush1.bf16.msra.mxu0 0
  %2697 = vmatprep.subr.bf16.mxu0 0
  %2698 = vmatpush1.bf16.msra.mxu0 0
  %2699 = vmatprep.subr.bf16.mxu0 0
  %2700 = vmatpush1.bf16.msra.mxu0 0
  %2701 = vmatprep.subr.bf16.mxu0 0
  %2702 = vmatpush1.bf16.msra.mxu0 0
  %2703 = vmatprep.subr.bf16.mxu0 0
  %2704 = vmatpush1.bf16.msra.mxu0 0
  %2705 = vmatprep.subr.bf16.mxu0 0
  %2706 = vmatpush1.bf16.msra.mxu0 0
  %2707 = vmatprep.subr.bf16.mxu0 0
  %2708 = vmatpush1.bf16.msra.mxu0 0
  %2709 = vmatprep.subr.bf16.mxu0 0
  %2710 = vmatpush1.bf16.msra.mxu0 0
  %2711 = vmatprep.subr.bf16.mxu0 0
  %2712 = vmatpush1.bf16.msra.mxu0 0
  %2713 = vmatprep.subr.bf16.mxu0 0
  %2714 = vmatpush1.bf16.msra.mxu0 0
  %2715 = vmatprep.subr.bf16.mxu0 0
  %2716 = vmatpush1.bf16.msra.mxu0 0
  %2717 = vmatprep.mubr.bf16.mxu0 0
  %2718 = vmatmul.mubr.bf16.gmra.mrb[0].mxu0 %v2683
  %v2719 = vpop.f32.mrb[0].mxu0
  %v2720 = vadd.f32 %v265, %v2719
  %v2721 = vpop.f32.mrb[0].mxu0
  %v2722 = vpop.f32.mrb[0].mxu0
  %v2723 = vpop.f32.mrb[0].mxu0
  %2724 = vdwg.mxu0
  %v2725 = vmul.f32 %v2720, 0.020833334
  %v2726 = vadd.f32 %v2633, %v2725
  %v2727 = vpack.c.bf16 %v2726, %v2726
  %v2729 = vsel %vm1223, %v2727, 0
  %2731 = vmatprep.subr.bf16.mxu0 0
  %2732 = vmatpush1.bf16.msra.mxu0 %v1215
  %2733 = vmatprep.subr.bf16.mxu0 0
  %2734 = vmatpush1.bf16.msra.mxu0 %v1216
  %2735 = vmatprep.subr.bf16.mxu0 0
  %2736 = vmatpush1.bf16.msra.mxu0 %v1217
  %2737 = vmatprep.subr.bf16.mxu0 0
  %2738 = vmatpush1.bf16.msra.mxu0 %v1218
  %2739 = vmatprep.subr.bf16.mxu0 0
  %2740 = vmatpush1.bf16.msra.mxu0 0
  %2741 = vmatprep.subr.bf16.mxu0 0
  %2742 = vmatpush1.bf16.msra.mxu0 0
  %2743 = vmatprep.subr.bf16.mxu0 0
  %2744 = vmatpush1.bf16.msra.mxu0 0
  %2745 = vmatprep.subr.bf16.mxu0 0
  %2746 = vmatpush1.bf16.msra.mxu0 0
  %2747 = vmatprep.subr.bf16.mxu0 0
  %2748 = vmatpush1.bf16.msra.mxu0 0
  %2749 = vmatprep.subr.bf16.mxu0 0
  %2750 = vmatpush1.bf16.msra.mxu0 0
  %2751 = vmatprep.subr.bf16.mxu0 0
  %2752 = vmatpush1.bf16.msra.mxu0 0
  %2753 = vmatprep.subr.bf16.mxu0 0
  %2754 = vmatpush1.bf16.msra.mxu0 0
  %2755 = vmatprep.subr.bf16.mxu0 0
  %2756 = vmatpush1.bf16.msra.mxu0 0
  %2757 = vmatprep.subr.bf16.mxu0 0
  %2758 = vmatpush1.bf16.msra.mxu0 0
  %2759 = vmatprep.subr.bf16.mxu0 0
  %2760 = vmatpush1.bf16.msra.mxu0 0
  %2761 = vmatprep.subr.bf16.mxu0 0
  %2762 = vmatpush1.bf16.msra.mxu0 0
  %2763 = vmatprep.mubr.bf16.mxu0 0
  %2764 = vmatmul.mubr.bf16.gmra.mrb[0].mxu0 %v2729
  %v2765 = vpop.f32.mrb[0].mxu0
  %v2766 = vadd.f32 %v258, %v2765
  %v2767 = vpop.f32.mrb[0].mxu0
  %v2768 = vpop.f32.mrb[0].mxu0
  %v2769 = vpop.f32.mrb[0].mxu0
  %2770 = vdwg.mxu0
  %v2771 = vmax.f32 %v2766, 0.0
  %v2772 = vpack.c.bf16 %v2771, %v2771
  %v2774 = vsel %vm1223, %v2772, 0
  %2776 = vmatprep.subr.bf16.mxu0 0
  %2777 = vmatpush1.bf16.msra.mxu0 %v1285
  %2778 = vmatprep.subr.bf16.mxu0 0
  %2779 = vmatpush1.bf16.msra.mxu0 %v1286
  %2780 = vmatprep.subr.bf16.mxu0 0
  %2781 = vmatpush1.bf16.msra.mxu0 %v1287
  %2782 = vmatprep.subr.bf16.mxu0 0
  %2783 = vmatpush1.bf16.msra.mxu0 %v1288
  %2784 = vmatprep.subr.bf16.mxu0 0
  %2785 = vmatpush1.bf16.msra.mxu0 0
  %2786 = vmatprep.subr.bf16.mxu0 0
  %2787 = vmatpush1.bf16.msra.mxu0 0
  %2788 = vmatprep.subr.bf16.mxu0 0
  %2789 = vmatpush1.bf16.msra.mxu0 0
  %2790 = vmatprep.subr.bf16.mxu0 0
  %2791 = vmatpush1.bf16.msra.mxu0 0
  %2792 = vmatprep.subr.bf16.mxu0 0
  %2793 = vmatpush1.bf16.msra.mxu0 0
  %2794 = vmatprep.subr.bf16.mxu0 0
  %2795 = vmatpush1.bf16.msra.mxu0 0
  %2796 = vmatprep.subr.bf16.mxu0 0
  %2797 = vmatpush1.bf16.msra.mxu0 0
  %2798 = vmatprep.subr.bf16.mxu0 0
  %2799 = vmatpush1.bf16.msra.mxu0 0
  %2800 = vmatprep.subr.bf16.mxu0 0
  %2801 = vmatpush1.bf16.msra.mxu0 0
  %2802 = vmatprep.subr.bf16.mxu0 0
  %2803 = vmatpush1.bf16.msra.mxu0 0
  %2804 = vmatprep.subr.bf16.mxu0 0
  %2805 = vmatpush1.bf16.msra.mxu0 0
  %2806 = vmatprep.subr.bf16.mxu0 0
  %2807 = vmatpush1.bf16.msra.mxu0 0
  %2808 = vmatprep.mubr.bf16.mxu0 0
  %2809 = vmatmul.mubr.bf16.gmra.mrb[0].mxu0 %v2774
  %v2810 = vpop.f32.mrb[0].mxu0
  %v2811 = vadd.f32 %v265, %v2810
  %v2812 = vpop.f32.mrb[0].mxu0
  %v2813 = vpop.f32.mrb[0].mxu0
  %v2814 = vpop.f32.mrb[0].mxu0
  %2815 = vdwg.mxu0
  %v2816 = vmul.f32 %v2811, 0.020833334
  %v2817 = vadd.f32 %v2726, %v2816
  %v2818 = vmul.f32 %v2811, 0.0625
  %v2819 = vadd.f32 %v2726, %v2818
  %v2820 = vpack.c.bf16 %v2819, %v2819
  %v2822 = vsel %vm1223, %v2820, 0
  %2824 = vmatprep.subr.bf16.mxu0 0
  %2825 = vmatpush1.bf16.msra.mxu0 %v1215
  %2826 = vmatprep.subr.bf16.mxu0 0
  %2827 = vmatpush1.bf16.msra.mxu0 %v1216
  %2828 = vmatprep.subr.bf16.mxu0 0
  %2829 = vmatpush1.bf16.msra.mxu0 %v1217
  %2830 = vmatprep.subr.bf16.mxu0 0
  %2831 = vmatpush1.bf16.msra.mxu0 %v1218
  %2832 = vmatprep.subr.bf16.mxu0 0
  %2833 = vmatpush1.bf16.msra.mxu0 0
  %2834 = vmatprep.subr.bf16.mxu0 0
  %2835 = vmatpush1.bf16.msra.mxu0 0
  %2836 = vmatprep.subr.bf16.mxu0 0
  %2837 = vmatpush1.bf16.msra.mxu0 0
  %2838 = vmatprep.subr.bf16.mxu0 0
  %2839 = vmatpush1.bf16.msra.mxu0 0
  %2840 = vmatprep.subr.bf16.mxu0 0
  %2841 = vmatpush1.bf16.msra.mxu0 0
  %2842 = vmatprep.subr.bf16.mxu0 0
  %2843 = vmatpush1.bf16.msra.mxu0 0
  %2844 = vmatprep.subr.bf16.mxu0 0
  %2845 = vmatpush1.bf16.msra.mxu0 0
  %2846 = vmatprep.subr.bf16.mxu0 0
  %2847 = vmatpush1.bf16.msra.mxu0 0
  %2848 = vmatprep.subr.bf16.mxu0 0
  %2849 = vmatpush1.bf16.msra.mxu0 0
  %2850 = vmatprep.subr.bf16.mxu0 0
  %2851 = vmatpush1.bf16.msra.mxu0 0
  %2852 = vmatprep.subr.bf16.mxu0 0
  %2853 = vmatpush1.bf16.msra.mxu0 0
  %2854 = vmatprep.subr.bf16.mxu0 0
  %2855 = vmatpush1.bf16.msra.mxu0 0
  %2856 = vmatprep.mubr.bf16.mxu0 0
  %2857 = vmatmul.mubr.bf16.gmra.mrb[0].mxu0 %v2822
  %v2858 = vpop.f32.mrb[0].mxu0
  %v2859 = vadd.f32 %v258, %v2858
  %v2860 = vpop.f32.mrb[0].mxu0
  %v2861 = vpop.f32.mrb[0].mxu0
  %v2862 = vpop.f32.mrb[0].mxu0
  %2863 = vdwg.mxu0
  %v2864 = vmax.f32 %v2859, 0.0
  %v2865 = vpack.c.bf16 %v2864, %v2864
  %v2867 = vsel %vm1223, %v2865, 0
  %2869 = vmatprep.subr.bf16.mxu0 0
  %2870 = vmatpush1.bf16.msra.mxu0 %v1285
  %2871 = vmatprep.subr.bf16.mxu0 0
  %2872 = vmatpush1.bf16.msra.mxu0 %v1286
  %2873 = vmatprep.subr.bf16.mxu0 0
  %2874 = vmatpush1.bf16.msra.mxu0 %v1287
  %2875 = vmatprep.subr.bf16.mxu0 0
  %2876 = vmatpush1.bf16.msra.mxu0 %v1288
  %2877 = vmatprep.subr.bf16.mxu0 0
  %2878 = vmatpush1.bf16.msra.mxu0 0
  %2879 = vmatprep.subr.bf16.mxu0 0
  %2880 = vmatpush1.bf16.msra.mxu0 0
  %2881 = vmatprep.subr.bf16.mxu0 0
  %2882 = vmatpush1.bf16.msra.mxu0 0
  %2883 = vmatprep.subr.bf16.mxu0 0
  %2884 = vmatpush1.bf16.msra.mxu0 0
  %2885 = vmatprep.subr.bf16.mxu0 0
  %2886 = vmatpush1.bf16.msra.mxu0 0
  %2887 = vmatprep.subr.bf16.mxu0 0
  %2888 = vmatpush1.bf16.msra.mxu0 0
  %2889 = vmatprep.subr.bf16.mxu0 0
  %2890 = vmatpush1.bf16.msra.mxu0 0
  %2891 = vmatprep.subr.bf16.mxu0 0
  %2892 = vmatpush1.bf16.msra.mxu0 0
  %2893 = vmatprep.subr.bf16.mxu0 0
  %2894 = vmatpush1.bf16.msra.mxu0 0
  %2895 = vmatprep.subr.bf16.mxu0 0
  %2896 = vmatpush1.bf16.msra.mxu0 0
  %2897 = vmatprep.subr.bf16.mxu0 0
  %2898 = vmatpush1.bf16.msra.mxu0 0
  %2899 = vmatprep.subr.bf16.mxu0 0
  %2900 = vmatpush1.bf16.msra.mxu0 0
  %2901 = vmatprep.mubr.bf16.mxu0 0
  %2902 = vmatmul.mubr.bf16.gmra.mrb[0].mxu0 %v2867
  %v2903 = vpop.f32.mrb[0].mxu0
  %v2904 = vadd.f32 %v265, %v2903
  %v2905 = vpop.f32.mrb[0].mxu0
  %v2906 = vpop.f32.mrb[0].mxu0
  %v2907 = vpop.f32.mrb[0].mxu0
  %2908 = vdwg.mxu0
  %v2909 = vmul.f32 %v2904, 0.041666668
  %v2910 = vadd.f32 %v2817, %v2909
  %v2911 = vmul.f32 %v2904, 0.0625
  %v2912 = vadd.f32 %v2726, %v2911
  %v2913 = vpack.c.bf16 %v2912, %v2912
  %v2915 = vsel %vm1223, %v2913, 0
  %2917 = vmatprep.subr.bf16.mxu0 0
  %2918 = vmatpush1.bf16.msra.mxu0 %v1215
  %2919 = vmatprep.subr.bf16.mxu0 0
  %2920 = vmatpush1.bf16.msra.mxu0 %v1216
  %2921 = vmatprep.subr.bf16.mxu0 0
  %2922 = vmatpush1.bf16.msra.mxu0 %v1217
  %2923 = vmatprep.subr.bf16.mxu0 0
  %2924 = vmatpush1.bf16.msra.mxu0 %v1218
  %2925 = vmatprep.subr.bf16.mxu0 0
  %2926 = vmatpush1.bf16.msra.mxu0 0
  %2927 = vmatprep.subr.bf16.mxu0 0
  %2928 = vmatpush1.bf16.msra.mxu0 0
  %2929 = vmatprep.subr.bf16.mxu0 0
  %2930 = vmatpush1.bf16.msra.mxu0 0
  %2931 = vmatprep.subr.bf16.mxu0 0
  %2932 = vmatpush1.bf16.msra.mxu0 0
  %2933 = vmatprep.subr.bf16.mxu0 0
  %2934 = vmatpush1.bf16.msra.mxu0 0
  %2935 = vmatprep.subr.bf16.mxu0 0
  %2936 = vmatpush1.bf16.msra.mxu0 0
  %2937 = vmatprep.subr.bf16.mxu0 0
  %2938 = vmatpush1.bf16.msra.mxu0 0
  %2939 = vmatprep.subr.bf16.mxu0 0
  %2940 = vmatpush1.bf16.msra.mxu0 0
  %2941 = vmatprep.subr.bf16.mxu0 0
  %2942 = vmatpush1.bf16.msra.mxu0 0
  %2943 = vmatprep.subr.bf16.mxu0 0
  %2944 = vmatpush1.bf16.msra.mxu0 0
  %2945 = vmatprep.subr.bf16.mxu0 0
  %2946 = vmatpush1.bf16.msra.mxu0 0
  %2947 = vmatprep.subr.bf16.mxu0 0
  %2948 = vmatpush1.bf16.msra.mxu0 0
  %2949 = vmatprep.mubr.bf16.mxu0 0
  %2950 = vmatmul.mubr.bf16.gmra.mrb[0].mxu0 %v2915
  %v2951 = vpop.f32.mrb[0].mxu0
  %v2952 = vadd.f32 %v258, %v2951
  %v2953 = vpop.f32.mrb[0].mxu0
  %v2954 = vpop.f32.mrb[0].mxu0
  %v2955 = vpop.f32.mrb[0].mxu0
  %2956 = vdwg.mxu0
  %v2957 = vmax.f32 %v2952, 0.0
  %v2958 = vpack.c.bf16 %v2957, %v2957
  %v2960 = vsel %vm1223, %v2958, 0
  %2962 = vmatprep.subr.bf16.mxu0 0
  %2963 = vmatpush1.bf16.msra.mxu0 %v1285
  %2964 = vmatprep.subr.bf16.mxu0 0
  %2965 = vmatpush1.bf16.msra.mxu0 %v1286
  %2966 = vmatprep.subr.bf16.mxu0 0
  %2967 = vmatpush1.bf16.msra.mxu0 %v1287
  %2968 = vmatprep.subr.bf16.mxu0 0
  %2969 = vmatpush1.bf16.msra.mxu0 %v1288
  %2970 = vmatprep.subr.bf16.mxu0 0
  %2971 = vmatpush1.bf16.msra.mxu0 0
  %2972 = vmatprep.subr.bf16.mxu0 0
  %2973 = vmatpush1.bf16.msra.mxu0 0
  %2974 = vmatprep.subr.bf16.mxu0 0
  %2975 = vmatpush1.bf16.msra.mxu0 0
  %2976 = vmatprep.subr.bf16.mxu0 0
  %2977 = vmatpush1.bf16.msra.mxu0 0
  %2978 = vmatprep.subr.bf16.mxu0 0
  %2979 = vmatpush1.bf16.msra.mxu0 0
  %2980 = vmatprep.subr.bf16.mxu0 0
  %2981 = vmatpush1.bf16.msra.mxu0 0
  %2982 = vmatprep.subr.bf16.mxu0 0
  %2983 = vmatpush1.bf16.msra.mxu0 0
  %2984 = vmatprep.subr.bf16.mxu0 0
  %2985 = vmatpush1.bf16.msra.mxu0 0
  %2986 = vmatprep.subr.bf16.mxu0 0
  %2987 = vmatpush1.bf16.msra.mxu0 0
  %2988 = vmatprep.subr.bf16.mxu0 0
  %2989 = vmatpush1.bf16.msra.mxu0 0
  %2990 = vmatprep.subr.bf16.mxu0 0
  %2991 = vmatpush1.bf16.msra.mxu0 0
  %2992 = vmatprep.subr.bf16.mxu0 0
  %2993 = vmatpush1.bf16.msra.mxu0 0
  %2994 = vmatprep.mubr.bf16.mxu0 0
  %2995 = vmatmul.mubr.bf16.gmra.mrb[0].mxu0 %v2960
  %v2996 = vpop.f32.mrb[0].mxu0
  %v2997 = vadd.f32 %v265, %v2996
  %v2998 = vpop.f32.mrb[0].mxu0
  %v2999 = vpop.f32.mrb[0].mxu0
  %v3000 = vpop.f32.mrb[0].mxu0
  %3001 = vdwg.mxu0
  %v3002 = vmul.f32 %v2997, 0.041666668
  %v3003 = vadd.f32 %v2910, %v3002
  %v3004 = vmul.f32 %v2997, 0.125
  %v3005 = vadd.f32 %v2726, %v3004
  %v3006 = vpack.c.bf16 %v3005, %v3005
  %v3008 = vsel %vm1223, %v3006, 0
  %3010 = vmatprep.subr.bf16.mxu0 0
  %3011 = vmatpush1.bf16.msra.mxu0 %v1215
  %3012 = vmatprep.subr.bf16.mxu0 0
  %3013 = vmatpush1.bf16.msra.mxu0 %v1216
  %3014 = vmatprep.subr.bf16.mxu0 0
  %3015 = vmatpush1.bf16.msra.mxu0 %v1217
  %3016 = vmatprep.subr.bf16.mxu0 0
  %3017 = vmatpush1.bf16.msra.mxu0 %v1218
  %3018 = vmatprep.subr.bf16.mxu0 0
  %3019 = vmatpush1.bf16.msra.mxu0 0
  %3020 = vmatprep.subr.bf16.mxu0 0
  %3021 = vmatpush1.bf16.msra.mxu0 0
  %3022 = vmatprep.subr.bf16.mxu0 0
  %3023 = vmatpush1.bf16.msra.mxu0 0
  %3024 = vmatprep.subr.bf16.mxu0 0
  %3025 = vmatpush1.bf16.msra.mxu0 0
  %3026 = vmatprep.subr.bf16.mxu0 0
  %3027 = vmatpush1.bf16.msra.mxu0 0
  %3028 = vmatprep.subr.bf16.mxu0 0
  %3029 = vmatpush1.bf16.msra.mxu0 0
  %3030 = vmatprep.subr.bf16.mxu0 0
  %3031 = vmatpush1.bf16.msra.mxu0 0
  %3032 = vmatprep.subr.bf16.mxu0 0
  %3033 = vmatpush1.bf16.msra.mxu0 0
  %3034 = vmatprep.subr.bf16.mxu0 0
  %3035 = vmatpush1.bf16.msra.mxu0 0
  %3036 = vmatprep.subr.bf16.mxu0 0
  %3037 = vmatpush1.bf16.msra.mxu0 0
  %3038 = vmatprep.subr.bf16.mxu0 0
  %3039 = vmatpush1.bf16.msra.mxu0 0
  %3040 = vmatprep.subr.bf16.mxu0 0
  %3041 = vmatpush1.bf16.msra.mxu0 0
  %3042 = vmatprep.mubr.bf16.mxu0 0
  %3043 = vmatmul.mubr.bf16.gmra.mrb[0].mxu0 %v3008
  %v3044 = vpop.f32.mrb[0].mxu0
  %v3045 = vadd.f32 %v258, %v3044
  %v3046 = vpop.f32.mrb[0].mxu0
  %v3047 = vpop.f32.mrb[0].mxu0
  %v3048 = vpop.f32.mrb[0].mxu0
  %3049 = vdwg.mxu0
  %v3050 = vmax.f32 %v3045, 0.0
  %v3051 = vpack.c.bf16 %v3050, %v3050
  %v3053 = vsel %vm1223, %v3051, 0
  %3055 = vmatprep.subr.bf16.mxu0 0
  %3056 = vmatpush1.bf16.msra.mxu0 %v1285
  %3057 = vmatprep.subr.bf16.mxu0 0
  %3058 = vmatpush1.bf16.msra.mxu0 %v1286
  %3059 = vmatprep.subr.bf16.mxu0 0
  %3060 = vmatpush1.bf16.msra.mxu0 %v1287
  %3061 = vmatprep.subr.bf16.mxu0 0
  %3062 = vmatpush1.bf16.msra.mxu0 %v1288
  %3063 = vmatprep.subr.bf16.mxu0 0
  %3064 = vmatpush1.bf16.msra.mxu0 0
  %3065 = vmatprep.subr.bf16.mxu0 0
  %3066 = vmatpush1.bf16.msra.mxu0 0
  %3067 = vmatprep.subr.bf16.mxu0 0
  %3068 = vmatpush1.bf16.msra.mxu0 0
  %3069 = vmatprep.subr.bf16.mxu0 0
  %3070 = vmatpush1.bf16.msra.mxu0 0
  %3071 = vmatprep.subr.bf16.mxu0 0
  %3072 = vmatpush1.bf16.msra.mxu0 0
  %3073 = vmatprep.subr.bf16.mxu0 0
  %3074 = vmatpush1.bf16.msra.mxu0 0
  %3075 = vmatprep.subr.bf16.mxu0 0
  %3076 = vmatpush1.bf16.msra.mxu0 0
  %3077 = vmatprep.subr.bf16.mxu0 0
  %3078 = vmatpush1.bf16.msra.mxu0 0
  %3079 = vmatprep.subr.bf16.mxu0 0
  %3080 = vmatpush1.bf16.msra.mxu0 0
  %3081 = vmatprep.subr.bf16.mxu0 0
  %3082 = vmatpush1.bf16.msra.mxu0 0
  %3083 = vmatprep.subr.bf16.mxu0 0
  %3084 = vmatpush1.bf16.msra.mxu0 0
  %3085 = vmatprep.subr.bf16.mxu0 0
  %3086 = vmatpush1.bf16.msra.mxu0 0
  %3087 = vmatprep.mubr.bf16.mxu0 0
  %3088 = vmatmul.mubr.bf16.gmra.mrb[0].mxu0 %v3053
  %v3089 = vpop.f32.mrb[0].mxu0
  %v3090 = vadd.f32 %v265, %v3089
  %v3091 = vpop.f32.mrb[0].mxu0
  %v3092 = vpop.f32.mrb[0].mxu0
  %v3093 = vpop.f32.mrb[0].mxu0
  %3094 = vdwg.mxu0
  %v3095 = vmul.f32 %v3090, 0.020833334
  %v3096 = vadd.f32 %v3003, %v3095
  %v3097 = vpack.c.bf16 %v3096, %v3096
  %v3099 = vsel %vm1223, %v3097, 0
  %3101 = vmatprep.subr.bf16.mxu0 0
  %3102 = vmatpush1.bf16.msra.mxu0 %v1215
  %3103 = vmatprep.subr.bf16.mxu0 0
  %3104 = vmatpush1.bf16.msra.mxu0 %v1216
  %3105 = vmatprep.subr.bf16.mxu0 0
  %3106 = vmatpush1.bf16.msra.mxu0 %v1217
  %3107 = vmatprep.subr.bf16.mxu0 0
  %3108 = vmatpush1.bf16.msra.mxu0 %v1218
  %3109 = vmatprep.subr.bf16.mxu0 0
  %3110 = vmatpush1.bf16.msra.mxu0 0
  %3111 = vmatprep.subr.bf16.mxu0 0
  %3112 = vmatpush1.bf16.msra.mxu0 0
  %3113 = vmatprep.subr.bf16.mxu0 0
  %3114 = vmatpush1.bf16.msra.mxu0 0
  %3115 = vmatprep.subr.bf16.mxu0 0
  %3116 = vmatpush1.bf16.msra.mxu0 0
  %3117 = vmatprep.subr.bf16.mxu0 0
  %3118 = vmatpush1.bf16.msra.mxu0 0
  %3119 = vmatprep.subr.bf16.mxu0 0
  %3120 = vmatpush1.bf16.msra.mxu0 0
  %3121 = vmatprep.subr.bf16.mxu0 0
  %3122 = vmatpush1.bf16.msra.mxu0 0
  %3123 = vmatprep.subr.bf16.mxu0 0
  %3124 = vmatpush1.bf16.msra.mxu0 0
  %3125 = vmatprep.subr.bf16.mxu0 0
  %3126 = vmatpush1.bf16.msra.mxu0 0
  %3127 = vmatprep.subr.bf16.mxu0 0
  %3128 = vmatpush1.bf16.msra.mxu0 0
  %3129 = vmatprep.subr.bf16.mxu0 0
  %3130 = vmatpush1.bf16.msra.mxu0 0
  %3131 = vmatprep.subr.bf16.mxu0 0
  %3132 = vmatpush1.bf16.msra.mxu0 0
  %3133 = vmatprep.mubr.bf16.mxu0 0
  %3134 = vmatmul.mubr.bf16.gmra.mrb[0].mxu0 %v3099
  %v3135 = vpop.f32.mrb[0].mxu0
  %v3136 = vadd.f32 %v258, %v3135
  %v3137 = vpop.f32.mrb[0].mxu0
  %v3138 = vpop.f32.mrb[0].mxu0
  %v3139 = vpop.f32.mrb[0].mxu0
  %3140 = vdwg.mxu0
  %v3141 = vmax.f32 %v3136, 0.0
  %v3142 = vpack.c.bf16 %v3141, %v3141
  %v3144 = vsel %vm1223, %v3142, 0
  %3146 = vmatprep.subr.bf16.mxu0 0
  %3147 = vmatpush1.bf16.msra.mxu0 %v1285
  %3148 = vmatprep.subr.bf16.mxu0 0
  %3149 = vmatpush1.bf16.msra.mxu0 %v1286
  %3150 = vmatprep.subr.bf16.mxu0 0
  %3151 = vmatpush1.bf16.msra.mxu0 %v1287
  %3152 = vmatprep.subr.bf16.mxu0 0
  %3153 = vmatpush1.bf16.msra.mxu0 %v1288
  %3154 = vmatprep.subr.bf16.mxu0 0
  %3155 = vmatpush1.bf16.msra.mxu0 0
  %3156 = vmatprep.subr.bf16.mxu0 0
  %3157 = vmatpush1.bf16.msra.mxu0 0
  %3158 = vmatprep.subr.bf16.mxu0 0
  %3159 = vmatpush1.bf16.msra.mxu0 0
  %3160 = vmatprep.subr.bf16.mxu0 0
  %3161 = vmatpush1.bf16.msra.mxu0 0
  %3162 = vmatprep.subr.bf16.mxu0 0
  %3163 = vmatpush1.bf16.msra.mxu0 0
  %3164 = vmatprep.subr.bf16.mxu0 0
  %3165 = vmatpush1.bf16.msra.mxu0 0
  %3166 = vmatprep.subr.bf16.mxu0 0
  %3167 = vmatpush1.bf16.msra.mxu0 0
  %3168 = vmatprep.subr.bf16.mxu0 0
  %3169 = vmatpush1.bf16.msra.mxu0 0
  %3170 = vmatprep.subr.bf16.mxu0 0
  %3171 = vmatpush1.bf16.msra.mxu0 0
  %3172 = vmatprep.subr.bf16.mxu0 0
  %3173 = vmatpush1.bf16.msra.mxu0 0
  %3174 = vmatprep.subr.bf16.mxu0 0
  %3175 = vmatpush1.bf16.msra.mxu0 0
  %3176 = vmatprep.subr.bf16.mxu0 0
  %3177 = vmatpush1.bf16.msra.mxu0 0
  %3178 = vmatprep.mubr.bf16.mxu0 0
  %3179 = vmatmul.mubr.bf16.gmra.mrb[0].mxu0 %v3144
  %v3180 = vpop.f32.mrb[0].mxu0
  %v3181 = vadd.f32 %v265, %v3180
  %v3182 = vpop.f32.mrb[0].mxu0
  %v3183 = vpop.f32.mrb[0].mxu0
  %v3184 = vpop.f32.mrb[0].mxu0
  %3185 = vdwg.mxu0
  %v3186 = vmul.f32 %v3181, 0.020833334
  %v3187 = vadd.f32 %v3096, %v3186
  %v3188 = vmul.f32 %v3181, 0.0625
  %v3189 = vadd.f32 %v3096, %v3188
  %v3190 = vpack.c.bf16 %v3189, %v3189
  %v3192 = vsel %vm1223, %v3190, 0
  %3194 = vmatprep.subr.bf16.mxu0 0
  %3195 = vmatpush1.bf16.msra.mxu0 %v1215
  %3196 = vmatprep.subr.bf16.mxu0 0
  %3197 = vmatpush1.bf16.msra.mxu0 %v1216
  %3198 = vmatprep.subr.bf16.mxu0 0
  %3199 = vmatpush1.bf16.msra.mxu0 %v1217
  %3200 = vmatprep.subr.bf16.mxu0 0
  %3201 = vmatpush1.bf16.msra.mxu0 %v1218
  %3202 = vmatprep.subr.bf16.mxu0 0
  %3203 = vmatpush1.bf16.msra.mxu0 0
  %3204 = vmatprep.subr.bf16.mxu0 0
  %3205 = vmatpush1.bf16.msra.mxu0 0
  %3206 = vmatprep.subr.bf16.mxu0 0
  %3207 = vmatpush1.bf16.msra.mxu0 0
  %3208 = vmatprep.subr.bf16.mxu0 0
  %3209 = vmatpush1.bf16.msra.mxu0 0
  %3210 = vmatprep.subr.bf16.mxu0 0
  %3211 = vmatpush1.bf16.msra.mxu0 0
  %3212 = vmatprep.subr.bf16.mxu0 0
  %3213 = vmatpush1.bf16.msra.mxu0 0
  %3214 = vmatprep.subr.bf16.mxu0 0
  %3215 = vmatpush1.bf16.msra.mxu0 0
  %3216 = vmatprep.subr.bf16.mxu0 0
  %3217 = vmatpush1.bf16.msra.mxu0 0
  %3218 = vmatprep.subr.bf16.mxu0 0
  %3219 = vmatpush1.bf16.msra.mxu0 0
  %3220 = vmatprep.subr.bf16.mxu0 0
  %3221 = vmatpush1.bf16.msra.mxu0 0
  %3222 = vmatprep.subr.bf16.mxu0 0
  %3223 = vmatpush1.bf16.msra.mxu0 0
  %3224 = vmatprep.subr.bf16.mxu0 0
  %3225 = vmatpush1.bf16.msra.mxu0 0
  %3226 = vmatprep.mubr.bf16.mxu0 0
  %3227 = vmatmul.mubr.bf16.gmra.mrb[0].mxu0 %v3192
  %v3228 = vpop.f32.mrb[0].mxu0
  %v3229 = vadd.f32 %v258, %v3228
  %v3230 = vpop.f32.mrb[0].mxu0
  %v3231 = vpop.f32.mrb[0].mxu0
  %v3232 = vpop.f32.mrb[0].mxu0
  %3233 = vdwg.mxu0
  %v3234 = vmax.f32 %v3229, 0.0
  %v3235 = vpack.c.bf16 %v3234, %v3234
  %v3237 = vsel %vm1223, %v3235, 0
  %3239 = vmatprep.subr.bf16.mxu0 0
  %3240 = vmatpush1.bf16.msra.mxu0 %v1285
  %3241 = vmatprep.subr.bf16.mxu0 0
  %3242 = vmatpush1.bf16.msra.mxu0 %v1286
  %3243 = vmatprep.subr.bf16.mxu0 0
  %3244 = vmatpush1.bf16.msra.mxu0 %v1287
  %3245 = vmatprep.subr.bf16.mxu0 0
  %3246 = vmatpush1.bf16.msra.mxu0 %v1288
  %3247 = vmatprep.subr.bf16.mxu0 0
  %3248 = vmatpush1.bf16.msra.mxu0 0
  %3249 = vmatprep.subr.bf16.mxu0 0
  %3250 = vmatpush1.bf16.msra.mxu0 0
  %3251 = vmatprep.subr.bf16.mxu0 0
  %3252 = vmatpush1.bf16.msra.mxu0 0
  %3253 = vmatprep.subr.bf16.mxu0 0
  %3254 = vmatpush1.bf16.msra.mxu0 0
  %3255 = vmatprep.subr.bf16.mxu0 0
  %3256 = vmatpush1.bf16.msra.mxu0 0
  %3257 = vmatprep.subr.bf16.mxu0 0
  %3258 = vmatpush1.bf16.msra.mxu0 0
  %3259 = vmatprep.subr.bf16.mxu0 0
  %3260 = vmatpush1.bf16.msra.mxu0 0
  %3261 = vmatprep.subr.bf16.mxu0 0
  %3262 = vmatpush1.bf16.msra.mxu0 0
  %3263 = vmatprep.subr.bf16.mxu0 0
  %3264 = vmatpush1.bf16.msra.mxu0 0
  %3265 = vmatprep.subr.bf16.mxu0 0
  %3266 = vmatpush1.bf16.msra.mxu0 0
  %3267 = vmatprep.subr.bf16.mxu0 0
  %3268 = vmatpush1.bf16.msra.mxu0 0
  %3269 = vmatprep.subr.bf16.mxu0 0
  %3270 = vmatpush1.bf16.msra.mxu0 0
  %3271 = vmatprep.mubr.bf16.mxu0 0
  %3272 = vmatmul.mubr.bf16.gmra.mrb[0].mxu0 %v3237
  %v3273 = vpop.f32.mrb[0].mxu0
  %v3274 = vadd.f32 %v265, %v3273
  %v3275 = vpop.f32.mrb[0].mxu0
  %v3276 = vpop.f32.mrb[0].mxu0
  %v3277 = vpop.f32.mrb[0].mxu0
  %3278 = vdwg.mxu0
  %v3279 = vmul.f32 %v3274, 0.041666668
  %v3280 = vadd.f32 %v3187, %v3279
  %v3281 = vmul.f32 %v3274, 0.0625
  %v3282 = vadd.f32 %v3096, %v3281
  %v3283 = vpack.c.bf16 %v3282, %v3282
  %v3285 = vsel %vm1223, %v3283, 0
  %3287 = vmatprep.subr.bf16.mxu0 0
  %3288 = vmatpush1.bf16.msra.mxu0 %v1215
  %3289 = vmatprep.subr.bf16.mxu0 0
  %3290 = vmatpush1.bf16.msra.mxu0 %v1216
  %3291 = vmatprep.subr.bf16.mxu0 0
  %3292 = vmatpush1.bf16.msra.mxu0 %v1217
  %3293 = vmatprep.subr.bf16.mxu0 0
  %3294 = vmatpush1.bf16.msra.mxu0 %v1218
  %3295 = vmatprep.subr.bf16.mxu0 0
  %3296 = vmatpush1.bf16.msra.mxu0 0
  %3297 = vmatprep.subr.bf16.mxu0 0
  %3298 = vmatpush1.bf16.msra.mxu0 0
  %3299 = vmatprep.subr.bf16.mxu0 0
  %3300 = vmatpush1.bf16.msra.mxu0 0
  %3301 = vmatprep.subr.bf16.mxu0 0
  %3302 = vmatpush1.bf16.msra.mxu0 0
  %3303 = vmatprep.subr.bf16.mxu0 0
  %3304 = vmatpush1.bf16.msra.mxu0 0
  %3305 = vmatprep.subr.bf16.mxu0 0
  %3306 = vmatpush1.bf16.msra.mxu0 0
  %3307 = vmatprep.subr.bf16.mxu0 0
  %3308 = vmatpush1.bf16.msra.mxu0 0
  %3309 = vmatprep.subr.bf16.mxu0 0
  %3310 = vmatpush1.bf16.msra.mxu0 0
  %3311 = vmatprep.subr.bf16.mxu0 0
  %3312 = vmatpush1.bf16.msra.mxu0 0
  %3313 = vmatprep.subr.bf16.mxu0 0
  %3314 = vmatpush1.bf16.msra.mxu0 0
  %3315 = vmatprep.subr.bf16.mxu0 0
  %3316 = vmatpush1.bf16.msra.mxu0 0
  %3317 = vmatprep.subr.bf16.mxu0 0
  %3318 = vmatpush1.bf16.msra.mxu0 0
  %3319 = vmatprep.mubr.bf16.mxu0 0
  %3320 = vmatmul.mubr.bf16.gmra.mrb[0].mxu0 %v3285
  %v3321 = vpop.f32.mrb[0].mxu0
  %v3322 = vadd.f32 %v258, %v3321
  %v3323 = vpop.f32.mrb[0].mxu0
  %v3324 = vpop.f32.mrb[0].mxu0
  %v3325 = vpop.f32.mrb[0].mxu0
  %3326 = vdwg.mxu0
  %v3327 = vmax.f32 %v3322, 0.0
  %v3328 = vpack.c.bf16 %v3327, %v3327
  %v3330 = vsel %vm1223, %v3328, 0
  %3332 = vmatprep.subr.bf16.mxu0 0
  %3333 = vmatpush1.bf16.msra.mxu0 %v1285
  %3334 = vmatprep.subr.bf16.mxu0 0
  %3335 = vmatpush1.bf16.msra.mxu0 %v1286
  %3336 = vmatprep.subr.bf16.mxu0 0
  %3337 = vmatpush1.bf16.msra.mxu0 %v1287
  %3338 = vmatprep.subr.bf16.mxu0 0
  %3339 = vmatpush1.bf16.msra.mxu0 %v1288
  %3340 = vmatprep.subr.bf16.mxu0 0
  %3341 = vmatpush1.bf16.msra.mxu0 0
  %3342 = vmatprep.subr.bf16.mxu0 0
  %3343 = vmatpush1.bf16.msra.mxu0 0
  %3344 = vmatprep.subr.bf16.mxu0 0
  %3345 = vmatpush1.bf16.msra.mxu0 0
  %3346 = vmatprep.subr.bf16.mxu0 0
  %3347 = vmatpush1.bf16.msra.mxu0 0
  %3348 = vmatprep.subr.bf16.mxu0 0
  %3349 = vmatpush1.bf16.msra.mxu0 0
  %3350 = vmatprep.subr.bf16.mxu0 0
  %3351 = vmatpush1.bf16.msra.mxu0 0
  %3352 = vmatprep.subr.bf16.mxu0 0
  %3353 = vmatpush1.bf16.msra.mxu0 0
  %3354 = vmatprep.subr.bf16.mxu0 0
  %3355 = vmatpush1.bf16.msra.mxu0 0
  %3356 = vmatprep.subr.bf16.mxu0 0
  %3357 = vmatpush1.bf16.msra.mxu0 0
  %3358 = vmatprep.subr.bf16.mxu0 0
  %3359 = vmatpush1.bf16.msra.mxu0 0
  %3360 = vmatprep.subr.bf16.mxu0 0
  %3361 = vmatpush1.bf16.msra.mxu0 0
  %3362 = vmatprep.subr.bf16.mxu0 0
  %3363 = vmatpush1.bf16.msra.mxu0 0
  %3364 = vmatprep.mubr.bf16.mxu0 0
  %3365 = vmatmul.mubr.bf16.gmra.mrb[0].mxu0 %v3330
  %v3366 = vpop.f32.mrb[0].mxu0
  %v3367 = vadd.f32 %v265, %v3366
  %v3368 = vpop.f32.mrb[0].mxu0
  %v3369 = vpop.f32.mrb[0].mxu0
  %v3370 = vpop.f32.mrb[0].mxu0
  %3371 = vdwg.mxu0
  %v3372 = vmul.f32 %v3367, 0.041666668
  %v3373 = vadd.f32 %v3280, %v3372
  %v3374 = vmul.f32 %v3367, 0.125
  %v3375 = vadd.f32 %v3096, %v3374
  %v3376 = vpack.c.bf16 %v3375, %v3375
  %v3378 = vsel %vm1223, %v3376, 0
  %3380 = vmatprep.subr.bf16.mxu0 0
  %3381 = vmatpush1.bf16.msra.mxu0 %v1215
  %3382 = vmatprep.subr.bf16.mxu0 0
  %3383 = vmatpush1.bf16.msra.mxu0 %v1216
  %3384 = vmatprep.subr.bf16.mxu0 0
  %3385 = vmatpush1.bf16.msra.mxu0 %v1217
  %3386 = vmatprep.subr.bf16.mxu0 0
  %3387 = vmatpush1.bf16.msra.mxu0 %v1218
  %3388 = vmatprep.subr.bf16.mxu0 0
  %3389 = vmatpush1.bf16.msra.mxu0 0
  %3390 = vmatprep.subr.bf16.mxu0 0
  %3391 = vmatpush1.bf16.msra.mxu0 0
  %3392 = vmatprep.subr.bf16.mxu0 0
  %3393 = vmatpush1.bf16.msra.mxu0 0
  %3394 = vmatprep.subr.bf16.mxu0 0
  %3395 = vmatpush1.bf16.msra.mxu0 0
  %3396 = vmatprep.subr.bf16.mxu0 0
  %3397 = vmatpush1.bf16.msra.mxu0 0
  %3398 = vmatprep.subr.bf16.mxu0 0
  %3399 = vmatpush1.bf16.msra.mxu0 0
  %3400 = vmatprep.subr.bf16.mxu0 0
  %3401 = vmatpush1.bf16.msra.mxu0 0
  %3402 = vmatprep.subr.bf16.mxu0 0
  %3403 = vmatpush1.bf16.msra.mxu0 0
  %3404 = vmatprep.subr.bf16.mxu0 0
  %3405 = vmatpush1.bf16.msra.mxu0 0
  %3406 = vmatprep.subr.bf16.mxu0 0
  %3407 = vmatpush1.bf16.msra.mxu0 0
  %3408 = vmatprep.subr.bf16.mxu0 0
  %3409 = vmatpush1.bf16.msra.mxu0 0
  %3410 = vmatprep.subr.bf16.mxu0 0
  %3411 = vmatpush1.bf16.msra.mxu0 0
  %3412 = vmatprep.mubr.bf16.mxu0 0
  %3413 = vmatmul.mubr.bf16.gmra.mrb[0].mxu0 %v3378
  %v3414 = vpop.f32.mrb[0].mxu0
  %v3415 = vadd.f32 %v258, %v3414
  %v3416 = vpop.f32.mrb[0].mxu0
  %v3417 = vpop.f32.mrb[0].mxu0
  %v3418 = vpop.f32.mrb[0].mxu0
  %3419 = vdwg.mxu0
  %v3420 = vmax.f32 %v3415, 0.0
  %v3421 = vpack.c.bf16 %v3420, %v3420
  %v3423 = vsel %vm1223, %v3421, 0
  %3425 = vmatprep.subr.bf16.mxu0 0
  %3426 = vmatpush1.bf16.msra.mxu0 %v1285
  %3427 = vmatprep.subr.bf16.mxu0 0
  %3428 = vmatpush1.bf16.msra.mxu0 %v1286
  %3429 = vmatprep.subr.bf16.mxu0 0
  %3430 = vmatpush1.bf16.msra.mxu0 %v1287
  %3431 = vmatprep.subr.bf16.mxu0 0
  %3432 = vmatpush1.bf16.msra.mxu0 %v1288
  %3433 = vmatprep.subr.bf16.mxu0 0
  %3434 = vmatpush1.bf16.msra.mxu0 0
  %3435 = vmatprep.subr.bf16.mxu0 0
  %3436 = vmatpush1.bf16.msra.mxu0 0
  %3437 = vmatprep.subr.bf16.mxu0 0
  %3438 = vmatpush1.bf16.msra.mxu0 0
  %3439 = vmatprep.subr.bf16.mxu0 0
  %3440 = vmatpush1.bf16.msra.mxu0 0
  %3441 = vmatprep.subr.bf16.mxu0 0
  %3442 = vmatpush1.bf16.msra.mxu0 0
  %3443 = vmatprep.subr.bf16.mxu0 0
  %3444 = vmatpush1.bf16.msra.mxu0 0
  %3445 = vmatprep.subr.bf16.mxu0 0
  %3446 = vmatpush1.bf16.msra.mxu0 0
  %3447 = vmatprep.subr.bf16.mxu0 0
  %3448 = vmatpush1.bf16.msra.mxu0 0
  %3449 = vmatprep.subr.bf16.mxu0 0
  %3450 = vmatpush1.bf16.msra.mxu0 0
  %3451 = vmatprep.subr.bf16.mxu0 0
  %3452 = vmatpush1.bf16.msra.mxu0 0
  %3453 = vmatprep.subr.bf16.mxu0 0
  %3454 = vmatpush1.bf16.msra.mxu0 0
  %3455 = vmatprep.subr.bf16.mxu0 0
  %3456 = vmatpush1.bf16.msra.mxu0 0
  %3457 = vmatprep.mubr.bf16.mxu0 0
  %3458 = vmatmul.mubr.bf16.gmra.mrb[0].mxu0 %v3423
  %v3459 = vpop.f32.mrb[0].mxu0
  %v3460 = vadd.f32 %v265, %v3459
  %v3461 = vpop.f32.mrb[0].mxu0
  %v3462 = vpop.f32.mrb[0].mxu0
  %v3463 = vpop.f32.mrb[0].mxu0
  %3464 = vdwg.mxu0
  %v3465 = vmul.f32 %v3460, 0.020833334
  %v3466 = vadd.f32 %v3373, %v3465
  %v3467 = vpack.c.bf16 %v3466, %v3466
  %v3469 = vsel %vm1223, %v3467, 0
  %3471 = vmatprep.subr.bf16.mxu0 0
  %3472 = vmatpush1.bf16.msra.mxu0 %v1215
  %3473 = vmatprep.subr.bf16.mxu0 0
  %3474 = vmatpush1.bf16.msra.mxu0 %v1216
  %3475 = vmatprep.subr.bf16.mxu0 0
  %3476 = vmatpush1.bf16.msra.mxu0 %v1217
  %3477 = vmatprep.subr.bf16.mxu0 0
  %3478 = vmatpush1.bf16.msra.mxu0 %v1218
  %3479 = vmatprep.subr.bf16.mxu0 0
  %3480 = vmatpush1.bf16.msra.mxu0 0
  %3481 = vmatprep.subr.bf16.mxu0 0
  %3482 = vmatpush1.bf16.msra.mxu0 0
  %3483 = vmatprep.subr.bf16.mxu0 0
  %3484 = vmatpush1.bf16.msra.mxu0 0
  %3485 = vmatprep.subr.bf16.mxu0 0
  %3486 = vmatpush1.bf16.msra.mxu0 0
  %3487 = vmatprep.subr.bf16.mxu0 0
  %3488 = vmatpush1.bf16.msra.mxu0 0
  %3489 = vmatprep.subr.bf16.mxu0 0
  %3490 = vmatpush1.bf16.msra.mxu0 0
  %3491 = vmatprep.subr.bf16.mxu0 0
  %3492 = vmatpush1.bf16.msra.mxu0 0
  %3493 = vmatprep.subr.bf16.mxu0 0
  %3494 = vmatpush1.bf16.msra.mxu0 0
  %3495 = vmatprep.subr.bf16.mxu0 0
  %3496 = vmatpush1.bf16.msra.mxu0 0
  %3497 = vmatprep.subr.bf16.mxu0 0
  %3498 = vmatpush1.bf16.msra.mxu0 0
  %3499 = vmatprep.subr.bf16.mxu0 0
  %3500 = vmatpush1.bf16.msra.mxu0 0
  %3501 = vmatprep.subr.bf16.mxu0 0
  %3502 = vmatpush1.bf16.msra.mxu0 0
  %3503 = vmatprep.mubr.bf16.mxu0 0
  %3504 = vmatmul.mubr.bf16.gmra.mrb[0].mxu0 %v3469
  %v3505 = vpop.f32.mrb[0].mxu0
  %v3506 = vadd.f32 %v258, %v3505
  %v3507 = vpop.f32.mrb[0].mxu0
  %v3508 = vpop.f32.mrb[0].mxu0
  %v3509 = vpop.f32.mrb[0].mxu0
  %3510 = vdwg.mxu0
  %v3511 = vmax.f32 %v3506, 0.0
  %v3512 = vpack.c.bf16 %v3511, %v3511
  %v3514 = vsel %vm1223, %v3512, 0
  %3516 = vmatprep.subr.bf16.mxu0 0
  %3517 = vmatpush1.bf16.msra.mxu0 %v1285
  %3518 = vmatprep.subr.bf16.mxu0 0
  %3519 = vmatpush1.bf16.msra.mxu0 %v1286
  %3520 = vmatprep.subr.bf16.mxu0 0
  %3521 = vmatpush1.bf16.msra.mxu0 %v1287
  %3522 = vmatprep.subr.bf16.mxu0 0
  %3523 = vmatpush1.bf16.msra.mxu0 %v1288
  %3524 = vmatprep.subr.bf16.mxu0 0
  %3525 = vmatpush1.bf16.msra.mxu0 0
  %3526 = vmatprep.subr.bf16.mxu0 0
  %3527 = vmatpush1.bf16.msra.mxu0 0
  %3528 = vmatprep.subr.bf16.mxu0 0
  %3529 = vmatpush1.bf16.msra.mxu0 0
  %3530 = vmatprep.subr.bf16.mxu0 0
  %3531 = vmatpush1.bf16.msra.mxu0 0
  %3532 = vmatprep.subr.bf16.mxu0 0
  %3533 = vmatpush1.bf16.msra.mxu0 0
  %3534 = vmatprep.subr.bf16.mxu0 0
  %3535 = vmatpush1.bf16.msra.mxu0 0
  %3536 = vmatprep.subr.bf16.mxu0 0
  %3537 = vmatpush1.bf16.msra.mxu0 0
  %3538 = vmatprep.subr.bf16.mxu0 0
  %3539 = vmatpush1.bf16.msra.mxu0 0
  %3540 = vmatprep.subr.bf16.mxu0 0
  %3541 = vmatpush1.bf16.msra.mxu0 0
  %3542 = vmatprep.subr.bf16.mxu0 0
  %3543 = vmatpush1.bf16.msra.mxu0 0
  %3544 = vmatprep.subr.bf16.mxu0 0
  %3545 = vmatpush1.bf16.msra.mxu0 0
  %3546 = vmatprep.subr.bf16.mxu0 0
  %3547 = vmatpush1.bf16.msra.mxu0 0
  %3548 = vmatprep.mubr.bf16.mxu0 0
  %3549 = vmatmul.mubr.bf16.gmra.mrb[0].mxu0 %v3514
  %v3550 = vpop.f32.mrb[0].mxu0
  %v3551 = vadd.f32 %v265, %v3550
  %v3552 = vpop.f32.mrb[0].mxu0
  %v3553 = vpop.f32.mrb[0].mxu0
  %v3554 = vpop.f32.mrb[0].mxu0
  %3555 = vdwg.mxu0
  %v3556 = vmul.f32 %v3551, 0.020833334
  %v3557 = vadd.f32 %v3466, %v3556
  %v3558 = vmul.f32 %v3551, 0.0625
  %v3559 = vadd.f32 %v3466, %v3558
  %v3560 = vpack.c.bf16 %v3559, %v3559
  %v3562 = vsel %vm1223, %v3560, 0
  %3564 = vmatprep.subr.bf16.mxu0 0
  %3565 = vmatpush1.bf16.msra.mxu0 %v1215
  %3566 = vmatprep.subr.bf16.mxu0 0
  %3567 = vmatpush1.bf16.msra.mxu0 %v1216
  %3568 = vmatprep.subr.bf16.mxu0 0
  %3569 = vmatpush1.bf16.msra.mxu0 %v1217
  %3570 = vmatprep.subr.bf16.mxu0 0
  %3571 = vmatpush1.bf16.msra.mxu0 %v1218
  %3572 = vmatprep.subr.bf16.mxu0 0
  %3573 = vmatpush1.bf16.msra.mxu0 0
  %3574 = vmatprep.subr.bf16.mxu0 0
  %3575 = vmatpush1.bf16.msra.mxu0 0
  %3576 = vmatprep.subr.bf16.mxu0 0
  %3577 = vmatpush1.bf16.msra.mxu0 0
  %3578 = vmatprep.subr.bf16.mxu0 0
  %3579 = vmatpush1.bf16.msra.mxu0 0
  %3580 = vmatprep.subr.bf16.mxu0 0
  %3581 = vmatpush1.bf16.msra.mxu0 0
  %3582 = vmatprep.subr.bf16.mxu0 0
  %3583 = vmatpush1.bf16.msra.mxu0 0
  %3584 = vmatprep.subr.bf16.mxu0 0
  %3585 = vmatpush1.bf16.msra.mxu0 0
  %3586 = vmatprep.subr.bf16.mxu0 0
  %3587 = vmatpush1.bf16.msra.mxu0 0
  %3588 = vmatprep.subr.bf16.mxu0 0
  %3589 = vmatpush1.bf16.msra.mxu0 0
  %3590 = vmatprep.subr.bf16.mxu0 0
  %3591 = vmatpush1.bf16.msra.mxu0 0
  %3592 = vmatprep.subr.bf16.mxu0 0
  %3593 = vmatpush1.bf16.msra.mxu0 0
  %3594 = vmatprep.subr.bf16.mxu0 0
  %3595 = vmatpush1.bf16.msra.mxu0 0
  %3596 = vmatprep.mubr.bf16.mxu0 0
  %3597 = vmatmul.mubr.bf16.gmra.mrb[0].mxu0 %v3562
  %v3598 = vpop.f32.mrb[0].mxu0
  %v3599 = vadd.f32 %v258, %v3598
  %v3600 = vpop.f32.mrb[0].mxu0
  %v3601 = vpop.f32.mrb[0].mxu0
  %v3602 = vpop.f32.mrb[0].mxu0
  %3603 = vdwg.mxu0
  %v3604 = vmax.f32 %v3599, 0.0
  %v3605 = vpack.c.bf16 %v3604, %v3604
  %v3607 = vsel %vm1223, %v3605, 0
  %3609 = vmatprep.subr.bf16.mxu0 0
  %3610 = vmatpush1.bf16.msra.mxu0 %v1285
  %3611 = vmatprep.subr.bf16.mxu0 0
  %3612 = vmatpush1.bf16.msra.mxu0 %v1286
  %3613 = vmatprep.subr.bf16.mxu0 0
  %3614 = vmatpush1.bf16.msra.mxu0 %v1287
  %3615 = vmatprep.subr.bf16.mxu0 0
  %3616 = vmatpush1.bf16.msra.mxu0 %v1288
  %3617 = vmatprep.subr.bf16.mxu0 0
  %3618 = vmatpush1.bf16.msra.mxu0 0
  %3619 = vmatprep.subr.bf16.mxu0 0
  %3620 = vmatpush1.bf16.msra.mxu0 0
  %3621 = vmatprep.subr.bf16.mxu0 0
  %3622 = vmatpush1.bf16.msra.mxu0 0
  %3623 = vmatprep.subr.bf16.mxu0 0
  %3624 = vmatpush1.bf16.msra.mxu0 0
  %3625 = vmatprep.subr.bf16.mxu0 0
  %3626 = vmatpush1.bf16.msra.mxu0 0
  %3627 = vmatprep.subr.bf16.mxu0 0
  %3628 = vmatpush1.bf16.msra.mxu0 0
  %3629 = vmatprep.subr.bf16.mxu0 0
  %3630 = vmatpush1.bf16.msra.mxu0 0
  %3631 = vmatprep.subr.bf16.mxu0 0
  %3632 = vmatpush1.bf16.msra.mxu0 0
  %3633 = vmatprep.subr.bf16.mxu0 0
  %3634 = vmatpush1.bf16.msra.mxu0 0
  %3635 = vmatprep.subr.bf16.mxu0 0
  %3636 = vmatpush1.bf16.msra.mxu0 0
  %3637 = vmatprep.subr.bf16.mxu0 0
  %3638 = vmatpush1.bf16.msra.mxu0 0
  %3639 = vmatprep.subr.bf16.mxu0 0
  %3640 = vmatpush1.bf16.msra.mxu0 0
  %3641 = vmatprep.mubr.bf16.mxu0 0
  %3642 = vmatmul.mubr.bf16.gmra.mrb[0].mxu0 %v3607
  %v3643 = vpop.f32.mrb[0].mxu0
  %v3644 = vadd.f32 %v265, %v3643
  %v3645 = vpop.f32.mrb[0].mxu0
  %v3646 = vpop.f32.mrb[0].mxu0
  %v3647 = vpop.f32.mrb[0].mxu0
  %3648 = vdwg.mxu0
  %v3649 = vmul.f32 %v3644, 0.041666668
  %v3650 = vadd.f32 %v3557, %v3649
  %v3651 = vmul.f32 %v3644, 0.0625
  %v3652 = vadd.f32 %v3466, %v3651
  %v3653 = vpack.c.bf16 %v3652, %v3652
  %v3655 = vsel %vm1223, %v3653, 0
  %3657 = vmatprep.subr.bf16.mxu0 0
  %3658 = vmatpush1.bf16.msra.mxu0 %v1215
  %3659 = vmatprep.subr.bf16.mxu0 0
  %3660 = vmatpush1.bf16.msra.mxu0 %v1216
  %3661 = vmatprep.subr.bf16.mxu0 0
  %3662 = vmatpush1.bf16.msra.mxu0 %v1217
  %3663 = vmatprep.subr.bf16.mxu0 0
  %3664 = vmatpush1.bf16.msra.mxu0 %v1218
  %3665 = vmatprep.subr.bf16.mxu0 0
  %3666 = vmatpush1.bf16.msra.mxu0 0
  %3667 = vmatprep.subr.bf16.mxu0 0
  %3668 = vmatpush1.bf16.msra.mxu0 0
  %3669 = vmatprep.subr.bf16.mxu0 0
  %3670 = vmatpush1.bf16.msra.mxu0 0
  %3671 = vmatprep.subr.bf16.mxu0 0
  %3672 = vmatpush1.bf16.msra.mxu0 0
  %3673 = vmatprep.subr.bf16.mxu0 0
  %3674 = vmatpush1.bf16.msra.mxu0 0
  %3675 = vmatprep.subr.bf16.mxu0 0
  %3676 = vmatpush1.bf16.msra.mxu0 0
  %3677 = vmatprep.subr.bf16.mxu0 0
  %3678 = vmatpush1.bf16.msra.mxu0 0
  %3679 = vmatprep.subr.bf16.mxu0 0
  %3680 = vmatpush1.bf16.msra.mxu0 0
  %3681 = vmatprep.subr.bf16.mxu0 0
  %3682 = vmatpush1.bf16.msra.mxu0 0
  %3683 = vmatprep.subr.bf16.mxu0 0
  %3684 = vmatpush1.bf16.msra.mxu0 0
  %3685 = vmatprep.subr.bf16.mxu0 0
  %3686 = vmatpush1.bf16.msra.mxu0 0
  %3687 = vmatprep.subr.bf16.mxu0 0
  %3688 = vmatpush1.bf16.msra.mxu0 0
  %3689 = vmatprep.mubr.bf16.mxu0 0
  %3690 = vmatmul.mubr.bf16.gmra.mrb[0].mxu0 %v3655
  %v3691 = vpop.f32.mrb[0].mxu0
  %v3692 = vadd.f32 %v258, %v3691
  %v3693 = vpop.f32.mrb[0].mxu0
  %v3694 = vpop.f32.mrb[0].mxu0
  %v3695 = vpop.f32.mrb[0].mxu0
  %3696 = vdwg.mxu0
  %v3697 = vmax.f32 %v3692, 0.0
  %v3698 = vpack.c.bf16 %v3697, %v3697
  %v3700 = vsel %vm1223, %v3698, 0
  %3702 = vmatprep.subr.bf16.mxu0 0
  %3703 = vmatpush1.bf16.msra.mxu0 %v1285
  %3704 = vmatprep.subr.bf16.mxu0 0
  %3705 = vmatpush1.bf16.msra.mxu0 %v1286
  %3706 = vmatprep.subr.bf16.mxu0 0
  %3707 = vmatpush1.bf16.msra.mxu0 %v1287
  %3708 = vmatprep.subr.bf16.mxu0 0
  %3709 = vmatpush1.bf16.msra.mxu0 %v1288
  %3710 = vmatprep.subr.bf16.mxu0 0
  %3711 = vmatpush1.bf16.msra.mxu0 0
  %3712 = vmatprep.subr.bf16.mxu0 0
  %3713 = vmatpush1.bf16.msra.mxu0 0
  %3714 = vmatprep.subr.bf16.mxu0 0
  %3715 = vmatpush1.bf16.msra.mxu0 0
  %3716 = vmatprep.subr.bf16.mxu0 0
  %3717 = vmatpush1.bf16.msra.mxu0 0
  %3718 = vmatprep.subr.bf16.mxu0 0
  %3719 = vmatpush1.bf16.msra.mxu0 0
  %3720 = vmatprep.subr.bf16.mxu0 0
  %3721 = vmatpush1.bf16.msra.mxu0 0
  %3722 = vmatprep.subr.bf16.mxu0 0
  %3723 = vmatpush1.bf16.msra.mxu0 0
  %3724 = vmatprep.subr.bf16.mxu0 0
  %3725 = vmatpush1.bf16.msra.mxu0 0
  %3726 = vmatprep.subr.bf16.mxu0 0
  %3727 = vmatpush1.bf16.msra.mxu0 0
  %3728 = vmatprep.subr.bf16.mxu0 0
  %3729 = vmatpush1.bf16.msra.mxu0 0
  %3730 = vmatprep.subr.bf16.mxu0 0
  %3731 = vmatpush1.bf16.msra.mxu0 0
  %3732 = vmatprep.subr.bf16.mxu0 0
  %3733 = vmatpush1.bf16.msra.mxu0 0
  %3734 = vmatprep.mubr.bf16.mxu0 0
  %3735 = vmatmul.mubr.bf16.gmra.mrb[0].mxu0 %v3700
  %v3736 = vpop.f32.mrb[0].mxu0
  %v3737 = vadd.f32 %v265, %v3736
  %v3738 = vpop.f32.mrb[0].mxu0
  %v3739 = vpop.f32.mrb[0].mxu0
  %v3740 = vpop.f32.mrb[0].mxu0
  %3741 = vdwg.mxu0
  %v3742 = vmul.f32 %v3737, 0.041666668
  %v3743 = vadd.f32 %v3650, %v3742
  %v3744 = vmul.f32 %v3737, 0.125
  %v3745 = vadd.f32 %v3466, %v3744
  %v3746 = vpack.c.bf16 %v3745, %v3745
  %v3748 = vsel %vm1223, %v3746, 0
  %3750 = vmatprep.subr.bf16.mxu0 0
  %3751 = vmatpush1.bf16.msra.mxu0 %v1215
  %3752 = vmatprep.subr.bf16.mxu0 0
  %3753 = vmatpush1.bf16.msra.mxu0 %v1216
  %3754 = vmatprep.subr.bf16.mxu0 0
  %3755 = vmatpush1.bf16.msra.mxu0 %v1217
  %3756 = vmatprep.subr.bf16.mxu0 0
  %3757 = vmatpush1.bf16.msra.mxu0 %v1218
  %3758 = vmatprep.subr.bf16.mxu0 0
  %3759 = vmatpush1.bf16.msra.mxu0 0
  %3760 = vmatprep.subr.bf16.mxu0 0
  %3761 = vmatpush1.bf16.msra.mxu0 0
  %3762 = vmatprep.subr.bf16.mxu0 0
  %3763 = vmatpush1.bf16.msra.mxu0 0
  %3764 = vmatprep.subr.bf16.mxu0 0
  %3765 = vmatpush1.bf16.msra.mxu0 0
  %3766 = vmatprep.subr.bf16.mxu0 0
  %3767 = vmatpush1.bf16.msra.mxu0 0
  %3768 = vmatprep.subr.bf16.mxu0 0
  %3769 = vmatpush1.bf16.msra.mxu0 0
  %3770 = vmatprep.subr.bf16.mxu0 0
  %3771 = vmatpush1.bf16.msra.mxu0 0
  %3772 = vmatprep.subr.bf16.mxu0 0
  %3773 = vmatpush1.bf16.msra.mxu0 0
  %3774 = vmatprep.subr.bf16.mxu0 0
  %3775 = vmatpush1.bf16.msra.mxu0 0
  %3776 = vmatprep.subr.bf16.mxu0 0
  %3777 = vmatpush1.bf16.msra.mxu0 0
  %3778 = vmatprep.subr.bf16.mxu0 0
  %3779 = vmatpush1.bf16.msra.mxu0 0
  %3780 = vmatprep.subr.bf16.mxu0 0
  %3781 = vmatpush1.bf16.msra.mxu0 0
  %3782 = vmatprep.mubr.bf16.mxu0 0
  %3783 = vmatmul.mubr.bf16.gmra.mrb[0].mxu0 %v3748
  %v3784 = vpop.f32.mrb[0].mxu0
  %v3785 = vadd.f32 %v258, %v3784
  %v3786 = vpop.f32.mrb[0].mxu0
  %v3787 = vpop.f32.mrb[0].mxu0
  %v3788 = vpop.f32.mrb[0].mxu0
  %3789 = vdwg.mxu0
  %v3790 = vmax.f32 %v3785, 0.0
  %v3791 = vpack.c.bf16 %v3790, %v3790
  %v3793 = vsel %vm1223, %v3791, 0
  %3795 = vmatprep.subr.bf16.mxu0 0
  %3796 = vmatpush1.bf16.msra.mxu0 %v1285
  %3797 = vmatprep.subr.bf16.mxu0 0
  %3798 = vmatpush1.bf16.msra.mxu0 %v1286
  %3799 = vmatprep.subr.bf16.mxu0 0
  %3800 = vmatpush1.bf16.msra.mxu0 %v1287
  %3801 = vmatprep.subr.bf16.mxu0 0
  %3802 = vmatpush1.bf16.msra.mxu0 %v1288
  %3803 = vmatprep.subr.bf16.mxu0 0
  %3804 = vmatpush1.bf16.msra.mxu0 0
  %3805 = vmatprep.subr.bf16.mxu0 0
  %3806 = vmatpush1.bf16.msra.mxu0 0
  %3807 = vmatprep.subr.bf16.mxu0 0
  %3808 = vmatpush1.bf16.msra.mxu0 0
  %3809 = vmatprep.subr.bf16.mxu0 0
  %3810 = vmatpush1.bf16.msra.mxu0 0
  %3811 = vmatprep.subr.bf16.mxu0 0
  %3812 = vmatpush1.bf16.msra.mxu0 0
  %3813 = vmatprep.subr.bf16.mxu0 0
  %3814 = vmatpush1.bf16.msra.mxu0 0
  %3815 = vmatprep.subr.bf16.mxu0 0
  %3816 = vmatpush1.bf16.msra.mxu0 0
  %3817 = vmatprep.subr.bf16.mxu0 0
  %3818 = vmatpush1.bf16.msra.mxu0 0
  %3819 = vmatprep.subr.bf16.mxu0 0
  %3820 = vmatpush1.bf16.msra.mxu0 0
  %3821 = vmatprep.subr.bf16.mxu0 0
  %3822 = vmatpush1.bf16.msra.mxu0 0
  %3823 = vmatprep.subr.bf16.mxu0 0
  %3824 = vmatpush1.bf16.msra.mxu0 0
  %3825 = vmatprep.subr.bf16.mxu0 0
  %3826 = vmatpush1.bf16.msra.mxu0 0
  %3827 = vmatprep.mubr.bf16.mxu0 0
  %3828 = vmatmul.mubr.bf16.gmra.mrb[0].mxu0 %v3793
  %v3829 = vpop.f32.mrb[0].mxu0
  %v3830 = vadd.f32 %v265, %v3829
  %v3831 = vpop.f32.mrb[0].mxu0
  %v3832 = vpop.f32.mrb[0].mxu0
  %v3833 = vpop.f32.mrb[0].mxu0
  %3834 = vdwg.mxu0
  %v3835 = vmul.f32 %v3830, 0.020833334
  %v3836 = vadd.f32 %v3743, %v3835
  %v3837 = vpack.c.bf16 %v3836, %v3836
  %v3839 = vsel %vm1223, %v3837, 0
  %3841 = vmatprep.subr.bf16.mxu0 0
  %3842 = vmatpush1.bf16.msra.mxu0 %v1215
  %3843 = vmatprep.subr.bf16.mxu0 0
  %3844 = vmatpush1.bf16.msra.mxu0 %v1216
  %3845 = vmatprep.subr.bf16.mxu0 0
  %3846 = vmatpush1.bf16.msra.mxu0 %v1217
  %3847 = vmatprep.subr.bf16.mxu0 0
  %3848 = vmatpush1.bf16.msra.mxu0 %v1218
  %3849 = vmatprep.subr.bf16.mxu0 0
  %3850 = vmatpush1.bf16.msra.mxu0 0
  %3851 = vmatprep.subr.bf16.mxu0 0
  %3852 = vmatpush1.bf16.msra.mxu0 0
  %3853 = vmatprep.subr.bf16.mxu0 0
  %3854 = vmatpush1.bf16.msra.mxu0 0
  %3855 = vmatprep.subr.bf16.mxu0 0
  %3856 = vmatpush1.bf16.msra.mxu0 0
  %3857 = vmatprep.subr.bf16.mxu0 0
  %3858 = vmatpush1.bf16.msra.mxu0 0
  %3859 = vmatprep.subr.bf16.mxu0 0
  %3860 = vmatpush1.bf16.msra.mxu0 0
  %3861 = vmatprep.subr.bf16.mxu0 0
  %3862 = vmatpush1.bf16.msra.mxu0 0
  %3863 = vmatprep.subr.bf16.mxu0 0
  %3864 = vmatpush1.bf16.msra.mxu0 0
  %3865 = vmatprep.subr.bf16.mxu0 0
  %3866 = vmatpush1.bf16.msra.mxu0 0
  %3867 = vmatprep.subr.bf16.mxu0 0
  %3868 = vmatpush1.bf16.msra.mxu0 0
  %3869 = vmatprep.subr.bf16.mxu0 0
  %3870 = vmatpush1.bf16.msra.mxu0 0
  %3871 = vmatprep.subr.bf16.mxu0 0
  %3872 = vmatpush1.bf16.msra.mxu0 0
  %3873 = vmatprep.mubr.bf16.mxu0 0
  %3874 = vmatmul.mubr.bf16.gmra.mrb[0].mxu0 %v3839
  %v3875 = vpop.f32.mrb[0].mxu0
  %v3876 = vadd.f32 %v258, %v3875
  %v3877 = vpop.f32.mrb[0].mxu0
  %v3878 = vpop.f32.mrb[0].mxu0
  %v3879 = vpop.f32.mrb[0].mxu0
  %3880 = vdwg.mxu0
  %v3881 = vmax.f32 %v3876, 0.0
  %v3882 = vpack.c.bf16 %v3881, %v3881
  %v3884 = vsel %vm1223, %v3882, 0
  %3886 = vmatprep.subr.bf16.mxu0 0
  %3887 = vmatpush1.bf16.msra.mxu0 %v1285
  %3888 = vmatprep.subr.bf16.mxu0 0
  %3889 = vmatpush1.bf16.msra.mxu0 %v1286
  %3890 = vmatprep.subr.bf16.mxu0 0
  %3891 = vmatpush1.bf16.msra.mxu0 %v1287
  %3892 = vmatprep.subr.bf16.mxu0 0
  %3893 = vmatpush1.bf16.msra.mxu0 %v1288
  %3894 = vmatprep.subr.bf16.mxu0 0
  %3895 = vmatpush1.bf16.msra.mxu0 0
  %3896 = vmatprep.subr.bf16.mxu0 0
  %3897 = vmatpush1.bf16.msra.mxu0 0
  %3898 = vmatprep.subr.bf16.mxu0 0
  %3899 = vmatpush1.bf16.msra.mxu0 0
  %3900 = vmatprep.subr.bf16.mxu0 0
  %3901 = vmatpush1.bf16.msra.mxu0 0
  %3902 = vmatprep.subr.bf16.mxu0 0
  %3903 = vmatpush1.bf16.msra.mxu0 0
  %3904 = vmatprep.subr.bf16.mxu0 0
  %3905 = vmatpush1.bf16.msra.mxu0 0
  %3906 = vmatprep.subr.bf16.mxu0 0
  %3907 = vmatpush1.bf16.msra.mxu0 0
  %3908 = vmatprep.subr.bf16.mxu0 0
  %3909 = vmatpush1.bf16.msra.mxu0 0
  %3910 = vmatprep.subr.bf16.mxu0 0
  %3911 = vmatpush1.bf16.msra.mxu0 0
  %3912 = vmatprep.subr.bf16.mxu0 0
  %3913 = vmatpush1.bf16.msra.mxu0 0
  %3914 = vmatprep.subr.bf16.mxu0 0
  %3915 = vmatpush1.bf16.msra.mxu0 0
  %3916 = vmatprep.subr.bf16.mxu0 0
  %3917 = vmatpush1.bf16.msra.mxu0 0
  %3918 = vmatprep.mubr.bf16.mxu0 0
  %3919 = vmatmul.mubr.bf16.gmra.mrb[0].mxu0 %v3884
  %v3920 = vpop.f32.mrb[0].mxu0
  %v3921 = vadd.f32 %v265, %v3920
  %v3922 = vpop.f32.mrb[0].mxu0
  %v3923 = vpop.f32.mrb[0].mxu0
  %v3924 = vpop.f32.mrb[0].mxu0
  %3925 = vdwg.mxu0
  %v3926 = vmul.f32 %v3921, 0.020833334
  %v3927 = vadd.f32 %v3836, %v3926
  %v3928 = vmul.f32 %v3921, 0.0625
  %v3929 = vadd.f32 %v3836, %v3928
  %v3930 = vpack.c.bf16 %v3929, %v3929
  %v3932 = vsel %vm1223, %v3930, 0
  %3934 = vmatprep.subr.bf16.mxu0 0
  %3935 = vmatpush1.bf16.msra.mxu0 %v1215
  %3936 = vmatprep.subr.bf16.mxu0 0
  %3937 = vmatpush1.bf16.msra.mxu0 %v1216
  %3938 = vmatprep.subr.bf16.mxu0 0
  %3939 = vmatpush1.bf16.msra.mxu0 %v1217
  %3940 = vmatprep.subr.bf16.mxu0 0
  %3941 = vmatpush1.bf16.msra.mxu0 %v1218
  %3942 = vmatprep.subr.bf16.mxu0 0
  %3943 = vmatpush1.bf16.msra.mxu0 0
  %3944 = vmatprep.subr.bf16.mxu0 0
  %3945 = vmatpush1.bf16.msra.mxu0 0
  %3946 = vmatprep.subr.bf16.mxu0 0
  %3947 = vmatpush1.bf16.msra.mxu0 0
  %3948 = vmatprep.subr.bf16.mxu0 0
  %3949 = vmatpush1.bf16.msra.mxu0 0
  %3950 = vmatprep.subr.bf16.mxu0 0
  %3951 = vmatpush1.bf16.msra.mxu0 0
  %3952 = vmatprep.subr.bf16.mxu0 0
  %3953 = vmatpush1.bf16.msra.mxu0 0
  %3954 = vmatprep.subr.bf16.mxu0 0
  %3955 = vmatpush1.bf16.msra.mxu0 0
  %3956 = vmatprep.subr.bf16.mxu0 0
  %3957 = vmatpush1.bf16.msra.mxu0 0
  %3958 = vmatprep.subr.bf16.mxu0 0
  %3959 = vmatpush1.bf16.msra.mxu0 0
  %3960 = vmatprep.subr.bf16.mxu0 0
  %3961 = vmatpush1.bf16.msra.mxu0 0
  %3962 = vmatprep.subr.bf16.mxu0 0
  %3963 = vmatpush1.bf16.msra.mxu0 0
  %3964 = vmatprep.subr.bf16.mxu0 0
  %3965 = vmatpush1.bf16.msra.mxu0 0
  %3966 = vmatprep.mubr.bf16.mxu0 0
  %3967 = vmatmul.mubr.bf16.gmra.mrb[0].mxu0 %v3932
  %v3968 = vpop.f32.mrb[0].mxu0
  %v3969 = vadd.f32 %v258, %v3968
  %v3970 = vpop.f32.mrb[0].mxu0
  %v3971 = vpop.f32.mrb[0].mxu0
  %v3972 = vpop.f32.mrb[0].mxu0
  %3973 = vdwg.mxu0
  %v3974 = vmax.f32 %v3969, 0.0
  %v3975 = vpack.c.bf16 %v3974, %v3974
  %v3977 = vsel %vm1223, %v3975, 0
  %3979 = vmatprep.subr.bf16.mxu0 0
  %3980 = vmatpush1.bf16.msra.mxu0 %v1285
  %3981 = vmatprep.subr.bf16.mxu0 0
  %3982 = vmatpush1.bf16.msra.mxu0 %v1286
  %3983 = vmatprep.subr.bf16.mxu0 0
  %3984 = vmatpush1.bf16.msra.mxu0 %v1287
  %3985 = vmatprep.subr.bf16.mxu0 0
  %3986 = vmatpush1.bf16.msra.mxu0 %v1288
  %3987 = vmatprep.subr.bf16.mxu0 0
  %3988 = vmatpush1.bf16.msra.mxu0 0
  %3989 = vmatprep.subr.bf16.mxu0 0
  %3990 = vmatpush1.bf16.msra.mxu0 0
  %3991 = vmatprep.subr.bf16.mxu0 0
  %3992 = vmatpush1.bf16.msra.mxu0 0
  %3993 = vmatprep.subr.bf16.mxu0 0
  %3994 = vmatpush1.bf16.msra.mxu0 0
  %3995 = vmatprep.subr.bf16.mxu0 0
  %3996 = vmatpush1.bf16.msra.mxu0 0
  %3997 = vmatprep.subr.bf16.mxu0 0
  %3998 = vmatpush1.bf16.msra.mxu0 0
  %3999 = vmatprep.subr.bf16.mxu0 0
  %4000 = vmatpush1.bf16.msra.mxu0 0
  %4001 = vmatprep.subr.bf16.mxu0 0
  %4002 = vmatpush1.bf16.msra.mxu0 0
  %4003 = vmatprep.subr.bf16.mxu0 0
  %4004 = vmatpush1.bf16.msra.mxu0 0
  %4005 = vmatprep.subr.bf16.mxu0 0
  %4006 = vmatpush1.bf16.msra.mxu0 0
  %4007 = vmatprep.subr.bf16.mxu0 0
  %4008 = vmatpush1.bf16.msra.mxu0 0
  %4009 = vmatprep.subr.bf16.mxu0 0
  %4010 = vmatpush1.bf16.msra.mxu0 0
  %4011 = vmatprep.mubr.bf16.mxu0 0
  %4012 = vmatmul.mubr.bf16.gmra.mrb[0].mxu0 %v3977
  %v4013 = vpop.f32.mrb[0].mxu0
  %v4014 = vadd.f32 %v265, %v4013
  %v4015 = vpop.f32.mrb[0].mxu0
  %v4016 = vpop.f32.mrb[0].mxu0
  %v4017 = vpop.f32.mrb[0].mxu0
  %4018 = vdwg.mxu0
  %v4019 = vmul.f32 %v4014, 0.041666668
  %v4020 = vadd.f32 %v3927, %v4019
  %v4021 = vmul.f32 %v4014, 0.0625
  %v4022 = vadd.f32 %v3836, %v4021
  %v4023 = vpack.c.bf16 %v4022, %v4022
  %v4025 = vsel %vm1223, %v4023, 0
  %4027 = vmatprep.subr.bf16.mxu0 0
  %4028 = vmatpush1.bf16.msra.mxu0 %v1215
  %4029 = vmatprep.subr.bf16.mxu0 0
  %4030 = vmatpush1.bf16.msra.mxu0 %v1216
  %4031 = vmatprep.subr.bf16.mxu0 0
  %4032 = vmatpush1.bf16.msra.mxu0 %v1217
  %4033 = vmatprep.subr.bf16.mxu0 0
  %4034 = vmatpush1.bf16.msra.mxu0 %v1218
  %4035 = vmatprep.subr.bf16.mxu0 0
  %4036 = vmatpush1.bf16.msra.mxu0 0
  %4037 = vmatprep.subr.bf16.mxu0 0
  %4038 = vmatpush1.bf16.msra.mxu0 0
  %4039 = vmatprep.subr.bf16.mxu0 0
  %4040 = vmatpush1.bf16.msra.mxu0 0
  %4041 = vmatprep.subr.bf16.mxu0 0
  %4042 = vmatpush1.bf16.msra.mxu0 0
  %4043 = vmatprep.subr.bf16.mxu0 0
  %4044 = vmatpush1.bf16.msra.mxu0 0
  %4045 = vmatprep.subr.bf16.mxu0 0
  %4046 = vmatpush1.bf16.msra.mxu0 0
  %4047 = vmatprep.subr.bf16.mxu0 0
  %4048 = vmatpush1.bf16.msra.mxu0 0
  %4049 = vmatprep.subr.bf16.mxu0 0
  %4050 = vmatpush1.bf16.msra.mxu0 0
  %4051 = vmatprep.subr.bf16.mxu0 0
  %4052 = vmatpush1.bf16.msra.mxu0 0
  %4053 = vmatprep.subr.bf16.mxu0 0
  %4054 = vmatpush1.bf16.msra.mxu0 0
  %4055 = vmatprep.subr.bf16.mxu0 0
  %4056 = vmatpush1.bf16.msra.mxu0 0
  %4057 = vmatprep.subr.bf16.mxu0 0
  %4058 = vmatpush1.bf16.msra.mxu0 0
  %4059 = vmatprep.mubr.bf16.mxu0 0
  %4060 = vmatmul.mubr.bf16.gmra.mrb[0].mxu0 %v4025
  %v4061 = vpop.f32.mrb[0].mxu0
  %v4062 = vadd.f32 %v258, %v4061
  %v4063 = vpop.f32.mrb[0].mxu0
  %v4064 = vpop.f32.mrb[0].mxu0
  %v4065 = vpop.f32.mrb[0].mxu0
  %4066 = vdwg.mxu0
  %v4067 = vmax.f32 %v4062, 0.0
  %v4068 = vpack.c.bf16 %v4067, %v4067
  %v4070 = vsel %vm1223, %v4068, 0
  %4072 = vmatprep.subr.bf16.mxu0 0
  %4073 = vmatpush1.bf16.msra.mxu0 %v1285
  %4074 = vmatprep.subr.bf16.mxu0 0
  %4075 = vmatpush1.bf16.msra.mxu0 %v1286
  %4076 = vmatprep.subr.bf16.mxu0 0
  %4077 = vmatpush1.bf16.msra.mxu0 %v1287
  %4078 = vmatprep.subr.bf16.mxu0 0
  %4079 = vmatpush1.bf16.msra.mxu0 %v1288
  %4080 = vmatprep.subr.bf16.mxu0 0
  %4081 = vmatpush1.bf16.msra.mxu0 0
  %4082 = vmatprep.subr.bf16.mxu0 0
  %4083 = vmatpush1.bf16.msra.mxu0 0
  %4084 = vmatprep.subr.bf16.mxu0 0
  %4085 = vmatpush1.bf16.msra.mxu0 0
  %4086 = vmatprep.subr.bf16.mxu0 0
  %4087 = vmatpush1.bf16.msra.mxu0 0
  %4088 = vmatprep.subr.bf16.mxu0 0
  %4089 = vmatpush1.bf16.msra.mxu0 0
  %4090 = vmatprep.subr.bf16.mxu0 0
  %4091 = vmatpush1.bf16.msra.mxu0 0
  %4092 = vmatprep.subr.bf16.mxu0 0
  %4093 = vmatpush1.bf16.msra.mxu0 0
  %4094 = vmatprep.subr.bf16.mxu0 0
  %4095 = vmatpush1.bf16.msra.mxu0 0
  %4096 = vmatprep.subr.bf16.mxu0 0
  %4097 = vmatpush1.bf16.msra.mxu0 0
  %4098 = vmatprep.subr.bf16.mxu0 0
  %4099 = vmatpush1.bf16.msra.mxu0 0
  %4100 = vmatprep.subr.bf16.mxu0 0
  %4101 = vmatpush1.bf16.msra.mxu0 0
  %4102 = vmatprep.subr.bf16.mxu0 0
  %4103 = vmatpush1.bf16.msra.mxu0 0
  %4104 = vmatprep.mubr.bf16.mxu0 0
  %4105 = vmatmul.mubr.bf16.gmra.mrb[0].mxu0 %v4070
  %v4106 = vpop.f32.mrb[0].mxu0
  %v4107 = vadd.f32 %v265, %v4106
  %v4108 = vpop.f32.mrb[0].mxu0
  %v4109 = vpop.f32.mrb[0].mxu0
  %v4110 = vpop.f32.mrb[0].mxu0
  %4111 = vdwg.mxu0
  %v4112 = vmul.f32 %v4107, 0.041666668
  %v4113 = vadd.f32 %v4020, %v4112
  %v4114 = vmul.f32 %v4107, 0.125
  %v4115 = vadd.f32 %v3836, %v4114
  %v4116 = vpack.c.bf16 %v4115, %v4115
  %v4118 = vsel %vm1223, %v4116, 0
  %4120 = vmatprep.subr.bf16.mxu0 0
  %4121 = vmatpush1.bf16.msra.mxu0 %v1215
  %4122 = vmatprep.subr.bf16.mxu0 0
  %4123 = vmatpush1.bf16.msra.mxu0 %v1216
  %4124 = vmatprep.subr.bf16.mxu0 0
  %4125 = vmatpush1.bf16.msra.mxu0 %v1217
  %4126 = vmatprep.subr.bf16.mxu0 0
  %4127 = vmatpush1.bf16.msra.mxu0 %v1218
  %4128 = vmatprep.subr.bf16.mxu0 0
  %4129 = vmatpush1.bf16.msra.mxu0 0
  %4130 = vmatprep.subr.bf16.mxu0 0
  %4131 = vmatpush1.bf16.msra.mxu0 0
  %4132 = vmatprep.subr.bf16.mxu0 0
  %4133 = vmatpush1.bf16.msra.mxu0 0
  %4134 = vmatprep.subr.bf16.mxu0 0
  %4135 = vmatpush1.bf16.msra.mxu0 0
  %4136 = vmatprep.subr.bf16.mxu0 0
  %4137 = vmatpush1.bf16.msra.mxu0 0
  %4138 = vmatprep.subr.bf16.mxu0 0
  %4139 = vmatpush1.bf16.msra.mxu0 0
  %4140 = vmatprep.subr.bf16.mxu0 0
  %4141 = vmatpush1.bf16.msra.mxu0 0
  %4142 = vmatprep.subr.bf16.mxu0 0
  %4143 = vmatpush1.bf16.msra.mxu0 0
  %4144 = vmatprep.subr.bf16.mxu0 0
  %4145 = vmatpush1.bf16.msra.mxu0 0
  %4146 = vmatprep.subr.bf16.mxu0 0
  %4147 = vmatpush1.bf16.msra.mxu0 0
  %4148 = vmatprep.subr.bf16.mxu0 0
  %4149 = vmatpush1.bf16.msra.mxu0 0
  %4150 = vmatprep.subr.bf16.mxu0 0
  %4151 = vmatpush1.bf16.msra.mxu0 0
  %4152 = vmatprep.mubr.bf16.mxu0 0
  %4153 = vmatmul.mubr.bf16.gmra.mrb[0].mxu0 %v4118
  %v4154 = vpop.f32.mrb[0].mxu0
  %v4155 = vadd.f32 %v258, %v4154
  %v4156 = vpop.f32.mrb[0].mxu0
  %v4157 = vpop.f32.mrb[0].mxu0
  %v4158 = vpop.f32.mrb[0].mxu0
  %4159 = vdwg.mxu0
  %v4160 = vmax.f32 %v4155, 0.0
  %v4161 = vpack.c.bf16 %v4160, %v4160
  %v4163 = vsel %vm1223, %v4161, 0
  %4165 = vmatprep.subr.bf16.mxu0 0
  %4166 = vmatpush1.bf16.msra.mxu0 %v1285
  %4167 = vmatprep.subr.bf16.mxu0 0
  %4168 = vmatpush1.bf16.msra.mxu0 %v1286
  %4169 = vmatprep.subr.bf16.mxu0 0
  %4170 = vmatpush1.bf16.msra.mxu0 %v1287
  %4171 = vmatprep.subr.bf16.mxu0 0
  %4172 = vmatpush1.bf16.msra.mxu0 %v1288
  %4173 = vmatprep.subr.bf16.mxu0 0
  %4174 = vmatpush1.bf16.msra.mxu0 0
  %4175 = vmatprep.subr.bf16.mxu0 0
  %4176 = vmatpush1.bf16.msra.mxu0 0
  %4177 = vmatprep.subr.bf16.mxu0 0
  %4178 = vmatpush1.bf16.msra.mxu0 0
  %4179 = vmatprep.subr.bf16.mxu0 0
  %4180 = vmatpush1.bf16.msra.mxu0 0
  %4181 = vmatprep.subr.bf16.mxu0 0
  %4182 = vmatpush1.bf16.msra.mxu0 0
  %4183 = vmatprep.subr.bf16.mxu0 0
  %4184 = vmatpush1.bf16.msra.mxu0 0
  %4185 = vmatprep.subr.bf16.mxu0 0
  %4186 = vmatpush1.bf16.msra.mxu0 0
  %4187 = vmatprep.subr.bf16.mxu0 0
  %4188 = vmatpush1.bf16.msra.mxu0 0
  %4189 = vmatprep.subr.bf16.mxu0 0
  %4190 = vmatpush1.bf16.msra.mxu0 0
  %4191 = vmatprep.subr.bf16.mxu0 0
  %4192 = vmatpush1.bf16.msra.mxu0 0
  %4193 = vmatprep.subr.bf16.mxu0 0
  %4194 = vmatpush1.bf16.msra.mxu0 0
  %4195 = vmatprep.subr.bf16.mxu0 0
  %4196 = vmatpush1.bf16.msra.mxu0 0
  %4197 = vmatprep.mubr.bf16.mxu0 0
  %4198 = vmatmul.mubr.bf16.gmra.mrb[0].mxu0 %v4163
  %v4199 = vpop.f32.mrb[0].mxu0
  %v4200 = vadd.f32 %v265, %v4199
  %v4201 = vpop.f32.mrb[0].mxu0
  %v4202 = vpop.f32.mrb[0].mxu0
  %v4203 = vpop.f32.mrb[0].mxu0
  %4204 = vdwg.mxu0
  %v4205 = vmul.f32 %v4200, 0.020833334
  %v4206 = vadd.f32 %v4113, %v4205
  %v4207 = vpack.c.bf16 %v4206, %v4206
  %v4208 = vld [vmem:[%s8] sm:$0x1]
  %v4210 = vlaneseq
  %v4211 = vshrl.u32 %v4210, 7
  %v4212 = vsub.s32 0, %v4211
  %v4213 = vrot.slane %v4208, %v4212
  %v4223 = vunpack.c.l.b16 %v245
  %v4224 = vunpack.c.l.b16 %v246
  %v4225 = vunpack.c.l.b16 %v247
  %v4226 = vunpack.c.l.b16 %v248
  %v4227 = vunpack.c.l.b16 %v249
  %v4228 = vunpack.c.l.b16 %v250
  %v4229 = vunpack.c.l.b16 %v251
  %v4230 = vunpack.c.l.b16 %v252
  %v4231 = vpack.c.b16 %v4224, %v4223
  %v4232 = vpack.c.b16 %v4226, %v4225
  %v4233 = vpack.c.b16 %v4228, %v4227
  %v4234 = vpack.c.b16 %v4230, %v4229
  %v4240 = vsel %vm1223, %v4207, 0
  %4242 = vmatprep.subr.bf16.mxu0 0
  %4243 = vmatpush1.bf16.msra.mxu0 %v4231
  %4244 = vmatprep.subr.bf16.mxu0 0
  %4245 = vmatpush1.bf16.msra.mxu0 %v4232
  %4246 = vmatprep.subr.bf16.mxu0 0
  %4247 = vmatpush1.bf16.msra.mxu0 %v4233
  %4248 = vmatprep.subr.bf16.mxu0 0
  %4249 = vmatpush1.bf16.msra.mxu0 %v4234
  %4250 = vmatprep.subr.bf16.mxu0 0
  %4251 = vmatpush1.bf16.msra.mxu0 0
  %4252 = vmatprep.subr.bf16.mxu0 0
  %4253 = vmatpush1.bf16.msra.mxu0 0
  %4254 = vmatprep.subr.bf16.mxu0 0
  %4255 = vmatpush1.bf16.msra.mxu0 0
  %4256 = vmatprep.subr.bf16.mxu0 0
  %4257 = vmatpush1.bf16.msra.mxu0 0
  %4258 = vmatprep.subr.bf16.mxu0 0
  %4259 = vmatpush1.bf16.msra.mxu0 0
  %4260 = vmatprep.subr.bf16.mxu0 0
  %4261 = vmatpush1.bf16.msra.mxu0 0
  %4262 = vmatprep.subr.bf16.mxu0 0
  %4263 = vmatpush1.bf16.msra.mxu0 0
  %4264 = vmatprep.subr.bf16.mxu0 0
  %4265 = vmatpush1.bf16.msra.mxu0 0
  %4266 = vmatprep.subr.bf16.mxu0 0
  %4267 = vmatpush1.bf16.msra.mxu0 0
  %4268 = vmatprep.subr.bf16.mxu0 0
  %4269 = vmatpush1.bf16.msra.mxu0 0
  %4270 = vmatprep.subr.bf16.mxu0 0
  %4271 = vmatpush1.bf16.msra.mxu0 0
  %4272 = vmatprep.subr.bf16.mxu0 0
  %4273 = vmatpush1.bf16.msra.mxu0 0
  %4274 = vmatprep.mubr.bf16.mxu0 0
  %4275 = vmatmul.mubr.bf16.gmra.mrb[0].mxu0 %v4240
  %v4276 = vpop.f32.mrb[0].mxu0
  %v4277 = vadd.f32 %v4213, %v4276
  %v4278 = vpop.f32.mrb[0].mxu0
  %v4279 = vpop.f32.mrb[0].mxu0
  %v4280 = vpop.f32.mrb[0].mxu0
  %4281 = vdwg.mxu0
  %4282 = vst [vmem:[%s9] sm:$0xff] %v4277
  // Predicated region
  $region38: #{neural_ode_mnist_forward.5} parent=0 // pred_check
    _
  $region39: #{neural_ode_mnist_forward.5} parent=0 // pred_check_branch
    %4284 = sbr.rel (0) target = $region41
  $region40: #{neural_ode_mnist_forward.5} parent=0 // pred_region
    _
  $region41: #{neural_ode_mnist_forward.5} parent=0 // pred_fallthru
    _
  // Predicated region
  $region42: #{neural_ode_mnist_forward.5} parent=0 // pred_check
    _
  $region43: #{neural_ode_mnist_forward.5} parent=0 // pred_check_branch
    %4286 = sbr.rel (0) target = $region45
  $region44: #{neural_ode_mnist_forward.5} parent=0 // pred_region
    _
  $region45: #{neural_ode_mnist_forward.5} parent=0 // pred_fallthru
    _

</llo_original>
